<compile_context>
chip_gen: v6e
topology: v6e:2x2x1
jax: 0.10.0
libtpu: 0.0.40
codegen_flags: <defaults>
</compile_context>

<pallas_src>
import math

import jax
import jax.numpy as jnp
import numpy as np
from jax.experimental import pallas as pl
from jax.experimental.pallas import tpu as pltpu


def neural_ode_kernel(dt_ref,     # SMEM (T_pad,) f32  -- scalar-prefetched dt per step
                      x0_ref,     # VMEM (B, D)        -- initial state
                      cur_ref,    # VMEM (1, B, TS)    -- shifted current, chunk k
                      w1x_ref,    # VMEM (D, H)
                      w1i_ref,    # VMEM (1, H)
                      b1_ref,     # VMEM (1, H)
                      w2_ref,     # VMEM (H, D)
                      b2_ref,     # VMEM (1, D)
                      out_ref,    # VMEM (B, TS*D)     -- lane-dense output block k
                      xstate):    # VMEM scratch (B, D) f32, persists across grid
    k = pl.program_id(0)
    B, D = xstate.shape
    TS = cur_ref.shape[2]
    f32 = jnp.float32

    # odeint initial condition.
    @pl.when(k == 0)
    def _():
        xstate[...] = x0_ref[...].astype(f32)

    # State as a value: stays in vregs for all TS steps, one writeback at end.
    x = xstate[...]

    # Weights/biases: one load per chunk (don't rely on CSE across the unroll).
    w1x = w1x_ref[...]
    w1i = w1i_ref[...]
    b1 = b1_ref[...]
    w2 = w2_ref[...]
    b2 = b2_ref[...]

    # Per-chunk precompute of the current/bias contribution to layer 1.
    # Independent of x -> off the serial recurrence, overlaps with the steps.
    cur_blk = cur_ref[0].astype(f32)                               # (B, TS)
    pres = [cur_blk[:, s:s + 1] * w1i + b1 for s in range(TS)]     # TS x (B, H)

    # TS Euler steps, fully unrolled (static step index -> static slices).
    for s in range(TS):
        # Global step g = k*TS + s:  x_g = x_{g-1} + dt[g] * f(x_{g-1}, I_{g-1}).
        # dt[0] == 0 and all padded-tail dts == 0, so those steps are exact
        # no-ops; no pl.when guard needed (keeps x a pure carried value).
        dt = dt_ref[k * TS + s]
        h = jnp.tanh(jnp.dot(x, w1x, preferred_element_type=f32) + pres[s])
        f = jnp.dot(h, w2, preferred_element_type=f32) + b2
        x = x + dt * f

        # Emit x_{k*TS+s}; the store does not feed the recurrence, so it
        # overlaps with the next step's compute.
        out_ref[:, s * D:(s + 1) * D] = x.astype(out_ref.dtype)

    xstate[...] = x


def _pick_chunk_steps(D, T, *, target_steps=64, max_single_chunk=256):
    """Euler steps per grid iteration.

    TS is a multiple of 128/gcd(D,128) so each output block is a lane-dense
    multiple of 128.  Small T -> one chunk (grid=(1,)); large T -> TS near
    `target_steps`, minimizing zero-dt tail padding.
    """
    base = 128 // math.gcd(D, 128)
    single = base * (-(-T // base))
    if single <= max_single_chunk:
        return single
    lo = max(1, target_steps // base)
    hi = max(lo, (2 * target_steps) // base)
    best_ts, best_pad = None, None
    for m in range(lo, hi + 1):
        ts = base * m
        pad = (-T) % ts
        if best_pad is None or pad < best_pad:
            best_ts, best_pad = ts, pad
    return best_ts


def neural_ode_forward(x0, current_profile, t, params):
    """Pallas NeuralODE.forward: returns (B, T, D), matching out.permute(1,0,2)."""
    B, D = x0.shape
    T = t.shape[0]
    H = params["w1x"].shape[1]
    f32 = jnp.float32

    TS = _pick_chunk_steps(D, T)                 # Euler steps per grid iteration
    NC = -(-T // TS)                             # number of chunks
    T_pad = NC * TS
    assert (TS * D) % 128 == 0, (TS, D)

    t = t.astype(f32)

    # dt[g] = t[g] - t[g-1] for 1 <= g < T; dt[0] and padded steps are exactly 0
    # (a zero-dt Euler step leaves the state unchanged -> no in-kernel guard).
    dt = jnp.zeros((T_pad,), f32).at[1:T].set(t[1:] - t[:-1])

    # Shifted current: step g uses I_{g-1}.  Chunked to (NC, B, TS) so the
    # pipeline streams one chunk per grid iteration.
    cur_bt = jnp.zeros((B, T_pad), f32).at[:, 1:T].set(
        current_profile.astype(f32)[:, :T - 1])
    cur_c = jnp.transpose(cur_bt.reshape(B, NC, TS), (1, 0, 2))  # (NC, B, TS)

    out_flat = pl.pallas_call(
        neural_ode_kernel,
        # Output written directly in the caller's dtype (no wrapper cast pass).
        out_shape=jax.ShapeDtypeStruct((B, T_pad * D), x0.dtype),
        grid_spec=pltpu.PrefetchScalarGridSpec(
            num_scalar_prefetch=1,               # dt -> SMEM
            grid=(NC,),
            in_specs=[
                pl.BlockSpec((B, D), lambda k, dt: (0, 0)),
                pl.BlockSpec((1, B, TS), lambda k, dt: (k, 0, 0)),
                pl.BlockSpec((D, H), lambda k, dt: (0, 0)),
                pl.BlockSpec((1, H), lambda k, dt: (0, 0)),
                pl.BlockSpec((1, H), lambda k, dt: (0, 0)),
                pl.BlockSpec((H, D), lambda k, dt: (0, 0)),
                pl.BlockSpec((1, D), lambda k, dt: (0, 0)),
            ],
            out_specs=pl.BlockSpec((B, TS * D), lambda k, dt: (0, k)),
            scratch_shapes=[pltpu.VMEM((B, D), f32)],
        ),
        compiler_params=pltpu.CompilerParams(
            dimension_semantics=("arbitrary",)),  # sequential time recurrence
    )(dt, x0.astype(f32), cur_c,
      params["w1x"].astype(f32), params["w1i"].astype(f32),
      params["b1"].astype(f32), params["w2"].astype(f32),
      params["b2"].astype(f32))

    # Free (contiguous) reshape + trim time padding -> (B, T, D).
    return out_flat.reshape(B, T_pad, D)[:, :T, :]


def neural_ode_reference(x0, current_profile, t, params):
    """Pure-JAX reference of odeint(..., method='euler') + permute(1,0,2)."""
    def f(x, i):
        h = jnp.tanh(x @ params["w1x"] + i * params["w1i"] + params["b1"])
        return h @ params["w2"] + params["b2"]

    xs = [x0]
    x = x0
    for k in range(1, t.shape[0]):
        dtk = t[k] - t[k - 1]
        x = x + dtk * f(x, current_profile[:, k - 1:k])
        xs.append(x)
    out = jnp.stack(xs, axis=0)                   # (T, B, D)
    return jnp.transpose(out, (1, 0, 2))


if __name__ == "__main__":
    B, D, H, T = 2, 8, 32, 40                     # TS=48, single chunk, grid=(1,)

    key = jax.random.PRNGKey(0)
    k_x0, k_cur, k_w1, k_wi, k_b1, k_w2, k_b2 = jax.random.split(key, 7)

    x0 = jax.random.normal(k_x0, (B, D), dtype=jnp.float32)
    current_profile = jax.random.normal(k_cur, (B, T), dtype=jnp.float32)
    t = jnp.linspace(0.0, 1.0, T, dtype=jnp.float32)

    params = {
        "w1x": 0.1 * jax.random.normal(k_w1, (D, H), dtype=jnp.float32),
        "w1i": 0.1 * jax.random.normal(k_wi, (1, H), dtype=jnp.float32),
        "b1":  0.1 * jax.random.normal(k_b1, (1, H), dtype=jnp.float32),
        "w2":  0.1 * jax.random.normal(k_w2, (H, D), dtype=jnp.float32),
        "b2":  0.1 * jax.random.normal(k_b2, (1, D), dtype=jnp.float32),
    }

    out = neural_ode_forward(x0, current_profile, t, params)
    out = jax.block_until_ready(out)

    ref = neural_ode_reference(x0, current_profile, t, params)
    assert out.shape == (B, T, D), out.shape
    np.testing.assert_allclose(np.asarray(out), np.asarray(ref),
                               rtol=1e-4, atol=1e-4)

    print("KERNEL_OK")
</pallas_src>

<mosaic_0001>
module attributes {stable_mosaic.version = 11 : i64} {
  func.func @neural_ode_kernel(%arg0: i32, %arg1: memref<48xf32, #tpu.memory_space<smem>>, %arg2: memref<2x8xf32, #tpu.memory_space<vmem>>, %arg3: memref<1x2x48xf32, #tpu.memory_space<vmem>>, %arg4: memref<8x32xf32, #tpu.memory_space<vmem>>, %arg5: memref<1x32xf32, #tpu.memory_space<vmem>>, %arg6: memref<1x32xf32, #tpu.memory_space<vmem>>, %arg7: memref<32x8xf32, #tpu.memory_space<vmem>>, %arg8: memref<1x8xf32, #tpu.memory_space<vmem>>, %arg9: memref<2x384xf32, #tpu.memory_space<vmem>>, %arg10: memref<2x8xf32, #tpu.memory_space<vmem>>) attributes {dimension_semantics = [#tpu.dimension_semantics<arbitrary>], iteration_bounds = array<i64: 1>, scalar_prefetch = 1 : i64, scratch_operands = 1 : i64, tpu.core_type = #tpu.core_type<tc>, window_params = [{pipeline_mode = #tpu.pipeline_mode<synchronous>, transform_indices = @transform_0, window_bounds = array<i64: 2, 8>}, {transform_indices = @transform_1, window_bounds = array<i64: 1, 2, 48>}, {pipeline_mode = #tpu.pipeline_mode<synchronous>, transform_indices = @transform_2, window_bounds = array<i64: 8, 32>}, {pipeline_mode = #tpu.pipeline_mode<synchronous>, transform_indices = @transform_3, window_bounds = array<i64: 1, 32>}, {pipeline_mode = #tpu.pipeline_mode<synchronous>, transform_indices = @transform_4, window_bounds = array<i64: 1, 32>}, {pipeline_mode = #tpu.pipeline_mode<synchronous>, transform_indices = @transform_5, window_bounds = array<i64: 32, 8>}, {pipeline_mode = #tpu.pipeline_mode<synchronous>, transform_indices = @transform_6, window_bounds = array<i64: 1, 8>}, {transform_indices = @transform_7, window_bounds = array<i64: 2, 384>}]} {
    %c0_i32 = arith.constant 0 : i32
    %0 = arith.cmpi eq, %arg0, %c0_i32 : i32
    %1 = arith.extui %0 : i1 to i32
    %c0_i32_0 = arith.constant 0 : i32
    %2 = arith.cmpi ne, %1, %c0_i32_0 : i32
    scf.if %2 {
      %c0_209 = arith.constant 0 : index
      %c0_210 = arith.constant 0 : index
      %972 = vector.load %arg2[%c0_209, %c0_210] : memref<2x8xf32, #tpu.memory_space<vmem>>, vector<2x8xf32>
      %c0_211 = arith.constant 0 : index
      %c0_212 = arith.constant 0 : index
      %973 = vector.load %arg10[%c0_211, %c0_212] : memref<2x8xf32, #tpu.memory_space<vmem>>, vector<2x8xf32>
      tpu.vector_store %arg10[%c0_211, %c0_212], %972 {strides = array<i32>} : memref<2x8xf32, #tpu.memory_space<vmem>>, vector<2x8xf32>,
    } else {
    }
    %c0 = arith.constant 0 : index
    %c0_1 = arith.constant 0 : index
    %3 = vector.load %arg10[%c0, %c0_1] : memref<2x8xf32, #tpu.memory_space<vmem>>, vector<2x8xf32>
    %c0_2 = arith.constant 0 : index
    %c0_3 = arith.constant 0 : index
    %4 = vector.load %arg4[%c0_2, %c0_3] : memref<8x32xf32, #tpu.memory_space<vmem>>, vector<8x32xf32>
    %c0_4 = arith.constant 0 : index
    %c0_5 = arith.constant 0 : index
    %5 = vector.load %arg5[%c0_4, %c0_5] : memref<1x32xf32, #tpu.memory_space<vmem>>, vector<1x32xf32>
    %c0_6 = arith.constant 0 : index
    %c0_7 = arith.constant 0 : index
    %6 = vector.load %arg6[%c0_6, %c0_7] : memref<1x32xf32, #tpu.memory_space<vmem>>, vector<1x32xf32>
    %c0_8 = arith.constant 0 : index
    %c0_9 = arith.constant 0 : index
    %7 = vector.load %arg7[%c0_8, %c0_9] : memref<32x8xf32, #tpu.memory_space<vmem>>, vector<32x8xf32>
    %c0_10 = arith.constant 0 : index
    %c0_11 = arith.constant 0 : index
    %8 = vector.load %arg8[%c0_10, %c0_11] : memref<1x8xf32, #tpu.memory_space<vmem>>, vector<1x8xf32>
    %c0_12 = arith.constant 0 : index
    %c0_13 = arith.constant 0 : index
    %c0_14 = arith.constant 0 : index
    %9 = vector.load %arg3[%c0_12, %c0_13, %c0_14] : memref<1x2x48xf32, #tpu.memory_space<vmem>>, vector<1x2x48xf32>
    %10 = vector.shape_cast %9 : vector<1x2x48xf32> to vector<2x48xf32>
    %11 = vector.extract_strided_slice %10 {offsets = [0, 0], sizes = [2, 1], strides = [1, 1]} : vector<2x48xf32> to vector<2x1xf32>
    %12 = vector.broadcast %11 : vector<2x1xf32> to vector<2x32xf32>
    %13 = vector.broadcast %5 : vector<1x32xf32> to vector<2x32xf32>
    %14 = arith.mulf %12, %13 : vector<2x32xf32>
    %15 = vector.broadcast %6 : vector<1x32xf32> to vector<2x32xf32>
    %16 = arith.addf %14, %15 : vector<2x32xf32>
    %17 = vector.extract_strided_slice %10 {offsets = [0, 1], sizes = [2, 1], strides = [1, 1]} : vector<2x48xf32> to vector<2x1xf32>
    %18 = vector.broadcast %17 : vector<2x1xf32> to vector<2x32xf32>
    %19 = vector.broadcast %5 : vector<1x32xf32> to vector<2x32xf32>
    %20 = arith.mulf %18, %19 : vector<2x32xf32>
    %21 = vector.broadcast %6 : vector<1x32xf32> to vector<2x32xf32>
    %22 = arith.addf %20, %21 : vector<2x32xf32>
    %23 = vector.extract_strided_slice %10 {offsets = [0, 2], sizes = [2, 1], strides = [1, 1]} : vector<2x48xf32> to vector<2x1xf32>
    %24 = vector.broadcast %23 : vector<2x1xf32> to vector<2x32xf32>
    %25 = vector.broadcast %5 : vector<1x32xf32> to vector<2x32xf32>
    %26 = arith.mulf %24, %25 : vector<2x32xf32>
    %27 = vector.broadcast %6 : vector<1x32xf32> to vector<2x32xf32>
    %28 = arith.addf %26, %27 : vector<2x32xf32>
    %29 = vector.extract_strided_slice %10 {offsets = [0, 3], sizes = [2, 1], strides = [1, 1]} : vector<2x48xf32> to vector<2x1xf32>
    %30 = vector.broadcast %29 : vector<2x1xf32> to vector<2x32xf32>
    %31 = vector.broadcast %5 : vector<1x32xf32> to vector<2x32xf32>
    %32 = arith.mulf %30, %31 : vector<2x32xf32>
    %33 = vector.broadcast %6 : vector<1x32xf32> to vector<2x32xf32>
    %34 = arith.addf %32, %33 : vector<2x32xf32>
    %35 = vector.extract_strided_slice %10 {offsets = [0, 4], sizes = [2, 1], strides = [1, 1]} : vector<2x48xf32> to vector<2x1xf32>
    %36 = vector.broadcast %35 : vector<2x1xf32> to vector<2x32xf32>
    %37 = vector.broadcast %5 : vector<1x32xf32> to vector<2x32xf32>
    %38 = arith.mulf %36, %37 : vector<2x32xf32>
    %39 = vector.broadcast %6 : vector<1x32xf32> to vector<2x32xf32>
    %40 = arith.addf %38, %39 : vector<2x32xf32>
    %41 = vector.extract_strided_slice %10 {offsets = [0, 5], sizes = [2, 1], strides = [1, 1]} : vector<2x48xf32> to vector<2x1xf32>
    %42 = vector.broadcast %41 : vector<2x1xf32> to vector<2x32xf32>
    %43 = vector.broadcast %5 : vector<1x32xf32> to vector<2x32xf32>
    %44 = arith.mulf %42, %43 : vector<2x32xf32>
    %45 = vector.broadcast %6 : vector<1x32xf32> to vector<2x32xf32>
    %46 = arith.addf %44, %45 : vector<2x32xf32>
    %47 = vector.extract_strided_slice %10 {offsets = [0, 6], sizes = [2, 1], strides = [1, 1]} : vector<2x48xf32> to vector<2x1xf32>
    %48 = vector.broadcast %47 : vector<2x1xf32> to vector<2x32xf32>
    %49 = vector.broadcast %5 : vector<1x32xf32> to vector<2x32xf32>
    %50 = arith.mulf %48, %49 : vector<2x32xf32>
    %51 = vector.broadcast %6 : vector<1x32xf32> to vector<2x32xf32>
    %52 = arith.addf %50, %51 : vector<2x32xf32>
    %53 = vector.extract_strided_slice %10 {offsets = [0, 7], sizes = [2, 1], strides = [1, 1]} : vector<2x48xf32> to vector<2x1xf32>
    %54 = vector.broadcast %53 : vector<2x1xf32> to vector<2x32xf32>
    %55 = vector.broadcast %5 : vector<1x32xf32> to vector<2x32xf32>
    %56 = arith.mulf %54, %55 : vector<2x32xf32>
    %57 = vector.broadcast %6 : vector<1x32xf32> to vector<2x32xf32>
    %58 = arith.addf %56, %57 : vector<2x32xf32>
    %59 = vector.extract_strided_slice %10 {offsets = [0, 8], sizes = [2, 1], strides = [1, 1]} : vector<2x48xf32> to vector<2x1xf32>
    %60 = vector.broadcast %59 : vector<2x1xf32> to vector<2x32xf32>
    %61 = vector.broadcast %5 : vector<1x32xf32> to vector<2x32xf32>
    %62 = arith.mulf %60, %61 : vector<2x32xf32>
    %63 = vector.broadcast %6 : vector<1x32xf32> to vector<2x32xf32>
    %64 = arith.addf %62, %63 : vector<2x32xf32>
    %65 = vector.extract_strided_slice %10 {offsets = [0, 9], sizes = [2, 1], strides = [1, 1]} : vector<2x48xf32> to vector<2x1xf32>
    %66 = vector.broadcast %65 : vector<2x1xf32> to vector<2x32xf32>
    %67 = vector.broadcast %5 : vector<1x32xf32> to vector<2x32xf32>
    %68 = arith.mulf %66, %67 : vector<2x32xf32>
    %69 = vector.broadcast %6 : vector<1x32xf32> to vector<2x32xf32>
    %70 = arith.addf %68, %69 : vector<2x32xf32>
    %71 = vector.extract_strided_slice %10 {offsets = [0, 10], sizes = [2, 1], strides = [1, 1]} : vector<2x48xf32> to vector<2x1xf32>
    %72 = vector.broadcast %71 : vector<2x1xf32> to vector<2x32xf32>
    %73 = vector.broadcast %5 : vector<1x32xf32> to vector<2x32xf32>
    %74 = arith.mulf %72, %73 : vector<2x32xf32>
    %75 = vector.broadcast %6 : vector<1x32xf32> to vector<2x32xf32>
    %76 = arith.addf %74, %75 : vector<2x32xf32>
    %77 = vector.extract_strided_slice %10 {offsets = [0, 11], sizes = [2, 1], strides = [1, 1]} : vector<2x48xf32> to vector<2x1xf32>
    %78 = vector.broadcast %77 : vector<2x1xf32> to vector<2x32xf32>
    %79 = vector.broadcast %5 : vector<1x32xf32> to vector<2x32xf32>
    %80 = arith.mulf %78, %79 : vector<2x32xf32>
    %81 = vector.broadcast %6 : vector<1x32xf32> to vector<2x32xf32>
    %82 = arith.addf %80, %81 : vector<2x32xf32>
    %83 = vector.extract_strided_slice %10 {offsets = [0, 12], sizes = [2, 1], strides = [1, 1]} : vector<2x48xf32> to vector<2x1xf32>
    %84 = vector.broadcast %83 : vector<2x1xf32> to vector<2x32xf32>
    %85 = vector.broadcast %5 : vector<1x32xf32> to vector<2x32xf32>
    %86 = arith.mulf %84, %85 : vector<2x32xf32>
    %87 = vector.broadcast %6 : vector<1x32xf32> to vector<2x32xf32>
    %88 = arith.addf %86, %87 : vector<2x32xf32>
    %89 = vector.extract_strided_slice %10 {offsets = [0, 13], sizes = [2, 1], strides = [1, 1]} : vector<2x48xf32> to vector<2x1xf32>
    %90 = vector.broadcast %89 : vector<2x1xf32> to vector<2x32xf32>
    %91 = vector.broadcast %5 : vector<1x32xf32> to vector<2x32xf32>
    %92 = arith.mulf %90, %91 : vector<2x32xf32>
    %93 = vector.broadcast %6 : vector<1x32xf32> to vector<2x32xf32>
    %94 = arith.addf %92, %93 : vector<2x32xf32>
    %95 = vector.extract_strided_slice %10 {offsets = [0, 14], sizes = [2, 1], strides = [1, 1]} : vector<2x48xf32> to vector<2x1xf32>
    %96 = vector.broadcast %95 : vector<2x1xf32> to vector<2x32xf32>
    %97 = vector.broadcast %5 : vector<1x32xf32> to vector<2x32xf32>
    %98 = arith.mulf %96, %97 : vector<2x32xf32>
    %99 = vector.broadcast %6 : vector<1x32xf32> to vector<2x32xf32>
    %100 = arith.addf %98, %99 : vector<2x32xf32>
    %101 = vector.extract_strided_slice %10 {offsets = [0, 15], sizes = [2, 1], strides = [1, 1]} : vector<2x48xf32> to vector<2x1xf32>
    %102 = vector.broadcast %101 : vector<2x1xf32> to vector<2x32xf32>
    %103 = vector.broadcast %5 : vector<1x32xf32> to vector<2x32xf32>
    %104 = arith.mulf %102, %103 : vector<2x32xf32>
    %105 = vector.broadcast %6 : vector<1x32xf32> to vector<2x32xf32>
    %106 = arith.addf %104, %105 : vector<2x32xf32>
    %107 = vector.extract_strided_slice %10 {offsets = [0, 16], sizes = [2, 1], strides = [1, 1]} : vector<2x48xf32> to vector<2x1xf32>
    %108 = vector.broadcast %107 : vector<2x1xf32> to vector<2x32xf32>
    %109 = vector.broadcast %5 : vector<1x32xf32> to vector<2x32xf32>
    %110 = arith.mulf %108, %109 : vector<2x32xf32>
    %111 = vector.broadcast %6 : vector<1x32xf32> to vector<2x32xf32>
    %112 = arith.addf %110, %111 : vector<2x32xf32>
    %113 = vector.extract_strided_slice %10 {offsets = [0, 17], sizes = [2, 1], strides = [1, 1]} : vector<2x48xf32> to vector<2x1xf32>
    %114 = vector.broadcast %113 : vector<2x1xf32> to vector<2x32xf32>
    %115 = vector.broadcast %5 : vector<1x32xf32> to vector<2x32xf32>
    %116 = arith.mulf %114, %115 : vector<2x32xf32>
    %117 = vector.broadcast %6 : vector<1x32xf32> to vector<2x32xf32>
    %118 = arith.addf %116, %117 : vector<2x32xf32>
    %119 = vector.extract_strided_slice %10 {offsets = [0, 18], sizes = [2, 1], strides = [1, 1]} : vector<2x48xf32> to vector<2x1xf32>
    %120 = vector.broadcast %119 : vector<2x1xf32> to vector<2x32xf32>
    %121 = vector.broadcast %5 : vector<1x32xf32> to vector<2x32xf32>
    %122 = arith.mulf %120, %121 : vector<2x32xf32>
    %123 = vector.broadcast %6 : vector<1x32xf32> to vector<2x32xf32>
    %124 = arith.addf %122, %123 : vector<2x32xf32>
    %125 = vector.extract_strided_slice %10 {offsets = [0, 19], sizes = [2, 1], strides = [1, 1]} : vector<2x48xf32> to vector<2x1xf32>
    %126 = vector.broadcast %125 : vector<2x1xf32> to vector<2x32xf32>
    %127 = vector.broadcast %5 : vector<1x32xf32> to vector<2x32xf32>
    %128 = arith.mulf %126, %127 : vector<2x32xf32>
    %129 = vector.broadcast %6 : vector<1x32xf32> to vector<2x32xf32>
    %130 = arith.addf %128, %129 : vector<2x32xf32>
    %131 = vector.extract_strided_slice %10 {offsets = [0, 20], sizes = [2, 1], strides = [1, 1]} : vector<2x48xf32> to vector<2x1xf32>
    %132 = vector.broadcast %131 : vector<2x1xf32> to vector<2x32xf32>
    %133 = vector.broadcast %5 : vector<1x32xf32> to vector<2x32xf32>
    %134 = arith.mulf %132, %133 : vector<2x32xf32>
    %135 = vector.broadcast %6 : vector<1x32xf32> to vector<2x32xf32>
    %136 = arith.addf %134, %135 : vector<2x32xf32>
    %137 = vector.extract_strided_slice %10 {offsets = [0, 21], sizes = [2, 1], strides = [1, 1]} : vector<2x48xf32> to vector<2x1xf32>
    %138 = vector.broadcast %137 : vector<2x1xf32> to vector<2x32xf32>
    %139 = vector.broadcast %5 : vector<1x32xf32> to vector<2x32xf32>
    %140 = arith.mulf %138, %139 : vector<2x32xf32>
    %141 = vector.broadcast %6 : vector<1x32xf32> to vector<2x32xf32>
    %142 = arith.addf %140, %141 : vector<2x32xf32>
    %143 = vector.extract_strided_slice %10 {offsets = [0, 22], sizes = [2, 1], strides = [1, 1]} : vector<2x48xf32> to vector<2x1xf32>
    %144 = vector.broadcast %143 : vector<2x1xf32> to vector<2x32xf32>
    %145 = vector.broadcast %5 : vector<1x32xf32> to vector<2x32xf32>
    %146 = arith.mulf %144, %145 : vector<2x32xf32>
    %147 = vector.broadcast %6 : vector<1x32xf32> to vector<2x32xf32>
    %148 = arith.addf %146, %147 : vector<2x32xf32>
    %149 = vector.extract_strided_slice %10 {offsets = [0, 23], sizes = [2, 1], strides = [1, 1]} : vector<2x48xf32> to vector<2x1xf32>
    %150 = vector.broadcast %149 : vector<2x1xf32> to vector<2x32xf32>
    %151 = vector.broadcast %5 : vector<1x32xf32> to vector<2x32xf32>
    %152 = arith.mulf %150, %151 : vector<2x32xf32>
    %153 = vector.broadcast %6 : vector<1x32xf32> to vector<2x32xf32>
    %154 = arith.addf %152, %153 : vector<2x32xf32>
    %155 = vector.extract_strided_slice %10 {offsets = [0, 24], sizes = [2, 1], strides = [1, 1]} : vector<2x48xf32> to vector<2x1xf32>
    %156 = vector.broadcast %155 : vector<2x1xf32> to vector<2x32xf32>
    %157 = vector.broadcast %5 : vector<1x32xf32> to vector<2x32xf32>
    %158 = arith.mulf %156, %157 : vector<2x32xf32>
    %159 = vector.broadcast %6 : vector<1x32xf32> to vector<2x32xf32>
    %160 = arith.addf %158, %159 : vector<2x32xf32>
    %161 = vector.extract_strided_slice %10 {offsets = [0, 25], sizes = [2, 1], strides = [1, 1]} : vector<2x48xf32> to vector<2x1xf32>
    %162 = vector.broadcast %161 : vector<2x1xf32> to vector<2x32xf32>
    %163 = vector.broadcast %5 : vector<1x32xf32> to vector<2x32xf32>
    %164 = arith.mulf %162, %163 : vector<2x32xf32>
    %165 = vector.broadcast %6 : vector<1x32xf32> to vector<2x32xf32>
    %166 = arith.addf %164, %165 : vector<2x32xf32>
    %167 = vector.extract_strided_slice %10 {offsets = [0, 26], sizes = [2, 1], strides = [1, 1]} : vector<2x48xf32> to vector<2x1xf32>
    %168 = vector.broadcast %167 : vector<2x1xf32> to vector<2x32xf32>
    %169 = vector.broadcast %5 : vector<1x32xf32> to vector<2x32xf32>
    %170 = arith.mulf %168, %169 : vector<2x32xf32>
    %171 = vector.broadcast %6 : vector<1x32xf32> to vector<2x32xf32>
    %172 = arith.addf %170, %171 : vector<2x32xf32>
    %173 = vector.extract_strided_slice %10 {offsets = [0, 27], sizes = [2, 1], strides = [1, 1]} : vector<2x48xf32> to vector<2x1xf32>
    %174 = vector.broadcast %173 : vector<2x1xf32> to vector<2x32xf32>
    %175 = vector.broadcast %5 : vector<1x32xf32> to vector<2x32xf32>
    %176 = arith.mulf %174, %175 : vector<2x32xf32>
    %177 = vector.broadcast %6 : vector<1x32xf32> to vector<2x32xf32>
    %178 = arith.addf %176, %177 : vector<2x32xf32>
    %179 = vector.extract_strided_slice %10 {offsets = [0, 28], sizes = [2, 1], strides = [1, 1]} : vector<2x48xf32> to vector<2x1xf32>
    %180 = vector.broadcast %179 : vector<2x1xf32> to vector<2x32xf32>
    %181 = vector.broadcast %5 : vector<1x32xf32> to vector<2x32xf32>
    %182 = arith.mulf %180, %181 : vector<2x32xf32>
    %183 = vector.broadcast %6 : vector<1x32xf32> to vector<2x32xf32>
    %184 = arith.addf %182, %183 : vector<2x32xf32>
    %185 = vector.extract_strided_slice %10 {offsets = [0, 29], sizes = [2, 1], strides = [1, 1]} : vector<2x48xf32> to vector<2x1xf32>
    %186 = vector.broadcast %185 : vector<2x1xf32> to vector<2x32xf32>
    %187 = vector.broadcast %5 : vector<1x32xf32> to vector<2x32xf32>
    %188 = arith.mulf %186, %187 : vector<2x32xf32>
    %189 = vector.broadcast %6 : vector<1x32xf32> to vector<2x32xf32>
    %190 = arith.addf %188, %189 : vector<2x32xf32>
    %191 = vector.extract_strided_slice %10 {offsets = [0, 30], sizes = [2, 1], strides = [1, 1]} : vector<2x48xf32> to vector<2x1xf32>
    %192 = vector.broadcast %191 : vector<2x1xf32> to vector<2x32xf32>
    %193 = vector.broadcast %5 : vector<1x32xf32> to vector<2x32xf32>
    %194 = arith.mulf %192, %193 : vector<2x32xf32>
    %195 = vector.broadcast %6 : vector<1x32xf32> to vector<2x32xf32>
    %196 = arith.addf %194, %195 : vector<2x32xf32>
    %197 = vector.extract_strided_slice %10 {offsets = [0, 31], sizes = [2, 1], strides = [1, 1]} : vector<2x48xf32> to vector<2x1xf32>
    %198 = vector.broadcast %197 : vector<2x1xf32> to vector<2x32xf32>
    %199 = vector.broadcast %5 : vector<1x32xf32> to vector<2x32xf32>
    %200 = arith.mulf %198, %199 : vector<2x32xf32>
    %201 = vector.broadcast %6 : vector<1x32xf32> to vector<2x32xf32>
    %202 = arith.addf %200, %201 : vector<2x32xf32>
    %203 = vector.extract_strided_slice %10 {offsets = [0, 32], sizes = [2, 1], strides = [1, 1]} : vector<2x48xf32> to vector<2x1xf32>
    %204 = vector.broadcast %203 : vector<2x1xf32> to vector<2x32xf32>
    %205 = vector.broadcast %5 : vector<1x32xf32> to vector<2x32xf32>
    %206 = arith.mulf %204, %205 : vector<2x32xf32>
    %207 = vector.broadcast %6 : vector<1x32xf32> to vector<2x32xf32>
    %208 = arith.addf %206, %207 : vector<2x32xf32>
    %209 = vector.extract_strided_slice %10 {offsets = [0, 33], sizes = [2, 1], strides = [1, 1]} : vector<2x48xf32> to vector<2x1xf32>
    %210 = vector.broadcast %209 : vector<2x1xf32> to vector<2x32xf32>
    %211 = vector.broadcast %5 : vector<1x32xf32> to vector<2x32xf32>
    %212 = arith.mulf %210, %211 : vector<2x32xf32>
    %213 = vector.broadcast %6 : vector<1x32xf32> to vector<2x32xf32>
    %214 = arith.addf %212, %213 : vector<2x32xf32>
    %215 = vector.extract_strided_slice %10 {offsets = [0, 34], sizes = [2, 1], strides = [1, 1]} : vector<2x48xf32> to vector<2x1xf32>
    %216 = vector.broadcast %215 : vector<2x1xf32> to vector<2x32xf32>
    %217 = vector.broadcast %5 : vector<1x32xf32> to vector<2x32xf32>
    %218 = arith.mulf %216, %217 : vector<2x32xf32>
    %219 = vector.broadcast %6 : vector<1x32xf32> to vector<2x32xf32>
    %220 = arith.addf %218, %219 : vector<2x32xf32>
    %221 = vector.extract_strided_slice %10 {offsets = [0, 35], sizes = [2, 1], strides = [1, 1]} : vector<2x48xf32> to vector<2x1xf32>
    %222 = vector.broadcast %221 : vector<2x1xf32> to vector<2x32xf32>
    %223 = vector.broadcast %5 : vector<1x32xf32> to vector<2x32xf32>
    %224 = arith.mulf %222, %223 : vector<2x32xf32>
    %225 = vector.broadcast %6 : vector<1x32xf32> to vector<2x32xf32>
    %226 = arith.addf %224, %225 : vector<2x32xf32>
    %227 = vector.extract_strided_slice %10 {offsets = [0, 36], sizes = [2, 1], strides = [1, 1]} : vector<2x48xf32> to vector<2x1xf32>
    %228 = vector.broadcast %227 : vector<2x1xf32> to vector<2x32xf32>
    %229 = vector.broadcast %5 : vector<1x32xf32> to vector<2x32xf32>
    %230 = arith.mulf %228, %229 : vector<2x32xf32>
    %231 = vector.broadcast %6 : vector<1x32xf32> to vector<2x32xf32>
    %232 = arith.addf %230, %231 : vector<2x32xf32>
    %233 = vector.extract_strided_slice %10 {offsets = [0, 37], sizes = [2, 1], strides = [1, 1]} : vector<2x48xf32> to vector<2x1xf32>
    %234 = vector.broadcast %233 : vector<2x1xf32> to vector<2x32xf32>
    %235 = vector.broadcast %5 : vector<1x32xf32> to vector<2x32xf32>
    %236 = arith.mulf %234, %235 : vector<2x32xf32>
    %237 = vector.broadcast %6 : vector<1x32xf32> to vector<2x32xf32>
    %238 = arith.addf %236, %237 : vector<2x32xf32>
    %239 = vector.extract_strided_slice %10 {offsets = [0, 38], sizes = [2, 1], strides = [1, 1]} : vector<2x48xf32> to vector<2x1xf32>
    %240 = vector.broadcast %239 : vector<2x1xf32> to vector<2x32xf32>
    %241 = vector.broadcast %5 : vector<1x32xf32> to vector<2x32xf32>
    %242 = arith.mulf %240, %241 : vector<2x32xf32>
    %243 = vector.broadcast %6 : vector<1x32xf32> to vector<2x32xf32>
    %244 = arith.addf %242, %243 : vector<2x32xf32>
    %245 = vector.extract_strided_slice %10 {offsets = [0, 39], sizes = [2, 1], strides = [1, 1]} : vector<2x48xf32> to vector<2x1xf32>
    %246 = vector.broadcast %245 : vector<2x1xf32> to vector<2x32xf32>
    %247 = vector.broadcast %5 : vector<1x32xf32> to vector<2x32xf32>
    %248 = arith.mulf %246, %247 : vector<2x32xf32>
    %249 = vector.broadcast %6 : vector<1x32xf32> to vector<2x32xf32>
    %250 = arith.addf %248, %249 : vector<2x32xf32>
    %251 = vector.extract_strided_slice %10 {offsets = [0, 40], sizes = [2, 1], strides = [1, 1]} : vector<2x48xf32> to vector<2x1xf32>
    %252 = vector.broadcast %251 : vector<2x1xf32> to vector<2x32xf32>
    %253 = vector.broadcast %5 : vector<1x32xf32> to vector<2x32xf32>
    %254 = arith.mulf %252, %253 : vector<2x32xf32>
    %255 = vector.broadcast %6 : vector<1x32xf32> to vector<2x32xf32>
    %256 = arith.addf %254, %255 : vector<2x32xf32>
    %257 = vector.extract_strided_slice %10 {offsets = [0, 41], sizes = [2, 1], strides = [1, 1]} : vector<2x48xf32> to vector<2x1xf32>
    %258 = vector.broadcast %257 : vector<2x1xf32> to vector<2x32xf32>
    %259 = vector.broadcast %5 : vector<1x32xf32> to vector<2x32xf32>
    %260 = arith.mulf %258, %259 : vector<2x32xf32>
    %261 = vector.broadcast %6 : vector<1x32xf32> to vector<2x32xf32>
    %262 = arith.addf %260, %261 : vector<2x32xf32>
    %263 = vector.extract_strided_slice %10 {offsets = [0, 42], sizes = [2, 1], strides = [1, 1]} : vector<2x48xf32> to vector<2x1xf32>
    %264 = vector.broadcast %263 : vector<2x1xf32> to vector<2x32xf32>
    %265 = vector.broadcast %5 : vector<1x32xf32> to vector<2x32xf32>
    %266 = arith.mulf %264, %265 : vector<2x32xf32>
    %267 = vector.broadcast %6 : vector<1x32xf32> to vector<2x32xf32>
    %268 = arith.addf %266, %267 : vector<2x32xf32>
    %269 = vector.extract_strided_slice %10 {offsets = [0, 43], sizes = [2, 1], strides = [1, 1]} : vector<2x48xf32> to vector<2x1xf32>
    %270 = vector.broadcast %269 : vector<2x1xf32> to vector<2x32xf32>
    %271 = vector.broadcast %5 : vector<1x32xf32> to vector<2x32xf32>
    %272 = arith.mulf %270, %271 : vector<2x32xf32>
    %273 = vector.broadcast %6 : vector<1x32xf32> to vector<2x32xf32>
    %274 = arith.addf %272, %273 : vector<2x32xf32>
    %275 = vector.extract_strided_slice %10 {offsets = [0, 44], sizes = [2, 1], strides = [1, 1]} : vector<2x48xf32> to vector<2x1xf32>
    %276 = vector.broadcast %275 : vector<2x1xf32> to vector<2x32xf32>
    %277 = vector.broadcast %5 : vector<1x32xf32> to vector<2x32xf32>
    %278 = arith.mulf %276, %277 : vector<2x32xf32>
    %279 = vector.broadcast %6 : vector<1x32xf32> to vector<2x32xf32>
    %280 = arith.addf %278, %279 : vector<2x32xf32>
    %281 = vector.extract_strided_slice %10 {offsets = [0, 45], sizes = [2, 1], strides = [1, 1]} : vector<2x48xf32> to vector<2x1xf32>
    %282 = vector.broadcast %281 : vector<2x1xf32> to vector<2x32xf32>
    %283 = vector.broadcast %5 : vector<1x32xf32> to vector<2x32xf32>
    %284 = arith.mulf %282, %283 : vector<2x32xf32>
    %285 = vector.broadcast %6 : vector<1x32xf32> to vector<2x32xf32>
    %286 = arith.addf %284, %285 : vector<2x32xf32>
    %287 = vector.extract_strided_slice %10 {offsets = [0, 46], sizes = [2, 1], strides = [1, 1]} : vector<2x48xf32> to vector<2x1xf32>
    %288 = vector.broadcast %287 : vector<2x1xf32> to vector<2x32xf32>
    %289 = vector.broadcast %5 : vector<1x32xf32> to vector<2x32xf32>
    %290 = arith.mulf %288, %289 : vector<2x32xf32>
    %291 = vector.broadcast %6 : vector<1x32xf32> to vector<2x32xf32>
    %292 = arith.addf %290, %291 : vector<2x32xf32>
    %293 = vector.extract_strided_slice %10 {offsets = [0, 47], sizes = [2, 1], strides = [1, 1]} : vector<2x48xf32> to vector<2x1xf32>
    %294 = vector.broadcast %293 : vector<2x1xf32> to vector<2x32xf32>
    %295 = vector.broadcast %5 : vector<1x32xf32> to vector<2x32xf32>
    %296 = arith.mulf %294, %295 : vector<2x32xf32>
    %297 = vector.broadcast %6 : vector<1x32xf32> to vector<2x32xf32>
    %298 = arith.addf %296, %297 : vector<2x32xf32>
    %c48_i32 = arith.constant 48 : i32
    %299 = arith.muli %arg0, %c48_i32 : i32
    %c0_i32_15 = arith.constant 0 : i32
    %300 = arith.addi %299, %c0_i32_15 : i32
    %301 = arith.index_cast %300 : i32 to index
    %302 = memref.load %arg1[%301] : memref<48xf32, #tpu.memory_space<smem>>
    %cst = arith.constant dense<0.000000e+00> : vector<2x32xf32>
    %303 = tpu.matmul %3, %4, %cst {dimension_numbers = #tpu.dot_dimension_numbers<[1], [0], [0], [1], [0, 0, 1, 1], [], []>} : vector<2x8xf32>, vector<8x32xf32>, vector<2x32xf32> -> vector<2x32xf32>
    %304 = arith.addf %303, %16 : vector<2x32xf32>
    %305 = math.tanh %304 : vector<2x32xf32>
    %cst_16 = arith.constant dense<0.000000e+00> : vector<2x8xf32>
    %306 = tpu.matmul %305, %7, %cst_16 {dimension_numbers = #tpu.dot_dimension_numbers<[1], [0], [0], [1], [0, 0, 1, 1], [], []>} : vector<2x32xf32>, vector<32x8xf32>, vector<2x8xf32> -> vector<2x8xf32>
    %307 = vector.broadcast %8 : vector<1x8xf32> to vector<2x8xf32>
    %308 = arith.addf %306, %307 : vector<2x8xf32>
    %309 = vector.broadcast %302 : f32 to vector<2x8xf32>
    %310 = arith.mulf %309, %308 : vector<2x8xf32>
    %311 = arith.addf %3, %310 : vector<2x8xf32>
    %c0_17 = arith.constant 0 : index
    %c0_18 = arith.constant 0 : index
    %312 = vector.load %arg9[%c0_17, %c0_18] : memref<2x384xf32, #tpu.memory_space<vmem>>, vector<2x8xf32>
    tpu.vector_store %arg9[%c0_17, %c0_18], %311 {strides = array<i32>} : memref<2x384xf32, #tpu.memory_space<vmem>>, vector<2x8xf32>,
    %c48_i32_19 = arith.constant 48 : i32
    %313 = arith.muli %arg0, %c48_i32_19 : i32
    %c1_i32 = arith.constant 1 : i32
    %314 = arith.addi %313, %c1_i32 : i32
    %315 = arith.index_cast %314 : i32 to index
    %316 = memref.load %arg1[%315] : memref<48xf32, #tpu.memory_space<smem>>
    %cst_20 = arith.constant dense<0.000000e+00> : vector<2x32xf32>
    %317 = tpu.matmul %311, %4, %cst_20 {dimension_numbers = #tpu.dot_dimension_numbers<[1], [0], [0], [1], [0, 0, 1, 1], [], []>} : vector<2x8xf32>, vector<8x32xf32>, vector<2x32xf32> -> vector<2x32xf32>
    %318 = arith.addf %317, %22 : vector<2x32xf32>
    %319 = math.tanh %318 : vector<2x32xf32>
    %cst_21 = arith.constant dense<0.000000e+00> : vector<2x8xf32>
    %320 = tpu.matmul %319, %7, %cst_21 {dimension_numbers = #tpu.dot_dimension_numbers<[1], [0], [0], [1], [0, 0, 1, 1], [], []>} : vector<2x32xf32>, vector<32x8xf32>, vector<2x8xf32> -> vector<2x8xf32>
    %321 = vector.broadcast %8 : vector<1x8xf32> to vector<2x8xf32>
    %322 = arith.addf %320, %321 : vector<2x8xf32>
    %323 = vector.broadcast %316 : f32 to vector<2x8xf32>
    %324 = arith.mulf %323, %322 : vector<2x8xf32>
    %325 = arith.addf %311, %324 : vector<2x8xf32>
    %c0_22 = arith.constant 0 : index
    %c8 = arith.constant 8 : index
    %326 = vector.load %arg9[%c0_22, %c8] : memref<2x384xf32, #tpu.memory_space<vmem>>, vector<2x8xf32>
    tpu.vector_store %arg9[%c0_22, %c8], %325 {strides = array<i32>} : memref<2x384xf32, #tpu.memory_space<vmem>>, vector<2x8xf32>,
    %c48_i32_23 = arith.constant 48 : i32
    %327 = arith.muli %arg0, %c48_i32_23 : i32
    %c2_i32 = arith.constant 2 : i32
    %328 = arith.addi %327, %c2_i32 : i32
    %329 = arith.index_cast %328 : i32 to index
    %330 = memref.load %arg1[%329] : memref<48xf32, #tpu.memory_space<smem>>
    %cst_24 = arith.constant dense<0.000000e+00> : vector<2x32xf32>
    %331 = tpu.matmul %325, %4, %cst_24 {dimension_numbers = #tpu.dot_dimension_numbers<[1], [0], [0], [1], [0, 0, 1, 1], [], []>} : vector<2x8xf32>, vector<8x32xf32>, vector<2x32xf32> -> vector<2x32xf32>
    %332 = arith.addf %331, %28 : vector<2x32xf32>
    %333 = math.tanh %332 : vector<2x32xf32>
    %cst_25 = arith.constant dense<0.000000e+00> : vector<2x8xf32>
    %334 = tpu.matmul %333, %7, %cst_25 {dimension_numbers = #tpu.dot_dimension_numbers<[1], [0], [0], [1], [0, 0, 1, 1], [], []>} : vector<2x32xf32>, vector<32x8xf32>, vector<2x8xf32> -> vector<2x8xf32>
    %335 = vector.broadcast %8 : vector<1x8xf32> to vector<2x8xf32>
    %336 = arith.addf %334, %335 : vector<2x8xf32>
    %337 = vector.broadcast %330 : f32 to vector<2x8xf32>
    %338 = arith.mulf %337, %336 : vector<2x8xf32>
    %339 = arith.addf %325, %338 : vector<2x8xf32>
    %c0_26 = arith.constant 0 : index
    %c16 = arith.constant 16 : index
    %340 = vector.load %arg9[%c0_26, %c16] : memref<2x384xf32, #tpu.memory_space<vmem>>, vector<2x8xf32>
    tpu.vector_store %arg9[%c0_26, %c16], %339 {strides = array<i32>} : memref<2x384xf32, #tpu.memory_space<vmem>>, vector<2x8xf32>,
    %c48_i32_27 = arith.constant 48 : i32
    %341 = arith.muli %arg0, %c48_i32_27 : i32
    %c3_i32 = arith.constant 3 : i32
    %342 = arith.addi %341, %c3_i32 : i32
    %343 = arith.index_cast %342 : i32 to index
    %344 = memref.load %arg1[%343] : memref<48xf32, #tpu.memory_space<smem>>
    %cst_28 = arith.constant dense<0.000000e+00> : vector<2x32xf32>
    %345 = tpu.matmul %339, %4, %cst_28 {dimension_numbers = #tpu.dot_dimension_numbers<[1], [0], [0], [1], [0, 0, 1, 1], [], []>} : vector<2x8xf32>, vector<8x32xf32>, vector<2x32xf32> -> vector<2x32xf32>
    %346 = arith.addf %345, %34 : vector<2x32xf32>
    %347 = math.tanh %346 : vector<2x32xf32>
    %cst_29 = arith.constant dense<0.000000e+00> : vector<2x8xf32>
    %348 = tpu.matmul %347, %7, %cst_29 {dimension_numbers = #tpu.dot_dimension_numbers<[1], [0], [0], [1], [0, 0, 1, 1], [], []>} : vector<2x32xf32>, vector<32x8xf32>, vector<2x8xf32> -> vector<2x8xf32>
    %349 = vector.broadcast %8 : vector<1x8xf32> to vector<2x8xf32>
    %350 = arith.addf %348, %349 : vector<2x8xf32>
    %351 = vector.broadcast %344 : f32 to vector<2x8xf32>
    %352 = arith.mulf %351, %350 : vector<2x8xf32>
    %353 = arith.addf %339, %352 : vector<2x8xf32>
    %c0_30 = arith.constant 0 : index
    %c24 = arith.constant 24 : index
    %354 = vector.load %arg9[%c0_30, %c24] : memref<2x384xf32, #tpu.memory_space<vmem>>, vector<2x8xf32>
    tpu.vector_store %arg9[%c0_30, %c24], %353 {strides = array<i32>} : memref<2x384xf32, #tpu.memory_space<vmem>>, vector<2x8xf32>,
    %c48_i32_31 = arith.constant 48 : i32
    %355 = arith.muli %arg0, %c48_i32_31 : i32
    %c4_i32 = arith.constant 4 : i32
    %356 = arith.addi %355, %c4_i32 : i32
    %357 = arith.index_cast %356 : i32 to index
    %358 = memref.load %arg1[%357] : memref<48xf32, #tpu.memory_space<smem>>
    %cst_32 = arith.constant dense<0.000000e+00> : vector<2x32xf32>
    %359 = tpu.matmul %353, %4, %cst_32 {dimension_numbers = #tpu.dot_dimension_numbers<[1], [0], [0], [1], [0, 0, 1, 1], [], []>} : vector<2x8xf32>, vector<8x32xf32>, vector<2x32xf32> -> vector<2x32xf32>
    %360 = arith.addf %359, %40 : vector<2x32xf32>
    %361 = math.tanh %360 : vector<2x32xf32>
    %cst_33 = arith.constant dense<0.000000e+00> : vector<2x8xf32>
    %362 = tpu.matmul %361, %7, %cst_33 {dimension_numbers = #tpu.dot_dimension_numbers<[1], [0], [0], [1], [0, 0, 1, 1], [], []>} : vector<2x32xf32>, vector<32x8xf32>, vector<2x8xf32> -> vector<2x8xf32>
    %363 = vector.broadcast %8 : vector<1x8xf32> to vector<2x8xf32>
    %364 = arith.addf %362, %363 : vector<2x8xf32>
    %365 = vector.broadcast %358 : f32 to vector<2x8xf32>
    %366 = arith.mulf %365, %364 : vector<2x8xf32>
    %367 = arith.addf %353, %366 : vector<2x8xf32>
    %c0_34 = arith.constant 0 : index
    %c32 = arith.constant 32 : index
    %368 = vector.load %arg9[%c0_34, %c32] : memref<2x384xf32, #tpu.memory_space<vmem>>, vector<2x8xf32>
    tpu.vector_store %arg9[%c0_34, %c32], %367 {strides = array<i32>} : memref<2x384xf32, #tpu.memory_space<vmem>>, vector<2x8xf32>,
    %c48_i32_35 = arith.constant 48 : i32
    %369 = arith.muli %arg0, %c48_i32_35 : i32
    %c5_i32 = arith.constant 5 : i32
    %370 = arith.addi %369, %c5_i32 : i32
    %371 = arith.index_cast %370 : i32 to index
    %372 = memref.load %arg1[%371] : memref<48xf32, #tpu.memory_space<smem>>
    %cst_36 = arith.constant dense<0.000000e+00> : vector<2x32xf32>
    %373 = tpu.matmul %367, %4, %cst_36 {dimension_numbers = #tpu.dot_dimension_numbers<[1], [0], [0], [1], [0, 0, 1, 1], [], []>} : vector<2x8xf32>, vector<8x32xf32>, vector<2x32xf32> -> vector<2x32xf32>
    %374 = arith.addf %373, %46 : vector<2x32xf32>
    %375 = math.tanh %374 : vector<2x32xf32>
    %cst_37 = arith.constant dense<0.000000e+00> : vector<2x8xf32>
    %376 = tpu.matmul %375, %7, %cst_37 {dimension_numbers = #tpu.dot_dimension_numbers<[1], [0], [0], [1], [0, 0, 1, 1], [], []>} : vector<2x32xf32>, vector<32x8xf32>, vector<2x8xf32> -> vector<2x8xf32>
    %377 = vector.broadcast %8 : vector<1x8xf32> to vector<2x8xf32>
    %378 = arith.addf %376, %377 : vector<2x8xf32>
    %379 = vector.broadcast %372 : f32 to vector<2x8xf32>
    %380 = arith.mulf %379, %378 : vector<2x8xf32>
    %381 = arith.addf %367, %380 : vector<2x8xf32>
    %c0_38 = arith.constant 0 : index
    %c40 = arith.constant 40 : index
    %382 = vector.load %arg9[%c0_38, %c40] : memref<2x384xf32, #tpu.memory_space<vmem>>, vector<2x8xf32>
    tpu.vector_store %arg9[%c0_38, %c40], %381 {strides = array<i32>} : memref<2x384xf32, #tpu.memory_space<vmem>>, vector<2x8xf32>,
    %c48_i32_39 = arith.constant 48 : i32
    %383 = arith.muli %arg0, %c48_i32_39 : i32
    %c6_i32 = arith.constant 6 : i32
    %384 = arith.addi %383, %c6_i32 : i32
    %385 = arith.index_cast %384 : i32 to index
    %386 = memref.load %arg1[%385] : memref<48xf32, #tpu.memory_space<smem>>
    %cst_40 = arith.constant dense<0.000000e+00> : vector<2x32xf32>
    %387 = tpu.matmul %381, %4, %cst_40 {dimension_numbers = #tpu.dot_dimension_numbers<[1], [0], [0], [1], [0, 0, 1, 1], [], []>} : vector<2x8xf32>, vector<8x32xf32>, vector<2x32xf32> -> vector<2x32xf32>
    %388 = arith.addf %387, %52 : vector<2x32xf32>
    %389 = math.tanh %388 : vector<2x32xf32>
    %cst_41 = arith.constant dense<0.000000e+00> : vector<2x8xf32>
    %390 = tpu.matmul %389, %7, %cst_41 {dimension_numbers = #tpu.dot_dimension_numbers<[1], [0], [0], [1], [0, 0, 1, 1], [], []>} : vector<2x32xf32>, vector<32x8xf32>, vector<2x8xf32> -> vector<2x8xf32>
    %391 = vector.broadcast %8 : vector<1x8xf32> to vector<2x8xf32>
    %392 = arith.addf %390, %391 : vector<2x8xf32>
    %393 = vector.broadcast %386 : f32 to vector<2x8xf32>
    %394 = arith.mulf %393, %392 : vector<2x8xf32>
    %395 = arith.addf %381, %394 : vector<2x8xf32>
    %c0_42 = arith.constant 0 : index
    %c48 = arith.constant 48 : index
    %396 = vector.load %arg9[%c0_42, %c48] : memref<2x384xf32, #tpu.memory_space<vmem>>, vector<2x8xf32>
    tpu.vector_store %arg9[%c0_42, %c48], %395 {strides = array<i32>} : memref<2x384xf32, #tpu.memory_space<vmem>>, vector<2x8xf32>,
    %c48_i32_43 = arith.constant 48 : i32
    %397 = arith.muli %arg0, %c48_i32_43 : i32
    %c7_i32 = arith.constant 7 : i32
    %398 = arith.addi %397, %c7_i32 : i32
    %399 = arith.index_cast %398 : i32 to index
    %400 = memref.load %arg1[%399] : memref<48xf32, #tpu.memory_space<smem>>
    %cst_44 = arith.constant dense<0.000000e+00> : vector<2x32xf32>
    %401 = tpu.matmul %395, %4, %cst_44 {dimension_numbers = #tpu.dot_dimension_numbers<[1], [0], [0], [1], [0, 0, 1, 1], [], []>} : vector<2x8xf32>, vector<8x32xf32>, vector<2x32xf32> -> vector<2x32xf32>
    %402 = arith.addf %401, %58 : vector<2x32xf32>
    %403 = math.tanh %402 : vector<2x32xf32>
    %cst_45 = arith.constant dense<0.000000e+00> : vector<2x8xf32>
    %404 = tpu.matmul %403, %7, %cst_45 {dimension_numbers = #tpu.dot_dimension_numbers<[1], [0], [0], [1], [0, 0, 1, 1], [], []>} : vector<2x32xf32>, vector<32x8xf32>, vector<2x8xf32> -> vector<2x8xf32>
    %405 = vector.broadcast %8 : vector<1x8xf32> to vector<2x8xf32>
    %406 = arith.addf %404, %405 : vector<2x8xf32>
    %407 = vector.broadcast %400 : f32 to vector<2x8xf32>
    %408 = arith.mulf %407, %406 : vector<2x8xf32>
    %409 = arith.addf %395, %408 : vector<2x8xf32>
    %c0_46 = arith.constant 0 : index
    %c56 = arith.constant 56 : index
    %410 = vector.load %arg9[%c0_46, %c56] : memref<2x384xf32, #tpu.memory_space<vmem>>, vector<2x8xf32>
    tpu.vector_store %arg9[%c0_46, %c56], %409 {strides = array<i32>} : memref<2x384xf32, #tpu.memory_space<vmem>>, vector<2x8xf32>,
    %c48_i32_47 = arith.constant 48 : i32
    %411 = arith.muli %arg0, %c48_i32_47 : i32
    %c8_i32 = arith.constant 8 : i32
    %412 = arith.addi %411, %c8_i32 : i32
    %413 = arith.index_cast %412 : i32 to index
    %414 = memref.load %arg1[%413] : memref<48xf32, #tpu.memory_space<smem>>
    %cst_48 = arith.constant dense<0.000000e+00> : vector<2x32xf32>
    %415 = tpu.matmul %409, %4, %cst_48 {dimension_numbers = #tpu.dot_dimension_numbers<[1], [0], [0], [1], [0, 0, 1, 1], [], []>} : vector<2x8xf32>, vector<8x32xf32>, vector<2x32xf32> -> vector<2x32xf32>
    %416 = arith.addf %415, %64 : vector<2x32xf32>
    %417 = math.tanh %416 : vector<2x32xf32>
    %cst_49 = arith.constant dense<0.000000e+00> : vector<2x8xf32>
    %418 = tpu.matmul %417, %7, %cst_49 {dimension_numbers = #tpu.dot_dimension_numbers<[1], [0], [0], [1], [0, 0, 1, 1], [], []>} : vector<2x32xf32>, vector<32x8xf32>, vector<2x8xf32> -> vector<2x8xf32>
    %419 = vector.broadcast %8 : vector<1x8xf32> to vector<2x8xf32>
    %420 = arith.addf %418, %419 : vector<2x8xf32>
    %421 = vector.broadcast %414 : f32 to vector<2x8xf32>
    %422 = arith.mulf %421, %420 : vector<2x8xf32>
    %423 = arith.addf %409, %422 : vector<2x8xf32>
    %c0_50 = arith.constant 0 : index
    %c64 = arith.constant 64 : index
    %424 = vector.load %arg9[%c0_50, %c64] : memref<2x384xf32, #tpu.memory_space<vmem>>, vector<2x8xf32>
    tpu.vector_store %arg9[%c0_50, %c64], %423 {strides = array<i32>} : memref<2x384xf32, #tpu.memory_space<vmem>>, vector<2x8xf32>,
    %c48_i32_51 = arith.constant 48 : i32
    %425 = arith.muli %arg0, %c48_i32_51 : i32
    %c9_i32 = arith.constant 9 : i32
    %426 = arith.addi %425, %c9_i32 : i32
    %427 = arith.index_cast %426 : i32 to index
    %428 = memref.load %arg1[%427] : memref<48xf32, #tpu.memory_space<smem>>
    %cst_52 = arith.constant dense<0.000000e+00> : vector<2x32xf32>
    %429 = tpu.matmul %423, %4, %cst_52 {dimension_numbers = #tpu.dot_dimension_numbers<[1], [0], [0], [1], [0, 0, 1, 1], [], []>} : vector<2x8xf32>, vector<8x32xf32>, vector<2x32xf32> -> vector<2x32xf32>
    %430 = arith.addf %429, %70 : vector<2x32xf32>
    %431 = math.tanh %430 : vector<2x32xf32>
    %cst_53 = arith.constant dense<0.000000e+00> : vector<2x8xf32>
    %432 = tpu.matmul %431, %7, %cst_53 {dimension_numbers = #tpu.dot_dimension_numbers<[1], [0], [0], [1], [0, 0, 1, 1], [], []>} : vector<2x32xf32>, vector<32x8xf32>, vector<2x8xf32> -> vector<2x8xf32>
    %433 = vector.broadcast %8 : vector<1x8xf32> to vector<2x8xf32>
    %434 = arith.addf %432, %433 : vector<2x8xf32>
    %435 = vector.broadcast %428 : f32 to vector<2x8xf32>
    %436 = arith.mulf %435, %434 : vector<2x8xf32>
    %437 = arith.addf %423, %436 : vector<2x8xf32>
    %c0_54 = arith.constant 0 : index
    %c72 = arith.constant 72 : index
    %438 = vector.load %arg9[%c0_54, %c72] : memref<2x384xf32, #tpu.memory_space<vmem>>, vector<2x8xf32>
    tpu.vector_store %arg9[%c0_54, %c72], %437 {strides = array<i32>} : memref<2x384xf32, #tpu.memory_space<vmem>>, vector<2x8xf32>,
    %c48_i32_55 = arith.constant 48 : i32
    %439 = arith.muli %arg0, %c48_i32_55 : i32
    %c10_i32 = arith.constant 10 : i32
    %440 = arith.addi %439, %c10_i32 : i32
    %441 = arith.index_cast %440 : i32 to index
    %442 = memref.load %arg1[%441] : memref<48xf32, #tpu.memory_space<smem>>
    %cst_56 = arith.constant dense<0.000000e+00> : vector<2x32xf32>
    %443 = tpu.matmul %437, %4, %cst_56 {dimension_numbers = #tpu.dot_dimension_numbers<[1], [0], [0], [1], [0, 0, 1, 1], [], []>} : vector<2x8xf32>, vector<8x32xf32>, vector<2x32xf32> -> vector<2x32xf32>
    %444 = arith.addf %443, %76 : vector<2x32xf32>
    %445 = math.tanh %444 : vector<2x32xf32>
    %cst_57 = arith.constant dense<0.000000e+00> : vector<2x8xf32>
    %446 = tpu.matmul %445, %7, %cst_57 {dimension_numbers = #tpu.dot_dimension_numbers<[1], [0], [0], [1], [0, 0, 1, 1], [], []>} : vector<2x32xf32>, vector<32x8xf32>, vector<2x8xf32> -> vector<2x8xf32>
    %447 = vector.broadcast %8 : vector<1x8xf32> to vector<2x8xf32>
    %448 = arith.addf %446, %447 : vector<2x8xf32>
    %449 = vector.broadcast %442 : f32 to vector<2x8xf32>
    %450 = arith.mulf %449, %448 : vector<2x8xf32>
    %451 = arith.addf %437, %450 : vector<2x8xf32>
    %c0_58 = arith.constant 0 : index
    %c80 = arith.constant 80 : index
    %452 = vector.load %arg9[%c0_58, %c80] : memref<2x384xf32, #tpu.memory_space<vmem>>, vector<2x8xf32>
    tpu.vector_store %arg9[%c0_58, %c80], %451 {strides = array<i32>} : memref<2x384xf32, #tpu.memory_space<vmem>>, vector<2x8xf32>,
    %c48_i32_59 = arith.constant 48 : i32
    %453 = arith.muli %arg0, %c48_i32_59 : i32
    %c11_i32 = arith.constant 11 : i32
    %454 = arith.addi %453, %c11_i32 : i32
    %455 = arith.index_cast %454 : i32 to index
    %456 = memref.load %arg1[%455] : memref<48xf32, #tpu.memory_space<smem>>
    %cst_60 = arith.constant dense<0.000000e+00> : vector<2x32xf32>
    %457 = tpu.matmul %451, %4, %cst_60 {dimension_numbers = #tpu.dot_dimension_numbers<[1], [0], [0], [1], [0, 0, 1, 1], [], []>} : vector<2x8xf32>, vector<8x32xf32>, vector<2x32xf32> -> vector<2x32xf32>
    %458 = arith.addf %457, %82 : vector<2x32xf32>
    %459 = math.tanh %458 : vector<2x32xf32>
    %cst_61 = arith.constant dense<0.000000e+00> : vector<2x8xf32>
    %460 = tpu.matmul %459, %7, %cst_61 {dimension_numbers = #tpu.dot_dimension_numbers<[1], [0], [0], [1], [0, 0, 1, 1], [], []>} : vector<2x32xf32>, vector<32x8xf32>, vector<2x8xf32> -> vector<2x8xf32>
    %461 = vector.broadcast %8 : vector<1x8xf32> to vector<2x8xf32>
    %462 = arith.addf %460, %461 : vector<2x8xf32>
    %463 = vector.broadcast %456 : f32 to vector<2x8xf32>
    %464 = arith.mulf %463, %462 : vector<2x8xf32>
    %465 = arith.addf %451, %464 : vector<2x8xf32>
    %c0_62 = arith.constant 0 : index
    %c88 = arith.constant 88 : index
    %466 = vector.load %arg9[%c0_62, %c88] : memref<2x384xf32, #tpu.memory_space<vmem>>, vector<2x8xf32>
    tpu.vector_store %arg9[%c0_62, %c88], %465 {strides = array<i32>} : memref<2x384xf32, #tpu.memory_space<vmem>>, vector<2x8xf32>,
    %c48_i32_63 = arith.constant 48 : i32
    %467 = arith.muli %arg0, %c48_i32_63 : i32
    %c12_i32 = arith.constant 12 : i32
    %468 = arith.addi %467, %c12_i32 : i32
    %469 = arith.index_cast %468 : i32 to index
    %470 = memref.load %arg1[%469] : memref<48xf32, #tpu.memory_space<smem>>
    %cst_64 = arith.constant dense<0.000000e+00> : vector<2x32xf32>
    %471 = tpu.matmul %465, %4, %cst_64 {dimension_numbers = #tpu.dot_dimension_numbers<[1], [0], [0], [1], [0, 0, 1, 1], [], []>} : vector<2x8xf32>, vector<8x32xf32>, vector<2x32xf32> -> vector<2x32xf32>
    %472 = arith.addf %471, %88 : vector<2x32xf32>
    %473 = math.tanh %472 : vector<2x32xf32>
    %cst_65 = arith.constant dense<0.000000e+00> : vector<2x8xf32>
    %474 = tpu.matmul %473, %7, %cst_65 {dimension_numbers = #tpu.dot_dimension_numbers<[1], [0], [0], [1], [0, 0, 1, 1], [], []>} : vector<2x32xf32>, vector<32x8xf32>, vector<2x8xf32> -> vector<2x8xf32>
    %475 = vector.broadcast %8 : vector<1x8xf32> to vector<2x8xf32>
    %476 = arith.addf %474, %475 : vector<2x8xf32>
    %477 = vector.broadcast %470 : f32 to vector<2x8xf32>
    %478 = arith.mulf %477, %476 : vector<2x8xf32>
    %479 = arith.addf %465, %478 : vector<2x8xf32>
    %c0_66 = arith.constant 0 : index
    %c96 = arith.constant 96 : index
    %480 = vector.load %arg9[%c0_66, %c96] : memref<2x384xf32, #tpu.memory_space<vmem>>, vector<2x8xf32>
    tpu.vector_store %arg9[%c0_66, %c96], %479 {strides = array<i32>} : memref<2x384xf32, #tpu.memory_space<vmem>>, vector<2x8xf32>,
    %c48_i32_67 = arith.constant 48 : i32
    %481 = arith.muli %arg0, %c48_i32_67 : i32
    %c13_i32 = arith.constant 13 : i32
    %482 = arith.addi %481, %c13_i32 : i32
    %483 = arith.index_cast %482 : i32 to index
    %484 = memref.load %arg1[%483] : memref<48xf32, #tpu.memory_space<smem>>
    %cst_68 = arith.constant dense<0.000000e+00> : vector<2x32xf32>
    %485 = tpu.matmul %479, %4, %cst_68 {dimension_numbers = #tpu.dot_dimension_numbers<[1], [0], [0], [1], [0, 0, 1, 1], [], []>} : vector<2x8xf32>, vector<8x32xf32>, vector<2x32xf32> -> vector<2x32xf32>
    %486 = arith.addf %485, %94 : vector<2x32xf32>
    %487 = math.tanh %486 : vector<2x32xf32>
    %cst_69 = arith.constant dense<0.000000e+00> : vector<2x8xf32>
    %488 = tpu.matmul %487, %7, %cst_69 {dimension_numbers = #tpu.dot_dimension_numbers<[1], [0], [0], [1], [0, 0, 1, 1], [], []>} : vector<2x32xf32>, vector<32x8xf32>, vector<2x8xf32> -> vector<2x8xf32>
    %489 = vector.broadcast %8 : vector<1x8xf32> to vector<2x8xf32>
    %490 = arith.addf %488, %489 : vector<2x8xf32>
    %491 = vector.broadcast %484 : f32 to vector<2x8xf32>
    %492 = arith.mulf %491, %490 : vector<2x8xf32>
    %493 = arith.addf %479, %492 : vector<2x8xf32>
    %c0_70 = arith.constant 0 : index
    %c104 = arith.constant 104 : index
    %494 = vector.load %arg9[%c0_70, %c104] : memref<2x384xf32, #tpu.memory_space<vmem>>, vector<2x8xf32>
    tpu.vector_store %arg9[%c0_70, %c104], %493 {strides = array<i32>} : memref<2x384xf32, #tpu.memory_space<vmem>>, vector<2x8xf32>,
    %c48_i32_71 = arith.constant 48 : i32
    %495 = arith.muli %arg0, %c48_i32_71 : i32
    %c14_i32 = arith.constant 14 : i32
    %496 = arith.addi %495, %c14_i32 : i32
    %497 = arith.index_cast %496 : i32 to index
    %498 = memref.load %arg1[%497] : memref<48xf32, #tpu.memory_space<smem>>
    %cst_72 = arith.constant dense<0.000000e+00> : vector<2x32xf32>
    %499 = tpu.matmul %493, %4, %cst_72 {dimension_numbers = #tpu.dot_dimension_numbers<[1], [0], [0], [1], [0, 0, 1, 1], [], []>} : vector<2x8xf32>, vector<8x32xf32>, vector<2x32xf32> -> vector<2x32xf32>
    %500 = arith.addf %499, %100 : vector<2x32xf32>
    %501 = math.tanh %500 : vector<2x32xf32>
    %cst_73 = arith.constant dense<0.000000e+00> : vector<2x8xf32>
    %502 = tpu.matmul %501, %7, %cst_73 {dimension_numbers = #tpu.dot_dimension_numbers<[1], [0], [0], [1], [0, 0, 1, 1], [], []>} : vector<2x32xf32>, vector<32x8xf32>, vector<2x8xf32> -> vector<2x8xf32>
    %503 = vector.broadcast %8 : vector<1x8xf32> to vector<2x8xf32>
    %504 = arith.addf %502, %503 : vector<2x8xf32>
    %505 = vector.broadcast %498 : f32 to vector<2x8xf32>
    %506 = arith.mulf %505, %504 : vector<2x8xf32>
    %507 = arith.addf %493, %506 : vector<2x8xf32>
    %c0_74 = arith.constant 0 : index
    %c112 = arith.constant 112 : index
    %508 = vector.load %arg9[%c0_74, %c112] : memref<2x384xf32, #tpu.memory_space<vmem>>, vector<2x8xf32>
    tpu.vector_store %arg9[%c0_74, %c112], %507 {strides = array<i32>} : memref<2x384xf32, #tpu.memory_space<vmem>>, vector<2x8xf32>,
    %c48_i32_75 = arith.constant 48 : i32
    %509 = arith.muli %arg0, %c48_i32_75 : i32
    %c15_i32 = arith.constant 15 : i32
    %510 = arith.addi %509, %c15_i32 : i32
    %511 = arith.index_cast %510 : i32 to index
    %512 = memref.load %arg1[%511] : memref<48xf32, #tpu.memory_space<smem>>
    %cst_76 = arith.constant dense<0.000000e+00> : vector<2x32xf32>
    %513 = tpu.matmul %507, %4, %cst_76 {dimension_numbers = #tpu.dot_dimension_numbers<[1], [0], [0], [1], [0, 0, 1, 1], [], []>} : vector<2x8xf32>, vector<8x32xf32>, vector<2x32xf32> -> vector<2x32xf32>
    %514 = arith.addf %513, %106 : vector<2x32xf32>
    %515 = math.tanh %514 : vector<2x32xf32>
    %cst_77 = arith.constant dense<0.000000e+00> : vector<2x8xf32>
    %516 = tpu.matmul %515, %7, %cst_77 {dimension_numbers = #tpu.dot_dimension_numbers<[1], [0], [0], [1], [0, 0, 1, 1], [], []>} : vector<2x32xf32>, vector<32x8xf32>, vector<2x8xf32> -> vector<2x8xf32>
    %517 = vector.broadcast %8 : vector<1x8xf32> to vector<2x8xf32>
    %518 = arith.addf %516, %517 : vector<2x8xf32>
    %519 = vector.broadcast %512 : f32 to vector<2x8xf32>
    %520 = arith.mulf %519, %518 : vector<2x8xf32>
    %521 = arith.addf %507, %520 : vector<2x8xf32>
    %c0_78 = arith.constant 0 : index
    %c120 = arith.constant 120 : index
    %522 = vector.load %arg9[%c0_78, %c120] : memref<2x384xf32, #tpu.memory_space<vmem>>, vector<2x8xf32>
    tpu.vector_store %arg9[%c0_78, %c120], %521 {strides = array<i32>} : memref<2x384xf32, #tpu.memory_space<vmem>>, vector<2x8xf32>,
    %c48_i32_79 = arith.constant 48 : i32
    %523 = arith.muli %arg0, %c48_i32_79 : i32
    %c16_i32 = arith.constant 16 : i32
    %524 = arith.addi %523, %c16_i32 : i32
    %525 = arith.index_cast %524 : i32 to index
    %526 = memref.load %arg1[%525] : memref<48xf32, #tpu.memory_space<smem>>
    %cst_80 = arith.constant dense<0.000000e+00> : vector<2x32xf32>
    %527 = tpu.matmul %521, %4, %cst_80 {dimension_numbers = #tpu.dot_dimension_numbers<[1], [0], [0], [1], [0, 0, 1, 1], [], []>} : vector<2x8xf32>, vector<8x32xf32>, vector<2x32xf32> -> vector<2x32xf32>
    %528 = arith.addf %527, %112 : vector<2x32xf32>
    %529 = math.tanh %528 : vector<2x32xf32>
    %cst_81 = arith.constant dense<0.000000e+00> : vector<2x8xf32>
    %530 = tpu.matmul %529, %7, %cst_81 {dimension_numbers = #tpu.dot_dimension_numbers<[1], [0], [0], [1], [0, 0, 1, 1], [], []>} : vector<2x32xf32>, vector<32x8xf32>, vector<2x8xf32> -> vector<2x8xf32>
    %531 = vector.broadcast %8 : vector<1x8xf32> to vector<2x8xf32>
    %532 = arith.addf %530, %531 : vector<2x8xf32>
    %533 = vector.broadcast %526 : f32 to vector<2x8xf32>
    %534 = arith.mulf %533, %532 : vector<2x8xf32>
    %535 = arith.addf %521, %534 : vector<2x8xf32>
    %c0_82 = arith.constant 0 : index
    %c128 = arith.constant 128 : index
    %536 = vector.load %arg9[%c0_82, %c128] : memref<2x384xf32, #tpu.memory_space<vmem>>, vector<2x8xf32>
    tpu.vector_store %arg9[%c0_82, %c128], %535 {strides = array<i32>} : memref<2x384xf32, #tpu.memory_space<vmem>>, vector<2x8xf32>,
    %c48_i32_83 = arith.constant 48 : i32
    %537 = arith.muli %arg0, %c48_i32_83 : i32
    %c17_i32 = arith.constant 17 : i32
    %538 = arith.addi %537, %c17_i32 : i32
    %539 = arith.index_cast %538 : i32 to index
    %540 = memref.load %arg1[%539] : memref<48xf32, #tpu.memory_space<smem>>
    %cst_84 = arith.constant dense<0.000000e+00> : vector<2x32xf32>
    %541 = tpu.matmul %535, %4, %cst_84 {dimension_numbers = #tpu.dot_dimension_numbers<[1], [0], [0], [1], [0, 0, 1, 1], [], []>} : vector<2x8xf32>, vector<8x32xf32>, vector<2x32xf32> -> vector<2x32xf32>
    %542 = arith.addf %541, %118 : vector<2x32xf32>
    %543 = math.tanh %542 : vector<2x32xf32>
    %cst_85 = arith.constant dense<0.000000e+00> : vector<2x8xf32>
    %544 = tpu.matmul %543, %7, %cst_85 {dimension_numbers = #tpu.dot_dimension_numbers<[1], [0], [0], [1], [0, 0, 1, 1], [], []>} : vector<2x32xf32>, vector<32x8xf32>, vector<2x8xf32> -> vector<2x8xf32>
    %545 = vector.broadcast %8 : vector<1x8xf32> to vector<2x8xf32>
    %546 = arith.addf %544, %545 : vector<2x8xf32>
    %547 = vector.broadcast %540 : f32 to vector<2x8xf32>
    %548 = arith.mulf %547, %546 : vector<2x8xf32>
    %549 = arith.addf %535, %548 : vector<2x8xf32>
    %c0_86 = arith.constant 0 : index
    %c136 = arith.constant 136 : index
    %550 = vector.load %arg9[%c0_86, %c136] : memref<2x384xf32, #tpu.memory_space<vmem>>, vector<2x8xf32>
    tpu.vector_store %arg9[%c0_86, %c136], %549 {strides = array<i32>} : memref<2x384xf32, #tpu.memory_space<vmem>>, vector<2x8xf32>,
    %c48_i32_87 = arith.constant 48 : i32
    %551 = arith.muli %arg0, %c48_i32_87 : i32
    %c18_i32 = arith.constant 18 : i32
    %552 = arith.addi %551, %c18_i32 : i32
    %553 = arith.index_cast %552 : i32 to index
    %554 = memref.load %arg1[%553] : memref<48xf32, #tpu.memory_space<smem>>
    %cst_88 = arith.constant dense<0.000000e+00> : vector<2x32xf32>
    %555 = tpu.matmul %549, %4, %cst_88 {dimension_numbers = #tpu.dot_dimension_numbers<[1], [0], [0], [1], [0, 0, 1, 1], [], []>} : vector<2x8xf32>, vector<8x32xf32>, vector<2x32xf32> -> vector<2x32xf32>
    %556 = arith.addf %555, %124 : vector<2x32xf32>
    %557 = math.tanh %556 : vector<2x32xf32>
    %cst_89 = arith.constant dense<0.000000e+00> : vector<2x8xf32>
    %558 = tpu.matmul %557, %7, %cst_89 {dimension_numbers = #tpu.dot_dimension_numbers<[1], [0], [0], [1], [0, 0, 1, 1], [], []>} : vector<2x32xf32>, vector<32x8xf32>, vector<2x8xf32> -> vector<2x8xf32>
    %559 = vector.broadcast %8 : vector<1x8xf32> to vector<2x8xf32>
    %560 = arith.addf %558, %559 : vector<2x8xf32>
    %561 = vector.broadcast %554 : f32 to vector<2x8xf32>
    %562 = arith.mulf %561, %560 : vector<2x8xf32>
    %563 = arith.addf %549, %562 : vector<2x8xf32>
    %c0_90 = arith.constant 0 : index
    %c144 = arith.constant 144 : index
    %564 = vector.load %arg9[%c0_90, %c144] : memref<2x384xf32, #tpu.memory_space<vmem>>, vector<2x8xf32>
    tpu.vector_store %arg9[%c0_90, %c144], %563 {strides = array<i32>} : memref<2x384xf32, #tpu.memory_space<vmem>>, vector<2x8xf32>,
    %c48_i32_91 = arith.constant 48 : i32
    %565 = arith.muli %arg0, %c48_i32_91 : i32
    %c19_i32 = arith.constant 19 : i32
    %566 = arith.addi %565, %c19_i32 : i32
    %567 = arith.index_cast %566 : i32 to index
    %568 = memref.load %arg1[%567] : memref<48xf32, #tpu.memory_space<smem>>
    %cst_92 = arith.constant dense<0.000000e+00> : vector<2x32xf32>
    %569 = tpu.matmul %563, %4, %cst_92 {dimension_numbers = #tpu.dot_dimension_numbers<[1], [0], [0], [1], [0, 0, 1, 1], [], []>} : vector<2x8xf32>, vector<8x32xf32>, vector<2x32xf32> -> vector<2x32xf32>
    %570 = arith.addf %569, %130 : vector<2x32xf32>
    %571 = math.tanh %570 : vector<2x32xf32>
    %cst_93 = arith.constant dense<0.000000e+00> : vector<2x8xf32>
    %572 = tpu.matmul %571, %7, %cst_93 {dimension_numbers = #tpu.dot_dimension_numbers<[1], [0], [0], [1], [0, 0, 1, 1], [], []>} : vector<2x32xf32>, vector<32x8xf32>, vector<2x8xf32> -> vector<2x8xf32>
    %573 = vector.broadcast %8 : vector<1x8xf32> to vector<2x8xf32>
    %574 = arith.addf %572, %573 : vector<2x8xf32>
    %575 = vector.broadcast %568 : f32 to vector<2x8xf32>
    %576 = arith.mulf %575, %574 : vector<2x8xf32>
    %577 = arith.addf %563, %576 : vector<2x8xf32>
    %c0_94 = arith.constant 0 : index
    %c152 = arith.constant 152 : index
    %578 = vector.load %arg9[%c0_94, %c152] : memref<2x384xf32, #tpu.memory_space<vmem>>, vector<2x8xf32>
    tpu.vector_store %arg9[%c0_94, %c152], %577 {strides = array<i32>} : memref<2x384xf32, #tpu.memory_space<vmem>>, vector<2x8xf32>,
    %c48_i32_95 = arith.constant 48 : i32
    %579 = arith.muli %arg0, %c48_i32_95 : i32
    %c20_i32 = arith.constant 20 : i32
    %580 = arith.addi %579, %c20_i32 : i32
    %581 = arith.index_cast %580 : i32 to index
    %582 = memref.load %arg1[%581] : memref<48xf32, #tpu.memory_space<smem>>
    %cst_96 = arith.constant dense<0.000000e+00> : vector<2x32xf32>
    %583 = tpu.matmul %577, %4, %cst_96 {dimension_numbers = #tpu.dot_dimension_numbers<[1], [0], [0], [1], [0, 0, 1, 1], [], []>} : vector<2x8xf32>, vector<8x32xf32>, vector<2x32xf32> -> vector<2x32xf32>
    %584 = arith.addf %583, %136 : vector<2x32xf32>
    %585 = math.tanh %584 : vector<2x32xf32>
    %cst_97 = arith.constant dense<0.000000e+00> : vector<2x8xf32>
    %586 = tpu.matmul %585, %7, %cst_97 {dimension_numbers = #tpu.dot_dimension_numbers<[1], [0], [0], [1], [0, 0, 1, 1], [], []>} : vector<2x32xf32>, vector<32x8xf32>, vector<2x8xf32> -> vector<2x8xf32>
    %587 = vector.broadcast %8 : vector<1x8xf32> to vector<2x8xf32>
    %588 = arith.addf %586, %587 : vector<2x8xf32>
    %589 = vector.broadcast %582 : f32 to vector<2x8xf32>
    %590 = arith.mulf %589, %588 : vector<2x8xf32>
    %591 = arith.addf %577, %590 : vector<2x8xf32>
    %c0_98 = arith.constant 0 : index
    %c160 = arith.constant 160 : index
    %592 = vector.load %arg9[%c0_98, %c160] : memref<2x384xf32, #tpu.memory_space<vmem>>, vector<2x8xf32>
    tpu.vector_store %arg9[%c0_98, %c160], %591 {strides = array<i32>} : memref<2x384xf32, #tpu.memory_space<vmem>>, vector<2x8xf32>,
    %c48_i32_99 = arith.constant 48 : i32
    %593 = arith.muli %arg0, %c48_i32_99 : i32
    %c21_i32 = arith.constant 21 : i32
    %594 = arith.addi %593, %c21_i32 : i32
    %595 = arith.index_cast %594 : i32 to index
    %596 = memref.load %arg1[%595] : memref<48xf32, #tpu.memory_space<smem>>
    %cst_100 = arith.constant dense<0.000000e+00> : vector<2x32xf32>
    %597 = tpu.matmul %591, %4, %cst_100 {dimension_numbers = #tpu.dot_dimension_numbers<[1], [0], [0], [1], [0, 0, 1, 1], [], []>} : vector<2x8xf32>, vector<8x32xf32>, vector<2x32xf32> -> vector<2x32xf32>
    %598 = arith.addf %597, %142 : vector<2x32xf32>
    %599 = math.tanh %598 : vector<2x32xf32>
    %cst_101 = arith.constant dense<0.000000e+00> : vector<2x8xf32>
    %600 = tpu.matmul %599, %7, %cst_101 {dimension_numbers = #tpu.dot_dimension_numbers<[1], [0], [0], [1], [0, 0, 1, 1], [], []>} : vector<2x32xf32>, vector<32x8xf32>, vector<2x8xf32> -> vector<2x8xf32>
    %601 = vector.broadcast %8 : vector<1x8xf32> to vector<2x8xf32>
    %602 = arith.addf %600, %601 : vector<2x8xf32>
    %603 = vector.broadcast %596 : f32 to vector<2x8xf32>
    %604 = arith.mulf %603, %602 : vector<2x8xf32>
    %605 = arith.addf %591, %604 : vector<2x8xf32>
    %c0_102 = arith.constant 0 : index
    %c168 = arith.constant 168 : index
    %606 = vector.load %arg9[%c0_102, %c168] : memref<2x384xf32, #tpu.memory_space<vmem>>, vector<2x8xf32>
    tpu.vector_store %arg9[%c0_102, %c168], %605 {strides = array<i32>} : memref<2x384xf32, #tpu.memory_space<vmem>>, vector<2x8xf32>,
    %c48_i32_103 = arith.constant 48 : i32
    %607 = arith.muli %arg0, %c48_i32_103 : i32
    %c22_i32 = arith.constant 22 : i32
    %608 = arith.addi %607, %c22_i32 : i32
    %609 = arith.index_cast %608 : i32 to index
    %610 = memref.load %arg1[%609] : memref<48xf32, #tpu.memory_space<smem>>
    %cst_104 = arith.constant dense<0.000000e+00> : vector<2x32xf32>
    %611 = tpu.matmul %605, %4, %cst_104 {dimension_numbers = #tpu.dot_dimension_numbers<[1], [0], [0], [1], [0, 0, 1, 1], [], []>} : vector<2x8xf32>, vector<8x32xf32>, vector<2x32xf32> -> vector<2x32xf32>
    %612 = arith.addf %611, %148 : vector<2x32xf32>
    %613 = math.tanh %612 : vector<2x32xf32>
    %cst_105 = arith.constant dense<0.000000e+00> : vector<2x8xf32>
    %614 = tpu.matmul %613, %7, %cst_105 {dimension_numbers = #tpu.dot_dimension_numbers<[1], [0], [0], [1], [0, 0, 1, 1], [], []>} : vector<2x32xf32>, vector<32x8xf32>, vector<2x8xf32> -> vector<2x8xf32>
    %615 = vector.broadcast %8 : vector<1x8xf32> to vector<2x8xf32>
    %616 = arith.addf %614, %615 : vector<2x8xf32>
    %617 = vector.broadcast %610 : f32 to vector<2x8xf32>
    %618 = arith.mulf %617, %616 : vector<2x8xf32>
    %619 = arith.addf %605, %618 : vector<2x8xf32>
    %c0_106 = arith.constant 0 : index
    %c176 = arith.constant 176 : index
    %620 = vector.load %arg9[%c0_106, %c176] : memref<2x384xf32, #tpu.memory_space<vmem>>, vector<2x8xf32>
    tpu.vector_store %arg9[%c0_106, %c176], %619 {strides = array<i32>} : memref<2x384xf32, #tpu.memory_space<vmem>>, vector<2x8xf32>,
    %c48_i32_107 = arith.constant 48 : i32
    %621 = arith.muli %arg0, %c48_i32_107 : i32
    %c23_i32 = arith.constant 23 : i32
    %622 = arith.addi %621, %c23_i32 : i32
    %623 = arith.index_cast %622 : i32 to index
    %624 = memref.load %arg1[%623] : memref<48xf32, #tpu.memory_space<smem>>
    %cst_108 = arith.constant dense<0.000000e+00> : vector<2x32xf32>
    %625 = tpu.matmul %619, %4, %cst_108 {dimension_numbers = #tpu.dot_dimension_numbers<[1], [0], [0], [1], [0, 0, 1, 1], [], []>} : vector<2x8xf32>, vector<8x32xf32>, vector<2x32xf32> -> vector<2x32xf32>
    %626 = arith.addf %625, %154 : vector<2x32xf32>
    %627 = math.tanh %626 : vector<2x32xf32>
    %cst_109 = arith.constant dense<0.000000e+00> : vector<2x8xf32>
    %628 = tpu.matmul %627, %7, %cst_109 {dimension_numbers = #tpu.dot_dimension_numbers<[1], [0], [0], [1], [0, 0, 1, 1], [], []>} : vector<2x32xf32>, vector<32x8xf32>, vector<2x8xf32> -> vector<2x8xf32>
    %629 = vector.broadcast %8 : vector<1x8xf32> to vector<2x8xf32>
    %630 = arith.addf %628, %629 : vector<2x8xf32>
    %631 = vector.broadcast %624 : f32 to vector<2x8xf32>
    %632 = arith.mulf %631, %630 : vector<2x8xf32>
    %633 = arith.addf %619, %632 : vector<2x8xf32>
    %c0_110 = arith.constant 0 : index
    %c184 = arith.constant 184 : index
    %634 = vector.load %arg9[%c0_110, %c184] : memref<2x384xf32, #tpu.memory_space<vmem>>, vector<2x8xf32>
    tpu.vector_store %arg9[%c0_110, %c184], %633 {strides = array<i32>} : memref<2x384xf32, #tpu.memory_space<vmem>>, vector<2x8xf32>,
    %c48_i32_111 = arith.constant 48 : i32
    %635 = arith.muli %arg0, %c48_i32_111 : i32
    %c24_i32 = arith.constant 24 : i32
    %636 = arith.addi %635, %c24_i32 : i32
    %637 = arith.index_cast %636 : i32 to index
    %638 = memref.load %arg1[%637] : memref<48xf32, #tpu.memory_space<smem>>
    %cst_112 = arith.constant dense<0.000000e+00> : vector<2x32xf32>
    %639 = tpu.matmul %633, %4, %cst_112 {dimension_numbers = #tpu.dot_dimension_numbers<[1], [0], [0], [1], [0, 0, 1, 1], [], []>} : vector<2x8xf32>, vector<8x32xf32>, vector<2x32xf32> -> vector<2x32xf32>
    %640 = arith.addf %639, %160 : vector<2x32xf32>
    %641 = math.tanh %640 : vector<2x32xf32>
    %cst_113 = arith.constant dense<0.000000e+00> : vector<2x8xf32>
    %642 = tpu.matmul %641, %7, %cst_113 {dimension_numbers = #tpu.dot_dimension_numbers<[1], [0], [0], [1], [0, 0, 1, 1], [], []>} : vector<2x32xf32>, vector<32x8xf32>, vector<2x8xf32> -> vector<2x8xf32>
    %643 = vector.broadcast %8 : vector<1x8xf32> to vector<2x8xf32>
    %644 = arith.addf %642, %643 : vector<2x8xf32>
    %645 = vector.broadcast %638 : f32 to vector<2x8xf32>
    %646 = arith.mulf %645, %644 : vector<2x8xf32>
    %647 = arith.addf %633, %646 : vector<2x8xf32>
    %c0_114 = arith.constant 0 : index
    %c192 = arith.constant 192 : index
    %648 = vector.load %arg9[%c0_114, %c192] : memref<2x384xf32, #tpu.memory_space<vmem>>, vector<2x8xf32>
    tpu.vector_store %arg9[%c0_114, %c192], %647 {strides = array<i32>} : memref<2x384xf32, #tpu.memory_space<vmem>>, vector<2x8xf32>,
    %c48_i32_115 = arith.constant 48 : i32
    %649 = arith.muli %arg0, %c48_i32_115 : i32
    %c25_i32 = arith.constant 25 : i32
    %650 = arith.addi %649, %c25_i32 : i32
    %651 = arith.index_cast %650 : i32 to index
    %652 = memref.load %arg1[%651] : memref<48xf32, #tpu.memory_space<smem>>
    %cst_116 = arith.constant dense<0.000000e+00> : vector<2x32xf32>
    %653 = tpu.matmul %647, %4, %cst_116 {dimension_numbers = #tpu.dot_dimension_numbers<[1], [0], [0], [1], [0, 0, 1, 1], [], []>} : vector<2x8xf32>, vector<8x32xf32>, vector<2x32xf32> -> vector<2x32xf32>
    %654 = arith.addf %653, %166 : vector<2x32xf32>
    %655 = math.tanh %654 : vector<2x32xf32>
    %cst_117 = arith.constant dense<0.000000e+00> : vector<2x8xf32>
    %656 = tpu.matmul %655, %7, %cst_117 {dimension_numbers = #tpu.dot_dimension_numbers<[1], [0], [0], [1], [0, 0, 1, 1], [], []>} : vector<2x32xf32>, vector<32x8xf32>, vector<2x8xf32> -> vector<2x8xf32>
    %657 = vector.broadcast %8 : vector<1x8xf32> to vector<2x8xf32>
    %658 = arith.addf %656, %657 : vector<2x8xf32>
    %659 = vector.broadcast %652 : f32 to vector<2x8xf32>
    %660 = arith.mulf %659, %658 : vector<2x8xf32>
    %661 = arith.addf %647, %660 : vector<2x8xf32>
    %c0_118 = arith.constant 0 : index
    %c200 = arith.constant 200 : index
    %662 = vector.load %arg9[%c0_118, %c200] : memref<2x384xf32, #tpu.memory_space<vmem>>, vector<2x8xf32>
    tpu.vector_store %arg9[%c0_118, %c200], %661 {strides = array<i32>} : memref<2x384xf32, #tpu.memory_space<vmem>>, vector<2x8xf32>,
    %c48_i32_119 = arith.constant 48 : i32
    %663 = arith.muli %arg0, %c48_i32_119 : i32
    %c26_i32 = arith.constant 26 : i32
    %664 = arith.addi %663, %c26_i32 : i32
    %665 = arith.index_cast %664 : i32 to index
    %666 = memref.load %arg1[%665] : memref<48xf32, #tpu.memory_space<smem>>
    %cst_120 = arith.constant dense<0.000000e+00> : vector<2x32xf32>
    %667 = tpu.matmul %661, %4, %cst_120 {dimension_numbers = #tpu.dot_dimension_numbers<[1], [0], [0], [1], [0, 0, 1, 1], [], []>} : vector<2x8xf32>, vector<8x32xf32>, vector<2x32xf32> -> vector<2x32xf32>
    %668 = arith.addf %667, %172 : vector<2x32xf32>
    %669 = math.tanh %668 : vector<2x32xf32>
    %cst_121 = arith.constant dense<0.000000e+00> : vector<2x8xf32>
    %670 = tpu.matmul %669, %7, %cst_121 {dimension_numbers = #tpu.dot_dimension_numbers<[1], [0], [0], [1], [0, 0, 1, 1], [], []>} : vector<2x32xf32>, vector<32x8xf32>, vector<2x8xf32> -> vector<2x8xf32>
    %671 = vector.broadcast %8 : vector<1x8xf32> to vector<2x8xf32>
    %672 = arith.addf %670, %671 : vector<2x8xf32>
    %673 = vector.broadcast %666 : f32 to vector<2x8xf32>
    %674 = arith.mulf %673, %672 : vector<2x8xf32>
    %675 = arith.addf %661, %674 : vector<2x8xf32>
    %c0_122 = arith.constant 0 : index
    %c208 = arith.constant 208 : index
    %676 = vector.load %arg9[%c0_122, %c208] : memref<2x384xf32, #tpu.memory_space<vmem>>, vector<2x8xf32>
    tpu.vector_store %arg9[%c0_122, %c208], %675 {strides = array<i32>} : memref<2x384xf32, #tpu.memory_space<vmem>>, vector<2x8xf32>,
    %c48_i32_123 = arith.constant 48 : i32
    %677 = arith.muli %arg0, %c48_i32_123 : i32
    %c27_i32 = arith.constant 27 : i32
    %678 = arith.addi %677, %c27_i32 : i32
    %679 = arith.index_cast %678 : i32 to index
    %680 = memref.load %arg1[%679] : memref<48xf32, #tpu.memory_space<smem>>
    %cst_124 = arith.constant dense<0.000000e+00> : vector<2x32xf32>
    %681 = tpu.matmul %675, %4, %cst_124 {dimension_numbers = #tpu.dot_dimension_numbers<[1], [0], [0], [1], [0, 0, 1, 1], [], []>} : vector<2x8xf32>, vector<8x32xf32>, vector<2x32xf32> -> vector<2x32xf32>
    %682 = arith.addf %681, %178 : vector<2x32xf32>
    %683 = math.tanh %682 : vector<2x32xf32>
    %cst_125 = arith.constant dense<0.000000e+00> : vector<2x8xf32>
    %684 = tpu.matmul %683, %7, %cst_125 {dimension_numbers = #tpu.dot_dimension_numbers<[1], [0], [0], [1], [0, 0, 1, 1], [], []>} : vector<2x32xf32>, vector<32x8xf32>, vector<2x8xf32> -> vector<2x8xf32>
    %685 = vector.broadcast %8 : vector<1x8xf32> to vector<2x8xf32>
    %686 = arith.addf %684, %685 : vector<2x8xf32>
    %687 = vector.broadcast %680 : f32 to vector<2x8xf32>
    %688 = arith.mulf %687, %686 : vector<2x8xf32>
    %689 = arith.addf %675, %688 : vector<2x8xf32>
    %c0_126 = arith.constant 0 : index
    %c216 = arith.constant 216 : index
    %690 = vector.load %arg9[%c0_126, %c216] : memref<2x384xf32, #tpu.memory_space<vmem>>, vector<2x8xf32>
    tpu.vector_store %arg9[%c0_126, %c216], %689 {strides = array<i32>} : memref<2x384xf32, #tpu.memory_space<vmem>>, vector<2x8xf32>,
    %c48_i32_127 = arith.constant 48 : i32
    %691 = arith.muli %arg0, %c48_i32_127 : i32
    %c28_i32 = arith.constant 28 : i32
    %692 = arith.addi %691, %c28_i32 : i32
    %693 = arith.index_cast %692 : i32 to index
    %694 = memref.load %arg1[%693] : memref<48xf32, #tpu.memory_space<smem>>
    %cst_128 = arith.constant dense<0.000000e+00> : vector<2x32xf32>
    %695 = tpu.matmul %689, %4, %cst_128 {dimension_numbers = #tpu.dot_dimension_numbers<[1], [0], [0], [1], [0, 0, 1, 1], [], []>} : vector<2x8xf32>, vector<8x32xf32>, vector<2x32xf32> -> vector<2x32xf32>
    %696 = arith.addf %695, %184 : vector<2x32xf32>
    %697 = math.tanh %696 : vector<2x32xf32>
    %cst_129 = arith.constant dense<0.000000e+00> : vector<2x8xf32>
    %698 = tpu.matmul %697, %7, %cst_129 {dimension_numbers = #tpu.dot_dimension_numbers<[1], [0], [0], [1], [0, 0, 1, 1], [], []>} : vector<2x32xf32>, vector<32x8xf32>, vector<2x8xf32> -> vector<2x8xf32>
    %699 = vector.broadcast %8 : vector<1x8xf32> to vector<2x8xf32>
    %700 = arith.addf %698, %699 : vector<2x8xf32>
    %701 = vector.broadcast %694 : f32 to vector<2x8xf32>
    %702 = arith.mulf %701, %700 : vector<2x8xf32>
    %703 = arith.addf %689, %702 : vector<2x8xf32>
    %c0_130 = arith.constant 0 : index
    %c224 = arith.constant 224 : index
    %704 = vector.load %arg9[%c0_130, %c224] : memref<2x384xf32, #tpu.memory_space<vmem>>, vector<2x8xf32>
    tpu.vector_store %arg9[%c0_130, %c224], %703 {strides = array<i32>} : memref<2x384xf32, #tpu.memory_space<vmem>>, vector<2x8xf32>,
    %c48_i32_131 = arith.constant 48 : i32
    %705 = arith.muli %arg0, %c48_i32_131 : i32
    %c29_i32 = arith.constant 29 : i32
    %706 = arith.addi %705, %c29_i32 : i32
    %707 = arith.index_cast %706 : i32 to index
    %708 = memref.load %arg1[%707] : memref<48xf32, #tpu.memory_space<smem>>
    %cst_132 = arith.constant dense<0.000000e+00> : vector<2x32xf32>
    %709 = tpu.matmul %703, %4, %cst_132 {dimension_numbers = #tpu.dot_dimension_numbers<[1], [0], [0], [1], [0, 0, 1, 1], [], []>} : vector<2x8xf32>, vector<8x32xf32>, vector<2x32xf32> -> vector<2x32xf32>
    %710 = arith.addf %709, %190 : vector<2x32xf32>
    %711 = math.tanh %710 : vector<2x32xf32>
    %cst_133 = arith.constant dense<0.000000e+00> : vector<2x8xf32>
    %712 = tpu.matmul %711, %7, %cst_133 {dimension_numbers = #tpu.dot_dimension_numbers<[1], [0], [0], [1], [0, 0, 1, 1], [], []>} : vector<2x32xf32>, vector<32x8xf32>, vector<2x8xf32> -> vector<2x8xf32>
    %713 = vector.broadcast %8 : vector<1x8xf32> to vector<2x8xf32>
    %714 = arith.addf %712, %713 : vector<2x8xf32>
    %715 = vector.broadcast %708 : f32 to vector<2x8xf32>
    %716 = arith.mulf %715, %714 : vector<2x8xf32>
    %717 = arith.addf %703, %716 : vector<2x8xf32>
    %c0_134 = arith.constant 0 : index
    %c232 = arith.constant 232 : index
    %718 = vector.load %arg9[%c0_134, %c232] : memref<2x384xf32, #tpu.memory_space<vmem>>, vector<2x8xf32>
    tpu.vector_store %arg9[%c0_134, %c232], %717 {strides = array<i32>} : memref<2x384xf32, #tpu.memory_space<vmem>>, vector<2x8xf32>,
    %c48_i32_135 = arith.constant 48 : i32
    %719 = arith.muli %arg0, %c48_i32_135 : i32
    %c30_i32 = arith.constant 30 : i32
    %720 = arith.addi %719, %c30_i32 : i32
    %721 = arith.index_cast %720 : i32 to index
    %722 = memref.load %arg1[%721] : memref<48xf32, #tpu.memory_space<smem>>
    %cst_136 = arith.constant dense<0.000000e+00> : vector<2x32xf32>
    %723 = tpu.matmul %717, %4, %cst_136 {dimension_numbers = #tpu.dot_dimension_numbers<[1], [0], [0], [1], [0, 0, 1, 1], [], []>} : vector<2x8xf32>, vector<8x32xf32>, vector<2x32xf32> -> vector<2x32xf32>
    %724 = arith.addf %723, %196 : vector<2x32xf32>
    %725 = math.tanh %724 : vector<2x32xf32>
    %cst_137 = arith.constant dense<0.000000e+00> : vector<2x8xf32>
    %726 = tpu.matmul %725, %7, %cst_137 {dimension_numbers = #tpu.dot_dimension_numbers<[1], [0], [0], [1], [0, 0, 1, 1], [], []>} : vector<2x32xf32>, vector<32x8xf32>, vector<2x8xf32> -> vector<2x8xf32>
    %727 = vector.broadcast %8 : vector<1x8xf32> to vector<2x8xf32>
    %728 = arith.addf %726, %727 : vector<2x8xf32>
    %729 = vector.broadcast %722 : f32 to vector<2x8xf32>
    %730 = arith.mulf %729, %728 : vector<2x8xf32>
    %731 = arith.addf %717, %730 : vector<2x8xf32>
    %c0_138 = arith.constant 0 : index
    %c240 = arith.constant 240 : index
    %732 = vector.load %arg9[%c0_138, %c240] : memref<2x384xf32, #tpu.memory_space<vmem>>, vector<2x8xf32>
    tpu.vector_store %arg9[%c0_138, %c240], %731 {strides = array<i32>} : memref<2x384xf32, #tpu.memory_space<vmem>>, vector<2x8xf32>,
    %c48_i32_139 = arith.constant 48 : i32
    %733 = arith.muli %arg0, %c48_i32_139 : i32
    %c31_i32 = arith.constant 31 : i32
    %734 = arith.addi %733, %c31_i32 : i32
    %735 = arith.index_cast %734 : i32 to index
    %736 = memref.load %arg1[%735] : memref<48xf32, #tpu.memory_space<smem>>
    %cst_140 = arith.constant dense<0.000000e+00> : vector<2x32xf32>
    %737 = tpu.matmul %731, %4, %cst_140 {dimension_numbers = #tpu.dot_dimension_numbers<[1], [0], [0], [1], [0, 0, 1, 1], [], []>} : vector<2x8xf32>, vector<8x32xf32>, vector<2x32xf32> -> vector<2x32xf32>
    %738 = arith.addf %737, %202 : vector<2x32xf32>
    %739 = math.tanh %738 : vector<2x32xf32>
    %cst_141 = arith.constant dense<0.000000e+00> : vector<2x8xf32>
    %740 = tpu.matmul %739, %7, %cst_141 {dimension_numbers = #tpu.dot_dimension_numbers<[1], [0], [0], [1], [0, 0, 1, 1], [], []>} : vector<2x32xf32>, vector<32x8xf32>, vector<2x8xf32> -> vector<2x8xf32>
    %741 = vector.broadcast %8 : vector<1x8xf32> to vector<2x8xf32>
    %742 = arith.addf %740, %741 : vector<2x8xf32>
    %743 = vector.broadcast %736 : f32 to vector<2x8xf32>
    %744 = arith.mulf %743, %742 : vector<2x8xf32>
    %745 = arith.addf %731, %744 : vector<2x8xf32>
    %c0_142 = arith.constant 0 : index
    %c248 = arith.constant 248 : index
    %746 = vector.load %arg9[%c0_142, %c248] : memref<2x384xf32, #tpu.memory_space<vmem>>, vector<2x8xf32>
    tpu.vector_store %arg9[%c0_142, %c248], %745 {strides = array<i32>} : memref<2x384xf32, #tpu.memory_space<vmem>>, vector<2x8xf32>,
    %c48_i32_143 = arith.constant 48 : i32
    %747 = arith.muli %arg0, %c48_i32_143 : i32
    %c32_i32 = arith.constant 32 : i32
    %748 = arith.addi %747, %c32_i32 : i32
    %749 = arith.index_cast %748 : i32 to index
    %750 = memref.load %arg1[%749] : memref<48xf32, #tpu.memory_space<smem>>
    %cst_144 = arith.constant dense<0.000000e+00> : vector<2x32xf32>
    %751 = tpu.matmul %745, %4, %cst_144 {dimension_numbers = #tpu.dot_dimension_numbers<[1], [0], [0], [1], [0, 0, 1, 1], [], []>} : vector<2x8xf32>, vector<8x32xf32>, vector<2x32xf32> -> vector<2x32xf32>
    %752 = arith.addf %751, %208 : vector<2x32xf32>
    %753 = math.tanh %752 : vector<2x32xf32>
    %cst_145 = arith.constant dense<0.000000e+00> : vector<2x8xf32>
    %754 = tpu.matmul %753, %7, %cst_145 {dimension_numbers = #tpu.dot_dimension_numbers<[1], [0], [0], [1], [0, 0, 1, 1], [], []>} : vector<2x32xf32>, vector<32x8xf32>, vector<2x8xf32> -> vector<2x8xf32>
    %755 = vector.broadcast %8 : vector<1x8xf32> to vector<2x8xf32>
    %756 = arith.addf %754, %755 : vector<2x8xf32>
    %757 = vector.broadcast %750 : f32 to vector<2x8xf32>
    %758 = arith.mulf %757, %756 : vector<2x8xf32>
    %759 = arith.addf %745, %758 : vector<2x8xf32>
    %c0_146 = arith.constant 0 : index
    %c256 = arith.constant 256 : index
    %760 = vector.load %arg9[%c0_146, %c256] : memref<2x384xf32, #tpu.memory_space<vmem>>, vector<2x8xf32>
    tpu.vector_store %arg9[%c0_146, %c256], %759 {strides = array<i32>} : memref<2x384xf32, #tpu.memory_space<vmem>>, vector<2x8xf32>,
    %c48_i32_147 = arith.constant 48 : i32
    %761 = arith.muli %arg0, %c48_i32_147 : i32
    %c33_i32 = arith.constant 33 : i32
    %762 = arith.addi %761, %c33_i32 : i32
    %763 = arith.index_cast %762 : i32 to index
    %764 = memref.load %arg1[%763] : memref<48xf32, #tpu.memory_space<smem>>
    %cst_148 = arith.constant dense<0.000000e+00> : vector<2x32xf32>
    %765 = tpu.matmul %759, %4, %cst_148 {dimension_numbers = #tpu.dot_dimension_numbers<[1], [0], [0], [1], [0, 0, 1, 1], [], []>} : vector<2x8xf32>, vector<8x32xf32>, vector<2x32xf32> -> vector<2x32xf32>
    %766 = arith.addf %765, %214 : vector<2x32xf32>
    %767 = math.tanh %766 : vector<2x32xf32>
    %cst_149 = arith.constant dense<0.000000e+00> : vector<2x8xf32>
    %768 = tpu.matmul %767, %7, %cst_149 {dimension_numbers = #tpu.dot_dimension_numbers<[1], [0], [0], [1], [0, 0, 1, 1], [], []>} : vector<2x32xf32>, vector<32x8xf32>, vector<2x8xf32> -> vector<2x8xf32>
    %769 = vector.broadcast %8 : vector<1x8xf32> to vector<2x8xf32>
    %770 = arith.addf %768, %769 : vector<2x8xf32>
    %771 = vector.broadcast %764 : f32 to vector<2x8xf32>
    %772 = arith.mulf %771, %770 : vector<2x8xf32>
    %773 = arith.addf %759, %772 : vector<2x8xf32>
    %c0_150 = arith.constant 0 : index
    %c264 = arith.constant 264 : index
    %774 = vector.load %arg9[%c0_150, %c264] : memref<2x384xf32, #tpu.memory_space<vmem>>, vector<2x8xf32>
    tpu.vector_store %arg9[%c0_150, %c264], %773 {strides = array<i32>} : memref<2x384xf32, #tpu.memory_space<vmem>>, vector<2x8xf32>,
    %c48_i32_151 = arith.constant 48 : i32
    %775 = arith.muli %arg0, %c48_i32_151 : i32
    %c34_i32 = arith.constant 34 : i32
    %776 = arith.addi %775, %c34_i32 : i32
    %777 = arith.index_cast %776 : i32 to index
    %778 = memref.load %arg1[%777] : memref<48xf32, #tpu.memory_space<smem>>
    %cst_152 = arith.constant dense<0.000000e+00> : vector<2x32xf32>
    %779 = tpu.matmul %773, %4, %cst_152 {dimension_numbers = #tpu.dot_dimension_numbers<[1], [0], [0], [1], [0, 0, 1, 1], [], []>} : vector<2x8xf32>, vector<8x32xf32>, vector<2x32xf32> -> vector<2x32xf32>
    %780 = arith.addf %779, %220 : vector<2x32xf32>
    %781 = math.tanh %780 : vector<2x32xf32>
    %cst_153 = arith.constant dense<0.000000e+00> : vector<2x8xf32>
    %782 = tpu.matmul %781, %7, %cst_153 {dimension_numbers = #tpu.dot_dimension_numbers<[1], [0], [0], [1], [0, 0, 1, 1], [], []>} : vector<2x32xf32>, vector<32x8xf32>, vector<2x8xf32> -> vector<2x8xf32>
    %783 = vector.broadcast %8 : vector<1x8xf32> to vector<2x8xf32>
    %784 = arith.addf %782, %783 : vector<2x8xf32>
    %785 = vector.broadcast %778 : f32 to vector<2x8xf32>
    %786 = arith.mulf %785, %784 : vector<2x8xf32>
    %787 = arith.addf %773, %786 : vector<2x8xf32>
    %c0_154 = arith.constant 0 : index
    %c272 = arith.constant 272 : index
    %788 = vector.load %arg9[%c0_154, %c272] : memref<2x384xf32, #tpu.memory_space<vmem>>, vector<2x8xf32>
    tpu.vector_store %arg9[%c0_154, %c272], %787 {strides = array<i32>} : memref<2x384xf32, #tpu.memory_space<vmem>>, vector<2x8xf32>,
    %c48_i32_155 = arith.constant 48 : i32
    %789 = arith.muli %arg0, %c48_i32_155 : i32
    %c35_i32 = arith.constant 35 : i32
    %790 = arith.addi %789, %c35_i32 : i32
    %791 = arith.index_cast %790 : i32 to index
    %792 = memref.load %arg1[%791] : memref<48xf32, #tpu.memory_space<smem>>
    %cst_156 = arith.constant dense<0.000000e+00> : vector<2x32xf32>
    %793 = tpu.matmul %787, %4, %cst_156 {dimension_numbers = #tpu.dot_dimension_numbers<[1], [0], [0], [1], [0, 0, 1, 1], [], []>} : vector<2x8xf32>, vector<8x32xf32>, vector<2x32xf32> -> vector<2x32xf32>
    %794 = arith.addf %793, %226 : vector<2x32xf32>
    %795 = math.tanh %794 : vector<2x32xf32>
    %cst_157 = arith.constant dense<0.000000e+00> : vector<2x8xf32>
    %796 = tpu.matmul %795, %7, %cst_157 {dimension_numbers = #tpu.dot_dimension_numbers<[1], [0], [0], [1], [0, 0, 1, 1], [], []>} : vector<2x32xf32>, vector<32x8xf32>, vector<2x8xf32> -> vector<2x8xf32>
    %797 = vector.broadcast %8 : vector<1x8xf32> to vector<2x8xf32>
    %798 = arith.addf %796, %797 : vector<2x8xf32>
    %799 = vector.broadcast %792 : f32 to vector<2x8xf32>
    %800 = arith.mulf %799, %798 : vector<2x8xf32>
    %801 = arith.addf %787, %800 : vector<2x8xf32>
    %c0_158 = arith.constant 0 : index
    %c280 = arith.constant 280 : index
    %802 = vector.load %arg9[%c0_158, %c280] : memref<2x384xf32, #tpu.memory_space<vmem>>, vector<2x8xf32>
    tpu.vector_store %arg9[%c0_158, %c280], %801 {strides = array<i32>} : memref<2x384xf32, #tpu.memory_space<vmem>>, vector<2x8xf32>,
    %c48_i32_159 = arith.constant 48 : i32
    %803 = arith.muli %arg0, %c48_i32_159 : i32
    %c36_i32 = arith.constant 36 : i32
    %804 = arith.addi %803, %c36_i32 : i32
    %805 = arith.index_cast %804 : i32 to index
    %806 = memref.load %arg1[%805] : memref<48xf32, #tpu.memory_space<smem>>
    %cst_160 = arith.constant dense<0.000000e+00> : vector<2x32xf32>
    %807 = tpu.matmul %801, %4, %cst_160 {dimension_numbers = #tpu.dot_dimension_numbers<[1], [0], [0], [1], [0, 0, 1, 1], [], []>} : vector<2x8xf32>, vector<8x32xf32>, vector<2x32xf32> -> vector<2x32xf32>
    %808 = arith.addf %807, %232 : vector<2x32xf32>
    %809 = math.tanh %808 : vector<2x32xf32>
    %cst_161 = arith.constant dense<0.000000e+00> : vector<2x8xf32>
    %810 = tpu.matmul %809, %7, %cst_161 {dimension_numbers = #tpu.dot_dimension_numbers<[1], [0], [0], [1], [0, 0, 1, 1], [], []>} : vector<2x32xf32>, vector<32x8xf32>, vector<2x8xf32> -> vector<2x8xf32>
    %811 = vector.broadcast %8 : vector<1x8xf32> to vector<2x8xf32>
    %812 = arith.addf %810, %811 : vector<2x8xf32>
    %813 = vector.broadcast %806 : f32 to vector<2x8xf32>
    %814 = arith.mulf %813, %812 : vector<2x8xf32>
    %815 = arith.addf %801, %814 : vector<2x8xf32>
    %c0_162 = arith.constant 0 : index
    %c288 = arith.constant 288 : index
    %816 = vector.load %arg9[%c0_162, %c288] : memref<2x384xf32, #tpu.memory_space<vmem>>, vector<2x8xf32>
    tpu.vector_store %arg9[%c0_162, %c288], %815 {strides = array<i32>} : memref<2x384xf32, #tpu.memory_space<vmem>>, vector<2x8xf32>,
    %c48_i32_163 = arith.constant 48 : i32
    %817 = arith.muli %arg0, %c48_i32_163 : i32
    %c37_i32 = arith.constant 37 : i32
    %818 = arith.addi %817, %c37_i32 : i32
    %819 = arith.index_cast %818 : i32 to index
    %820 = memref.load %arg1[%819] : memref<48xf32, #tpu.memory_space<smem>>
    %cst_164 = arith.constant dense<0.000000e+00> : vector<2x32xf32>
    %821 = tpu.matmul %815, %4, %cst_164 {dimension_numbers = #tpu.dot_dimension_numbers<[1], [0], [0], [1], [0, 0, 1, 1], [], []>} : vector<2x8xf32>, vector<8x32xf32>, vector<2x32xf32> -> vector<2x32xf32>
    %822 = arith.addf %821, %238 : vector<2x32xf32>
    %823 = math.tanh %822 : vector<2x32xf32>
    %cst_165 = arith.constant dense<0.000000e+00> : vector<2x8xf32>
    %824 = tpu.matmul %823, %7, %cst_165 {dimension_numbers = #tpu.dot_dimension_numbers<[1], [0], [0], [1], [0, 0, 1, 1], [], []>} : vector<2x32xf32>, vector<32x8xf32>, vector<2x8xf32> -> vector<2x8xf32>
    %825 = vector.broadcast %8 : vector<1x8xf32> to vector<2x8xf32>
    %826 = arith.addf %824, %825 : vector<2x8xf32>
    %827 = vector.broadcast %820 : f32 to vector<2x8xf32>
    %828 = arith.mulf %827, %826 : vector<2x8xf32>
    %829 = arith.addf %815, %828 : vector<2x8xf32>
    %c0_166 = arith.constant 0 : index
    %c296 = arith.constant 296 : index
    %830 = vector.load %arg9[%c0_166, %c296] : memref<2x384xf32, #tpu.memory_space<vmem>>, vector<2x8xf32>
    tpu.vector_store %arg9[%c0_166, %c296], %829 {strides = array<i32>} : memref<2x384xf32, #tpu.memory_space<vmem>>, vector<2x8xf32>,
    %c48_i32_167 = arith.constant 48 : i32
    %831 = arith.muli %arg0, %c48_i32_167 : i32
    %c38_i32 = arith.constant 38 : i32
    %832 = arith.addi %831, %c38_i32 : i32
    %833 = arith.index_cast %832 : i32 to index
    %834 = memref.load %arg1[%833] : memref<48xf32, #tpu.memory_space<smem>>
    %cst_168 = arith.constant dense<0.000000e+00> : vector<2x32xf32>
    %835 = tpu.matmul %829, %4, %cst_168 {dimension_numbers = #tpu.dot_dimension_numbers<[1], [0], [0], [1], [0, 0, 1, 1], [], []>} : vector<2x8xf32>, vector<8x32xf32>, vector<2x32xf32> -> vector<2x32xf32>
    %836 = arith.addf %835, %244 : vector<2x32xf32>
    %837 = math.tanh %836 : vector<2x32xf32>
    %cst_169 = arith.constant dense<0.000000e+00> : vector<2x8xf32>
    %838 = tpu.matmul %837, %7, %cst_169 {dimension_numbers = #tpu.dot_dimension_numbers<[1], [0], [0], [1], [0, 0, 1, 1], [], []>} : vector<2x32xf32>, vector<32x8xf32>, vector<2x8xf32> -> vector<2x8xf32>
    %839 = vector.broadcast %8 : vector<1x8xf32> to vector<2x8xf32>
    %840 = arith.addf %838, %839 : vector<2x8xf32>
    %841 = vector.broadcast %834 : f32 to vector<2x8xf32>
    %842 = arith.mulf %841, %840 : vector<2x8xf32>
    %843 = arith.addf %829, %842 : vector<2x8xf32>
    %c0_170 = arith.constant 0 : index
    %c304 = arith.constant 304 : index
    %844 = vector.load %arg9[%c0_170, %c304] : memref<2x384xf32, #tpu.memory_space<vmem>>, vector<2x8xf32>
    tpu.vector_store %arg9[%c0_170, %c304], %843 {strides = array<i32>} : memref<2x384xf32, #tpu.memory_space<vmem>>, vector<2x8xf32>,
    %c48_i32_171 = arith.constant 48 : i32
    %845 = arith.muli %arg0, %c48_i32_171 : i32
    %c39_i32 = arith.constant 39 : i32
    %846 = arith.addi %845, %c39_i32 : i32
    %847 = arith.index_cast %846 : i32 to index
    %848 = memref.load %arg1[%847] : memref<48xf32, #tpu.memory_space<smem>>
    %cst_172 = arith.constant dense<0.000000e+00> : vector<2x32xf32>
    %849 = tpu.matmul %843, %4, %cst_172 {dimension_numbers = #tpu.dot_dimension_numbers<[1], [0], [0], [1], [0, 0, 1, 1], [], []>} : vector<2x8xf32>, vector<8x32xf32>, vector<2x32xf32> -> vector<2x32xf32>
    %850 = arith.addf %849, %250 : vector<2x32xf32>
    %851 = math.tanh %850 : vector<2x32xf32>
    %cst_173 = arith.constant dense<0.000000e+00> : vector<2x8xf32>
    %852 = tpu.matmul %851, %7, %cst_173 {dimension_numbers = #tpu.dot_dimension_numbers<[1], [0], [0], [1], [0, 0, 1, 1], [], []>} : vector<2x32xf32>, vector<32x8xf32>, vector<2x8xf32> -> vector<2x8xf32>
    %853 = vector.broadcast %8 : vector<1x8xf32> to vector<2x8xf32>
    %854 = arith.addf %852, %853 : vector<2x8xf32>
    %855 = vector.broadcast %848 : f32 to vector<2x8xf32>
    %856 = arith.mulf %855, %854 : vector<2x8xf32>
    %857 = arith.addf %843, %856 : vector<2x8xf32>
    %c0_174 = arith.constant 0 : index
    %c312 = arith.constant 312 : index
    %858 = vector.load %arg9[%c0_174, %c312] : memref<2x384xf32, #tpu.memory_space<vmem>>, vector<2x8xf32>
    tpu.vector_store %arg9[%c0_174, %c312], %857 {strides = array<i32>} : memref<2x384xf32, #tpu.memory_space<vmem>>, vector<2x8xf32>,
    %c48_i32_175 = arith.constant 48 : i32
    %859 = arith.muli %arg0, %c48_i32_175 : i32
    %c40_i32 = arith.constant 40 : i32
    %860 = arith.addi %859, %c40_i32 : i32
    %861 = arith.index_cast %860 : i32 to index
    %862 = memref.load %arg1[%861] : memref<48xf32, #tpu.memory_space<smem>>
    %cst_176 = arith.constant dense<0.000000e+00> : vector<2x32xf32>
    %863 = tpu.matmul %857, %4, %cst_176 {dimension_numbers = #tpu.dot_dimension_numbers<[1], [0], [0], [1], [0, 0, 1, 1], [], []>} : vector<2x8xf32>, vector<8x32xf32>, vector<2x32xf32> -> vector<2x32xf32>
    %864 = arith.addf %863, %256 : vector<2x32xf32>
    %865 = math.tanh %864 : vector<2x32xf32>
    %cst_177 = arith.constant dense<0.000000e+00> : vector<2x8xf32>
    %866 = tpu.matmul %865, %7, %cst_177 {dimension_numbers = #tpu.dot_dimension_numbers<[1], [0], [0], [1], [0, 0, 1, 1], [], []>} : vector<2x32xf32>, vector<32x8xf32>, vector<2x8xf32> -> vector<2x8xf32>
    %867 = vector.broadcast %8 : vector<1x8xf32> to vector<2x8xf32>
    %868 = arith.addf %866, %867 : vector<2x8xf32>
    %869 = vector.broadcast %862 : f32 to vector<2x8xf32>
    %870 = arith.mulf %869, %868 : vector<2x8xf32>
    %871 = arith.addf %857, %870 : vector<2x8xf32>
    %c0_178 = arith.constant 0 : index
    %c320 = arith.constant 320 : index
    %872 = vector.load %arg9[%c0_178, %c320] : memref<2x384xf32, #tpu.memory_space<vmem>>, vector<2x8xf32>
    tpu.vector_store %arg9[%c0_178, %c320], %871 {strides = array<i32>} : memref<2x384xf32, #tpu.memory_space<vmem>>, vector<2x8xf32>,
    %c48_i32_179 = arith.constant 48 : i32
    %873 = arith.muli %arg0, %c48_i32_179 : i32
    %c41_i32 = arith.constant 41 : i32
    %874 = arith.addi %873, %c41_i32 : i32
    %875 = arith.index_cast %874 : i32 to index
    %876 = memref.load %arg1[%875] : memref<48xf32, #tpu.memory_space<smem>>
    %cst_180 = arith.constant dense<0.000000e+00> : vector<2x32xf32>
    %877 = tpu.matmul %871, %4, %cst_180 {dimension_numbers = #tpu.dot_dimension_numbers<[1], [0], [0], [1], [0, 0, 1, 1], [], []>} : vector<2x8xf32>, vector<8x32xf32>, vector<2x32xf32> -> vector<2x32xf32>
    %878 = arith.addf %877, %262 : vector<2x32xf32>
    %879 = math.tanh %878 : vector<2x32xf32>
    %cst_181 = arith.constant dense<0.000000e+00> : vector<2x8xf32>
    %880 = tpu.matmul %879, %7, %cst_181 {dimension_numbers = #tpu.dot_dimension_numbers<[1], [0], [0], [1], [0, 0, 1, 1], [], []>} : vector<2x32xf32>, vector<32x8xf32>, vector<2x8xf32> -> vector<2x8xf32>
    %881 = vector.broadcast %8 : vector<1x8xf32> to vector<2x8xf32>
    %882 = arith.addf %880, %881 : vector<2x8xf32>
    %883 = vector.broadcast %876 : f32 to vector<2x8xf32>
    %884 = arith.mulf %883, %882 : vector<2x8xf32>
    %885 = arith.addf %871, %884 : vector<2x8xf32>
    %c0_182 = arith.constant 0 : index
    %c328 = arith.constant 328 : index
    %886 = vector.load %arg9[%c0_182, %c328] : memref<2x384xf32, #tpu.memory_space<vmem>>, vector<2x8xf32>
    tpu.vector_store %arg9[%c0_182, %c328], %885 {strides = array<i32>} : memref<2x384xf32, #tpu.memory_space<vmem>>, vector<2x8xf32>,
    %c48_i32_183 = arith.constant 48 : i32
    %887 = arith.muli %arg0, %c48_i32_183 : i32
    %c42_i32 = arith.constant 42 : i32
    %888 = arith.addi %887, %c42_i32 : i32
    %889 = arith.index_cast %888 : i32 to index
    %890 = memref.load %arg1[%889] : memref<48xf32, #tpu.memory_space<smem>>
    %cst_184 = arith.constant dense<0.000000e+00> : vector<2x32xf32>
    %891 = tpu.matmul %885, %4, %cst_184 {dimension_numbers = #tpu.dot_dimension_numbers<[1], [0], [0], [1], [0, 0, 1, 1], [], []>} : vector<2x8xf32>, vector<8x32xf32>, vector<2x32xf32> -> vector<2x32xf32>
    %892 = arith.addf %891, %268 : vector<2x32xf32>
    %893 = math.tanh %892 : vector<2x32xf32>
    %cst_185 = arith.constant dense<0.000000e+00> : vector<2x8xf32>
    %894 = tpu.matmul %893, %7, %cst_185 {dimension_numbers = #tpu.dot_dimension_numbers<[1], [0], [0], [1], [0, 0, 1, 1], [], []>} : vector<2x32xf32>, vector<32x8xf32>, vector<2x8xf32> -> vector<2x8xf32>
    %895 = vector.broadcast %8 : vector<1x8xf32> to vector<2x8xf32>
    %896 = arith.addf %894, %895 : vector<2x8xf32>
    %897 = vector.broadcast %890 : f32 to vector<2x8xf32>
    %898 = arith.mulf %897, %896 : vector<2x8xf32>
    %899 = arith.addf %885, %898 : vector<2x8xf32>
    %c0_186 = arith.constant 0 : index
    %c336 = arith.constant 336 : index
    %900 = vector.load %arg9[%c0_186, %c336] : memref<2x384xf32, #tpu.memory_space<vmem>>, vector<2x8xf32>
    tpu.vector_store %arg9[%c0_186, %c336], %899 {strides = array<i32>} : memref<2x384xf32, #tpu.memory_space<vmem>>, vector<2x8xf32>,
    %c48_i32_187 = arith.constant 48 : i32
    %901 = arith.muli %arg0, %c48_i32_187 : i32
    %c43_i32 = arith.constant 43 : i32
    %902 = arith.addi %901, %c43_i32 : i32
    %903 = arith.index_cast %902 : i32 to index
    %904 = memref.load %arg1[%903] : memref<48xf32, #tpu.memory_space<smem>>
    %cst_188 = arith.constant dense<0.000000e+00> : vector<2x32xf32>
    %905 = tpu.matmul %899, %4, %cst_188 {dimension_numbers = #tpu.dot_dimension_numbers<[1], [0], [0], [1], [0, 0, 1, 1], [], []>} : vector<2x8xf32>, vector<8x32xf32>, vector<2x32xf32> -> vector<2x32xf32>
    %906 = arith.addf %905, %274 : vector<2x32xf32>
    %907 = math.tanh %906 : vector<2x32xf32>
    %cst_189 = arith.constant dense<0.000000e+00> : vector<2x8xf32>
    %908 = tpu.matmul %907, %7, %cst_189 {dimension_numbers = #tpu.dot_dimension_numbers<[1], [0], [0], [1], [0, 0, 1, 1], [], []>} : vector<2x32xf32>, vector<32x8xf32>, vector<2x8xf32> -> vector<2x8xf32>
    %909 = vector.broadcast %8 : vector<1x8xf32> to vector<2x8xf32>
    %910 = arith.addf %908, %909 : vector<2x8xf32>
    %911 = vector.broadcast %904 : f32 to vector<2x8xf32>
    %912 = arith.mulf %911, %910 : vector<2x8xf32>
    %913 = arith.addf %899, %912 : vector<2x8xf32>
    %c0_190 = arith.constant 0 : index
    %c344 = arith.constant 344 : index
    %914 = vector.load %arg9[%c0_190, %c344] : memref<2x384xf32, #tpu.memory_space<vmem>>, vector<2x8xf32>
    tpu.vector_store %arg9[%c0_190, %c344], %913 {strides = array<i32>} : memref<2x384xf32, #tpu.memory_space<vmem>>, vector<2x8xf32>,
    %c48_i32_191 = arith.constant 48 : i32
    %915 = arith.muli %arg0, %c48_i32_191 : i32
    %c44_i32 = arith.constant 44 : i32
    %916 = arith.addi %915, %c44_i32 : i32
    %917 = arith.index_cast %916 : i32 to index
    %918 = memref.load %arg1[%917] : memref<48xf32, #tpu.memory_space<smem>>
    %cst_192 = arith.constant dense<0.000000e+00> : vector<2x32xf32>
    %919 = tpu.matmul %913, %4, %cst_192 {dimension_numbers = #tpu.dot_dimension_numbers<[1], [0], [0], [1], [0, 0, 1, 1], [], []>} : vector<2x8xf32>, vector<8x32xf32>, vector<2x32xf32> -> vector<2x32xf32>
    %920 = arith.addf %919, %280 : vector<2x32xf32>
    %921 = math.tanh %920 : vector<2x32xf32>
    %cst_193 = arith.constant dense<0.000000e+00> : vector<2x8xf32>
    %922 = tpu.matmul %921, %7, %cst_193 {dimension_numbers = #tpu.dot_dimension_numbers<[1], [0], [0], [1], [0, 0, 1, 1], [], []>} : vector<2x32xf32>, vector<32x8xf32>, vector<2x8xf32> -> vector<2x8xf32>
    %923 = vector.broadcast %8 : vector<1x8xf32> to vector<2x8xf32>
    %924 = arith.addf %922, %923 : vector<2x8xf32>
    %925 = vector.broadcast %918 : f32 to vector<2x8xf32>
    %926 = arith.mulf %925, %924 : vector<2x8xf32>
    %927 = arith.addf %913, %926 : vector<2x8xf32>
    %c0_194 = arith.constant 0 : index
    %c352 = arith.constant 352 : index
    %928 = vector.load %arg9[%c0_194, %c352] : memref<2x384xf32, #tpu.memory_space<vmem>>, vector<2x8xf32>
    tpu.vector_store %arg9[%c0_194, %c352], %927 {strides = array<i32>} : memref<2x384xf32, #tpu.memory_space<vmem>>, vector<2x8xf32>,
    %c48_i32_195 = arith.constant 48 : i32
    %929 = arith.muli %arg0, %c48_i32_195 : i32
    %c45_i32 = arith.constant 45 : i32
    %930 = arith.addi %929, %c45_i32 : i32
    %931 = arith.index_cast %930 : i32 to index
    %932 = memref.load %arg1[%931] : memref<48xf32, #tpu.memory_space<smem>>
    %cst_196 = arith.constant dense<0.000000e+00> : vector<2x32xf32>
    %933 = tpu.matmul %927, %4, %cst_196 {dimension_numbers = #tpu.dot_dimension_numbers<[1], [0], [0], [1], [0, 0, 1, 1], [], []>} : vector<2x8xf32>, vector<8x32xf32>, vector<2x32xf32> -> vector<2x32xf32>
    %934 = arith.addf %933, %286 : vector<2x32xf32>
    %935 = math.tanh %934 : vector<2x32xf32>
    %cst_197 = arith.constant dense<0.000000e+00> : vector<2x8xf32>
    %936 = tpu.matmul %935, %7, %cst_197 {dimension_numbers = #tpu.dot_dimension_numbers<[1], [0], [0], [1], [0, 0, 1, 1], [], []>} : vector<2x32xf32>, vector<32x8xf32>, vector<2x8xf32> -> vector<2x8xf32>
    %937 = vector.broadcast %8 : vector<1x8xf32> to vector<2x8xf32>
    %938 = arith.addf %936, %937 : vector<2x8xf32>
    %939 = vector.broadcast %932 : f32 to vector<2x8xf32>
    %940 = arith.mulf %939, %938 : vector<2x8xf32>
    %941 = arith.addf %927, %940 : vector<2x8xf32>
    %c0_198 = arith.constant 0 : index
    %c360 = arith.constant 360 : index
    %942 = vector.load %arg9[%c0_198, %c360] : memref<2x384xf32, #tpu.memory_space<vmem>>, vector<2x8xf32>
    tpu.vector_store %arg9[%c0_198, %c360], %941 {strides = array<i32>} : memref<2x384xf32, #tpu.memory_space<vmem>>, vector<2x8xf32>,
    %c48_i32_199 = arith.constant 48 : i32
    %943 = arith.muli %arg0, %c48_i32_199 : i32
    %c46_i32 = arith.constant 46 : i32
    %944 = arith.addi %943, %c46_i32 : i32
    %945 = arith.index_cast %944 : i32 to index
    %946 = memref.load %arg1[%945] : memref<48xf32, #tpu.memory_space<smem>>
    %cst_200 = arith.constant dense<0.000000e+00> : vector<2x32xf32>
    %947 = tpu.matmul %941, %4, %cst_200 {dimension_numbers = #tpu.dot_dimension_numbers<[1], [0], [0], [1], [0, 0, 1, 1], [], []>} : vector<2x8xf32>, vector<8x32xf32>, vector<2x32xf32> -> vector<2x32xf32>
    %948 = arith.addf %947, %292 : vector<2x32xf32>
    %949 = math.tanh %948 : vector<2x32xf32>
    %cst_201 = arith.constant dense<0.000000e+00> : vector<2x8xf32>
    %950 = tpu.matmul %949, %7, %cst_201 {dimension_numbers = #tpu.dot_dimension_numbers<[1], [0], [0], [1], [0, 0, 1, 1], [], []>} : vector<2x32xf32>, vector<32x8xf32>, vector<2x8xf32> -> vector<2x8xf32>
    %951 = vector.broadcast %8 : vector<1x8xf32> to vector<2x8xf32>
    %952 = arith.addf %950, %951 : vector<2x8xf32>
    %953 = vector.broadcast %946 : f32 to vector<2x8xf32>
    %954 = arith.mulf %953, %952 : vector<2x8xf32>
    %955 = arith.addf %941, %954 : vector<2x8xf32>
    %c0_202 = arith.constant 0 : index
    %c368 = arith.constant 368 : index
    %956 = vector.load %arg9[%c0_202, %c368] : memref<2x384xf32, #tpu.memory_space<vmem>>, vector<2x8xf32>
    tpu.vector_store %arg9[%c0_202, %c368], %955 {strides = array<i32>} : memref<2x384xf32, #tpu.memory_space<vmem>>, vector<2x8xf32>,
    %c48_i32_203 = arith.constant 48 : i32
    %957 = arith.muli %arg0, %c48_i32_203 : i32
    %c47_i32 = arith.constant 47 : i32
    %958 = arith.addi %957, %c47_i32 : i32
    %959 = arith.index_cast %958 : i32 to index
    %960 = memref.load %arg1[%959] : memref<48xf32, #tpu.memory_space<smem>>
    %cst_204 = arith.constant dense<0.000000e+00> : vector<2x32xf32>
    %961 = tpu.matmul %955, %4, %cst_204 {dimension_numbers = #tpu.dot_dimension_numbers<[1], [0], [0], [1], [0, 0, 1, 1], [], []>} : vector<2x8xf32>, vector<8x32xf32>, vector<2x32xf32> -> vector<2x32xf32>
    %962 = arith.addf %961, %298 : vector<2x32xf32>
    %963 = math.tanh %962 : vector<2x32xf32>
    %cst_205 = arith.constant dense<0.000000e+00> : vector<2x8xf32>
    %964 = tpu.matmul %963, %7, %cst_205 {dimension_numbers = #tpu.dot_dimension_numbers<[1], [0], [0], [1], [0, 0, 1, 1], [], []>} : vector<2x32xf32>, vector<32x8xf32>, vector<2x8xf32> -> vector<2x8xf32>
    %965 = vector.broadcast %8 : vector<1x8xf32> to vector<2x8xf32>
    %966 = arith.addf %964, %965 : vector<2x8xf32>
    %967 = vector.broadcast %960 : f32 to vector<2x8xf32>
    %968 = arith.mulf %967, %966 : vector<2x8xf32>
    %969 = arith.addf %955, %968 : vector<2x8xf32>
    %c0_206 = arith.constant 0 : index
    %c376 = arith.constant 376 : index
    %970 = vector.load %arg9[%c0_206, %c376] : memref<2x384xf32, #tpu.memory_space<vmem>>, vector<2x8xf32>
    tpu.vector_store %arg9[%c0_206, %c376], %969 {strides = array<i32>} : memref<2x384xf32, #tpu.memory_space<vmem>>, vector<2x8xf32>,
    %c0_207 = arith.constant 0 : index
    %c0_208 = arith.constant 0 : index
    %971 = vector.load %arg10[%c0_207, %c0_208] : memref<2x8xf32, #tpu.memory_space<vmem>>, vector<2x8xf32>
    tpu.vector_store %arg10[%c0_207, %c0_208], %969 {strides = array<i32>} : memref<2x8xf32, #tpu.memory_space<vmem>>, vector<2x8xf32>,
    return
  }
  func.func @transform_0(%arg0: i32, %arg1: memref<48xf32, #tpu.memory_space<smem>>) -> (i32, i32) {
    %c0_i32 = arith.constant 0 : i32
    %c0_i32_0 = arith.constant 0 : i32
    %c0_i32_1 = arith.constant 0 : i32
    return %c0_i32, %c0_i32_0 : i32, i32
  }
  func.func @transform_1(%arg0: i32, %arg1: memref<48xf32, #tpu.memory_space<smem>>) -> (i32, i32, i32) {
    %c0_i32 = arith.constant 0 : i32
    %c0_i32_0 = arith.constant 0 : i32
    %c0_i32_1 = arith.constant 0 : i32
    return %arg0, %c0_i32, %c0_i32_0 : i32, i32, i32
  }
  func.func @transform_2(%arg0: i32, %arg1: memref<48xf32, #tpu.memory_space<smem>>) -> (i32, i32) {
    %c0_i32 = arith.constant 0 : i32
    %c0_i32_0 = arith.constant 0 : i32
    %c0_i32_1 = arith.constant 0 : i32
    return %c0_i32, %c0_i32_0 : i32, i32
  }
  func.func @transform_3(%arg0: i32, %arg1: memref<48xf32, #tpu.memory_space<smem>>) -> (i32, i32) {
    %c0_i32 = arith.constant 0 : i32
    %c0_i32_0 = arith.constant 0 : i32
    %c0_i32_1 = arith.constant 0 : i32
    return %c0_i32, %c0_i32_0 : i32, i32
  }
  func.func @transform_4(%arg0: i32, %arg1: memref<48xf32, #tpu.memory_space<smem>>) -> (i32, i32) {
    %c0_i32 = arith.constant 0 : i32
    %c0_i32_0 = arith.constant 0 : i32
    %c0_i32_1 = arith.constant 0 : i32
    return %c0_i32, %c0_i32_0 : i32, i32
  }
  func.func @transform_5(%arg0: i32, %arg1: memref<48xf32, #tpu.memory_space<smem>>) -> (i32, i32) {
    %c0_i32 = arith.constant 0 : i32
    %c0_i32_0 = arith.constant 0 : i32
    %c0_i32_1 = arith.constant 0 : i32
    return %c0_i32, %c0_i32_0 : i32, i32
  }
  func.func @transform_6(%arg0: i32, %arg1: memref<48xf32, #tpu.memory_space<smem>>) -> (i32, i32) {
    %c0_i32 = arith.constant 0 : i32
    %c0_i32_0 = arith.constant 0 : i32
    %c0_i32_1 = arith.constant 0 : i32
    return %c0_i32, %c0_i32_0 : i32, i32
  }
  func.func @transform_7(%arg0: i32, %arg1: memref<48xf32, #tpu.memory_space<smem>>) -> (i32, i32) {
    %c0_i32 = arith.constant 0 : i32
    %c0_i32_0 = arith.constant 0 : i32
    return %c0_i32, %arg0 : i32, i32
  }
}

</mosaic_0001>

<llo_original>
// kernel: tpu_custom_call.1
$region0: #{tpu_custom_call.1}
  #allocation0 [shape = 'u32[]', space=smem, size = 0x4, offset = 0x4, fixed_abs, tag = 'smem constant byte address 0x4 - core index']
  #allocation1 [shape = 'u32[144,128]{1,0:T(1,128)}', space=vmem, size = 0x12000, scoped, tag = 'internal scratch']
  #allocation2 [shape = 'f32[2,8]{1,0:T(2,128)}', space=vmem, size = 0x400, scoped, tag = 'scratch operand']
  #allocation3 [shape = 's32[1]{0}', space=sflag, size = 0x4, scoped, tag = 'scoped memory for tpu_custom_call.1']
  #allocation4 [shape = 'u8[512]{0}', space=smem, size = 0x200, scoped, tag = 'prefetched SMEM operand 0']
  %s0 = inlined_call_operand.vmem [shape: f32[48], index: 0, kind: input, shape index: {}]
  %s1 = inlined_call_operand.vmem [shape: f32[2,8], index: 1, kind: input, shape index: {}]
  %s2 = inlined_call_operand.vmem [shape: f32[1,2,48], index: 2, kind: input, shape index: {}]
  %s3 = inlined_call_operand.vmem [shape: f32[8,32], index: 3, kind: input, shape index: {}]
  %s4 = inlined_call_operand.vmem [shape: f32[1,32], index: 4, kind: input, shape index: {}]
  %s5 = inlined_call_operand.vmem [shape: f32[1,32], index: 5, kind: input, shape index: {}]
  %s6 = inlined_call_operand.vmem [shape: f32[32,8], index: 6, kind: input, shape index: {}]
  %s7 = inlined_call_operand.vmem [shape: f32[1,8], index: 7, kind: input, shape index: {}]
  %s8 = inlined_call_operand.hbm [shape: f32[2,384], index: 8, kind: output, shape index: {}]
  %s9 = sld [smem:[#allocation0]]
  $region42: #{tpu_custom_call.1} parent=0
    _
  %s11 = ssub.s32 1, %s9
  %s12 = scalar_select 0, %s11, %s9
  %s13 = sshll.u32 %s0, 4
  %s14 = int_to_ptr.vmem [resolvable:$true] %s13
  %16 = dma.vmem_to_smem %s14, 16, [#allocation4], [#allocation3]
  %17 = dma.done [#allocation3], 16
  %18 = sfence
  $region1: #{tpu_custom_call.1} parent=0
    #allocation5 [shape = 'u8[3072]{0}', space=vmem, size = 0xc00, scoped, tag = 'output window, operand 0, single buffered']
    #allocation6 [shape = 's32[1]{0}', space=sflag, size = 0x4, scoped, tag = 'scoped memory for tpu_custom_call.1']
    %19 = vsyncpa [#allocation6], 0
    // Predicated region
    $region2: #{tpu_custom_call.1} parent=1 // pred_check
      _
    $region3: #{tpu_custom_call.1} parent=1 // pred_check_branch
      %21 = sbr.rel (0) target = $region5
    $region4: #{tpu_custom_call.1} parent=1 // pred_region
      _
    $region5: #{tpu_custom_call.1} parent=1 // pred_fallthru
      _
    // Predicated region
    $region6: #{tpu_custom_call.1} parent=1 // pred_check
      _
    $region7: #{tpu_custom_call.1} parent=1 // pred_check_branch
      %23 = sbr.rel (0) target = $region9
    $region8: #{tpu_custom_call.1} parent=1 // pred_region
      _
    $region9: #{tpu_custom_call.1} parent=1 // pred_fallthru
      _
    // Predicated region
    $region10: #{tpu_custom_call.1} parent=1 // pred_check
      _
    $region11: #{tpu_custom_call.1} parent=1 // pred_check_branch
      %25 = sbr.rel (0) target = $region13
    $region12: #{tpu_custom_call.1} parent=1 // pred_region
      _
    $region13: #{tpu_custom_call.1} parent=1 // pred_fallthru
      _
    // Predicated region
    $region14: #{tpu_custom_call.1} parent=1 // pred_check
      _
    $region15: #{tpu_custom_call.1} parent=1 // pred_check_branch
      %27 = sbr.rel (0) target = $region17
    $region16: #{tpu_custom_call.1} parent=1 // pred_region
      _
    $region17: #{tpu_custom_call.1} parent=1 // pred_fallthru
      _
    // Predicated region
    $region18: #{tpu_custom_call.1} parent=1 // pred_check
      _
    $region19: #{tpu_custom_call.1} parent=1 // pred_check_branch
      %29 = sbr.rel (0) target = $region21
    $region20: #{tpu_custom_call.1} parent=1 // pred_region
      _
    $region21: #{tpu_custom_call.1} parent=1 // pred_fallthru
      _
    // Predicated region
    $region22: #{tpu_custom_call.1} parent=1 // pred_check
      _
    $region23: #{tpu_custom_call.1} parent=1 // pred_check_branch
      %31 = sbr.rel (0) target = $region25
    $region24: #{tpu_custom_call.1} parent=1 // pred_region
      _
    $region25: #{tpu_custom_call.1} parent=1 // pred_fallthru
      _
    // Predicated region
    $region26: #{tpu_custom_call.1} parent=1 // pred_check
      _
    $region27: #{tpu_custom_call.1} parent=1 // pred_check_branch
      %33 = sbr.rel (0) target = $region29
    $region28: #{tpu_custom_call.1} parent=1 // pred_region
      _
    $region29: #{tpu_custom_call.1} parent=1 // pred_fallthru
      _
    %p34 = scmp.eq.s32.totalorder 0, 0
    // Predicated region
    $region30: #{tpu_custom_call.1} parent=1 // pred_check
      %p35 = pneg %p34
    $region31: #{tpu_custom_call.1} parent=1 // pred_check_branch
      %37 = sbr.rel (%p35) target = $region33
    $region32: #{tpu_custom_call.1} parent=1 // pred_region
      %v38 = vld [vmem:[%s1] sm:$0x3]
      %vm39 = vcmask 58368
      %40 = vst.msk [vmem:[#allocation2] sm:$0x3] %vm39, %v38
    $region33: #{tpu_custom_call.1} parent=1 // pred_fallthru
      _
    %v41 = vld [vmem:[#allocation2] sm:$0x3]
    %v42 = vld [vmem:[%s3] sm:$0xff]
    %v43 = vld [vmem:[%s4] sm:$0x1]
    %v44 = vld [vmem:[%s5] sm:$0x1]
    %v45 = vld [vmem:[%s6] sm:$0xff]
    %v46 = vld [vmem:[%s6 + $0x8] sm:$0xff]
    %v47 = vld [vmem:[%s6 + $0x10] sm:$0xff]
    %v48 = vld [vmem:[%s6 + $0x18] sm:$0xff]
    %v49 = vld [vmem:[%s7] sm:$0x1]
    %v50 = vld [vmem:[%s2] sm:$0x3]
    %52 = vset.pattern.permute.xlu0 0
    %53 = vperm.xlu0 %52, %v50
    %v54 = vpop.permute.xlu0 %53
    %v57 = vlaneseq
    %v58 = vshrl.u32 %v57, 7
    %v59 = vsub.s32 0, %v58
    %v60 = vrot.slane %v43, %v59
    %v62 = vmul.f32 %v54, %v60
    %v64 = vlaneseq
    %v65 = vshrl.u32 %v64, 7
    %v66 = vsub.s32 0, %v65
    %v67 = vrot.slane %v44, %v66
    %v69 = vadd.f32 %v62, %v67
    %70 = vset.pattern.permute.xlu0 1
    %71 = vperm.xlu0 %70, %v50
    %v72 = vpop.permute.xlu0 %71
    %v74 = vmul.f32 %v72, %v60
    %v75 = vadd.f32 %v74, %v67
    %76 = vset.pattern.permute.xlu0 2
    %77 = vperm.xlu0 %76, %v50
    %v78 = vpop.permute.xlu0 %77
    %v80 = vmul.f32 %v78, %v60
    %v81 = vadd.f32 %v80, %v67
    %82 = vset.pattern.permute.xlu0 3
    %83 = vperm.xlu0 %82, %v50
    %v84 = vpop.permute.xlu0 %83
    %v86 = vmul.f32 %v84, %v60
    %v87 = vadd.f32 %v86, %v67
    %88 = vset.pattern.permute.xlu0 4
    %89 = vperm.xlu0 %88, %v50
    %v90 = vpop.permute.xlu0 %89
    %v92 = vmul.f32 %v90, %v60
    %v93 = vadd.f32 %v92, %v67
    %94 = vset.pattern.permute.xlu0 5
    %95 = vperm.xlu0 %94, %v50
    %v96 = vpop.permute.xlu0 %95
    %v98 = vmul.f32 %v96, %v60
    %v99 = vadd.f32 %v98, %v67
    %100 = vset.pattern.permute.xlu0 6
    %101 = vperm.xlu0 %100, %v50
    %v102 = vpop.permute.xlu0 %101
    %v104 = vmul.f32 %v102, %v60
    %v105 = vadd.f32 %v104, %v67
    %106 = vset.pattern.permute.xlu0 7
    %107 = vperm.xlu0 %106, %v50
    %v108 = vpop.permute.xlu0 %107
    %v110 = vmul.f32 %v108, %v60
    %v111 = vadd.f32 %v110, %v67
    %112 = vset.pattern.permute.xlu0 8
    %113 = vperm.xlu0 %112, %v50
    %v114 = vpop.permute.xlu0 %113
    %v116 = vmul.f32 %v114, %v60
    %v117 = vadd.f32 %v116, %v67
    %118 = vset.pattern.permute.xlu0 9
    %119 = vperm.xlu0 %118, %v50
    %v120 = vpop.permute.xlu0 %119
    %v122 = vmul.f32 %v120, %v60
    %v123 = vadd.f32 %v122, %v67
    %124 = vset.pattern.permute.xlu0 10
    %125 = vperm.xlu0 %124, %v50
    %v126 = vpop.permute.xlu0 %125
    %v128 = vmul.f32 %v126, %v60
    %v129 = vadd.f32 %v128, %v67
    %130 = vset.pattern.permute.xlu0 11
    %131 = vperm.xlu0 %130, %v50
    %v132 = vpop.permute.xlu0 %131
    %v134 = vmul.f32 %v132, %v60
    %v135 = vadd.f32 %v134, %v67
    %136 = vset.pattern.permute.xlu0 12
    %137 = vperm.xlu0 %136, %v50
    %v138 = vpop.permute.xlu0 %137
    %v140 = vmul.f32 %v138, %v60
    %v141 = vadd.f32 %v140, %v67
    %142 = vset.pattern.permute.xlu0 13
    %143 = vperm.xlu0 %142, %v50
    %v144 = vpop.permute.xlu0 %143
    %v146 = vmul.f32 %v144, %v60
    %v147 = vadd.f32 %v146, %v67
    %148 = vset.pattern.permute.xlu0 14
    %149 = vperm.xlu0 %148, %v50
    %v150 = vpop.permute.xlu0 %149
    %v152 = vmul.f32 %v150, %v60
    %v153 = vadd.f32 %v152, %v67
    %154 = vset.pattern.permute.xlu0 15
    %155 = vperm.xlu0 %154, %v50
    %v156 = vpop.permute.xlu0 %155
    %v158 = vmul.f32 %v156, %v60
    %v159 = vadd.f32 %v158, %v67
    %160 = vset.pattern.permute.xlu0 16
    %161 = vperm.xlu0 %160, %v50
    %v162 = vpop.permute.xlu0 %161
    %v164 = vmul.f32 %v162, %v60
    %v165 = vadd.f32 %v164, %v67
    %166 = vset.pattern.permute.xlu0 17
    %167 = vperm.xlu0 %166, %v50
    %v168 = vpop.permute.xlu0 %167
    %v170 = vmul.f32 %v168, %v60
    %v171 = vadd.f32 %v170, %v67
    %172 = vset.pattern.permute.xlu0 18
    %173 = vperm.xlu0 %172, %v50
    %v174 = vpop.permute.xlu0 %173
    %v176 = vmul.f32 %v174, %v60
    %v177 = vadd.f32 %v176, %v67
    %178 = vset.pattern.permute.xlu0 19
    %179 = vperm.xlu0 %178, %v50
    %v180 = vpop.permute.xlu0 %179
    %v182 = vmul.f32 %v180, %v60
    %v183 = vadd.f32 %v182, %v67
    %184 = vset.pattern.permute.xlu0 20
    %185 = vperm.xlu0 %184, %v50
    %v186 = vpop.permute.xlu0 %185
    %v188 = vmul.f32 %v186, %v60
    %v189 = vadd.f32 %v188, %v67
    %190 = vset.pattern.permute.xlu0 21
    %191 = vperm.xlu0 %190, %v50
    %v192 = vpop.permute.xlu0 %191
    %v194 = vmul.f32 %v192, %v60
    %v195 = vadd.f32 %v194, %v67
    %196 = vset.pattern.permute.xlu0 22
    %197 = vperm.xlu0 %196, %v50
    %v198 = vpop.permute.xlu0 %197
    %v200 = vmul.f32 %v198, %v60
    %v201 = vadd.f32 %v200, %v67
    %202 = vset.pattern.permute.xlu0 23
    %203 = vperm.xlu0 %202, %v50
    %v204 = vpop.permute.xlu0 %203
    %v206 = vmul.f32 %v204, %v60
    %v207 = vadd.f32 %v206, %v67
    %208 = vset.pattern.permute.xlu0 24
    %209 = vperm.xlu0 %208, %v50
    %v210 = vpop.permute.xlu0 %209
    %v212 = vmul.f32 %v210, %v60
    %v213 = vadd.f32 %v212, %v67
    %214 = vset.pattern.permute.xlu0 25
    %215 = vperm.xlu0 %214, %v50
    %v216 = vpop.permute.xlu0 %215
    %v218 = vmul.f32 %v216, %v60
    %v219 = vadd.f32 %v218, %v67
    %220 = vset.pattern.permute.xlu0 26
    %221 = vperm.xlu0 %220, %v50
    %v222 = vpop.permute.xlu0 %221
    %v224 = vmul.f32 %v222, %v60
    %v225 = vadd.f32 %v224, %v67
    %226 = vset.pattern.permute.xlu0 27
    %227 = vperm.xlu0 %226, %v50
    %v228 = vpop.permute.xlu0 %227
    %v230 = vmul.f32 %v228, %v60
    %v231 = vadd.f32 %v230, %v67
    %232 = vset.pattern.permute.xlu0 28
    %233 = vperm.xlu0 %232, %v50
    %v234 = vpop.permute.xlu0 %233
    %v236 = vmul.f32 %v234, %v60
    %v237 = vadd.f32 %v236, %v67
    %238 = vset.pattern.permute.xlu0 29
    %239 = vperm.xlu0 %238, %v50
    %v240 = vpop.permute.xlu0 %239
    %v242 = vmul.f32 %v240, %v60
    %v243 = vadd.f32 %v242, %v67
    %244 = vset.pattern.permute.xlu0 30
    %245 = vperm.xlu0 %244, %v50
    %v246 = vpop.permute.xlu0 %245
    %v248 = vmul.f32 %v246, %v60
    %v249 = vadd.f32 %v248, %v67
    %250 = vset.pattern.permute.xlu0 31
    %251 = vperm.xlu0 %250, %v50
    %v252 = vpop.permute.xlu0 %251
    %v254 = vmul.f32 %v252, %v60
    %v255 = vadd.f32 %v254, %v67
    %256 = vset.pattern.permute.xlu0 32
    %257 = vperm.xlu0 %256, %v50
    %v258 = vpop.permute.xlu0 %257
    %v260 = vmul.f32 %v258, %v60
    %v261 = vadd.f32 %v260, %v67
    %262 = vset.pattern.permute.xlu0 33
    %263 = vperm.xlu0 %262, %v50
    %v264 = vpop.permute.xlu0 %263
    %v266 = vmul.f32 %v264, %v60
    %v267 = vadd.f32 %v266, %v67
    %268 = vset.pattern.permute.xlu0 34
    %269 = vperm.xlu0 %268, %v50
    %v270 = vpop.permute.xlu0 %269
    %v272 = vmul.f32 %v270, %v60
    %v273 = vadd.f32 %v272, %v67
    %274 = vset.pattern.permute.xlu0 35
    %275 = vperm.xlu0 %274, %v50
    %v276 = vpop.permute.xlu0 %275
    %v278 = vmul.f32 %v276, %v60
    %v279 = vadd.f32 %v278, %v67
    %280 = vset.pattern.permute.xlu0 36
    %281 = vperm.xlu0 %280, %v50
    %v282 = vpop.permute.xlu0 %281
    %v284 = vmul.f32 %v282, %v60
    %v285 = vadd.f32 %v284, %v67
    %286 = vset.pattern.permute.xlu0 37
    %287 = vperm.xlu0 %286, %v50
    %v288 = vpop.permute.xlu0 %287
    %v290 = vmul.f32 %v288, %v60
    %v291 = vadd.f32 %v290, %v67
    %292 = vset.pattern.permute.xlu0 38
    %293 = vperm.xlu0 %292, %v50
    %v294 = vpop.permute.xlu0 %293
    %v296 = vmul.f32 %v294, %v60
    %v297 = vadd.f32 %v296, %v67
    %298 = vset.pattern.permute.xlu0 39
    %299 = vperm.xlu0 %298, %v50
    %v300 = vpop.permute.xlu0 %299
    %v302 = vmul.f32 %v300, %v60
    %v303 = vadd.f32 %v302, %v67
    %304 = vset.pattern.permute.xlu0 40
    %305 = vperm.xlu0 %304, %v50
    %v306 = vpop.permute.xlu0 %305
    %v308 = vmul.f32 %v306, %v60
    %v309 = vadd.f32 %v308, %v67
    %310 = vset.pattern.permute.xlu0 41
    %311 = vperm.xlu0 %310, %v50
    %v312 = vpop.permute.xlu0 %311
    %v314 = vmul.f32 %v312, %v60
    %v315 = vadd.f32 %v314, %v67
    %316 = vset.pattern.permute.xlu0 42
    %317 = vperm.xlu0 %316, %v50
    %v318 = vpop.permute.xlu0 %317
    %v320 = vmul.f32 %v318, %v60
    %v321 = vadd.f32 %v320, %v67
    %322 = vset.pattern.permute.xlu0 43
    %323 = vperm.xlu0 %322, %v50
    %v324 = vpop.permute.xlu0 %323
    %v326 = vmul.f32 %v324, %v60
    %v327 = vadd.f32 %v326, %v67
    %328 = vset.pattern.permute.xlu0 44
    %329 = vperm.xlu0 %328, %v50
    %v330 = vpop.permute.xlu0 %329
    %v332 = vmul.f32 %v330, %v60
    %v333 = vadd.f32 %v332, %v67
    %334 = vset.pattern.permute.xlu0 45
    %335 = vperm.xlu0 %334, %v50
    %v336 = vpop.permute.xlu0 %335
    %v338 = vmul.f32 %v336, %v60
    %v339 = vadd.f32 %v338, %v67
    %340 = vset.pattern.permute.xlu0 46
    %341 = vperm.xlu0 %340, %v50
    %v342 = vpop.permute.xlu0 %341
    %v344 = vmul.f32 %v342, %v60
    %v345 = vadd.f32 %v344, %v67
    %346 = vset.pattern.permute.xlu0 47
    %347 = vperm.xlu0 %346, %v50
    %v348 = vpop.permute.xlu0 %347
    %v350 = vmul.f32 %v348, %v60
    %v351 = vadd.f32 %v350, %v67
    %s352 = smul.u32 0, 48
    %s353 = sld [smem:[#allocation4 + %s352]]
    %vm354 = vcmask 64512
    %v356 = vsel %vm354, %v41, 0
    %358 = vmatprep.subr.mxu0 0.0
    %359 = vmatpush1.msra.mxu0 0.0
    %360 = vmatprep.subr.mxu0 0.0
    %361 = vmatpush1.msra.mxu0 0.0
    %362 = vmatprep.subr.mxu0 0.0
    %363 = vmatpush1.msra.mxu0 0.0
    %364 = vmatprep.subr.mxu0 0.0
    %365 = vmatpush1.msra.mxu0 0.0
    %366 = vmatprep.subr.mxu0 0.0
    %367 = vmatpush1.msra.mxu0 0.0
    %368 = vmatprep.subr.mxu0 0.0
    %369 = vmatpush1.msra.mxu0 0.0
    %370 = vmatprep.subr.mxu0 0.0
    %371 = vmatpush1.msra.mxu0 0.0
    %372 = vmatprep.subr.mxu0 0.0
    %373 = vmatpush1.msra.mxu0 0.0
    %374 = vmatprep.subr.mxu0 0.0
    %375 = vmatpush1.msra.mxu0 0.0
    %376 = vmatprep.subr.mxu0 0.0
    %377 = vmatpush1.msra.mxu0 0.0
    %378 = vmatprep.subr.mxu0 0.0
    %379 = vmatpush1.msra.mxu0 0.0
    %380 = vmatprep.subr.mxu0 0.0
    %381 = vmatpush1.msra.mxu0 0.0
    %382 = vmatprep.subr.mxu0 0.0
    %383 = vmatpush1.msra.mxu0 0.0
    %384 = vmatprep.subr.mxu0 0.0
    %385 = vmatpush1.msra.mxu0 0.0
    %386 = vmatprep.subr.mxu0 0.0
    %387 = vmatpush1.msra.mxu0 0.0
    %388 = vmatprep.subr.mxu0 0.0
    %389 = vmatpush1.msra.mxu0 %v42
    %390 = vmatprep.subr.mxu0 0.0
    %391 = vmatpush2.msra.mxu0 0.0
    %392 = vmatprep.subr.mxu0 0.0
    %393 = vmatpush2.msra.mxu0 0.0
    %394 = vmatprep.subr.mxu0 0.0
    %395 = vmatpush2.msra.mxu0 0.0
    %396 = vmatprep.subr.mxu0 0.0
    %397 = vmatpush2.msra.mxu0 0.0
    %398 = vmatprep.subr.mxu0 0.0
    %399 = vmatpush2.msra.mxu0 0.0
    %400 = vmatprep.subr.mxu0 0.0
    %401 = vmatpush2.msra.mxu0 0.0
    %402 = vmatprep.subr.mxu0 0.0
    %403 = vmatpush2.msra.mxu0 0.0
    %404 = vmatprep.subr.mxu0 0.0
    %405 = vmatpush2.msra.mxu0 0.0
    %406 = vmatprep.subr.mxu0 0.0
    %407 = vmatpush2.msra.mxu0 0.0
    %408 = vmatprep.subr.mxu0 0.0
    %409 = vmatpush2.msra.mxu0 0.0
    %410 = vmatprep.subr.mxu0 0.0
    %411 = vmatpush2.msra.mxu0 0.0
    %412 = vmatprep.subr.mxu0 0.0
    %413 = vmatpush2.msra.mxu0 0.0
    %414 = vmatprep.subr.mxu0 0.0
    %415 = vmatpush2.msra.mxu0 0.0
    %416 = vmatprep.subr.mxu0 0.0
    %417 = vmatpush2.msra.mxu0 0.0
    %418 = vmatprep.subr.mxu0 0.0
    %419 = vmatpush2.msra.mxu0 0.0
    %420 = vmatprep.subr.mxu0 0.0
    %421 = vmatpush2.msra.mxu0 0.0
    %422 = vmatprep.mubr.f32.mxu0 0.0
    %423 = vmatmul.mubr.f32.gmra.mxu0 %v356
    %v424 = vpop.f32.mrf.mxu0
    %v425 = vadd.f32 %v69, %v424
    %v426 = vpop.f32.mrf.mxu0
    %427 = vdwg.mxu0
    %v428 = vtanh.pop %v425
    %v430 = vlaneseq
    %v431 = vshrl.u32 %v430, 7
    %v432 = vsub.s32 0, %v431
    %v433 = vrot.slane %v49, %v432
    %vm435 = vcmask 261120
    %v437 = vsel %vm435, %v428, 0
    %439 = vmatprep.subr.mxu0 0.0
    %440 = vmatpush1.msra.mxu0 0.0
    %441 = vmatprep.subr.mxu0 0.0
    %442 = vmatpush1.msra.mxu0 0.0
    %443 = vmatprep.subr.mxu0 0.0
    %444 = vmatpush1.msra.mxu0 0.0
    %445 = vmatprep.subr.mxu0 0.0
    %446 = vmatpush1.msra.mxu0 0.0
    %447 = vmatprep.subr.mxu0 0.0
    %448 = vmatpush1.msra.mxu0 0.0
    %449 = vmatprep.subr.mxu0 0.0
    %450 = vmatpush1.msra.mxu0 0.0
    %451 = vmatprep.subr.mxu0 0.0
    %452 = vmatpush1.msra.mxu0 0.0
    %453 = vmatprep.subr.mxu0 0.0
    %454 = vmatpush1.msra.mxu0 0.0
    %455 = vmatprep.subr.mxu0 0.0
    %456 = vmatpush1.msra.mxu0 0.0
    %457 = vmatprep.subr.mxu0 0.0
    %458 = vmatpush1.msra.mxu0 0.0
    %459 = vmatprep.subr.mxu0 0.0
    %460 = vmatpush1.msra.mxu0 0.0
    %461 = vmatprep.subr.mxu0 0.0
    %462 = vmatpush1.msra.mxu0 0.0
    %463 = vmatprep.subr.mxu0 0.0
    %464 = vmatpush1.msra.mxu0 %v48
    %465 = vmatprep.subr.mxu0 0.0
    %466 = vmatpush1.msra.mxu0 %v47
    %467 = vmatprep.subr.mxu0 0.0
    %468 = vmatpush1.msra.mxu0 %v46
    %469 = vmatprep.subr.mxu0 0.0
    %470 = vmatpush1.msra.mxu0 %v45
    %471 = vmatprep.subr.mxu0 0.0
    %472 = vmatpush2.msra.mxu0 0.0
    %473 = vmatprep.subr.mxu0 0.0
    %474 = vmatpush2.msra.mxu0 0.0
    %475 = vmatprep.subr.mxu0 0.0
    %476 = vmatpush2.msra.mxu0 0.0
    %477 = vmatprep.subr.mxu0 0.0
    %478 = vmatpush2.msra.mxu0 0.0
    %479 = vmatprep.subr.mxu0 0.0
    %480 = vmatpush2.msra.mxu0 0.0
    %481 = vmatprep.subr.mxu0 0.0
    %482 = vmatpush2.msra.mxu0 0.0
    %483 = vmatprep.subr.mxu0 0.0
    %484 = vmatpush2.msra.mxu0 0.0
    %485 = vmatprep.subr.mxu0 0.0
    %486 = vmatpush2.msra.mxu0 0.0
    %487 = vmatprep.subr.mxu0 0.0
    %488 = vmatpush2.msra.mxu0 0.0
    %489 = vmatprep.subr.mxu0 0.0
    %490 = vmatpush2.msra.mxu0 0.0
    %491 = vmatprep.subr.mxu0 0.0
    %492 = vmatpush2.msra.mxu0 0.0
    %493 = vmatprep.subr.mxu0 0.0
    %494 = vmatpush2.msra.mxu0 0.0
    %495 = vmatprep.subr.mxu0 0.0
    %496 = vmatpush2.msra.mxu0 0.0
    %497 = vmatprep.subr.mxu0 0.0
    %498 = vmatpush2.msra.mxu0 0.0
    %499 = vmatprep.subr.mxu0 0.0
    %500 = vmatpush2.msra.mxu0 0.0
    %501 = vmatprep.subr.mxu0 0.0
    %502 = vmatpush2.msra.mxu0 0.0
    %503 = vmatprep.mubr.f32.mxu0 0.0
    %504 = vmatmul.mubr.f32.gmra.mxu0 %v437
    %v505 = vpop.f32.mrf.mxu0
    %v506 = vadd.f32 %v433, %v505
    %v507 = vpop.f32.mrf.mxu0
    %508 = vdwg.mxu0
    %v509 = vstv %s353
    %v510 = vmul.f32 %v509, %v506
    %v511 = vadd.f32 %v41, %v510
    %vm512 = vcmask 58368
    %513 = vst.msk [vmem:[#allocation5] sm:$0x3] %vm512, %v511
    %s514 = sadd.s32 %s352, 1
    %s515 = sld [smem:[#allocation4 + %s514]]
    %v517 = vsel %vm354, %v511, 0
    %519 = vmatprep.subr.mxu0 0.0
    %520 = vmatpush1.msra.mxu0 0.0
    %521 = vmatprep.subr.mxu0 0.0
    %522 = vmatpush1.msra.mxu0 0.0
    %523 = vmatprep.subr.mxu0 0.0
    %524 = vmatpush1.msra.mxu0 0.0
    %525 = vmatprep.subr.mxu0 0.0
    %526 = vmatpush1.msra.mxu0 0.0
    %527 = vmatprep.subr.mxu0 0.0
    %528 = vmatpush1.msra.mxu0 0.0
    %529 = vmatprep.subr.mxu0 0.0
    %530 = vmatpush1.msra.mxu0 0.0
    %531 = vmatprep.subr.mxu0 0.0
    %532 = vmatpush1.msra.mxu0 0.0
    %533 = vmatprep.subr.mxu0 0.0
    %534 = vmatpush1.msra.mxu0 0.0
    %535 = vmatprep.subr.mxu0 0.0
    %536 = vmatpush1.msra.mxu0 0.0
    %537 = vmatprep.subr.mxu0 0.0
    %538 = vmatpush1.msra.mxu0 0.0
    %539 = vmatprep.subr.mxu0 0.0
    %540 = vmatpush1.msra.mxu0 0.0
    %541 = vmatprep.subr.mxu0 0.0
    %542 = vmatpush1.msra.mxu0 0.0
    %543 = vmatprep.subr.mxu0 0.0
    %544 = vmatpush1.msra.mxu0 0.0
    %545 = vmatprep.subr.mxu0 0.0
    %546 = vmatpush1.msra.mxu0 0.0
    %547 = vmatprep.subr.mxu0 0.0
    %548 = vmatpush1.msra.mxu0 0.0
    %549 = vmatprep.subr.mxu0 0.0
    %550 = vmatpush1.msra.mxu0 %v42
    %551 = vmatprep.subr.mxu0 0.0
    %552 = vmatpush2.msra.mxu0 0.0
    %553 = vmatprep.subr.mxu0 0.0
    %554 = vmatpush2.msra.mxu0 0.0
    %555 = vmatprep.subr.mxu0 0.0
    %556 = vmatpush2.msra.mxu0 0.0
    %557 = vmatprep.subr.mxu0 0.0
    %558 = vmatpush2.msra.mxu0 0.0
    %559 = vmatprep.subr.mxu0 0.0
    %560 = vmatpush2.msra.mxu0 0.0
    %561 = vmatprep.subr.mxu0 0.0
    %562 = vmatpush2.msra.mxu0 0.0
    %563 = vmatprep.subr.mxu0 0.0
    %564 = vmatpush2.msra.mxu0 0.0
    %565 = vmatprep.subr.mxu0 0.0
    %566 = vmatpush2.msra.mxu0 0.0
    %567 = vmatprep.subr.mxu0 0.0
    %568 = vmatpush2.msra.mxu0 0.0
    %569 = vmatprep.subr.mxu0 0.0
    %570 = vmatpush2.msra.mxu0 0.0
    %571 = vmatprep.subr.mxu0 0.0
    %572 = vmatpush2.msra.mxu0 0.0
    %573 = vmatprep.subr.mxu0 0.0
    %574 = vmatpush2.msra.mxu0 0.0
    %575 = vmatprep.subr.mxu0 0.0
    %576 = vmatpush2.msra.mxu0 0.0
    %577 = vmatprep.subr.mxu0 0.0
    %578 = vmatpush2.msra.mxu0 0.0
    %579 = vmatprep.subr.mxu0 0.0
    %580 = vmatpush2.msra.mxu0 0.0
    %581 = vmatprep.subr.mxu0 0.0
    %582 = vmatpush2.msra.mxu0 0.0
    %583 = vmatprep.mubr.f32.mxu0 0.0
    %584 = vmatmul.mubr.f32.gmra.mxu0 %v517
    %v585 = vpop.f32.mrf.mxu0
    %v586 = vadd.f32 %v75, %v585
    %v587 = vpop.f32.mrf.mxu0
    %588 = vdwg.mxu0
    %v589 = vtanh.pop %v586
    %v591 = vsel %vm435, %v589, 0
    %593 = vmatprep.subr.mxu0 0.0
    %594 = vmatpush1.msra.mxu0 0.0
    %595 = vmatprep.subr.mxu0 0.0
    %596 = vmatpush1.msra.mxu0 0.0
    %597 = vmatprep.subr.mxu0 0.0
    %598 = vmatpush1.msra.mxu0 0.0
    %599 = vmatprep.subr.mxu0 0.0
    %600 = vmatpush1.msra.mxu0 0.0
    %601 = vmatprep.subr.mxu0 0.0
    %602 = vmatpush1.msra.mxu0 0.0
    %603 = vmatprep.subr.mxu0 0.0
    %604 = vmatpush1.msra.mxu0 0.0
    %605 = vmatprep.subr.mxu0 0.0
    %606 = vmatpush1.msra.mxu0 0.0
    %607 = vmatprep.subr.mxu0 0.0
    %608 = vmatpush1.msra.mxu0 0.0
    %609 = vmatprep.subr.mxu0 0.0
    %610 = vmatpush1.msra.mxu0 0.0
    %611 = vmatprep.subr.mxu0 0.0
    %612 = vmatpush1.msra.mxu0 0.0
    %613 = vmatprep.subr.mxu0 0.0
    %614 = vmatpush1.msra.mxu0 0.0
    %615 = vmatprep.subr.mxu0 0.0
    %616 = vmatpush1.msra.mxu0 0.0
    %617 = vmatprep.subr.mxu0 0.0
    %618 = vmatpush1.msra.mxu0 %v48
    %619 = vmatprep.subr.mxu0 0.0
    %620 = vmatpush1.msra.mxu0 %v47
    %621 = vmatprep.subr.mxu0 0.0
    %622 = vmatpush1.msra.mxu0 %v46
    %623 = vmatprep.subr.mxu0 0.0
    %624 = vmatpush1.msra.mxu0 %v45
    %625 = vmatprep.subr.mxu0 0.0
    %626 = vmatpush2.msra.mxu0 0.0
    %627 = vmatprep.subr.mxu0 0.0
    %628 = vmatpush2.msra.mxu0 0.0
    %629 = vmatprep.subr.mxu0 0.0
    %630 = vmatpush2.msra.mxu0 0.0
    %631 = vmatprep.subr.mxu0 0.0
    %632 = vmatpush2.msra.mxu0 0.0
    %633 = vmatprep.subr.mxu0 0.0
    %634 = vmatpush2.msra.mxu0 0.0
    %635 = vmatprep.subr.mxu0 0.0
    %636 = vmatpush2.msra.mxu0 0.0
    %637 = vmatprep.subr.mxu0 0.0
    %638 = vmatpush2.msra.mxu0 0.0
    %639 = vmatprep.subr.mxu0 0.0
    %640 = vmatpush2.msra.mxu0 0.0
    %641 = vmatprep.subr.mxu0 0.0
    %642 = vmatpush2.msra.mxu0 0.0
    %643 = vmatprep.subr.mxu0 0.0
    %644 = vmatpush2.msra.mxu0 0.0
    %645 = vmatprep.subr.mxu0 0.0
    %646 = vmatpush2.msra.mxu0 0.0
    %647 = vmatprep.subr.mxu0 0.0
    %648 = vmatpush2.msra.mxu0 0.0
    %649 = vmatprep.subr.mxu0 0.0
    %650 = vmatpush2.msra.mxu0 0.0
    %651 = vmatprep.subr.mxu0 0.0
    %652 = vmatpush2.msra.mxu0 0.0
    %653 = vmatprep.subr.mxu0 0.0
    %654 = vmatpush2.msra.mxu0 0.0
    %655 = vmatprep.subr.mxu0 0.0
    %656 = vmatpush2.msra.mxu0 0.0
    %657 = vmatprep.mubr.f32.mxu0 0.0
    %658 = vmatmul.mubr.f32.gmra.mxu0 %v591
    %v659 = vpop.f32.mrf.mxu0
    %v660 = vadd.f32 %v433, %v659
    %v661 = vpop.f32.mrf.mxu0
    %662 = vdwg.mxu0
    %v663 = vstv %s515
    %v664 = vmul.f32 %v663, %v660
    %v665 = vadd.f32 %v511, %v664
    %v668 = vunpack.c.l.s4 1983009808
    %v669 = vunpack.c.0.s8 %v668
    %v670 = vlaneseq
    %v671 = vshrl.u32 %v670, 7
    %v672 = vsub.s32 %v669, %v671
    %v673 = vrot.slane %v665, %v672
    %674 = vrot.lane.b32.xlu0 %v673, 8
    %v675 = vpop.permute.xlu0 %674
    %vm677 = vcmask 123968
    %678 = vst.msk [vmem:[#allocation5] sm:$0x3] %vm677, %v675
    %s679 = sadd.s32 %s352, 2
    %s680 = sld [smem:[#allocation4 + %s679]]
    %v681 = vsel %vm354, %v665, 0
    %683 = vmatprep.subr.mxu0 0.0
    %684 = vmatpush1.msra.mxu0 0.0
    %685 = vmatprep.subr.mxu0 0.0
    %686 = vmatpush1.msra.mxu0 0.0
    %687 = vmatprep.subr.mxu0 0.0
    %688 = vmatpush1.msra.mxu0 0.0
    %689 = vmatprep.subr.mxu0 0.0
    %690 = vmatpush1.msra.mxu0 0.0
    %691 = vmatprep.subr.mxu0 0.0
    %692 = vmatpush1.msra.mxu0 0.0
    %693 = vmatprep.subr.mxu0 0.0
    %694 = vmatpush1.msra.mxu0 0.0
    %695 = vmatprep.subr.mxu0 0.0
    %696 = vmatpush1.msra.mxu0 0.0
    %697 = vmatprep.subr.mxu0 0.0
    %698 = vmatpush1.msra.mxu0 0.0
    %699 = vmatprep.subr.mxu0 0.0
    %700 = vmatpush1.msra.mxu0 0.0
    %701 = vmatprep.subr.mxu0 0.0
    %702 = vmatpush1.msra.mxu0 0.0
    %703 = vmatprep.subr.mxu0 0.0
    %704 = vmatpush1.msra.mxu0 0.0
    %705 = vmatprep.subr.mxu0 0.0
    %706 = vmatpush1.msra.mxu0 0.0
    %707 = vmatprep.subr.mxu0 0.0
    %708 = vmatpush1.msra.mxu0 0.0
    %709 = vmatprep.subr.mxu0 0.0
    %710 = vmatpush1.msra.mxu0 0.0
    %711 = vmatprep.subr.mxu0 0.0
    %712 = vmatpush1.msra.mxu0 0.0
    %713 = vmatprep.subr.mxu0 0.0
    %714 = vmatpush1.msra.mxu0 %v42
    %715 = vmatprep.subr.mxu0 0.0
    %716 = vmatpush2.msra.mxu0 0.0
    %717 = vmatprep.subr.mxu0 0.0
    %718 = vmatpush2.msra.mxu0 0.0
    %719 = vmatprep.subr.mxu0 0.0
    %720 = vmatpush2.msra.mxu0 0.0
    %721 = vmatprep.subr.mxu0 0.0
    %722 = vmatpush2.msra.mxu0 0.0
    %723 = vmatprep.subr.mxu0 0.0
    %724 = vmatpush2.msra.mxu0 0.0
    %725 = vmatprep.subr.mxu0 0.0
    %726 = vmatpush2.msra.mxu0 0.0
    %727 = vmatprep.subr.mxu0 0.0
    %728 = vmatpush2.msra.mxu0 0.0
    %729 = vmatprep.subr.mxu0 0.0
    %730 = vmatpush2.msra.mxu0 0.0
    %731 = vmatprep.subr.mxu0 0.0
    %732 = vmatpush2.msra.mxu0 0.0
    %733 = vmatprep.subr.mxu0 0.0
    %734 = vmatpush2.msra.mxu0 0.0
    %735 = vmatprep.subr.mxu0 0.0
    %736 = vmatpush2.msra.mxu0 0.0
    %737 = vmatprep.subr.mxu0 0.0
    %738 = vmatpush2.msra.mxu0 0.0
    %739 = vmatprep.subr.mxu0 0.0
    %740 = vmatpush2.msra.mxu0 0.0
    %741 = vmatprep.subr.mxu0 0.0
    %742 = vmatpush2.msra.mxu0 0.0
    %743 = vmatprep.subr.mxu0 0.0
    %744 = vmatpush2.msra.mxu0 0.0
    %745 = vmatprep.subr.mxu0 0.0
    %746 = vmatpush2.msra.mxu0 0.0
    %747 = vmatprep.mubr.f32.mxu0 0.0
    %748 = vmatmul.mubr.f32.gmra.mxu0 %v681
    %v749 = vpop.f32.mrf.mxu0
    %v750 = vadd.f32 %v81, %v749
    %v751 = vpop.f32.mrf.mxu0
    %752 = vdwg.mxu0
    %v753 = vtanh.pop %v750
    %v755 = vsel %vm435, %v753, 0
    %757 = vmatprep.subr.mxu0 0.0
    %758 = vmatpush1.msra.mxu0 0.0
    %759 = vmatprep.subr.mxu0 0.0
    %760 = vmatpush1.msra.mxu0 0.0
    %761 = vmatprep.subr.mxu0 0.0
    %762 = vmatpush1.msra.mxu0 0.0
    %763 = vmatprep.subr.mxu0 0.0
    %764 = vmatpush1.msra.mxu0 0.0
    %765 = vmatprep.subr.mxu0 0.0
    %766 = vmatpush1.msra.mxu0 0.0
    %767 = vmatprep.subr.mxu0 0.0
    %768 = vmatpush1.msra.mxu0 0.0
    %769 = vmatprep.subr.mxu0 0.0
    %770 = vmatpush1.msra.mxu0 0.0
    %771 = vmatprep.subr.mxu0 0.0
    %772 = vmatpush1.msra.mxu0 0.0
    %773 = vmatprep.subr.mxu0 0.0
    %774 = vmatpush1.msra.mxu0 0.0
    %775 = vmatprep.subr.mxu0 0.0
    %776 = vmatpush1.msra.mxu0 0.0
    %777 = vmatprep.subr.mxu0 0.0
    %778 = vmatpush1.msra.mxu0 0.0
    %779 = vmatprep.subr.mxu0 0.0
    %780 = vmatpush1.msra.mxu0 0.0
    %781 = vmatprep.subr.mxu0 0.0
    %782 = vmatpush1.msra.mxu0 %v48
    %783 = vmatprep.subr.mxu0 0.0
    %784 = vmatpush1.msra.mxu0 %v47
    %785 = vmatprep.subr.mxu0 0.0
    %786 = vmatpush1.msra.mxu0 %v46
    %787 = vmatprep.subr.mxu0 0.0
    %788 = vmatpush1.msra.mxu0 %v45
    %789 = vmatprep.subr.mxu0 0.0
    %790 = vmatpush2.msra.mxu0 0.0
    %791 = vmatprep.subr.mxu0 0.0
    %792 = vmatpush2.msra.mxu0 0.0
    %793 = vmatprep.subr.mxu0 0.0
    %794 = vmatpush2.msra.mxu0 0.0
    %795 = vmatprep.subr.mxu0 0.0
    %796 = vmatpush2.msra.mxu0 0.0
    %797 = vmatprep.subr.mxu0 0.0
    %798 = vmatpush2.msra.mxu0 0.0
    %799 = vmatprep.subr.mxu0 0.0
    %800 = vmatpush2.msra.mxu0 0.0
    %801 = vmatprep.subr.mxu0 0.0
    %802 = vmatpush2.msra.mxu0 0.0
    %803 = vmatprep.subr.mxu0 0.0
    %804 = vmatpush2.msra.mxu0 0.0
    %805 = vmatprep.subr.mxu0 0.0
    %806 = vmatpush2.msra.mxu0 0.0
    %807 = vmatprep.subr.mxu0 0.0
    %808 = vmatpush2.msra.mxu0 0.0
    %809 = vmatprep.subr.mxu0 0.0
    %810 = vmatpush2.msra.mxu0 0.0
    %811 = vmatprep.subr.mxu0 0.0
    %812 = vmatpush2.msra.mxu0 0.0
    %813 = vmatprep.subr.mxu0 0.0
    %814 = vmatpush2.msra.mxu0 0.0
    %815 = vmatprep.subr.mxu0 0.0
    %816 = vmatpush2.msra.mxu0 0.0
    %817 = vmatprep.subr.mxu0 0.0
    %818 = vmatpush2.msra.mxu0 0.0
    %819 = vmatprep.subr.mxu0 0.0
    %820 = vmatpush2.msra.mxu0 0.0
    %821 = vmatprep.mubr.f32.mxu0 0.0
    %822 = vmatmul.mubr.f32.gmra.mxu0 %v755
    %v823 = vpop.f32.mrf.mxu0
    %v824 = vadd.f32 %v433, %v823
    %v825 = vpop.f32.mrf.mxu0
    %826 = vdwg.mxu0
    %v827 = vstv %s680
    %v828 = vmul.f32 %v827, %v824
    %v829 = vadd.f32 %v665, %v828
    %v832 = vunpack.c.l.s4 1983009808
    %v833 = vunpack.c.0.s8 %v832
    %v834 = vlaneseq
    %v835 = vshrl.u32 %v834, 7
    %v836 = vsub.s32 %v833, %v835
    %v837 = vrot.slane %v829, %v836
    %838 = vrot.lane.b32.xlu0 %v837, 16
    %v839 = vpop.permute.xlu0 %838
    %vm841 = vcmask 189568
    %842 = vst.msk [vmem:[#allocation5] sm:$0x3] %vm841, %v839
    %s843 = sadd.s32 %s352, 3
    %s844 = sld [smem:[#allocation4 + %s843]]
    %v845 = vsel %vm354, %v829, 0
    %847 = vmatprep.subr.mxu0 0.0
    %848 = vmatpush1.msra.mxu0 0.0
    %849 = vmatprep.subr.mxu0 0.0
    %850 = vmatpush1.msra.mxu0 0.0
    %851 = vmatprep.subr.mxu0 0.0
    %852 = vmatpush1.msra.mxu0 0.0
    %853 = vmatprep.subr.mxu0 0.0
    %854 = vmatpush1.msra.mxu0 0.0
    %855 = vmatprep.subr.mxu0 0.0
    %856 = vmatpush1.msra.mxu0 0.0
    %857 = vmatprep.subr.mxu0 0.0
    %858 = vmatpush1.msra.mxu0 0.0
    %859 = vmatprep.subr.mxu0 0.0
    %860 = vmatpush1.msra.mxu0 0.0
    %861 = vmatprep.subr.mxu0 0.0
    %862 = vmatpush1.msra.mxu0 0.0
    %863 = vmatprep.subr.mxu0 0.0
    %864 = vmatpush1.msra.mxu0 0.0
    %865 = vmatprep.subr.mxu0 0.0
    %866 = vmatpush1.msra.mxu0 0.0
    %867 = vmatprep.subr.mxu0 0.0
    %868 = vmatpush1.msra.mxu0 0.0
    %869 = vmatprep.subr.mxu0 0.0
    %870 = vmatpush1.msra.mxu0 0.0
    %871 = vmatprep.subr.mxu0 0.0
    %872 = vmatpush1.msra.mxu0 0.0
    %873 = vmatprep.subr.mxu0 0.0
    %874 = vmatpush1.msra.mxu0 0.0
    %875 = vmatprep.subr.mxu0 0.0
    %876 = vmatpush1.msra.mxu0 0.0
    %877 = vmatprep.subr.mxu0 0.0
    %878 = vmatpush1.msra.mxu0 %v42
    %879 = vmatprep.subr.mxu0 0.0
    %880 = vmatpush2.msra.mxu0 0.0
    %881 = vmatprep.subr.mxu0 0.0
    %882 = vmatpush2.msra.mxu0 0.0
    %883 = vmatprep.subr.mxu0 0.0
    %884 = vmatpush2.msra.mxu0 0.0
    %885 = vmatprep.subr.mxu0 0.0
    %886 = vmatpush2.msra.mxu0 0.0
    %887 = vmatprep.subr.mxu0 0.0
    %888 = vmatpush2.msra.mxu0 0.0
    %889 = vmatprep.subr.mxu0 0.0
    %890 = vmatpush2.msra.mxu0 0.0
    %891 = vmatprep.subr.mxu0 0.0
    %892 = vmatpush2.msra.mxu0 0.0
    %893 = vmatprep.subr.mxu0 0.0
    %894 = vmatpush2.msra.mxu0 0.0
    %895 = vmatprep.subr.mxu0 0.0
    %896 = vmatpush2.msra.mxu0 0.0
    %897 = vmatprep.subr.mxu0 0.0
    %898 = vmatpush2.msra.mxu0 0.0
    %899 = vmatprep.subr.mxu0 0.0
    %900 = vmatpush2.msra.mxu0 0.0
    %901 = vmatprep.subr.mxu0 0.0
    %902 = vmatpush2.msra.mxu0 0.0
    %903 = vmatprep.subr.mxu0 0.0
    %904 = vmatpush2.msra.mxu0 0.0
    %905 = vmatprep.subr.mxu0 0.0
    %906 = vmatpush2.msra.mxu0 0.0
    %907 = vmatprep.subr.mxu0 0.0
    %908 = vmatpush2.msra.mxu0 0.0
    %909 = vmatprep.subr.mxu0 0.0
    %910 = vmatpush2.msra.mxu0 0.0
    %911 = vmatprep.mubr.f32.mxu0 0.0
    %912 = vmatmul.mubr.f32.gmra.mxu0 %v845
    %v913 = vpop.f32.mrf.mxu0
    %v914 = vadd.f32 %v87, %v913
    %v915 = vpop.f32.mrf.mxu0
    %916 = vdwg.mxu0
    %v917 = vtanh.pop %v914
    %v919 = vsel %vm435, %v917, 0
    %921 = vmatprep.subr.mxu0 0.0
    %922 = vmatpush1.msra.mxu0 0.0
    %923 = vmatprep.subr.mxu0 0.0
    %924 = vmatpush1.msra.mxu0 0.0
    %925 = vmatprep.subr.mxu0 0.0
    %926 = vmatpush1.msra.mxu0 0.0
    %927 = vmatprep.subr.mxu0 0.0
    %928 = vmatpush1.msra.mxu0 0.0
    %929 = vmatprep.subr.mxu0 0.0
    %930 = vmatpush1.msra.mxu0 0.0
    %931 = vmatprep.subr.mxu0 0.0
    %932 = vmatpush1.msra.mxu0 0.0
    %933 = vmatprep.subr.mxu0 0.0
    %934 = vmatpush1.msra.mxu0 0.0
    %935 = vmatprep.subr.mxu0 0.0
    %936 = vmatpush1.msra.mxu0 0.0
    %937 = vmatprep.subr.mxu0 0.0
    %938 = vmatpush1.msra.mxu0 0.0
    %939 = vmatprep.subr.mxu0 0.0
    %940 = vmatpush1.msra.mxu0 0.0
    %941 = vmatprep.subr.mxu0 0.0
    %942 = vmatpush1.msra.mxu0 0.0
    %943 = vmatprep.subr.mxu0 0.0
    %944 = vmatpush1.msra.mxu0 0.0
    %945 = vmatprep.subr.mxu0 0.0
    %946 = vmatpush1.msra.mxu0 %v48
    %947 = vmatprep.subr.mxu0 0.0
    %948 = vmatpush1.msra.mxu0 %v47
    %949 = vmatprep.subr.mxu0 0.0
    %950 = vmatpush1.msra.mxu0 %v46
    %951 = vmatprep.subr.mxu0 0.0
    %952 = vmatpush1.msra.mxu0 %v45
    %953 = vmatprep.subr.mxu0 0.0
    %954 = vmatpush2.msra.mxu0 0.0
    %955 = vmatprep.subr.mxu0 0.0
    %956 = vmatpush2.msra.mxu0 0.0
    %957 = vmatprep.subr.mxu0 0.0
    %958 = vmatpush2.msra.mxu0 0.0
    %959 = vmatprep.subr.mxu0 0.0
    %960 = vmatpush2.msra.mxu0 0.0
    %961 = vmatprep.subr.mxu0 0.0
    %962 = vmatpush2.msra.mxu0 0.0
    %963 = vmatprep.subr.mxu0 0.0
    %964 = vmatpush2.msra.mxu0 0.0
    %965 = vmatprep.subr.mxu0 0.0
    %966 = vmatpush2.msra.mxu0 0.0
    %967 = vmatprep.subr.mxu0 0.0
    %968 = vmatpush2.msra.mxu0 0.0
    %969 = vmatprep.subr.mxu0 0.0
    %970 = vmatpush2.msra.mxu0 0.0
    %971 = vmatprep.subr.mxu0 0.0
    %972 = vmatpush2.msra.mxu0 0.0
    %973 = vmatprep.subr.mxu0 0.0
    %974 = vmatpush2.msra.mxu0 0.0
    %975 = vmatprep.subr.mxu0 0.0
    %976 = vmatpush2.msra.mxu0 0.0
    %977 = vmatprep.subr.mxu0 0.0
    %978 = vmatpush2.msra.mxu0 0.0
    %979 = vmatprep.subr.mxu0 0.0
    %980 = vmatpush2.msra.mxu0 0.0
    %981 = vmatprep.subr.mxu0 0.0
    %982 = vmatpush2.msra.mxu0 0.0
    %983 = vmatprep.subr.mxu0 0.0
    %984 = vmatpush2.msra.mxu0 0.0
    %985 = vmatprep.mubr.f32.mxu0 0.0
    %986 = vmatmul.mubr.f32.gmra.mxu0 %v919
    %v987 = vpop.f32.mrf.mxu0
    %v988 = vadd.f32 %v433, %v987
    %v989 = vpop.f32.mrf.mxu0
    %990 = vdwg.mxu0
    %v991 = vstv %s844
    %v992 = vmul.f32 %v991, %v988
    %v993 = vadd.f32 %v829, %v992
    %v996 = vunpack.c.l.s4 1983009808
    %v997 = vunpack.c.0.s8 %v996
    %v998 = vlaneseq
    %v999 = vshrl.u32 %v998, 7
    %v1000 = vsub.s32 %v997, %v999
    %v1001 = vrot.slane %v993, %v1000
    %1002 = vrot.lane.b32.xlu0 %v1001, 24
    %v1003 = vpop.permute.xlu0 %1002
    %vm1005 = vcmask 255168
    %1006 = vst.msk [vmem:[#allocation5] sm:$0x3] %vm1005, %v1003
    %s1007 = sadd.s32 %s352, 4
    %s1008 = sld [smem:[#allocation4 + %s1007]]
    %v1009 = vsel %vm354, %v993, 0
    %1011 = vmatprep.subr.mxu0 0.0
    %1012 = vmatpush1.msra.mxu0 0.0
    %1013 = vmatprep.subr.mxu0 0.0
    %1014 = vmatpush1.msra.mxu0 0.0
    %1015 = vmatprep.subr.mxu0 0.0
    %1016 = vmatpush1.msra.mxu0 0.0
    %1017 = vmatprep.subr.mxu0 0.0
    %1018 = vmatpush1.msra.mxu0 0.0
    %1019 = vmatprep.subr.mxu0 0.0
    %1020 = vmatpush1.msra.mxu0 0.0
    %1021 = vmatprep.subr.mxu0 0.0
    %1022 = vmatpush1.msra.mxu0 0.0
    %1023 = vmatprep.subr.mxu0 0.0
    %1024 = vmatpush1.msra.mxu0 0.0
    %1025 = vmatprep.subr.mxu0 0.0
    %1026 = vmatpush1.msra.mxu0 0.0
    %1027 = vmatprep.subr.mxu0 0.0
    %1028 = vmatpush1.msra.mxu0 0.0
    %1029 = vmatprep.subr.mxu0 0.0
    %1030 = vmatpush1.msra.mxu0 0.0
    %1031 = vmatprep.subr.mxu0 0.0
    %1032 = vmatpush1.msra.mxu0 0.0
    %1033 = vmatprep.subr.mxu0 0.0
    %1034 = vmatpush1.msra.mxu0 0.0
    %1035 = vmatprep.subr.mxu0 0.0
    %1036 = vmatpush1.msra.mxu0 0.0
    %1037 = vmatprep.subr.mxu0 0.0
    %1038 = vmatpush1.msra.mxu0 0.0
    %1039 = vmatprep.subr.mxu0 0.0
    %1040 = vmatpush1.msra.mxu0 0.0
    %1041 = vmatprep.subr.mxu0 0.0
    %1042 = vmatpush1.msra.mxu0 %v42
    %1043 = vmatprep.subr.mxu0 0.0
    %1044 = vmatpush2.msra.mxu0 0.0
    %1045 = vmatprep.subr.mxu0 0.0
    %1046 = vmatpush2.msra.mxu0 0.0
    %1047 = vmatprep.subr.mxu0 0.0
    %1048 = vmatpush2.msra.mxu0 0.0
    %1049 = vmatprep.subr.mxu0 0.0
    %1050 = vmatpush2.msra.mxu0 0.0
    %1051 = vmatprep.subr.mxu0 0.0
    %1052 = vmatpush2.msra.mxu0 0.0
    %1053 = vmatprep.subr.mxu0 0.0
    %1054 = vmatpush2.msra.mxu0 0.0
    %1055 = vmatprep.subr.mxu0 0.0
    %1056 = vmatpush2.msra.mxu0 0.0
    %1057 = vmatprep.subr.mxu0 0.0
    %1058 = vmatpush2.msra.mxu0 0.0
    %1059 = vmatprep.subr.mxu0 0.0
    %1060 = vmatpush2.msra.mxu0 0.0
    %1061 = vmatprep.subr.mxu0 0.0
    %1062 = vmatpush2.msra.mxu0 0.0
    %1063 = vmatprep.subr.mxu0 0.0
    %1064 = vmatpush2.msra.mxu0 0.0
    %1065 = vmatprep.subr.mxu0 0.0
    %1066 = vmatpush2.msra.mxu0 0.0
    %1067 = vmatprep.subr.mxu0 0.0
    %1068 = vmatpush2.msra.mxu0 0.0
    %1069 = vmatprep.subr.mxu0 0.0
    %1070 = vmatpush2.msra.mxu0 0.0
    %1071 = vmatprep.subr.mxu0 0.0
    %1072 = vmatpush2.msra.mxu0 0.0
    %1073 = vmatprep.subr.mxu0 0.0
    %1074 = vmatpush2.msra.mxu0 0.0
    %1075 = vmatprep.mubr.f32.mxu0 0.0
    %1076 = vmatmul.mubr.f32.gmra.mxu0 %v1009
    %v1077 = vpop.f32.mrf.mxu0
    %v1078 = vadd.f32 %v93, %v1077
    %v1079 = vpop.f32.mrf.mxu0
    %1080 = vdwg.mxu0
    %v1081 = vtanh.pop %v1078
    %v1083 = vsel %vm435, %v1081, 0
    %1085 = vmatprep.subr.mxu0 0.0
    %1086 = vmatpush1.msra.mxu0 0.0
    %1087 = vmatprep.subr.mxu0 0.0
    %1088 = vmatpush1.msra.mxu0 0.0
    %1089 = vmatprep.subr.mxu0 0.0
    %1090 = vmatpush1.msra.mxu0 0.0
    %1091 = vmatprep.subr.mxu0 0.0
    %1092 = vmatpush1.msra.mxu0 0.0
    %1093 = vmatprep.subr.mxu0 0.0
    %1094 = vmatpush1.msra.mxu0 0.0
    %1095 = vmatprep.subr.mxu0 0.0
    %1096 = vmatpush1.msra.mxu0 0.0
    %1097 = vmatprep.subr.mxu0 0.0
    %1098 = vmatpush1.msra.mxu0 0.0
    %1099 = vmatprep.subr.mxu0 0.0
    %1100 = vmatpush1.msra.mxu0 0.0
    %1101 = vmatprep.subr.mxu0 0.0
    %1102 = vmatpush1.msra.mxu0 0.0
    %1103 = vmatprep.subr.mxu0 0.0
    %1104 = vmatpush1.msra.mxu0 0.0
    %1105 = vmatprep.subr.mxu0 0.0
    %1106 = vmatpush1.msra.mxu0 0.0
    %1107 = vmatprep.subr.mxu0 0.0
    %1108 = vmatpush1.msra.mxu0 0.0
    %1109 = vmatprep.subr.mxu0 0.0
    %1110 = vmatpush1.msra.mxu0 %v48
    %1111 = vmatprep.subr.mxu0 0.0
    %1112 = vmatpush1.msra.mxu0 %v47
    %1113 = vmatprep.subr.mxu0 0.0
    %1114 = vmatpush1.msra.mxu0 %v46
    %1115 = vmatprep.subr.mxu0 0.0
    %1116 = vmatpush1.msra.mxu0 %v45
    %1117 = vmatprep.subr.mxu0 0.0
    %1118 = vmatpush2.msra.mxu0 0.0
    %1119 = vmatprep.subr.mxu0 0.0
    %1120 = vmatpush2.msra.mxu0 0.0
    %1121 = vmatprep.subr.mxu0 0.0
    %1122 = vmatpush2.msra.mxu0 0.0
    %1123 = vmatprep.subr.mxu0 0.0
    %1124 = vmatpush2.msra.mxu0 0.0
    %1125 = vmatprep.subr.mxu0 0.0
    %1126 = vmatpush2.msra.mxu0 0.0
    %1127 = vmatprep.subr.mxu0 0.0
    %1128 = vmatpush2.msra.mxu0 0.0
    %1129 = vmatprep.subr.mxu0 0.0
    %1130 = vmatpush2.msra.mxu0 0.0
    %1131 = vmatprep.subr.mxu0 0.0
    %1132 = vmatpush2.msra.mxu0 0.0
    %1133 = vmatprep.subr.mxu0 0.0
    %1134 = vmatpush2.msra.mxu0 0.0
    %1135 = vmatprep.subr.mxu0 0.0
    %1136 = vmatpush2.msra.mxu0 0.0
    %1137 = vmatprep.subr.mxu0 0.0
    %1138 = vmatpush2.msra.mxu0 0.0
    %1139 = vmatprep.subr.mxu0 0.0
    %1140 = vmatpush2.msra.mxu0 0.0
    %1141 = vmatprep.subr.mxu0 0.0
    %1142 = vmatpush2.msra.mxu0 0.0
    %1143 = vmatprep.subr.mxu0 0.0
    %1144 = vmatpush2.msra.mxu0 0.0
    %1145 = vmatprep.subr.mxu0 0.0
    %1146 = vmatpush2.msra.mxu0 0.0
    %1147 = vmatprep.subr.mxu0 0.0
    %1148 = vmatpush2.msra.mxu0 0.0
    %1149 = vmatprep.mubr.f32.mxu0 0.0
    %1150 = vmatmul.mubr.f32.gmra.mxu0 %v1083
    %v1151 = vpop.f32.mrf.mxu0
    %v1152 = vadd.f32 %v433, %v1151
    %v1153 = vpop.f32.mrf.mxu0
    %1154 = vdwg.mxu0
    %v1155 = vstv %s1008
    %v1156 = vmul.f32 %v1155, %v1152
    %v1157 = vadd.f32 %v993, %v1156
    %v1160 = vunpack.c.l.s4 1983009808
    %v1161 = vunpack.c.0.s8 %v1160
    %v1162 = vlaneseq
    %v1163 = vshrl.u32 %v1162, 7
    %v1164 = vsub.s32 %v1161, %v1163
    %v1165 = vrot.slane %v1157, %v1164
    %1166 = vrot.lane.b32.xlu0 %v1165, 32
    %v1167 = vpop.permute.xlu0 %1166
    %vm1169 = vcmask 320768
    %1170 = vst.msk [vmem:[#allocation5] sm:$0x3] %vm1169, %v1167
    %s1171 = sadd.s32 %s352, 5
    %s1172 = sld [smem:[#allocation4 + %s1171]]
    %v1173 = vsel %vm354, %v1157, 0
    %1175 = vmatprep.subr.mxu0 0.0
    %1176 = vmatpush1.msra.mxu0 0.0
    %1177 = vmatprep.subr.mxu0 0.0
    %1178 = vmatpush1.msra.mxu0 0.0
    %1179 = vmatprep.subr.mxu0 0.0
    %1180 = vmatpush1.msra.mxu0 0.0
    %1181 = vmatprep.subr.mxu0 0.0
    %1182 = vmatpush1.msra.mxu0 0.0
    %1183 = vmatprep.subr.mxu0 0.0
    %1184 = vmatpush1.msra.mxu0 0.0
    %1185 = vmatprep.subr.mxu0 0.0
    %1186 = vmatpush1.msra.mxu0 0.0
    %1187 = vmatprep.subr.mxu0 0.0
    %1188 = vmatpush1.msra.mxu0 0.0
    %1189 = vmatprep.subr.mxu0 0.0
    %1190 = vmatpush1.msra.mxu0 0.0
    %1191 = vmatprep.subr.mxu0 0.0
    %1192 = vmatpush1.msra.mxu0 0.0
    %1193 = vmatprep.subr.mxu0 0.0
    %1194 = vmatpush1.msra.mxu0 0.0
    %1195 = vmatprep.subr.mxu0 0.0
    %1196 = vmatpush1.msra.mxu0 0.0
    %1197 = vmatprep.subr.mxu0 0.0
    %1198 = vmatpush1.msra.mxu0 0.0
    %1199 = vmatprep.subr.mxu0 0.0
    %1200 = vmatpush1.msra.mxu0 0.0
    %1201 = vmatprep.subr.mxu0 0.0
    %1202 = vmatpush1.msra.mxu0 0.0
    %1203 = vmatprep.subr.mxu0 0.0
    %1204 = vmatpush1.msra.mxu0 0.0
    %1205 = vmatprep.subr.mxu0 0.0
    %1206 = vmatpush1.msra.mxu0 %v42
    %1207 = vmatprep.subr.mxu0 0.0
    %1208 = vmatpush2.msra.mxu0 0.0
    %1209 = vmatprep.subr.mxu0 0.0
    %1210 = vmatpush2.msra.mxu0 0.0
    %1211 = vmatprep.subr.mxu0 0.0
    %1212 = vmatpush2.msra.mxu0 0.0
    %1213 = vmatprep.subr.mxu0 0.0
    %1214 = vmatpush2.msra.mxu0 0.0
    %1215 = vmatprep.subr.mxu0 0.0
    %1216 = vmatpush2.msra.mxu0 0.0
    %1217 = vmatprep.subr.mxu0 0.0
    %1218 = vmatpush2.msra.mxu0 0.0
    %1219 = vmatprep.subr.mxu0 0.0
    %1220 = vmatpush2.msra.mxu0 0.0
    %1221 = vmatprep.subr.mxu0 0.0
    %1222 = vmatpush2.msra.mxu0 0.0
    %1223 = vmatprep.subr.mxu0 0.0
    %1224 = vmatpush2.msra.mxu0 0.0
    %1225 = vmatprep.subr.mxu0 0.0
    %1226 = vmatpush2.msra.mxu0 0.0
    %1227 = vmatprep.subr.mxu0 0.0
    %1228 = vmatpush2.msra.mxu0 0.0
    %1229 = vmatprep.subr.mxu0 0.0
    %1230 = vmatpush2.msra.mxu0 0.0
    %1231 = vmatprep.subr.mxu0 0.0
    %1232 = vmatpush2.msra.mxu0 0.0
    %1233 = vmatprep.subr.mxu0 0.0
    %1234 = vmatpush2.msra.mxu0 0.0
    %1235 = vmatprep.subr.mxu0 0.0
    %1236 = vmatpush2.msra.mxu0 0.0
    %1237 = vmatprep.subr.mxu0 0.0
    %1238 = vmatpush2.msra.mxu0 0.0
    %1239 = vmatprep.mubr.f32.mxu0 0.0
    %1240 = vmatmul.mubr.f32.gmra.mxu0 %v1173
    %v1241 = vpop.f32.mrf.mxu0
    %v1242 = vadd.f32 %v99, %v1241
    %v1243 = vpop.f32.mrf.mxu0
    %1244 = vdwg.mxu0
    %v1245 = vtanh.pop %v1242
    %v1247 = vsel %vm435, %v1245, 0
    %1249 = vmatprep.subr.mxu0 0.0
    %1250 = vmatpush1.msra.mxu0 0.0
    %1251 = vmatprep.subr.mxu0 0.0
    %1252 = vmatpush1.msra.mxu0 0.0
    %1253 = vmatprep.subr.mxu0 0.0
    %1254 = vmatpush1.msra.mxu0 0.0
    %1255 = vmatprep.subr.mxu0 0.0
    %1256 = vmatpush1.msra.mxu0 0.0
    %1257 = vmatprep.subr.mxu0 0.0
    %1258 = vmatpush1.msra.mxu0 0.0
    %1259 = vmatprep.subr.mxu0 0.0
    %1260 = vmatpush1.msra.mxu0 0.0
    %1261 = vmatprep.subr.mxu0 0.0
    %1262 = vmatpush1.msra.mxu0 0.0
    %1263 = vmatprep.subr.mxu0 0.0
    %1264 = vmatpush1.msra.mxu0 0.0
    %1265 = vmatprep.subr.mxu0 0.0
    %1266 = vmatpush1.msra.mxu0 0.0
    %1267 = vmatprep.subr.mxu0 0.0
    %1268 = vmatpush1.msra.mxu0 0.0
    %1269 = vmatprep.subr.mxu0 0.0
    %1270 = vmatpush1.msra.mxu0 0.0
    %1271 = vmatprep.subr.mxu0 0.0
    %1272 = vmatpush1.msra.mxu0 0.0
    %1273 = vmatprep.subr.mxu0 0.0
    %1274 = vmatpush1.msra.mxu0 %v48
    %1275 = vmatprep.subr.mxu0 0.0
    %1276 = vmatpush1.msra.mxu0 %v47
    %1277 = vmatprep.subr.mxu0 0.0
    %1278 = vmatpush1.msra.mxu0 %v46
    %1279 = vmatprep.subr.mxu0 0.0
    %1280 = vmatpush1.msra.mxu0 %v45
    %1281 = vmatprep.subr.mxu0 0.0
    %1282 = vmatpush2.msra.mxu0 0.0
    %1283 = vmatprep.subr.mxu0 0.0
    %1284 = vmatpush2.msra.mxu0 0.0
    %1285 = vmatprep.subr.mxu0 0.0
    %1286 = vmatpush2.msra.mxu0 0.0
    %1287 = vmatprep.subr.mxu0 0.0
    %1288 = vmatpush2.msra.mxu0 0.0
    %1289 = vmatprep.subr.mxu0 0.0
    %1290 = vmatpush2.msra.mxu0 0.0
    %1291 = vmatprep.subr.mxu0 0.0
    %1292 = vmatpush2.msra.mxu0 0.0
    %1293 = vmatprep.subr.mxu0 0.0
    %1294 = vmatpush2.msra.mxu0 0.0
    %1295 = vmatprep.subr.mxu0 0.0
    %1296 = vmatpush2.msra.mxu0 0.0
    %1297 = vmatprep.subr.mxu0 0.0
    %1298 = vmatpush2.msra.mxu0 0.0
    %1299 = vmatprep.subr.mxu0 0.0
    %1300 = vmatpush2.msra.mxu0 0.0
    %1301 = vmatprep.subr.mxu0 0.0
    %1302 = vmatpush2.msra.mxu0 0.0
    %1303 = vmatprep.subr.mxu0 0.0
    %1304 = vmatpush2.msra.mxu0 0.0
    %1305 = vmatprep.subr.mxu0 0.0
    %1306 = vmatpush2.msra.mxu0 0.0
    %1307 = vmatprep.subr.mxu0 0.0
    %1308 = vmatpush2.msra.mxu0 0.0
    %1309 = vmatprep.subr.mxu0 0.0
    %1310 = vmatpush2.msra.mxu0 0.0
    %1311 = vmatprep.subr.mxu0 0.0
    %1312 = vmatpush2.msra.mxu0 0.0
    %1313 = vmatprep.mubr.f32.mxu0 0.0
    %1314 = vmatmul.mubr.f32.gmra.mxu0 %v1247
    %v1315 = vpop.f32.mrf.mxu0
    %v1316 = vadd.f32 %v433, %v1315
    %v1317 = vpop.f32.mrf.mxu0
    %1318 = vdwg.mxu0
    %v1319 = vstv %s1172
    %v1320 = vmul.f32 %v1319, %v1316
    %v1321 = vadd.f32 %v1157, %v1320
    %v1324 = vunpack.c.l.s4 1983009808
    %v1325 = vunpack.c.0.s8 %v1324
    %v1326 = vlaneseq
    %v1327 = vshrl.u32 %v1326, 7
    %v1328 = vsub.s32 %v1325, %v1327
    %v1329 = vrot.slane %v1321, %v1328
    %1330 = vrot.lane.b32.xlu0 %v1329, 40
    %v1331 = vpop.permute.xlu0 %1330
    %vm1333 = vcmask 386368
    %1334 = vst.msk [vmem:[#allocation5] sm:$0x3] %vm1333, %v1331
    %s1335 = sadd.s32 %s352, 6
    %s1336 = sld [smem:[#allocation4 + %s1335]]
    %v1337 = vsel %vm354, %v1321, 0
    %1339 = vmatprep.subr.mxu0 0.0
    %1340 = vmatpush1.msra.mxu0 0.0
    %1341 = vmatprep.subr.mxu0 0.0
    %1342 = vmatpush1.msra.mxu0 0.0
    %1343 = vmatprep.subr.mxu0 0.0
    %1344 = vmatpush1.msra.mxu0 0.0
    %1345 = vmatprep.subr.mxu0 0.0
    %1346 = vmatpush1.msra.mxu0 0.0
    %1347 = vmatprep.subr.mxu0 0.0
    %1348 = vmatpush1.msra.mxu0 0.0
    %1349 = vmatprep.subr.mxu0 0.0
    %1350 = vmatpush1.msra.mxu0 0.0
    %1351 = vmatprep.subr.mxu0 0.0
    %1352 = vmatpush1.msra.mxu0 0.0
    %1353 = vmatprep.subr.mxu0 0.0
    %1354 = vmatpush1.msra.mxu0 0.0
    %1355 = vmatprep.subr.mxu0 0.0
    %1356 = vmatpush1.msra.mxu0 0.0
    %1357 = vmatprep.subr.mxu0 0.0
    %1358 = vmatpush1.msra.mxu0 0.0
    %1359 = vmatprep.subr.mxu0 0.0
    %1360 = vmatpush1.msra.mxu0 0.0
    %1361 = vmatprep.subr.mxu0 0.0
    %1362 = vmatpush1.msra.mxu0 0.0
    %1363 = vmatprep.subr.mxu0 0.0
    %1364 = vmatpush1.msra.mxu0 0.0
    %1365 = vmatprep.subr.mxu0 0.0
    %1366 = vmatpush1.msra.mxu0 0.0
    %1367 = vmatprep.subr.mxu0 0.0
    %1368 = vmatpush1.msra.mxu0 0.0
    %1369 = vmatprep.subr.mxu0 0.0
    %1370 = vmatpush1.msra.mxu0 %v42
    %1371 = vmatprep.subr.mxu0 0.0
    %1372 = vmatpush2.msra.mxu0 0.0
    %1373 = vmatprep.subr.mxu0 0.0
    %1374 = vmatpush2.msra.mxu0 0.0
    %1375 = vmatprep.subr.mxu0 0.0
    %1376 = vmatpush2.msra.mxu0 0.0
    %1377 = vmatprep.subr.mxu0 0.0
    %1378 = vmatpush2.msra.mxu0 0.0
    %1379 = vmatprep.subr.mxu0 0.0
    %1380 = vmatpush2.msra.mxu0 0.0
    %1381 = vmatprep.subr.mxu0 0.0
    %1382 = vmatpush2.msra.mxu0 0.0
    %1383 = vmatprep.subr.mxu0 0.0
    %1384 = vmatpush2.msra.mxu0 0.0
    %1385 = vmatprep.subr.mxu0 0.0
    %1386 = vmatpush2.msra.mxu0 0.0
    %1387 = vmatprep.subr.mxu0 0.0
    %1388 = vmatpush2.msra.mxu0 0.0
    %1389 = vmatprep.subr.mxu0 0.0
    %1390 = vmatpush2.msra.mxu0 0.0
    %1391 = vmatprep.subr.mxu0 0.0
    %1392 = vmatpush2.msra.mxu0 0.0
    %1393 = vmatprep.subr.mxu0 0.0
    %1394 = vmatpush2.msra.mxu0 0.0
    %1395 = vmatprep.subr.mxu0 0.0
    %1396 = vmatpush2.msra.mxu0 0.0
    %1397 = vmatprep.subr.mxu0 0.0
    %1398 = vmatpush2.msra.mxu0 0.0
    %1399 = vmatprep.subr.mxu0 0.0
    %1400 = vmatpush2.msra.mxu0 0.0
    %1401 = vmatprep.subr.mxu0 0.0
    %1402 = vmatpush2.msra.mxu0 0.0
    %1403 = vmatprep.mubr.f32.mxu0 0.0
    %1404 = vmatmul.mubr.f32.gmra.mxu0 %v1337
    %v1405 = vpop.f32.mrf.mxu0
    %v1406 = vadd.f32 %v105, %v1405
    %v1407 = vpop.f32.mrf.mxu0
    %1408 = vdwg.mxu0
    %v1409 = vtanh.pop %v1406
    %v1411 = vsel %vm435, %v1409, 0
    %1413 = vmatprep.subr.mxu0 0.0
    %1414 = vmatpush1.msra.mxu0 0.0
    %1415 = vmatprep.subr.mxu0 0.0
    %1416 = vmatpush1.msra.mxu0 0.0
    %1417 = vmatprep.subr.mxu0 0.0
    %1418 = vmatpush1.msra.mxu0 0.0
    %1419 = vmatprep.subr.mxu0 0.0
    %1420 = vmatpush1.msra.mxu0 0.0
    %1421 = vmatprep.subr.mxu0 0.0
    %1422 = vmatpush1.msra.mxu0 0.0
    %1423 = vmatprep.subr.mxu0 0.0
    %1424 = vmatpush1.msra.mxu0 0.0
    %1425 = vmatprep.subr.mxu0 0.0
    %1426 = vmatpush1.msra.mxu0 0.0
    %1427 = vmatprep.subr.mxu0 0.0
    %1428 = vmatpush1.msra.mxu0 0.0
    %1429 = vmatprep.subr.mxu0 0.0
    %1430 = vmatpush1.msra.mxu0 0.0
    %1431 = vmatprep.subr.mxu0 0.0
    %1432 = vmatpush1.msra.mxu0 0.0
    %1433 = vmatprep.subr.mxu0 0.0
    %1434 = vmatpush1.msra.mxu0 0.0
    %1435 = vmatprep.subr.mxu0 0.0
    %1436 = vmatpush1.msra.mxu0 0.0
    %1437 = vmatprep.subr.mxu0 0.0
    %1438 = vmatpush1.msra.mxu0 %v48
    %1439 = vmatprep.subr.mxu0 0.0
    %1440 = vmatpush1.msra.mxu0 %v47
    %1441 = vmatprep.subr.mxu0 0.0
    %1442 = vmatpush1.msra.mxu0 %v46
    %1443 = vmatprep.subr.mxu0 0.0
    %1444 = vmatpush1.msra.mxu0 %v45
    %1445 = vmatprep.subr.mxu0 0.0
    %1446 = vmatpush2.msra.mxu0 0.0
    %1447 = vmatprep.subr.mxu0 0.0
    %1448 = vmatpush2.msra.mxu0 0.0
    %1449 = vmatprep.subr.mxu0 0.0
    %1450 = vmatpush2.msra.mxu0 0.0
    %1451 = vmatprep.subr.mxu0 0.0
    %1452 = vmatpush2.msra.mxu0 0.0
    %1453 = vmatprep.subr.mxu0 0.0
    %1454 = vmatpush2.msra.mxu0 0.0
    %1455 = vmatprep.subr.mxu0 0.0
    %1456 = vmatpush2.msra.mxu0 0.0
    %1457 = vmatprep.subr.mxu0 0.0
    %1458 = vmatpush2.msra.mxu0 0.0
    %1459 = vmatprep.subr.mxu0 0.0
    %1460 = vmatpush2.msra.mxu0 0.0
    %1461 = vmatprep.subr.mxu0 0.0
    %1462 = vmatpush2.msra.mxu0 0.0
    %1463 = vmatprep.subr.mxu0 0.0
    %1464 = vmatpush2.msra.mxu0 0.0
    %1465 = vmatprep.subr.mxu0 0.0
    %1466 = vmatpush2.msra.mxu0 0.0
    %1467 = vmatprep.subr.mxu0 0.0
    %1468 = vmatpush2.msra.mxu0 0.0
    %1469 = vmatprep.subr.mxu0 0.0
    %1470 = vmatpush2.msra.mxu0 0.0
    %1471 = vmatprep.subr.mxu0 0.0
    %1472 = vmatpush2.msra.mxu0 0.0
    %1473 = vmatprep.subr.mxu0 0.0
    %1474 = vmatpush2.msra.mxu0 0.0
    %1475 = vmatprep.subr.mxu0 0.0
    %1476 = vmatpush2.msra.mxu0 0.0
    %1477 = vmatprep.mubr.f32.mxu0 0.0
    %1478 = vmatmul.mubr.f32.gmra.mxu0 %v1411
    %v1479 = vpop.f32.mrf.mxu0
    %v1480 = vadd.f32 %v433, %v1479
    %v1481 = vpop.f32.mrf.mxu0
    %1482 = vdwg.mxu0
    %v1483 = vstv %s1336
    %v1484 = vmul.f32 %v1483, %v1480
    %v1485 = vadd.f32 %v1321, %v1484
    %v1488 = vunpack.c.l.s4 1983009808
    %v1489 = vunpack.c.0.s8 %v1488
    %v1490 = vlaneseq
    %v1491 = vshrl.u32 %v1490, 7
    %v1492 = vsub.s32 %v1489, %v1491
    %v1493 = vrot.slane %v1485, %v1492
    %1494 = vrot.lane.b32.xlu0 %v1493, 48
    %v1495 = vpop.permute.xlu0 %1494
    %vm1497 = vcmask 451968
    %1498 = vst.msk [vmem:[#allocation5] sm:$0x3] %vm1497, %v1495
    %s1499 = sadd.s32 %s352, 7
    %s1500 = sld [smem:[#allocation4 + %s1499]]
    %v1501 = vsel %vm354, %v1485, 0
    %1503 = vmatprep.subr.mxu0 0.0
    %1504 = vmatpush1.msra.mxu0 0.0
    %1505 = vmatprep.subr.mxu0 0.0
    %1506 = vmatpush1.msra.mxu0 0.0
    %1507 = vmatprep.subr.mxu0 0.0
    %1508 = vmatpush1.msra.mxu0 0.0
    %1509 = vmatprep.subr.mxu0 0.0
    %1510 = vmatpush1.msra.mxu0 0.0
    %1511 = vmatprep.subr.mxu0 0.0
    %1512 = vmatpush1.msra.mxu0 0.0
    %1513 = vmatprep.subr.mxu0 0.0
    %1514 = vmatpush1.msra.mxu0 0.0
    %1515 = vmatprep.subr.mxu0 0.0
    %1516 = vmatpush1.msra.mxu0 0.0
    %1517 = vmatprep.subr.mxu0 0.0
    %1518 = vmatpush1.msra.mxu0 0.0
    %1519 = vmatprep.subr.mxu0 0.0
    %1520 = vmatpush1.msra.mxu0 0.0
    %1521 = vmatprep.subr.mxu0 0.0
    %1522 = vmatpush1.msra.mxu0 0.0
    %1523 = vmatprep.subr.mxu0 0.0
    %1524 = vmatpush1.msra.mxu0 0.0
    %1525 = vmatprep.subr.mxu0 0.0
    %1526 = vmatpush1.msra.mxu0 0.0
    %1527 = vmatprep.subr.mxu0 0.0
    %1528 = vmatpush1.msra.mxu0 0.0
    %1529 = vmatprep.subr.mxu0 0.0
    %1530 = vmatpush1.msra.mxu0 0.0
    %1531 = vmatprep.subr.mxu0 0.0
    %1532 = vmatpush1.msra.mxu0 0.0
    %1533 = vmatprep.subr.mxu0 0.0
    %1534 = vmatpush1.msra.mxu0 %v42
    %1535 = vmatprep.subr.mxu0 0.0
    %1536 = vmatpush2.msra.mxu0 0.0
    %1537 = vmatprep.subr.mxu0 0.0
    %1538 = vmatpush2.msra.mxu0 0.0
    %1539 = vmatprep.subr.mxu0 0.0
    %1540 = vmatpush2.msra.mxu0 0.0
    %1541 = vmatprep.subr.mxu0 0.0
    %1542 = vmatpush2.msra.mxu0 0.0
    %1543 = vmatprep.subr.mxu0 0.0
    %1544 = vmatpush2.msra.mxu0 0.0
    %1545 = vmatprep.subr.mxu0 0.0
    %1546 = vmatpush2.msra.mxu0 0.0
    %1547 = vmatprep.subr.mxu0 0.0
    %1548 = vmatpush2.msra.mxu0 0.0
    %1549 = vmatprep.subr.mxu0 0.0
    %1550 = vmatpush2.msra.mxu0 0.0
    %1551 = vmatprep.subr.mxu0 0.0
    %1552 = vmatpush2.msra.mxu0 0.0
    %1553 = vmatprep.subr.mxu0 0.0
    %1554 = vmatpush2.msra.mxu0 0.0
    %1555 = vmatprep.subr.mxu0 0.0
    %1556 = vmatpush2.msra.mxu0 0.0
    %1557 = vmatprep.subr.mxu0 0.0
    %1558 = vmatpush2.msra.mxu0 0.0
    %1559 = vmatprep.subr.mxu0 0.0
    %1560 = vmatpush2.msra.mxu0 0.0
    %1561 = vmatprep.subr.mxu0 0.0
    %1562 = vmatpush2.msra.mxu0 0.0
    %1563 = vmatprep.subr.mxu0 0.0
    %1564 = vmatpush2.msra.mxu0 0.0
    %1565 = vmatprep.subr.mxu0 0.0
    %1566 = vmatpush2.msra.mxu0 0.0
    %1567 = vmatprep.mubr.f32.mxu0 0.0
    %1568 = vmatmul.mubr.f32.gmra.mxu0 %v1501
    %v1569 = vpop.f32.mrf.mxu0
    %v1570 = vadd.f32 %v111, %v1569
    %v1571 = vpop.f32.mrf.mxu0
    %1572 = vdwg.mxu0
    %v1573 = vtanh.pop %v1570
    %v1575 = vsel %vm435, %v1573, 0
    %1577 = vmatprep.subr.mxu0 0.0
    %1578 = vmatpush1.msra.mxu0 0.0
    %1579 = vmatprep.subr.mxu0 0.0
    %1580 = vmatpush1.msra.mxu0 0.0
    %1581 = vmatprep.subr.mxu0 0.0
    %1582 = vmatpush1.msra.mxu0 0.0
    %1583 = vmatprep.subr.mxu0 0.0
    %1584 = vmatpush1.msra.mxu0 0.0
    %1585 = vmatprep.subr.mxu0 0.0
    %1586 = vmatpush1.msra.mxu0 0.0
    %1587 = vmatprep.subr.mxu0 0.0
    %1588 = vmatpush1.msra.mxu0 0.0
    %1589 = vmatprep.subr.mxu0 0.0
    %1590 = vmatpush1.msra.mxu0 0.0
    %1591 = vmatprep.subr.mxu0 0.0
    %1592 = vmatpush1.msra.mxu0 0.0
    %1593 = vmatprep.subr.mxu0 0.0
    %1594 = vmatpush1.msra.mxu0 0.0
    %1595 = vmatprep.subr.mxu0 0.0
    %1596 = vmatpush1.msra.mxu0 0.0
    %1597 = vmatprep.subr.mxu0 0.0
    %1598 = vmatpush1.msra.mxu0 0.0
    %1599 = vmatprep.subr.mxu0 0.0
    %1600 = vmatpush1.msra.mxu0 0.0
    %1601 = vmatprep.subr.mxu0 0.0
    %1602 = vmatpush1.msra.mxu0 %v48
    %1603 = vmatprep.subr.mxu0 0.0
    %1604 = vmatpush1.msra.mxu0 %v47
    %1605 = vmatprep.subr.mxu0 0.0
    %1606 = vmatpush1.msra.mxu0 %v46
    %1607 = vmatprep.subr.mxu0 0.0
    %1608 = vmatpush1.msra.mxu0 %v45
    %1609 = vmatprep.subr.mxu0 0.0
    %1610 = vmatpush2.msra.mxu0 0.0
    %1611 = vmatprep.subr.mxu0 0.0
    %1612 = vmatpush2.msra.mxu0 0.0
    %1613 = vmatprep.subr.mxu0 0.0
    %1614 = vmatpush2.msra.mxu0 0.0
    %1615 = vmatprep.subr.mxu0 0.0
    %1616 = vmatpush2.msra.mxu0 0.0
    %1617 = vmatprep.subr.mxu0 0.0
    %1618 = vmatpush2.msra.mxu0 0.0
    %1619 = vmatprep.subr.mxu0 0.0
    %1620 = vmatpush2.msra.mxu0 0.0
    %1621 = vmatprep.subr.mxu0 0.0
    %1622 = vmatpush2.msra.mxu0 0.0
    %1623 = vmatprep.subr.mxu0 0.0
    %1624 = vmatpush2.msra.mxu0 0.0
    %1625 = vmatprep.subr.mxu0 0.0
    %1626 = vmatpush2.msra.mxu0 0.0
    %1627 = vmatprep.subr.mxu0 0.0
    %1628 = vmatpush2.msra.mxu0 0.0
    %1629 = vmatprep.subr.mxu0 0.0
    %1630 = vmatpush2.msra.mxu0 0.0
    %1631 = vmatprep.subr.mxu0 0.0
    %1632 = vmatpush2.msra.mxu0 0.0
    %1633 = vmatprep.subr.mxu0 0.0
    %1634 = vmatpush2.msra.mxu0 0.0
    %1635 = vmatprep.subr.mxu0 0.0
    %1636 = vmatpush2.msra.mxu0 0.0
    %1637 = vmatprep.subr.mxu0 0.0
    %1638 = vmatpush2.msra.mxu0 0.0
    %1639 = vmatprep.subr.mxu0 0.0
    %1640 = vmatpush2.msra.mxu0 0.0
    %1641 = vmatprep.mubr.f32.mxu0 0.0
    %1642 = vmatmul.mubr.f32.gmra.mxu0 %v1575
    %v1643 = vpop.f32.mrf.mxu0
    %v1644 = vadd.f32 %v433, %v1643
    %v1645 = vpop.f32.mrf.mxu0
    %1646 = vdwg.mxu0
    %v1647 = vstv %s1500
    %v1648 = vmul.f32 %v1647, %v1644
    %v1649 = vadd.f32 %v1485, %v1648
    %v1652 = vunpack.c.l.s4 1983009808
    %v1653 = vunpack.c.0.s8 %v1652
    %v1654 = vlaneseq
    %v1655 = vshrl.u32 %v1654, 7
    %v1656 = vsub.s32 %v1653, %v1655
    %v1657 = vrot.slane %v1649, %v1656
    %1658 = vrot.lane.b32.xlu0 %v1657, 56
    %v1659 = vpop.permute.xlu0 %1658
    %vm1661 = vcmask 517568
    %1662 = vst.msk [vmem:[#allocation5] sm:$0x3] %vm1661, %v1659
    %s1663 = sadd.s32 %s352, 8
    %s1664 = sld [smem:[#allocation4 + %s1663]]
    %v1665 = vsel %vm354, %v1649, 0
    %1667 = vmatprep.subr.mxu0 0.0
    %1668 = vmatpush1.msra.mxu0 0.0
    %1669 = vmatprep.subr.mxu0 0.0
    %1670 = vmatpush1.msra.mxu0 0.0
    %1671 = vmatprep.subr.mxu0 0.0
    %1672 = vmatpush1.msra.mxu0 0.0
    %1673 = vmatprep.subr.mxu0 0.0
    %1674 = vmatpush1.msra.mxu0 0.0
    %1675 = vmatprep.subr.mxu0 0.0
    %1676 = vmatpush1.msra.mxu0 0.0
    %1677 = vmatprep.subr.mxu0 0.0
    %1678 = vmatpush1.msra.mxu0 0.0
    %1679 = vmatprep.subr.mxu0 0.0
    %1680 = vmatpush1.msra.mxu0 0.0
    %1681 = vmatprep.subr.mxu0 0.0
    %1682 = vmatpush1.msra.mxu0 0.0
    %1683 = vmatprep.subr.mxu0 0.0
    %1684 = vmatpush1.msra.mxu0 0.0
    %1685 = vmatprep.subr.mxu0 0.0
    %1686 = vmatpush1.msra.mxu0 0.0
    %1687 = vmatprep.subr.mxu0 0.0
    %1688 = vmatpush1.msra.mxu0 0.0
    %1689 = vmatprep.subr.mxu0 0.0
    %1690 = vmatpush1.msra.mxu0 0.0
    %1691 = vmatprep.subr.mxu0 0.0
    %1692 = vmatpush1.msra.mxu0 0.0
    %1693 = vmatprep.subr.mxu0 0.0
    %1694 = vmatpush1.msra.mxu0 0.0
    %1695 = vmatprep.subr.mxu0 0.0
    %1696 = vmatpush1.msra.mxu0 0.0
    %1697 = vmatprep.subr.mxu0 0.0
    %1698 = vmatpush1.msra.mxu0 %v42
    %1699 = vmatprep.subr.mxu0 0.0
    %1700 = vmatpush2.msra.mxu0 0.0
    %1701 = vmatprep.subr.mxu0 0.0
    %1702 = vmatpush2.msra.mxu0 0.0
    %1703 = vmatprep.subr.mxu0 0.0
    %1704 = vmatpush2.msra.mxu0 0.0
    %1705 = vmatprep.subr.mxu0 0.0
    %1706 = vmatpush2.msra.mxu0 0.0
    %1707 = vmatprep.subr.mxu0 0.0
    %1708 = vmatpush2.msra.mxu0 0.0
    %1709 = vmatprep.subr.mxu0 0.0
    %1710 = vmatpush2.msra.mxu0 0.0
    %1711 = vmatprep.subr.mxu0 0.0
    %1712 = vmatpush2.msra.mxu0 0.0
    %1713 = vmatprep.subr.mxu0 0.0
    %1714 = vmatpush2.msra.mxu0 0.0
    %1715 = vmatprep.subr.mxu0 0.0
    %1716 = vmatpush2.msra.mxu0 0.0
    %1717 = vmatprep.subr.mxu0 0.0
    %1718 = vmatpush2.msra.mxu0 0.0
    %1719 = vmatprep.subr.mxu0 0.0
    %1720 = vmatpush2.msra.mxu0 0.0
    %1721 = vmatprep.subr.mxu0 0.0
    %1722 = vmatpush2.msra.mxu0 0.0
    %1723 = vmatprep.subr.mxu0 0.0
    %1724 = vmatpush2.msra.mxu0 0.0
    %1725 = vmatprep.subr.mxu0 0.0
    %1726 = vmatpush2.msra.mxu0 0.0
    %1727 = vmatprep.subr.mxu0 0.0
    %1728 = vmatpush2.msra.mxu0 0.0
    %1729 = vmatprep.subr.mxu0 0.0
    %1730 = vmatpush2.msra.mxu0 0.0
    %1731 = vmatprep.mubr.f32.mxu0 0.0
    %1732 = vmatmul.mubr.f32.gmra.mxu0 %v1665
    %v1733 = vpop.f32.mrf.mxu0
    %v1734 = vadd.f32 %v117, %v1733
    %v1735 = vpop.f32.mrf.mxu0
    %1736 = vdwg.mxu0
    %v1737 = vtanh.pop %v1734
    %v1739 = vsel %vm435, %v1737, 0
    %1741 = vmatprep.subr.mxu0 0.0
    %1742 = vmatpush1.msra.mxu0 0.0
    %1743 = vmatprep.subr.mxu0 0.0
    %1744 = vmatpush1.msra.mxu0 0.0
    %1745 = vmatprep.subr.mxu0 0.0
    %1746 = vmatpush1.msra.mxu0 0.0
    %1747 = vmatprep.subr.mxu0 0.0
    %1748 = vmatpush1.msra.mxu0 0.0
    %1749 = vmatprep.subr.mxu0 0.0
    %1750 = vmatpush1.msra.mxu0 0.0
    %1751 = vmatprep.subr.mxu0 0.0
    %1752 = vmatpush1.msra.mxu0 0.0
    %1753 = vmatprep.subr.mxu0 0.0
    %1754 = vmatpush1.msra.mxu0 0.0
    %1755 = vmatprep.subr.mxu0 0.0
    %1756 = vmatpush1.msra.mxu0 0.0
    %1757 = vmatprep.subr.mxu0 0.0
    %1758 = vmatpush1.msra.mxu0 0.0
    %1759 = vmatprep.subr.mxu0 0.0
    %1760 = vmatpush1.msra.mxu0 0.0
    %1761 = vmatprep.subr.mxu0 0.0
    %1762 = vmatpush1.msra.mxu0 0.0
    %1763 = vmatprep.subr.mxu0 0.0
    %1764 = vmatpush1.msra.mxu0 0.0
    %1765 = vmatprep.subr.mxu0 0.0
    %1766 = vmatpush1.msra.mxu0 %v48
    %1767 = vmatprep.subr.mxu0 0.0
    %1768 = vmatpush1.msra.mxu0 %v47
    %1769 = vmatprep.subr.mxu0 0.0
    %1770 = vmatpush1.msra.mxu0 %v46
    %1771 = vmatprep.subr.mxu0 0.0
    %1772 = vmatpush1.msra.mxu0 %v45
    %1773 = vmatprep.subr.mxu0 0.0
    %1774 = vmatpush2.msra.mxu0 0.0
    %1775 = vmatprep.subr.mxu0 0.0
    %1776 = vmatpush2.msra.mxu0 0.0
    %1777 = vmatprep.subr.mxu0 0.0
    %1778 = vmatpush2.msra.mxu0 0.0
    %1779 = vmatprep.subr.mxu0 0.0
    %1780 = vmatpush2.msra.mxu0 0.0
    %1781 = vmatprep.subr.mxu0 0.0
    %1782 = vmatpush2.msra.mxu0 0.0
    %1783 = vmatprep.subr.mxu0 0.0
    %1784 = vmatpush2.msra.mxu0 0.0
    %1785 = vmatprep.subr.mxu0 0.0
    %1786 = vmatpush2.msra.mxu0 0.0
    %1787 = vmatprep.subr.mxu0 0.0
    %1788 = vmatpush2.msra.mxu0 0.0
    %1789 = vmatprep.subr.mxu0 0.0
    %1790 = vmatpush2.msra.mxu0 0.0
    %1791 = vmatprep.subr.mxu0 0.0
    %1792 = vmatpush2.msra.mxu0 0.0
    %1793 = vmatprep.subr.mxu0 0.0
    %1794 = vmatpush2.msra.mxu0 0.0
    %1795 = vmatprep.subr.mxu0 0.0
    %1796 = vmatpush2.msra.mxu0 0.0
    %1797 = vmatprep.subr.mxu0 0.0
    %1798 = vmatpush2.msra.mxu0 0.0
    %1799 = vmatprep.subr.mxu0 0.0
    %1800 = vmatpush2.msra.mxu0 0.0
    %1801 = vmatprep.subr.mxu0 0.0
    %1802 = vmatpush2.msra.mxu0 0.0
    %1803 = vmatprep.subr.mxu0 0.0
    %1804 = vmatpush2.msra.mxu0 0.0
    %1805 = vmatprep.mubr.f32.mxu0 0.0
    %1806 = vmatmul.mubr.f32.gmra.mxu0 %v1739
    %v1807 = vpop.f32.mrf.mxu0
    %v1808 = vadd.f32 %v433, %v1807
    %v1809 = vpop.f32.mrf.mxu0
    %1810 = vdwg.mxu0
    %v1811 = vstv %s1664
    %v1812 = vmul.f32 %v1811, %v1808
    %v1813 = vadd.f32 %v1649, %v1812
    %v1816 = vunpack.c.l.s4 1983009808
    %v1817 = vunpack.c.0.s8 %v1816
    %v1818 = vlaneseq
    %v1819 = vshrl.u32 %v1818, 7
    %v1820 = vsub.s32 %v1817, %v1819
    %v1821 = vrot.slane %v1813, %v1820
    %1822 = vrot.lane.b32.xlu0 %v1821, 64
    %v1823 = vpop.permute.xlu0 %1822
    %vm1825 = vcmask 583168
    %1826 = vst.msk [vmem:[#allocation5] sm:$0x3] %vm1825, %v1823
    %s1827 = sadd.s32 %s352, 9
    %s1828 = sld [smem:[#allocation4 + %s1827]]
    %v1829 = vsel %vm354, %v1813, 0
    %1831 = vmatprep.subr.mxu0 0.0
    %1832 = vmatpush1.msra.mxu0 0.0
    %1833 = vmatprep.subr.mxu0 0.0
    %1834 = vmatpush1.msra.mxu0 0.0
    %1835 = vmatprep.subr.mxu0 0.0
    %1836 = vmatpush1.msra.mxu0 0.0
    %1837 = vmatprep.subr.mxu0 0.0
    %1838 = vmatpush1.msra.mxu0 0.0
    %1839 = vmatprep.subr.mxu0 0.0
    %1840 = vmatpush1.msra.mxu0 0.0
    %1841 = vmatprep.subr.mxu0 0.0
    %1842 = vmatpush1.msra.mxu0 0.0
    %1843 = vmatprep.subr.mxu0 0.0
    %1844 = vmatpush1.msra.mxu0 0.0
    %1845 = vmatprep.subr.mxu0 0.0
    %1846 = vmatpush1.msra.mxu0 0.0
    %1847 = vmatprep.subr.mxu0 0.0
    %1848 = vmatpush1.msra.mxu0 0.0
    %1849 = vmatprep.subr.mxu0 0.0
    %1850 = vmatpush1.msra.mxu0 0.0
    %1851 = vmatprep.subr.mxu0 0.0
    %1852 = vmatpush1.msra.mxu0 0.0
    %1853 = vmatprep.subr.mxu0 0.0
    %1854 = vmatpush1.msra.mxu0 0.0
    %1855 = vmatprep.subr.mxu0 0.0
    %1856 = vmatpush1.msra.mxu0 0.0
    %1857 = vmatprep.subr.mxu0 0.0
    %1858 = vmatpush1.msra.mxu0 0.0
    %1859 = vmatprep.subr.mxu0 0.0
    %1860 = vmatpush1.msra.mxu0 0.0
    %1861 = vmatprep.subr.mxu0 0.0
    %1862 = vmatpush1.msra.mxu0 %v42
    %1863 = vmatprep.subr.mxu0 0.0
    %1864 = vmatpush2.msra.mxu0 0.0
    %1865 = vmatprep.subr.mxu0 0.0
    %1866 = vmatpush2.msra.mxu0 0.0
    %1867 = vmatprep.subr.mxu0 0.0
    %1868 = vmatpush2.msra.mxu0 0.0
    %1869 = vmatprep.subr.mxu0 0.0
    %1870 = vmatpush2.msra.mxu0 0.0
    %1871 = vmatprep.subr.mxu0 0.0
    %1872 = vmatpush2.msra.mxu0 0.0
    %1873 = vmatprep.subr.mxu0 0.0
    %1874 = vmatpush2.msra.mxu0 0.0
    %1875 = vmatprep.subr.mxu0 0.0
    %1876 = vmatpush2.msra.mxu0 0.0
    %1877 = vmatprep.subr.mxu0 0.0
    %1878 = vmatpush2.msra.mxu0 0.0
    %1879 = vmatprep.subr.mxu0 0.0
    %1880 = vmatpush2.msra.mxu0 0.0
    %1881 = vmatprep.subr.mxu0 0.0
    %1882 = vmatpush2.msra.mxu0 0.0
    %1883 = vmatprep.subr.mxu0 0.0
    %1884 = vmatpush2.msra.mxu0 0.0
    %1885 = vmatprep.subr.mxu0 0.0
    %1886 = vmatpush2.msra.mxu0 0.0
    %1887 = vmatprep.subr.mxu0 0.0
    %1888 = vmatpush2.msra.mxu0 0.0
    %1889 = vmatprep.subr.mxu0 0.0
    %1890 = vmatpush2.msra.mxu0 0.0
    %1891 = vmatprep.subr.mxu0 0.0
    %1892 = vmatpush2.msra.mxu0 0.0
    %1893 = vmatprep.subr.mxu0 0.0
    %1894 = vmatpush2.msra.mxu0 0.0
    %1895 = vmatprep.mubr.f32.mxu0 0.0
    %1896 = vmatmul.mubr.f32.gmra.mxu0 %v1829
    %v1897 = vpop.f32.mrf.mxu0
    %v1898 = vadd.f32 %v123, %v1897
    %v1899 = vpop.f32.mrf.mxu0
    %1900 = vdwg.mxu0
    %v1901 = vtanh.pop %v1898
    %v1903 = vsel %vm435, %v1901, 0
    %1905 = vmatprep.subr.mxu0 0.0
    %1906 = vmatpush1.msra.mxu0 0.0
    %1907 = vmatprep.subr.mxu0 0.0
    %1908 = vmatpush1.msra.mxu0 0.0
    %1909 = vmatprep.subr.mxu0 0.0
    %1910 = vmatpush1.msra.mxu0 0.0
    %1911 = vmatprep.subr.mxu0 0.0
    %1912 = vmatpush1.msra.mxu0 0.0
    %1913 = vmatprep.subr.mxu0 0.0
    %1914 = vmatpush1.msra.mxu0 0.0
    %1915 = vmatprep.subr.mxu0 0.0
    %1916 = vmatpush1.msra.mxu0 0.0
    %1917 = vmatprep.subr.mxu0 0.0
    %1918 = vmatpush1.msra.mxu0 0.0
    %1919 = vmatprep.subr.mxu0 0.0
    %1920 = vmatpush1.msra.mxu0 0.0
    %1921 = vmatprep.subr.mxu0 0.0
    %1922 = vmatpush1.msra.mxu0 0.0
    %1923 = vmatprep.subr.mxu0 0.0
    %1924 = vmatpush1.msra.mxu0 0.0
    %1925 = vmatprep.subr.mxu0 0.0
    %1926 = vmatpush1.msra.mxu0 0.0
    %1927 = vmatprep.subr.mxu0 0.0
    %1928 = vmatpush1.msra.mxu0 0.0
    %1929 = vmatprep.subr.mxu0 0.0
    %1930 = vmatpush1.msra.mxu0 %v48
    %1931 = vmatprep.subr.mxu0 0.0
    %1932 = vmatpush1.msra.mxu0 %v47
    %1933 = vmatprep.subr.mxu0 0.0
    %1934 = vmatpush1.msra.mxu0 %v46
    %1935 = vmatprep.subr.mxu0 0.0
    %1936 = vmatpush1.msra.mxu0 %v45
    %1937 = vmatprep.subr.mxu0 0.0
    %1938 = vmatpush2.msra.mxu0 0.0
    %1939 = vmatprep.subr.mxu0 0.0
    %1940 = vmatpush2.msra.mxu0 0.0
    %1941 = vmatprep.subr.mxu0 0.0
    %1942 = vmatpush2.msra.mxu0 0.0
    %1943 = vmatprep.subr.mxu0 0.0
    %1944 = vmatpush2.msra.mxu0 0.0
    %1945 = vmatprep.subr.mxu0 0.0
    %1946 = vmatpush2.msra.mxu0 0.0
    %1947 = vmatprep.subr.mxu0 0.0
    %1948 = vmatpush2.msra.mxu0 0.0
    %1949 = vmatprep.subr.mxu0 0.0
    %1950 = vmatpush2.msra.mxu0 0.0
    %1951 = vmatprep.subr.mxu0 0.0
    %1952 = vmatpush2.msra.mxu0 0.0
    %1953 = vmatprep.subr.mxu0 0.0
    %1954 = vmatpush2.msra.mxu0 0.0
    %1955 = vmatprep.subr.mxu0 0.0
    %1956 = vmatpush2.msra.mxu0 0.0
    %1957 = vmatprep.subr.mxu0 0.0
    %1958 = vmatpush2.msra.mxu0 0.0
    %1959 = vmatprep.subr.mxu0 0.0
    %1960 = vmatpush2.msra.mxu0 0.0
    %1961 = vmatprep.subr.mxu0 0.0
    %1962 = vmatpush2.msra.mxu0 0.0
    %1963 = vmatprep.subr.mxu0 0.0
    %1964 = vmatpush2.msra.mxu0 0.0
    %1965 = vmatprep.subr.mxu0 0.0
    %1966 = vmatpush2.msra.mxu0 0.0
    %1967 = vmatprep.subr.mxu0 0.0
    %1968 = vmatpush2.msra.mxu0 0.0
    %1969 = vmatprep.mubr.f32.mxu0 0.0
    %1970 = vmatmul.mubr.f32.gmra.mxu0 %v1903
    %v1971 = vpop.f32.mrf.mxu0
    %v1972 = vadd.f32 %v433, %v1971
    %v1973 = vpop.f32.mrf.mxu0
    %1974 = vdwg.mxu0
    %v1975 = vstv %s1828
    %v1976 = vmul.f32 %v1975, %v1972
    %v1977 = vadd.f32 %v1813, %v1976
    %v1980 = vunpack.c.l.s4 1983009808
    %v1981 = vunpack.c.0.s8 %v1980
    %v1982 = vlaneseq
    %v1983 = vshrl.u32 %v1982, 7
    %v1984 = vsub.s32 %v1981, %v1983
    %v1985 = vrot.slane %v1977, %v1984
    %1986 = vrot.lane.b32.xlu0 %v1985, 72
    %v1987 = vpop.permute.xlu0 %1986
    %vm1989 = vcmask 648768
    %1990 = vst.msk [vmem:[#allocation5] sm:$0x3] %vm1989, %v1987
    %s1991 = sadd.s32 %s352, 10
    %s1992 = sld [smem:[#allocation4 + %s1991]]
    %v1993 = vsel %vm354, %v1977, 0
    %1995 = vmatprep.subr.mxu0 0.0
    %1996 = vmatpush1.msra.mxu0 0.0
    %1997 = vmatprep.subr.mxu0 0.0
    %1998 = vmatpush1.msra.mxu0 0.0
    %1999 = vmatprep.subr.mxu0 0.0
    %2000 = vmatpush1.msra.mxu0 0.0
    %2001 = vmatprep.subr.mxu0 0.0
    %2002 = vmatpush1.msra.mxu0 0.0
    %2003 = vmatprep.subr.mxu0 0.0
    %2004 = vmatpush1.msra.mxu0 0.0
    %2005 = vmatprep.subr.mxu0 0.0
    %2006 = vmatpush1.msra.mxu0 0.0
    %2007 = vmatprep.subr.mxu0 0.0
    %2008 = vmatpush1.msra.mxu0 0.0
    %2009 = vmatprep.subr.mxu0 0.0
    %2010 = vmatpush1.msra.mxu0 0.0
    %2011 = vmatprep.subr.mxu0 0.0
    %2012 = vmatpush1.msra.mxu0 0.0
    %2013 = vmatprep.subr.mxu0 0.0
    %2014 = vmatpush1.msra.mxu0 0.0
    %2015 = vmatprep.subr.mxu0 0.0
    %2016 = vmatpush1.msra.mxu0 0.0
    %2017 = vmatprep.subr.mxu0 0.0
    %2018 = vmatpush1.msra.mxu0 0.0
    %2019 = vmatprep.subr.mxu0 0.0
    %2020 = vmatpush1.msra.mxu0 0.0
    %2021 = vmatprep.subr.mxu0 0.0
    %2022 = vmatpush1.msra.mxu0 0.0
    %2023 = vmatprep.subr.mxu0 0.0
    %2024 = vmatpush1.msra.mxu0 0.0
    %2025 = vmatprep.subr.mxu0 0.0
    %2026 = vmatpush1.msra.mxu0 %v42
    %2027 = vmatprep.subr.mxu0 0.0
    %2028 = vmatpush2.msra.mxu0 0.0
    %2029 = vmatprep.subr.mxu0 0.0
    %2030 = vmatpush2.msra.mxu0 0.0
    %2031 = vmatprep.subr.mxu0 0.0
    %2032 = vmatpush2.msra.mxu0 0.0
    %2033 = vmatprep.subr.mxu0 0.0
    %2034 = vmatpush2.msra.mxu0 0.0
    %2035 = vmatprep.subr.mxu0 0.0
    %2036 = vmatpush2.msra.mxu0 0.0
    %2037 = vmatprep.subr.mxu0 0.0
    %2038 = vmatpush2.msra.mxu0 0.0
    %2039 = vmatprep.subr.mxu0 0.0
    %2040 = vmatpush2.msra.mxu0 0.0
    %2041 = vmatprep.subr.mxu0 0.0
    %2042 = vmatpush2.msra.mxu0 0.0
    %2043 = vmatprep.subr.mxu0 0.0
    %2044 = vmatpush2.msra.mxu0 0.0
    %2045 = vmatprep.subr.mxu0 0.0
    %2046 = vmatpush2.msra.mxu0 0.0
    %2047 = vmatprep.subr.mxu0 0.0
    %2048 = vmatpush2.msra.mxu0 0.0
    %2049 = vmatprep.subr.mxu0 0.0
    %2050 = vmatpush2.msra.mxu0 0.0
    %2051 = vmatprep.subr.mxu0 0.0
    %2052 = vmatpush2.msra.mxu0 0.0
    %2053 = vmatprep.subr.mxu0 0.0
    %2054 = vmatpush2.msra.mxu0 0.0
    %2055 = vmatprep.subr.mxu0 0.0
    %2056 = vmatpush2.msra.mxu0 0.0
    %2057 = vmatprep.subr.mxu0 0.0
    %2058 = vmatpush2.msra.mxu0 0.0
    %2059 = vmatprep.mubr.f32.mxu0 0.0
    %2060 = vmatmul.mubr.f32.gmra.mxu0 %v1993
    %v2061 = vpop.f32.mrf.mxu0
    %v2062 = vadd.f32 %v129, %v2061
    %v2063 = vpop.f32.mrf.mxu0
    %2064 = vdwg.mxu0
    %v2065 = vtanh.pop %v2062
    %v2067 = vsel %vm435, %v2065, 0
    %2069 = vmatprep.subr.mxu0 0.0
    %2070 = vmatpush1.msra.mxu0 0.0
    %2071 = vmatprep.subr.mxu0 0.0
    %2072 = vmatpush1.msra.mxu0 0.0
    %2073 = vmatprep.subr.mxu0 0.0
    %2074 = vmatpush1.msra.mxu0 0.0
    %2075 = vmatprep.subr.mxu0 0.0
    %2076 = vmatpush1.msra.mxu0 0.0
    %2077 = vmatprep.subr.mxu0 0.0
    %2078 = vmatpush1.msra.mxu0 0.0
    %2079 = vmatprep.subr.mxu0 0.0
    %2080 = vmatpush1.msra.mxu0 0.0
    %2081 = vmatprep.subr.mxu0 0.0
    %2082 = vmatpush1.msra.mxu0 0.0
    %2083 = vmatprep.subr.mxu0 0.0
    %2084 = vmatpush1.msra.mxu0 0.0
    %2085 = vmatprep.subr.mxu0 0.0
    %2086 = vmatpush1.msra.mxu0 0.0
    %2087 = vmatprep.subr.mxu0 0.0
    %2088 = vmatpush1.msra.mxu0 0.0
    %2089 = vmatprep.subr.mxu0 0.0
    %2090 = vmatpush1.msra.mxu0 0.0
    %2091 = vmatprep.subr.mxu0 0.0
    %2092 = vmatpush1.msra.mxu0 0.0
    %2093 = vmatprep.subr.mxu0 0.0
    %2094 = vmatpush1.msra.mxu0 %v48
    %2095 = vmatprep.subr.mxu0 0.0
    %2096 = vmatpush1.msra.mxu0 %v47
    %2097 = vmatprep.subr.mxu0 0.0
    %2098 = vmatpush1.msra.mxu0 %v46
    %2099 = vmatprep.subr.mxu0 0.0
    %2100 = vmatpush1.msra.mxu0 %v45
    %2101 = vmatprep.subr.mxu0 0.0
    %2102 = vmatpush2.msra.mxu0 0.0
    %2103 = vmatprep.subr.mxu0 0.0
    %2104 = vmatpush2.msra.mxu0 0.0
    %2105 = vmatprep.subr.mxu0 0.0
    %2106 = vmatpush2.msra.mxu0 0.0
    %2107 = vmatprep.subr.mxu0 0.0
    %2108 = vmatpush2.msra.mxu0 0.0
    %2109 = vmatprep.subr.mxu0 0.0
    %2110 = vmatpush2.msra.mxu0 0.0
    %2111 = vmatprep.subr.mxu0 0.0
    %2112 = vmatpush2.msra.mxu0 0.0
    %2113 = vmatprep.subr.mxu0 0.0
    %2114 = vmatpush2.msra.mxu0 0.0
    %2115 = vmatprep.subr.mxu0 0.0
    %2116 = vmatpush2.msra.mxu0 0.0
    %2117 = vmatprep.subr.mxu0 0.0
    %2118 = vmatpush2.msra.mxu0 0.0
    %2119 = vmatprep.subr.mxu0 0.0
    %2120 = vmatpush2.msra.mxu0 0.0
    %2121 = vmatprep.subr.mxu0 0.0
    %2122 = vmatpush2.msra.mxu0 0.0
    %2123 = vmatprep.subr.mxu0 0.0
    %2124 = vmatpush2.msra.mxu0 0.0
    %2125 = vmatprep.subr.mxu0 0.0
    %2126 = vmatpush2.msra.mxu0 0.0
    %2127 = vmatprep.subr.mxu0 0.0
    %2128 = vmatpush2.msra.mxu0 0.0
    %2129 = vmatprep.subr.mxu0 0.0
    %2130 = vmatpush2.msra.mxu0 0.0
    %2131 = vmatprep.subr.mxu0 0.0
    %2132 = vmatpush2.msra.mxu0 0.0
    %2133 = vmatprep.mubr.f32.mxu0 0.0
    %2134 = vmatmul.mubr.f32.gmra.mxu0 %v2067
    %v2135 = vpop.f32.mrf.mxu0
    %v2136 = vadd.f32 %v433, %v2135
    %v2137 = vpop.f32.mrf.mxu0
    %2138 = vdwg.mxu0
    %v2139 = vstv %s1992
    %v2140 = vmul.f32 %v2139, %v2136
    %v2141 = vadd.f32 %v1977, %v2140
    %v2144 = vunpack.c.l.s4 1983009808
    %v2145 = vunpack.c.0.s8 %v2144
    %v2146 = vlaneseq
    %v2147 = vshrl.u32 %v2146, 7
    %v2148 = vsub.s32 %v2145, %v2147
    %v2149 = vrot.slane %v2141, %v2148
    %2150 = vrot.lane.b32.xlu0 %v2149, 80
    %v2151 = vpop.permute.xlu0 %2150
    %vm2153 = vcmask 714368
    %2154 = vst.msk [vmem:[#allocation5] sm:$0x3] %vm2153, %v2151
    %s2155 = sadd.s32 %s352, 11
    %s2156 = sld [smem:[#allocation4 + %s2155]]
    %v2157 = vsel %vm354, %v2141, 0
    %2159 = vmatprep.subr.mxu0 0.0
    %2160 = vmatpush1.msra.mxu0 0.0
    %2161 = vmatprep.subr.mxu0 0.0
    %2162 = vmatpush1.msra.mxu0 0.0
    %2163 = vmatprep.subr.mxu0 0.0
    %2164 = vmatpush1.msra.mxu0 0.0
    %2165 = vmatprep.subr.mxu0 0.0
    %2166 = vmatpush1.msra.mxu0 0.0
    %2167 = vmatprep.subr.mxu0 0.0
    %2168 = vmatpush1.msra.mxu0 0.0
    %2169 = vmatprep.subr.mxu0 0.0
    %2170 = vmatpush1.msra.mxu0 0.0
    %2171 = vmatprep.subr.mxu0 0.0
    %2172 = vmatpush1.msra.mxu0 0.0
    %2173 = vmatprep.subr.mxu0 0.0
    %2174 = vmatpush1.msra.mxu0 0.0
    %2175 = vmatprep.subr.mxu0 0.0
    %2176 = vmatpush1.msra.mxu0 0.0
    %2177 = vmatprep.subr.mxu0 0.0
    %2178 = vmatpush1.msra.mxu0 0.0
    %2179 = vmatprep.subr.mxu0 0.0
    %2180 = vmatpush1.msra.mxu0 0.0
    %2181 = vmatprep.subr.mxu0 0.0
    %2182 = vmatpush1.msra.mxu0 0.0
    %2183 = vmatprep.subr.mxu0 0.0
    %2184 = vmatpush1.msra.mxu0 0.0
    %2185 = vmatprep.subr.mxu0 0.0
    %2186 = vmatpush1.msra.mxu0 0.0
    %2187 = vmatprep.subr.mxu0 0.0
    %2188 = vmatpush1.msra.mxu0 0.0
    %2189 = vmatprep.subr.mxu0 0.0
    %2190 = vmatpush1.msra.mxu0 %v42
    %2191 = vmatprep.subr.mxu0 0.0
    %2192 = vmatpush2.msra.mxu0 0.0
    %2193 = vmatprep.subr.mxu0 0.0
    %2194 = vmatpush2.msra.mxu0 0.0
    %2195 = vmatprep.subr.mxu0 0.0
    %2196 = vmatpush2.msra.mxu0 0.0
    %2197 = vmatprep.subr.mxu0 0.0
    %2198 = vmatpush2.msra.mxu0 0.0
    %2199 = vmatprep.subr.mxu0 0.0
    %2200 = vmatpush2.msra.mxu0 0.0
    %2201 = vmatprep.subr.mxu0 0.0
    %2202 = vmatpush2.msra.mxu0 0.0
    %2203 = vmatprep.subr.mxu0 0.0
    %2204 = vmatpush2.msra.mxu0 0.0
    %2205 = vmatprep.subr.mxu0 0.0
    %2206 = vmatpush2.msra.mxu0 0.0
    %2207 = vmatprep.subr.mxu0 0.0
    %2208 = vmatpush2.msra.mxu0 0.0
    %2209 = vmatprep.subr.mxu0 0.0
    %2210 = vmatpush2.msra.mxu0 0.0
    %2211 = vmatprep.subr.mxu0 0.0
    %2212 = vmatpush2.msra.mxu0 0.0
    %2213 = vmatprep.subr.mxu0 0.0
    %2214 = vmatpush2.msra.mxu0 0.0
    %2215 = vmatprep.subr.mxu0 0.0
    %2216 = vmatpush2.msra.mxu0 0.0
    %2217 = vmatprep.subr.mxu0 0.0
    %2218 = vmatpush2.msra.mxu0 0.0
    %2219 = vmatprep.subr.mxu0 0.0
    %2220 = vmatpush2.msra.mxu0 0.0
    %2221 = vmatprep.subr.mxu0 0.0
    %2222 = vmatpush2.msra.mxu0 0.0
    %2223 = vmatprep.mubr.f32.mxu0 0.0
    %2224 = vmatmul.mubr.f32.gmra.mxu0 %v2157
    %v2225 = vpop.f32.mrf.mxu0
    %v2226 = vadd.f32 %v135, %v2225
    %v2227 = vpop.f32.mrf.mxu0
    %2228 = vdwg.mxu0
    %v2229 = vtanh.pop %v2226
    %v2231 = vsel %vm435, %v2229, 0
    %2233 = vmatprep.subr.mxu0 0.0
    %2234 = vmatpush1.msra.mxu0 0.0
    %2235 = vmatprep.subr.mxu0 0.0
    %2236 = vmatpush1.msra.mxu0 0.0
    %2237 = vmatprep.subr.mxu0 0.0
    %2238 = vmatpush1.msra.mxu0 0.0
    %2239 = vmatprep.subr.mxu0 0.0
    %2240 = vmatpush1.msra.mxu0 0.0
    %2241 = vmatprep.subr.mxu0 0.0
    %2242 = vmatpush1.msra.mxu0 0.0
    %2243 = vmatprep.subr.mxu0 0.0
    %2244 = vmatpush1.msra.mxu0 0.0
    %2245 = vmatprep.subr.mxu0 0.0
    %2246 = vmatpush1.msra.mxu0 0.0
    %2247 = vmatprep.subr.mxu0 0.0
    %2248 = vmatpush1.msra.mxu0 0.0
    %2249 = vmatprep.subr.mxu0 0.0
    %2250 = vmatpush1.msra.mxu0 0.0
    %2251 = vmatprep.subr.mxu0 0.0
    %2252 = vmatpush1.msra.mxu0 0.0
    %2253 = vmatprep.subr.mxu0 0.0
    %2254 = vmatpush1.msra.mxu0 0.0
    %2255 = vmatprep.subr.mxu0 0.0
    %2256 = vmatpush1.msra.mxu0 0.0
    %2257 = vmatprep.subr.mxu0 0.0
    %2258 = vmatpush1.msra.mxu0 %v48
    %2259 = vmatprep.subr.mxu0 0.0
    %2260 = vmatpush1.msra.mxu0 %v47
    %2261 = vmatprep.subr.mxu0 0.0
    %2262 = vmatpush1.msra.mxu0 %v46
    %2263 = vmatprep.subr.mxu0 0.0
    %2264 = vmatpush1.msra.mxu0 %v45
    %2265 = vmatprep.subr.mxu0 0.0
    %2266 = vmatpush2.msra.mxu0 0.0
    %2267 = vmatprep.subr.mxu0 0.0
    %2268 = vmatpush2.msra.mxu0 0.0
    %2269 = vmatprep.subr.mxu0 0.0
    %2270 = vmatpush2.msra.mxu0 0.0
    %2271 = vmatprep.subr.mxu0 0.0
    %2272 = vmatpush2.msra.mxu0 0.0
    %2273 = vmatprep.subr.mxu0 0.0
    %2274 = vmatpush2.msra.mxu0 0.0
    %2275 = vmatprep.subr.mxu0 0.0
    %2276 = vmatpush2.msra.mxu0 0.0
    %2277 = vmatprep.subr.mxu0 0.0
    %2278 = vmatpush2.msra.mxu0 0.0
    %2279 = vmatprep.subr.mxu0 0.0
    %2280 = vmatpush2.msra.mxu0 0.0
    %2281 = vmatprep.subr.mxu0 0.0
    %2282 = vmatpush2.msra.mxu0 0.0
    %2283 = vmatprep.subr.mxu0 0.0
    %2284 = vmatpush2.msra.mxu0 0.0
    %2285 = vmatprep.subr.mxu0 0.0
    %2286 = vmatpush2.msra.mxu0 0.0
    %2287 = vmatprep.subr.mxu0 0.0
    %2288 = vmatpush2.msra.mxu0 0.0
    %2289 = vmatprep.subr.mxu0 0.0
    %2290 = vmatpush2.msra.mxu0 0.0
    %2291 = vmatprep.subr.mxu0 0.0
    %2292 = vmatpush2.msra.mxu0 0.0
    %2293 = vmatprep.subr.mxu0 0.0
    %2294 = vmatpush2.msra.mxu0 0.0
    %2295 = vmatprep.subr.mxu0 0.0
    %2296 = vmatpush2.msra.mxu0 0.0
    %2297 = vmatprep.mubr.f32.mxu0 0.0
    %2298 = vmatmul.mubr.f32.gmra.mxu0 %v2231
    %v2299 = vpop.f32.mrf.mxu0
    %v2300 = vadd.f32 %v433, %v2299
    %v2301 = vpop.f32.mrf.mxu0
    %2302 = vdwg.mxu0
    %v2303 = vstv %s2156
    %v2304 = vmul.f32 %v2303, %v2300
    %v2305 = vadd.f32 %v2141, %v2304
    %v2308 = vunpack.c.l.s4 1983009808
    %v2309 = vunpack.c.0.s8 %v2308
    %v2310 = vlaneseq
    %v2311 = vshrl.u32 %v2310, 7
    %v2312 = vsub.s32 %v2309, %v2311
    %v2313 = vrot.slane %v2305, %v2312
    %2314 = vrot.lane.b32.xlu0 %v2313, 88
    %v2315 = vpop.permute.xlu0 %2314
    %vm2317 = vcmask 779968
    %2318 = vst.msk [vmem:[#allocation5] sm:$0x3] %vm2317, %v2315
    %s2319 = sadd.s32 %s352, 12
    %s2320 = sld [smem:[#allocation4 + %s2319]]
    %v2321 = vsel %vm354, %v2305, 0
    %2323 = vmatprep.subr.mxu0 0.0
    %2324 = vmatpush1.msra.mxu0 0.0
    %2325 = vmatprep.subr.mxu0 0.0
    %2326 = vmatpush1.msra.mxu0 0.0
    %2327 = vmatprep.subr.mxu0 0.0
    %2328 = vmatpush1.msra.mxu0 0.0
    %2329 = vmatprep.subr.mxu0 0.0
    %2330 = vmatpush1.msra.mxu0 0.0
    %2331 = vmatprep.subr.mxu0 0.0
    %2332 = vmatpush1.msra.mxu0 0.0
    %2333 = vmatprep.subr.mxu0 0.0
    %2334 = vmatpush1.msra.mxu0 0.0
    %2335 = vmatprep.subr.mxu0 0.0
    %2336 = vmatpush1.msra.mxu0 0.0
    %2337 = vmatprep.subr.mxu0 0.0
    %2338 = vmatpush1.msra.mxu0 0.0
    %2339 = vmatprep.subr.mxu0 0.0
    %2340 = vmatpush1.msra.mxu0 0.0
    %2341 = vmatprep.subr.mxu0 0.0
    %2342 = vmatpush1.msra.mxu0 0.0
    %2343 = vmatprep.subr.mxu0 0.0
    %2344 = vmatpush1.msra.mxu0 0.0
    %2345 = vmatprep.subr.mxu0 0.0
    %2346 = vmatpush1.msra.mxu0 0.0
    %2347 = vmatprep.subr.mxu0 0.0
    %2348 = vmatpush1.msra.mxu0 0.0
    %2349 = vmatprep.subr.mxu0 0.0
    %2350 = vmatpush1.msra.mxu0 0.0
    %2351 = vmatprep.subr.mxu0 0.0
    %2352 = vmatpush1.msra.mxu0 0.0
    %2353 = vmatprep.subr.mxu0 0.0
    %2354 = vmatpush1.msra.mxu0 %v42
    %2355 = vmatprep.subr.mxu0 0.0
    %2356 = vmatpush2.msra.mxu0 0.0
    %2357 = vmatprep.subr.mxu0 0.0
    %2358 = vmatpush2.msra.mxu0 0.0
    %2359 = vmatprep.subr.mxu0 0.0
    %2360 = vmatpush2.msra.mxu0 0.0
    %2361 = vmatprep.subr.mxu0 0.0
    %2362 = vmatpush2.msra.mxu0 0.0
    %2363 = vmatprep.subr.mxu0 0.0
    %2364 = vmatpush2.msra.mxu0 0.0
    %2365 = vmatprep.subr.mxu0 0.0
    %2366 = vmatpush2.msra.mxu0 0.0
    %2367 = vmatprep.subr.mxu0 0.0
    %2368 = vmatpush2.msra.mxu0 0.0
    %2369 = vmatprep.subr.mxu0 0.0
    %2370 = vmatpush2.msra.mxu0 0.0
    %2371 = vmatprep.subr.mxu0 0.0
    %2372 = vmatpush2.msra.mxu0 0.0
    %2373 = vmatprep.subr.mxu0 0.0
    %2374 = vmatpush2.msra.mxu0 0.0
    %2375 = vmatprep.subr.mxu0 0.0
    %2376 = vmatpush2.msra.mxu0 0.0
    %2377 = vmatprep.subr.mxu0 0.0
    %2378 = vmatpush2.msra.mxu0 0.0
    %2379 = vmatprep.subr.mxu0 0.0
    %2380 = vmatpush2.msra.mxu0 0.0
    %2381 = vmatprep.subr.mxu0 0.0
    %2382 = vmatpush2.msra.mxu0 0.0
    %2383 = vmatprep.subr.mxu0 0.0
    %2384 = vmatpush2.msra.mxu0 0.0
    %2385 = vmatprep.subr.mxu0 0.0
    %2386 = vmatpush2.msra.mxu0 0.0
    %2387 = vmatprep.mubr.f32.mxu0 0.0
    %2388 = vmatmul.mubr.f32.gmra.mxu0 %v2321
    %v2389 = vpop.f32.mrf.mxu0
    %v2390 = vadd.f32 %v141, %v2389
    %v2391 = vpop.f32.mrf.mxu0
    %2392 = vdwg.mxu0
    %v2393 = vtanh.pop %v2390
    %v2395 = vsel %vm435, %v2393, 0
    %2397 = vmatprep.subr.mxu0 0.0
    %2398 = vmatpush1.msra.mxu0 0.0
    %2399 = vmatprep.subr.mxu0 0.0
    %2400 = vmatpush1.msra.mxu0 0.0
    %2401 = vmatprep.subr.mxu0 0.0
    %2402 = vmatpush1.msra.mxu0 0.0
    %2403 = vmatprep.subr.mxu0 0.0
    %2404 = vmatpush1.msra.mxu0 0.0
    %2405 = vmatprep.subr.mxu0 0.0
    %2406 = vmatpush1.msra.mxu0 0.0
    %2407 = vmatprep.subr.mxu0 0.0
    %2408 = vmatpush1.msra.mxu0 0.0
    %2409 = vmatprep.subr.mxu0 0.0
    %2410 = vmatpush1.msra.mxu0 0.0
    %2411 = vmatprep.subr.mxu0 0.0
    %2412 = vmatpush1.msra.mxu0 0.0
    %2413 = vmatprep.subr.mxu0 0.0
    %2414 = vmatpush1.msra.mxu0 0.0
    %2415 = vmatprep.subr.mxu0 0.0
    %2416 = vmatpush1.msra.mxu0 0.0
    %2417 = vmatprep.subr.mxu0 0.0
    %2418 = vmatpush1.msra.mxu0 0.0
    %2419 = vmatprep.subr.mxu0 0.0
    %2420 = vmatpush1.msra.mxu0 0.0
    %2421 = vmatprep.subr.mxu0 0.0
    %2422 = vmatpush1.msra.mxu0 %v48
    %2423 = vmatprep.subr.mxu0 0.0
    %2424 = vmatpush1.msra.mxu0 %v47
    %2425 = vmatprep.subr.mxu0 0.0
    %2426 = vmatpush1.msra.mxu0 %v46
    %2427 = vmatprep.subr.mxu0 0.0
    %2428 = vmatpush1.msra.mxu0 %v45
    %2429 = vmatprep.subr.mxu0 0.0
    %2430 = vmatpush2.msra.mxu0 0.0
    %2431 = vmatprep.subr.mxu0 0.0
    %2432 = vmatpush2.msra.mxu0 0.0
    %2433 = vmatprep.subr.mxu0 0.0
    %2434 = vmatpush2.msra.mxu0 0.0
    %2435 = vmatprep.subr.mxu0 0.0
    %2436 = vmatpush2.msra.mxu0 0.0
    %2437 = vmatprep.subr.mxu0 0.0
    %2438 = vmatpush2.msra.mxu0 0.0
    %2439 = vmatprep.subr.mxu0 0.0
    %2440 = vmatpush2.msra.mxu0 0.0
    %2441 = vmatprep.subr.mxu0 0.0
    %2442 = vmatpush2.msra.mxu0 0.0
    %2443 = vmatprep.subr.mxu0 0.0
    %2444 = vmatpush2.msra.mxu0 0.0
    %2445 = vmatprep.subr.mxu0 0.0
    %2446 = vmatpush2.msra.mxu0 0.0
    %2447 = vmatprep.subr.mxu0 0.0
    %2448 = vmatpush2.msra.mxu0 0.0
    %2449 = vmatprep.subr.mxu0 0.0
    %2450 = vmatpush2.msra.mxu0 0.0
    %2451 = vmatprep.subr.mxu0 0.0
    %2452 = vmatpush2.msra.mxu0 0.0
    %2453 = vmatprep.subr.mxu0 0.0
    %2454 = vmatpush2.msra.mxu0 0.0
    %2455 = vmatprep.subr.mxu0 0.0
    %2456 = vmatpush2.msra.mxu0 0.0
    %2457 = vmatprep.subr.mxu0 0.0
    %2458 = vmatpush2.msra.mxu0 0.0
    %2459 = vmatprep.subr.mxu0 0.0
    %2460 = vmatpush2.msra.mxu0 0.0
    %2461 = vmatprep.mubr.f32.mxu0 0.0
    %2462 = vmatmul.mubr.f32.gmra.mxu0 %v2395
    %v2463 = vpop.f32.mrf.mxu0
    %v2464 = vadd.f32 %v433, %v2463
    %v2465 = vpop.f32.mrf.mxu0
    %2466 = vdwg.mxu0
    %v2467 = vstv %s2320
    %v2468 = vmul.f32 %v2467, %v2464
    %v2469 = vadd.f32 %v2305, %v2468
    %v2472 = vunpack.c.l.s4 1983009808
    %v2473 = vunpack.c.0.s8 %v2472
    %v2474 = vlaneseq
    %v2475 = vshrl.u32 %v2474, 7
    %v2476 = vsub.s32 %v2473, %v2475
    %v2477 = vrot.slane %v2469, %v2476
    %2478 = vrot.lane.b32.xlu0 %v2477, 96
    %v2479 = vpop.permute.xlu0 %2478
    %vm2481 = vcmask 845568
    %2482 = vst.msk [vmem:[#allocation5] sm:$0x3] %vm2481, %v2479
    %s2483 = sadd.s32 %s352, 13
    %s2484 = sld [smem:[#allocation4 + %s2483]]
    %v2485 = vsel %vm354, %v2469, 0
    %2487 = vmatprep.subr.mxu0 0.0
    %2488 = vmatpush1.msra.mxu0 0.0
    %2489 = vmatprep.subr.mxu0 0.0
    %2490 = vmatpush1.msra.mxu0 0.0
    %2491 = vmatprep.subr.mxu0 0.0
    %2492 = vmatpush1.msra.mxu0 0.0
    %2493 = vmatprep.subr.mxu0 0.0
    %2494 = vmatpush1.msra.mxu0 0.0
    %2495 = vmatprep.subr.mxu0 0.0
    %2496 = vmatpush1.msra.mxu0 0.0
    %2497 = vmatprep.subr.mxu0 0.0
    %2498 = vmatpush1.msra.mxu0 0.0
    %2499 = vmatprep.subr.mxu0 0.0
    %2500 = vmatpush1.msra.mxu0 0.0
    %2501 = vmatprep.subr.mxu0 0.0
    %2502 = vmatpush1.msra.mxu0 0.0
    %2503 = vmatprep.subr.mxu0 0.0
    %2504 = vmatpush1.msra.mxu0 0.0
    %2505 = vmatprep.subr.mxu0 0.0
    %2506 = vmatpush1.msra.mxu0 0.0
    %2507 = vmatprep.subr.mxu0 0.0
    %2508 = vmatpush1.msra.mxu0 0.0
    %2509 = vmatprep.subr.mxu0 0.0
    %2510 = vmatpush1.msra.mxu0 0.0
    %2511 = vmatprep.subr.mxu0 0.0
    %2512 = vmatpush1.msra.mxu0 0.0
    %2513 = vmatprep.subr.mxu0 0.0
    %2514 = vmatpush1.msra.mxu0 0.0
    %2515 = vmatprep.subr.mxu0 0.0
    %2516 = vmatpush1.msra.mxu0 0.0
    %2517 = vmatprep.subr.mxu0 0.0
    %2518 = vmatpush1.msra.mxu0 %v42
    %2519 = vmatprep.subr.mxu0 0.0
    %2520 = vmatpush2.msra.mxu0 0.0
    %2521 = vmatprep.subr.mxu0 0.0
    %2522 = vmatpush2.msra.mxu0 0.0
    %2523 = vmatprep.subr.mxu0 0.0
    %2524 = vmatpush2.msra.mxu0 0.0
    %2525 = vmatprep.subr.mxu0 0.0
    %2526 = vmatpush2.msra.mxu0 0.0
    %2527 = vmatprep.subr.mxu0 0.0
    %2528 = vmatpush2.msra.mxu0 0.0
    %2529 = vmatprep.subr.mxu0 0.0
    %2530 = vmatpush2.msra.mxu0 0.0
    %2531 = vmatprep.subr.mxu0 0.0
    %2532 = vmatpush2.msra.mxu0 0.0
    %2533 = vmatprep.subr.mxu0 0.0
    %2534 = vmatpush2.msra.mxu0 0.0
    %2535 = vmatprep.subr.mxu0 0.0
    %2536 = vmatpush2.msra.mxu0 0.0
    %2537 = vmatprep.subr.mxu0 0.0
    %2538 = vmatpush2.msra.mxu0 0.0
    %2539 = vmatprep.subr.mxu0 0.0
    %2540 = vmatpush2.msra.mxu0 0.0
    %2541 = vmatprep.subr.mxu0 0.0
    %2542 = vmatpush2.msra.mxu0 0.0
    %2543 = vmatprep.subr.mxu0 0.0
    %2544 = vmatpush2.msra.mxu0 0.0
    %2545 = vmatprep.subr.mxu0 0.0
    %2546 = vmatpush2.msra.mxu0 0.0
    %2547 = vmatprep.subr.mxu0 0.0
    %2548 = vmatpush2.msra.mxu0 0.0
    %2549 = vmatprep.subr.mxu0 0.0
    %2550 = vmatpush2.msra.mxu0 0.0
    %2551 = vmatprep.mubr.f32.mxu0 0.0
    %2552 = vmatmul.mubr.f32.gmra.mxu0 %v2485
    %v2553 = vpop.f32.mrf.mxu0
    %v2554 = vadd.f32 %v147, %v2553
    %v2555 = vpop.f32.mrf.mxu0
    %2556 = vdwg.mxu0
    %v2557 = vtanh.pop %v2554
    %v2559 = vsel %vm435, %v2557, 0
    %2561 = vmatprep.subr.mxu0 0.0
    %2562 = vmatpush1.msra.mxu0 0.0
    %2563 = vmatprep.subr.mxu0 0.0
    %2564 = vmatpush1.msra.mxu0 0.0
    %2565 = vmatprep.subr.mxu0 0.0
    %2566 = vmatpush1.msra.mxu0 0.0
    %2567 = vmatprep.subr.mxu0 0.0
    %2568 = vmatpush1.msra.mxu0 0.0
    %2569 = vmatprep.subr.mxu0 0.0
    %2570 = vmatpush1.msra.mxu0 0.0
    %2571 = vmatprep.subr.mxu0 0.0
    %2572 = vmatpush1.msra.mxu0 0.0
    %2573 = vmatprep.subr.mxu0 0.0
    %2574 = vmatpush1.msra.mxu0 0.0
    %2575 = vmatprep.subr.mxu0 0.0
    %2576 = vmatpush1.msra.mxu0 0.0
    %2577 = vmatprep.subr.mxu0 0.0
    %2578 = vmatpush1.msra.mxu0 0.0
    %2579 = vmatprep.subr.mxu0 0.0
    %2580 = vmatpush1.msra.mxu0 0.0
    %2581 = vmatprep.subr.mxu0 0.0
    %2582 = vmatpush1.msra.mxu0 0.0
    %2583 = vmatprep.subr.mxu0 0.0
    %2584 = vmatpush1.msra.mxu0 0.0
    %2585 = vmatprep.subr.mxu0 0.0
    %2586 = vmatpush1.msra.mxu0 %v48
    %2587 = vmatprep.subr.mxu0 0.0
    %2588 = vmatpush1.msra.mxu0 %v47
    %2589 = vmatprep.subr.mxu0 0.0
    %2590 = vmatpush1.msra.mxu0 %v46
    %2591 = vmatprep.subr.mxu0 0.0
    %2592 = vmatpush1.msra.mxu0 %v45
    %2593 = vmatprep.subr.mxu0 0.0
    %2594 = vmatpush2.msra.mxu0 0.0
    %2595 = vmatprep.subr.mxu0 0.0
    %2596 = vmatpush2.msra.mxu0 0.0
    %2597 = vmatprep.subr.mxu0 0.0
    %2598 = vmatpush2.msra.mxu0 0.0
    %2599 = vmatprep.subr.mxu0 0.0
    %2600 = vmatpush2.msra.mxu0 0.0
    %2601 = vmatprep.subr.mxu0 0.0
    %2602 = vmatpush2.msra.mxu0 0.0
    %2603 = vmatprep.subr.mxu0 0.0
    %2604 = vmatpush2.msra.mxu0 0.0
    %2605 = vmatprep.subr.mxu0 0.0
    %2606 = vmatpush2.msra.mxu0 0.0
    %2607 = vmatprep.subr.mxu0 0.0
    %2608 = vmatpush2.msra.mxu0 0.0
    %2609 = vmatprep.subr.mxu0 0.0
    %2610 = vmatpush2.msra.mxu0 0.0
    %2611 = vmatprep.subr.mxu0 0.0
    %2612 = vmatpush2.msra.mxu0 0.0
    %2613 = vmatprep.subr.mxu0 0.0
    %2614 = vmatpush2.msra.mxu0 0.0
    %2615 = vmatprep.subr.mxu0 0.0
    %2616 = vmatpush2.msra.mxu0 0.0
    %2617 = vmatprep.subr.mxu0 0.0
    %2618 = vmatpush2.msra.mxu0 0.0
    %2619 = vmatprep.subr.mxu0 0.0
    %2620 = vmatpush2.msra.mxu0 0.0
    %2621 = vmatprep.subr.mxu0 0.0
    %2622 = vmatpush2.msra.mxu0 0.0
    %2623 = vmatprep.subr.mxu0 0.0
    %2624 = vmatpush2.msra.mxu0 0.0
    %2625 = vmatprep.mubr.f32.mxu0 0.0
    %2626 = vmatmul.mubr.f32.gmra.mxu0 %v2559
    %v2627 = vpop.f32.mrf.mxu0
    %v2628 = vadd.f32 %v433, %v2627
    %v2629 = vpop.f32.mrf.mxu0
    %2630 = vdwg.mxu0
    %v2631 = vstv %s2484
    %v2632 = vmul.f32 %v2631, %v2628
    %v2633 = vadd.f32 %v2469, %v2632
    %v2636 = vunpack.c.l.s4 1983009808
    %v2637 = vunpack.c.0.s8 %v2636
    %v2638 = vlaneseq
    %v2639 = vshrl.u32 %v2638, 7
    %v2640 = vsub.s32 %v2637, %v2639
    %v2641 = vrot.slane %v2633, %v2640
    %2642 = vrot.lane.b32.xlu0 %v2641, 104
    %v2643 = vpop.permute.xlu0 %2642
    %vm2645 = vcmask 911168
    %2646 = vst.msk [vmem:[#allocation5] sm:$0x3] %vm2645, %v2643
    %s2647 = sadd.s32 %s352, 14
    %s2648 = sld [smem:[#allocation4 + %s2647]]
    %v2649 = vsel %vm354, %v2633, 0
    %2651 = vmatprep.subr.mxu0 0.0
    %2652 = vmatpush1.msra.mxu0 0.0
    %2653 = vmatprep.subr.mxu0 0.0
    %2654 = vmatpush1.msra.mxu0 0.0
    %2655 = vmatprep.subr.mxu0 0.0
    %2656 = vmatpush1.msra.mxu0 0.0
    %2657 = vmatprep.subr.mxu0 0.0
    %2658 = vmatpush1.msra.mxu0 0.0
    %2659 = vmatprep.subr.mxu0 0.0
    %2660 = vmatpush1.msra.mxu0 0.0
    %2661 = vmatprep.subr.mxu0 0.0
    %2662 = vmatpush1.msra.mxu0 0.0
    %2663 = vmatprep.subr.mxu0 0.0
    %2664 = vmatpush1.msra.mxu0 0.0
    %2665 = vmatprep.subr.mxu0 0.0
    %2666 = vmatpush1.msra.mxu0 0.0
    %2667 = vmatprep.subr.mxu0 0.0
    %2668 = vmatpush1.msra.mxu0 0.0
    %2669 = vmatprep.subr.mxu0 0.0
    %2670 = vmatpush1.msra.mxu0 0.0
    %2671 = vmatprep.subr.mxu0 0.0
    %2672 = vmatpush1.msra.mxu0 0.0
    %2673 = vmatprep.subr.mxu0 0.0
    %2674 = vmatpush1.msra.mxu0 0.0
    %2675 = vmatprep.subr.mxu0 0.0
    %2676 = vmatpush1.msra.mxu0 0.0
    %2677 = vmatprep.subr.mxu0 0.0
    %2678 = vmatpush1.msra.mxu0 0.0
    %2679 = vmatprep.subr.mxu0 0.0
    %2680 = vmatpush1.msra.mxu0 0.0
    %2681 = vmatprep.subr.mxu0 0.0
    %2682 = vmatpush1.msra.mxu0 %v42
    %2683 = vmatprep.subr.mxu0 0.0
    %2684 = vmatpush2.msra.mxu0 0.0
    %2685 = vmatprep.subr.mxu0 0.0
    %2686 = vmatpush2.msra.mxu0 0.0
    %2687 = vmatprep.subr.mxu0 0.0
    %2688 = vmatpush2.msra.mxu0 0.0
    %2689 = vmatprep.subr.mxu0 0.0
    %2690 = vmatpush2.msra.mxu0 0.0
    %2691 = vmatprep.subr.mxu0 0.0
    %2692 = vmatpush2.msra.mxu0 0.0
    %2693 = vmatprep.subr.mxu0 0.0
    %2694 = vmatpush2.msra.mxu0 0.0
    %2695 = vmatprep.subr.mxu0 0.0
    %2696 = vmatpush2.msra.mxu0 0.0
    %2697 = vmatprep.subr.mxu0 0.0
    %2698 = vmatpush2.msra.mxu0 0.0
    %2699 = vmatprep.subr.mxu0 0.0
    %2700 = vmatpush2.msra.mxu0 0.0
    %2701 = vmatprep.subr.mxu0 0.0
    %2702 = vmatpush2.msra.mxu0 0.0
    %2703 = vmatprep.subr.mxu0 0.0
    %2704 = vmatpush2.msra.mxu0 0.0
    %2705 = vmatprep.subr.mxu0 0.0
    %2706 = vmatpush2.msra.mxu0 0.0
    %2707 = vmatprep.subr.mxu0 0.0
    %2708 = vmatpush2.msra.mxu0 0.0
    %2709 = vmatprep.subr.mxu0 0.0
    %2710 = vmatpush2.msra.mxu0 0.0
    %2711 = vmatprep.subr.mxu0 0.0
    %2712 = vmatpush2.msra.mxu0 0.0
    %2713 = vmatprep.subr.mxu0 0.0
    %2714 = vmatpush2.msra.mxu0 0.0
    %2715 = vmatprep.mubr.f32.mxu0 0.0
    %2716 = vmatmul.mubr.f32.gmra.mxu0 %v2649
    %v2717 = vpop.f32.mrf.mxu0
    %v2718 = vadd.f32 %v153, %v2717
    %v2719 = vpop.f32.mrf.mxu0
    %2720 = vdwg.mxu0
    %v2721 = vtanh.pop %v2718
    %v2723 = vsel %vm435, %v2721, 0
    %2725 = vmatprep.subr.mxu0 0.0
    %2726 = vmatpush1.msra.mxu0 0.0
    %2727 = vmatprep.subr.mxu0 0.0
    %2728 = vmatpush1.msra.mxu0 0.0
    %2729 = vmatprep.subr.mxu0 0.0
    %2730 = vmatpush1.msra.mxu0 0.0
    %2731 = vmatprep.subr.mxu0 0.0
    %2732 = vmatpush1.msra.mxu0 0.0
    %2733 = vmatprep.subr.mxu0 0.0
    %2734 = vmatpush1.msra.mxu0 0.0
    %2735 = vmatprep.subr.mxu0 0.0
    %2736 = vmatpush1.msra.mxu0 0.0
    %2737 = vmatprep.subr.mxu0 0.0
    %2738 = vmatpush1.msra.mxu0 0.0
    %2739 = vmatprep.subr.mxu0 0.0
    %2740 = vmatpush1.msra.mxu0 0.0
    %2741 = vmatprep.subr.mxu0 0.0
    %2742 = vmatpush1.msra.mxu0 0.0
    %2743 = vmatprep.subr.mxu0 0.0
    %2744 = vmatpush1.msra.mxu0 0.0
    %2745 = vmatprep.subr.mxu0 0.0
    %2746 = vmatpush1.msra.mxu0 0.0
    %2747 = vmatprep.subr.mxu0 0.0
    %2748 = vmatpush1.msra.mxu0 0.0
    %2749 = vmatprep.subr.mxu0 0.0
    %2750 = vmatpush1.msra.mxu0 %v48
    %2751 = vmatprep.subr.mxu0 0.0
    %2752 = vmatpush1.msra.mxu0 %v47
    %2753 = vmatprep.subr.mxu0 0.0
    %2754 = vmatpush1.msra.mxu0 %v46
    %2755 = vmatprep.subr.mxu0 0.0
    %2756 = vmatpush1.msra.mxu0 %v45
    %2757 = vmatprep.subr.mxu0 0.0
    %2758 = vmatpush2.msra.mxu0 0.0
    %2759 = vmatprep.subr.mxu0 0.0
    %2760 = vmatpush2.msra.mxu0 0.0
    %2761 = vmatprep.subr.mxu0 0.0
    %2762 = vmatpush2.msra.mxu0 0.0
    %2763 = vmatprep.subr.mxu0 0.0
    %2764 = vmatpush2.msra.mxu0 0.0
    %2765 = vmatprep.subr.mxu0 0.0
    %2766 = vmatpush2.msra.mxu0 0.0
    %2767 = vmatprep.subr.mxu0 0.0
    %2768 = vmatpush2.msra.mxu0 0.0
    %2769 = vmatprep.subr.mxu0 0.0
    %2770 = vmatpush2.msra.mxu0 0.0
    %2771 = vmatprep.subr.mxu0 0.0
    %2772 = vmatpush2.msra.mxu0 0.0
    %2773 = vmatprep.subr.mxu0 0.0
    %2774 = vmatpush2.msra.mxu0 0.0
    %2775 = vmatprep.subr.mxu0 0.0
    %2776 = vmatpush2.msra.mxu0 0.0
    %2777 = vmatprep.subr.mxu0 0.0
    %2778 = vmatpush2.msra.mxu0 0.0
    %2779 = vmatprep.subr.mxu0 0.0
    %2780 = vmatpush2.msra.mxu0 0.0
    %2781 = vmatprep.subr.mxu0 0.0
    %2782 = vmatpush2.msra.mxu0 0.0
    %2783 = vmatprep.subr.mxu0 0.0
    %2784 = vmatpush2.msra.mxu0 0.0
    %2785 = vmatprep.subr.mxu0 0.0
    %2786 = vmatpush2.msra.mxu0 0.0
    %2787 = vmatprep.subr.mxu0 0.0
    %2788 = vmatpush2.msra.mxu0 0.0
    %2789 = vmatprep.mubr.f32.mxu0 0.0
    %2790 = vmatmul.mubr.f32.gmra.mxu0 %v2723
    %v2791 = vpop.f32.mrf.mxu0
    %v2792 = vadd.f32 %v433, %v2791
    %v2793 = vpop.f32.mrf.mxu0
    %2794 = vdwg.mxu0
    %v2795 = vstv %s2648
    %v2796 = vmul.f32 %v2795, %v2792
    %v2797 = vadd.f32 %v2633, %v2796
    %v2800 = vunpack.c.l.s4 1983009808
    %v2801 = vunpack.c.0.s8 %v2800
    %v2802 = vlaneseq
    %v2803 = vshrl.u32 %v2802, 7
    %v2804 = vsub.s32 %v2801, %v2803
    %v2805 = vrot.slane %v2797, %v2804
    %2806 = vrot.lane.b32.xlu0 %v2805, 112
    %v2807 = vpop.permute.xlu0 %2806
    %vm2809 = vcmask 976768
    %2810 = vst.msk [vmem:[#allocation5] sm:$0x3] %vm2809, %v2807
    %s2811 = sadd.s32 %s352, 15
    %s2812 = sld [smem:[#allocation4 + %s2811]]
    %v2813 = vsel %vm354, %v2797, 0
    %2815 = vmatprep.subr.mxu0 0.0
    %2816 = vmatpush1.msra.mxu0 0.0
    %2817 = vmatprep.subr.mxu0 0.0
    %2818 = vmatpush1.msra.mxu0 0.0
    %2819 = vmatprep.subr.mxu0 0.0
    %2820 = vmatpush1.msra.mxu0 0.0
    %2821 = vmatprep.subr.mxu0 0.0
    %2822 = vmatpush1.msra.mxu0 0.0
    %2823 = vmatprep.subr.mxu0 0.0
    %2824 = vmatpush1.msra.mxu0 0.0
    %2825 = vmatprep.subr.mxu0 0.0
    %2826 = vmatpush1.msra.mxu0 0.0
    %2827 = vmatprep.subr.mxu0 0.0
    %2828 = vmatpush1.msra.mxu0 0.0
    %2829 = vmatprep.subr.mxu0 0.0
    %2830 = vmatpush1.msra.mxu0 0.0
    %2831 = vmatprep.subr.mxu0 0.0
    %2832 = vmatpush1.msra.mxu0 0.0
    %2833 = vmatprep.subr.mxu0 0.0
    %2834 = vmatpush1.msra.mxu0 0.0
    %2835 = vmatprep.subr.mxu0 0.0
    %2836 = vmatpush1.msra.mxu0 0.0
    %2837 = vmatprep.subr.mxu0 0.0
    %2838 = vmatpush1.msra.mxu0 0.0
    %2839 = vmatprep.subr.mxu0 0.0
    %2840 = vmatpush1.msra.mxu0 0.0
    %2841 = vmatprep.subr.mxu0 0.0
    %2842 = vmatpush1.msra.mxu0 0.0
    %2843 = vmatprep.subr.mxu0 0.0
    %2844 = vmatpush1.msra.mxu0 0.0
    %2845 = vmatprep.subr.mxu0 0.0
    %2846 = vmatpush1.msra.mxu0 %v42
    %2847 = vmatprep.subr.mxu0 0.0
    %2848 = vmatpush2.msra.mxu0 0.0
    %2849 = vmatprep.subr.mxu0 0.0
    %2850 = vmatpush2.msra.mxu0 0.0
    %2851 = vmatprep.subr.mxu0 0.0
    %2852 = vmatpush2.msra.mxu0 0.0
    %2853 = vmatprep.subr.mxu0 0.0
    %2854 = vmatpush2.msra.mxu0 0.0
    %2855 = vmatprep.subr.mxu0 0.0
    %2856 = vmatpush2.msra.mxu0 0.0
    %2857 = vmatprep.subr.mxu0 0.0
    %2858 = vmatpush2.msra.mxu0 0.0
    %2859 = vmatprep.subr.mxu0 0.0
    %2860 = vmatpush2.msra.mxu0 0.0
    %2861 = vmatprep.subr.mxu0 0.0
    %2862 = vmatpush2.msra.mxu0 0.0
    %2863 = vmatprep.subr.mxu0 0.0
    %2864 = vmatpush2.msra.mxu0 0.0
    %2865 = vmatprep.subr.mxu0 0.0
    %2866 = vmatpush2.msra.mxu0 0.0
    %2867 = vmatprep.subr.mxu0 0.0
    %2868 = vmatpush2.msra.mxu0 0.0
    %2869 = vmatprep.subr.mxu0 0.0
    %2870 = vmatpush2.msra.mxu0 0.0
    %2871 = vmatprep.subr.mxu0 0.0
    %2872 = vmatpush2.msra.mxu0 0.0
    %2873 = vmatprep.subr.mxu0 0.0
    %2874 = vmatpush2.msra.mxu0 0.0
    %2875 = vmatprep.subr.mxu0 0.0
    %2876 = vmatpush2.msra.mxu0 0.0
    %2877 = vmatprep.subr.mxu0 0.0
    %2878 = vmatpush2.msra.mxu0 0.0
    %2879 = vmatprep.mubr.f32.mxu0 0.0
    %2880 = vmatmul.mubr.f32.gmra.mxu0 %v2813
    %v2881 = vpop.f32.mrf.mxu0
    %v2882 = vadd.f32 %v159, %v2881
    %v2883 = vpop.f32.mrf.mxu0
    %2884 = vdwg.mxu0
    %v2885 = vtanh.pop %v2882
    %v2887 = vsel %vm435, %v2885, 0
    %2889 = vmatprep.subr.mxu0 0.0
    %2890 = vmatpush1.msra.mxu0 0.0
    %2891 = vmatprep.subr.mxu0 0.0
    %2892 = vmatpush1.msra.mxu0 0.0
    %2893 = vmatprep.subr.mxu0 0.0
    %2894 = vmatpush1.msra.mxu0 0.0
    %2895 = vmatprep.subr.mxu0 0.0
    %2896 = vmatpush1.msra.mxu0 0.0
    %2897 = vmatprep.subr.mxu0 0.0
    %2898 = vmatpush1.msra.mxu0 0.0
    %2899 = vmatprep.subr.mxu0 0.0
    %2900 = vmatpush1.msra.mxu0 0.0
    %2901 = vmatprep.subr.mxu0 0.0
    %2902 = vmatpush1.msra.mxu0 0.0
    %2903 = vmatprep.subr.mxu0 0.0
    %2904 = vmatpush1.msra.mxu0 0.0
    %2905 = vmatprep.subr.mxu0 0.0
    %2906 = vmatpush1.msra.mxu0 0.0
    %2907 = vmatprep.subr.mxu0 0.0
    %2908 = vmatpush1.msra.mxu0 0.0
    %2909 = vmatprep.subr.mxu0 0.0
    %2910 = vmatpush1.msra.mxu0 0.0
    %2911 = vmatprep.subr.mxu0 0.0
    %2912 = vmatpush1.msra.mxu0 0.0
    %2913 = vmatprep.subr.mxu0 0.0
    %2914 = vmatpush1.msra.mxu0 %v48
    %2915 = vmatprep.subr.mxu0 0.0
    %2916 = vmatpush1.msra.mxu0 %v47
    %2917 = vmatprep.subr.mxu0 0.0
    %2918 = vmatpush1.msra.mxu0 %v46
    %2919 = vmatprep.subr.mxu0 0.0
    %2920 = vmatpush1.msra.mxu0 %v45
    %2921 = vmatprep.subr.mxu0 0.0
    %2922 = vmatpush2.msra.mxu0 0.0
    %2923 = vmatprep.subr.mxu0 0.0
    %2924 = vmatpush2.msra.mxu0 0.0
    %2925 = vmatprep.subr.mxu0 0.0
    %2926 = vmatpush2.msra.mxu0 0.0
    %2927 = vmatprep.subr.mxu0 0.0
    %2928 = vmatpush2.msra.mxu0 0.0
    %2929 = vmatprep.subr.mxu0 0.0
    %2930 = vmatpush2.msra.mxu0 0.0
    %2931 = vmatprep.subr.mxu0 0.0
    %2932 = vmatpush2.msra.mxu0 0.0
    %2933 = vmatprep.subr.mxu0 0.0
    %2934 = vmatpush2.msra.mxu0 0.0
    %2935 = vmatprep.subr.mxu0 0.0
    %2936 = vmatpush2.msra.mxu0 0.0
    %2937 = vmatprep.subr.mxu0 0.0
    %2938 = vmatpush2.msra.mxu0 0.0
    %2939 = vmatprep.subr.mxu0 0.0
    %2940 = vmatpush2.msra.mxu0 0.0
    %2941 = vmatprep.subr.mxu0 0.0
    %2942 = vmatpush2.msra.mxu0 0.0
    %2943 = vmatprep.subr.mxu0 0.0
    %2944 = vmatpush2.msra.mxu0 0.0
    %2945 = vmatprep.subr.mxu0 0.0
    %2946 = vmatpush2.msra.mxu0 0.0
    %2947 = vmatprep.subr.mxu0 0.0
    %2948 = vmatpush2.msra.mxu0 0.0
    %2949 = vmatprep.subr.mxu0 0.0
    %2950 = vmatpush2.msra.mxu0 0.0
    %2951 = vmatprep.subr.mxu0 0.0
    %2952 = vmatpush2.msra.mxu0 0.0
    %2953 = vmatprep.mubr.f32.mxu0 0.0
    %2954 = vmatmul.mubr.f32.gmra.mxu0 %v2887
    %v2955 = vpop.f32.mrf.mxu0
    %v2956 = vadd.f32 %v433, %v2955
    %v2957 = vpop.f32.mrf.mxu0
    %2958 = vdwg.mxu0
    %v2959 = vstv %s2812
    %v2960 = vmul.f32 %v2959, %v2956
    %v2961 = vadd.f32 %v2797, %v2960
    %v2964 = vunpack.c.l.s4 1983009808
    %v2965 = vunpack.c.0.s8 %v2964
    %v2966 = vlaneseq
    %v2967 = vshrl.u32 %v2966, 7
    %v2968 = vsub.s32 %v2965, %v2967
    %v2969 = vrot.slane %v2961, %v2968
    %2970 = vrot.lane.b32.xlu0 %v2969, 120
    %v2971 = vpop.permute.xlu0 %2970
    %vm2973 = vcmask 1042368
    %2974 = vst.msk [vmem:[#allocation5] sm:$0x3] %vm2973, %v2971
    %s2975 = sadd.s32 %s352, 16
    %s2976 = sld [smem:[#allocation4 + %s2975]]
    %v2977 = vsel %vm354, %v2961, 0
    %2979 = vmatprep.subr.mxu0 0.0
    %2980 = vmatpush1.msra.mxu0 0.0
    %2981 = vmatprep.subr.mxu0 0.0
    %2982 = vmatpush1.msra.mxu0 0.0
    %2983 = vmatprep.subr.mxu0 0.0
    %2984 = vmatpush1.msra.mxu0 0.0
    %2985 = vmatprep.subr.mxu0 0.0
    %2986 = vmatpush1.msra.mxu0 0.0
    %2987 = vmatprep.subr.mxu0 0.0
    %2988 = vmatpush1.msra.mxu0 0.0
    %2989 = vmatprep.subr.mxu0 0.0
    %2990 = vmatpush1.msra.mxu0 0.0
    %2991 = vmatprep.subr.mxu0 0.0
    %2992 = vmatpush1.msra.mxu0 0.0
    %2993 = vmatprep.subr.mxu0 0.0
    %2994 = vmatpush1.msra.mxu0 0.0
    %2995 = vmatprep.subr.mxu0 0.0
    %2996 = vmatpush1.msra.mxu0 0.0
    %2997 = vmatprep.subr.mxu0 0.0
    %2998 = vmatpush1.msra.mxu0 0.0
    %2999 = vmatprep.subr.mxu0 0.0
    %3000 = vmatpush1.msra.mxu0 0.0
    %3001 = vmatprep.subr.mxu0 0.0
    %3002 = vmatpush1.msra.mxu0 0.0
    %3003 = vmatprep.subr.mxu0 0.0
    %3004 = vmatpush1.msra.mxu0 0.0
    %3005 = vmatprep.subr.mxu0 0.0
    %3006 = vmatpush1.msra.mxu0 0.0
    %3007 = vmatprep.subr.mxu0 0.0
    %3008 = vmatpush1.msra.mxu0 0.0
    %3009 = vmatprep.subr.mxu0 0.0
    %3010 = vmatpush1.msra.mxu0 %v42
    %3011 = vmatprep.subr.mxu0 0.0
    %3012 = vmatpush2.msra.mxu0 0.0
    %3013 = vmatprep.subr.mxu0 0.0
    %3014 = vmatpush2.msra.mxu0 0.0
    %3015 = vmatprep.subr.mxu0 0.0
    %3016 = vmatpush2.msra.mxu0 0.0
    %3017 = vmatprep.subr.mxu0 0.0
    %3018 = vmatpush2.msra.mxu0 0.0
    %3019 = vmatprep.subr.mxu0 0.0
    %3020 = vmatpush2.msra.mxu0 0.0
    %3021 = vmatprep.subr.mxu0 0.0
    %3022 = vmatpush2.msra.mxu0 0.0
    %3023 = vmatprep.subr.mxu0 0.0
    %3024 = vmatpush2.msra.mxu0 0.0
    %3025 = vmatprep.subr.mxu0 0.0
    %3026 = vmatpush2.msra.mxu0 0.0
    %3027 = vmatprep.subr.mxu0 0.0
    %3028 = vmatpush2.msra.mxu0 0.0
    %3029 = vmatprep.subr.mxu0 0.0
    %3030 = vmatpush2.msra.mxu0 0.0
    %3031 = vmatprep.subr.mxu0 0.0
    %3032 = vmatpush2.msra.mxu0 0.0
    %3033 = vmatprep.subr.mxu0 0.0
    %3034 = vmatpush2.msra.mxu0 0.0
    %3035 = vmatprep.subr.mxu0 0.0
    %3036 = vmatpush2.msra.mxu0 0.0
    %3037 = vmatprep.subr.mxu0 0.0
    %3038 = vmatpush2.msra.mxu0 0.0
    %3039 = vmatprep.subr.mxu0 0.0
    %3040 = vmatpush2.msra.mxu0 0.0
    %3041 = vmatprep.subr.mxu0 0.0
    %3042 = vmatpush2.msra.mxu0 0.0
    %3043 = vmatprep.mubr.f32.mxu0 0.0
    %3044 = vmatmul.mubr.f32.gmra.mxu0 %v2977
    %v3045 = vpop.f32.mrf.mxu0
    %v3046 = vadd.f32 %v165, %v3045
    %v3047 = vpop.f32.mrf.mxu0
    %3048 = vdwg.mxu0
    %v3049 = vtanh.pop %v3046
    %v3051 = vsel %vm435, %v3049, 0
    %3053 = vmatprep.subr.mxu0 0.0
    %3054 = vmatpush1.msra.mxu0 0.0
    %3055 = vmatprep.subr.mxu0 0.0
    %3056 = vmatpush1.msra.mxu0 0.0
    %3057 = vmatprep.subr.mxu0 0.0
    %3058 = vmatpush1.msra.mxu0 0.0
    %3059 = vmatprep.subr.mxu0 0.0
    %3060 = vmatpush1.msra.mxu0 0.0
    %3061 = vmatprep.subr.mxu0 0.0
    %3062 = vmatpush1.msra.mxu0 0.0
    %3063 = vmatprep.subr.mxu0 0.0
    %3064 = vmatpush1.msra.mxu0 0.0
    %3065 = vmatprep.subr.mxu0 0.0
    %3066 = vmatpush1.msra.mxu0 0.0
    %3067 = vmatprep.subr.mxu0 0.0
    %3068 = vmatpush1.msra.mxu0 0.0
    %3069 = vmatprep.subr.mxu0 0.0
    %3070 = vmatpush1.msra.mxu0 0.0
    %3071 = vmatprep.subr.mxu0 0.0
    %3072 = vmatpush1.msra.mxu0 0.0
    %3073 = vmatprep.subr.mxu0 0.0
    %3074 = vmatpush1.msra.mxu0 0.0
    %3075 = vmatprep.subr.mxu0 0.0
    %3076 = vmatpush1.msra.mxu0 0.0
    %3077 = vmatprep.subr.mxu0 0.0
    %3078 = vmatpush1.msra.mxu0 %v48
    %3079 = vmatprep.subr.mxu0 0.0
    %3080 = vmatpush1.msra.mxu0 %v47
    %3081 = vmatprep.subr.mxu0 0.0
    %3082 = vmatpush1.msra.mxu0 %v46
    %3083 = vmatprep.subr.mxu0 0.0
    %3084 = vmatpush1.msra.mxu0 %v45
    %3085 = vmatprep.subr.mxu0 0.0
    %3086 = vmatpush2.msra.mxu0 0.0
    %3087 = vmatprep.subr.mxu0 0.0
    %3088 = vmatpush2.msra.mxu0 0.0
    %3089 = vmatprep.subr.mxu0 0.0
    %3090 = vmatpush2.msra.mxu0 0.0
    %3091 = vmatprep.subr.mxu0 0.0
    %3092 = vmatpush2.msra.mxu0 0.0
    %3093 = vmatprep.subr.mxu0 0.0
    %3094 = vmatpush2.msra.mxu0 0.0
    %3095 = vmatprep.subr.mxu0 0.0
    %3096 = vmatpush2.msra.mxu0 0.0
    %3097 = vmatprep.subr.mxu0 0.0
    %3098 = vmatpush2.msra.mxu0 0.0
    %3099 = vmatprep.subr.mxu0 0.0
    %3100 = vmatpush2.msra.mxu0 0.0
    %3101 = vmatprep.subr.mxu0 0.0
    %3102 = vmatpush2.msra.mxu0 0.0
    %3103 = vmatprep.subr.mxu0 0.0
    %3104 = vmatpush2.msra.mxu0 0.0
    %3105 = vmatprep.subr.mxu0 0.0
    %3106 = vmatpush2.msra.mxu0 0.0
    %3107 = vmatprep.subr.mxu0 0.0
    %3108 = vmatpush2.msra.mxu0 0.0
    %3109 = vmatprep.subr.mxu0 0.0
    %3110 = vmatpush2.msra.mxu0 0.0
    %3111 = vmatprep.subr.mxu0 0.0
    %3112 = vmatpush2.msra.mxu0 0.0
    %3113 = vmatprep.subr.mxu0 0.0
    %3114 = vmatpush2.msra.mxu0 0.0
    %3115 = vmatprep.subr.mxu0 0.0
    %3116 = vmatpush2.msra.mxu0 0.0
    %3117 = vmatprep.mubr.f32.mxu0 0.0
    %3118 = vmatmul.mubr.f32.gmra.mxu0 %v3051
    %v3119 = vpop.f32.mrf.mxu0
    %v3120 = vadd.f32 %v433, %v3119
    %v3121 = vpop.f32.mrf.mxu0
    %3122 = vdwg.mxu0
    %v3123 = vstv %s2976
    %v3124 = vmul.f32 %v3123, %v3120
    %v3125 = vadd.f32 %v2961, %v3124
    %3126 = vst.msk [vmem:[#allocation5 + $0x2] sm:$0x3] %vm512, %v3125
    %s3127 = sadd.s32 %s352, 17
    %s3128 = sld [smem:[#allocation4 + %s3127]]
    %v3130 = vsel %vm354, %v3125, 0
    %3132 = vmatprep.subr.mxu0 0.0
    %3133 = vmatpush1.msra.mxu0 0.0
    %3134 = vmatprep.subr.mxu0 0.0
    %3135 = vmatpush1.msra.mxu0 0.0
    %3136 = vmatprep.subr.mxu0 0.0
    %3137 = vmatpush1.msra.mxu0 0.0
    %3138 = vmatprep.subr.mxu0 0.0
    %3139 = vmatpush1.msra.mxu0 0.0
    %3140 = vmatprep.subr.mxu0 0.0
    %3141 = vmatpush1.msra.mxu0 0.0
    %3142 = vmatprep.subr.mxu0 0.0
    %3143 = vmatpush1.msra.mxu0 0.0
    %3144 = vmatprep.subr.mxu0 0.0
    %3145 = vmatpush1.msra.mxu0 0.0
    %3146 = vmatprep.subr.mxu0 0.0
    %3147 = vmatpush1.msra.mxu0 0.0
    %3148 = vmatprep.subr.mxu0 0.0
    %3149 = vmatpush1.msra.mxu0 0.0
    %3150 = vmatprep.subr.mxu0 0.0
    %3151 = vmatpush1.msra.mxu0 0.0
    %3152 = vmatprep.subr.mxu0 0.0
    %3153 = vmatpush1.msra.mxu0 0.0
    %3154 = vmatprep.subr.mxu0 0.0
    %3155 = vmatpush1.msra.mxu0 0.0
    %3156 = vmatprep.subr.mxu0 0.0
    %3157 = vmatpush1.msra.mxu0 0.0
    %3158 = vmatprep.subr.mxu0 0.0
    %3159 = vmatpush1.msra.mxu0 0.0
    %3160 = vmatprep.subr.mxu0 0.0
    %3161 = vmatpush1.msra.mxu0 0.0
    %3162 = vmatprep.subr.mxu0 0.0
    %3163 = vmatpush1.msra.mxu0 %v42
    %3164 = vmatprep.subr.mxu0 0.0
    %3165 = vmatpush2.msra.mxu0 0.0
    %3166 = vmatprep.subr.mxu0 0.0
    %3167 = vmatpush2.msra.mxu0 0.0
    %3168 = vmatprep.subr.mxu0 0.0
    %3169 = vmatpush2.msra.mxu0 0.0
    %3170 = vmatprep.subr.mxu0 0.0
    %3171 = vmatpush2.msra.mxu0 0.0
    %3172 = vmatprep.subr.mxu0 0.0
    %3173 = vmatpush2.msra.mxu0 0.0
    %3174 = vmatprep.subr.mxu0 0.0
    %3175 = vmatpush2.msra.mxu0 0.0
    %3176 = vmatprep.subr.mxu0 0.0
    %3177 = vmatpush2.msra.mxu0 0.0
    %3178 = vmatprep.subr.mxu0 0.0
    %3179 = vmatpush2.msra.mxu0 0.0
    %3180 = vmatprep.subr.mxu0 0.0
    %3181 = vmatpush2.msra.mxu0 0.0
    %3182 = vmatprep.subr.mxu0 0.0
    %3183 = vmatpush2.msra.mxu0 0.0
    %3184 = vmatprep.subr.mxu0 0.0
    %3185 = vmatpush2.msra.mxu0 0.0
    %3186 = vmatprep.subr.mxu0 0.0
    %3187 = vmatpush2.msra.mxu0 0.0
    %3188 = vmatprep.subr.mxu0 0.0
    %3189 = vmatpush2.msra.mxu0 0.0
    %3190 = vmatprep.subr.mxu0 0.0
    %3191 = vmatpush2.msra.mxu0 0.0
    %3192 = vmatprep.subr.mxu0 0.0
    %3193 = vmatpush2.msra.mxu0 0.0
    %3194 = vmatprep.subr.mxu0 0.0
    %3195 = vmatpush2.msra.mxu0 0.0
    %3196 = vmatprep.mubr.f32.mxu0 0.0
    %3197 = vmatmul.mubr.f32.gmra.mxu0 %v3130
    %v3198 = vpop.f32.mrf.mxu0
    %v3199 = vadd.f32 %v171, %v3198
    %v3200 = vpop.f32.mrf.mxu0
    %3201 = vdwg.mxu0
    %v3202 = vtanh.pop %v3199
    %v3204 = vsel %vm435, %v3202, 0
    %3206 = vmatprep.subr.mxu0 0.0
    %3207 = vmatpush1.msra.mxu0 0.0
    %3208 = vmatprep.subr.mxu0 0.0
    %3209 = vmatpush1.msra.mxu0 0.0
    %3210 = vmatprep.subr.mxu0 0.0
    %3211 = vmatpush1.msra.mxu0 0.0
    %3212 = vmatprep.subr.mxu0 0.0
    %3213 = vmatpush1.msra.mxu0 0.0
    %3214 = vmatprep.subr.mxu0 0.0
    %3215 = vmatpush1.msra.mxu0 0.0
    %3216 = vmatprep.subr.mxu0 0.0
    %3217 = vmatpush1.msra.mxu0 0.0
    %3218 = vmatprep.subr.mxu0 0.0
    %3219 = vmatpush1.msra.mxu0 0.0
    %3220 = vmatprep.subr.mxu0 0.0
    %3221 = vmatpush1.msra.mxu0 0.0
    %3222 = vmatprep.subr.mxu0 0.0
    %3223 = vmatpush1.msra.mxu0 0.0
    %3224 = vmatprep.subr.mxu0 0.0
    %3225 = vmatpush1.msra.mxu0 0.0
    %3226 = vmatprep.subr.mxu0 0.0
    %3227 = vmatpush1.msra.mxu0 0.0
    %3228 = vmatprep.subr.mxu0 0.0
    %3229 = vmatpush1.msra.mxu0 0.0
    %3230 = vmatprep.subr.mxu0 0.0
    %3231 = vmatpush1.msra.mxu0 %v48
    %3232 = vmatprep.subr.mxu0 0.0
    %3233 = vmatpush1.msra.mxu0 %v47
    %3234 = vmatprep.subr.mxu0 0.0
    %3235 = vmatpush1.msra.mxu0 %v46
    %3236 = vmatprep.subr.mxu0 0.0
    %3237 = vmatpush1.msra.mxu0 %v45
    %3238 = vmatprep.subr.mxu0 0.0
    %3239 = vmatpush2.msra.mxu0 0.0
    %3240 = vmatprep.subr.mxu0 0.0
    %3241 = vmatpush2.msra.mxu0 0.0
    %3242 = vmatprep.subr.mxu0 0.0
    %3243 = vmatpush2.msra.mxu0 0.0
    %3244 = vmatprep.subr.mxu0 0.0
    %3245 = vmatpush2.msra.mxu0 0.0
    %3246 = vmatprep.subr.mxu0 0.0
    %3247 = vmatpush2.msra.mxu0 0.0
    %3248 = vmatprep.subr.mxu0 0.0
    %3249 = vmatpush2.msra.mxu0 0.0
    %3250 = vmatprep.subr.mxu0 0.0
    %3251 = vmatpush2.msra.mxu0 0.0
    %3252 = vmatprep.subr.mxu0 0.0
    %3253 = vmatpush2.msra.mxu0 0.0
    %3254 = vmatprep.subr.mxu0 0.0
    %3255 = vmatpush2.msra.mxu0 0.0
    %3256 = vmatprep.subr.mxu0 0.0
    %3257 = vmatpush2.msra.mxu0 0.0
    %3258 = vmatprep.subr.mxu0 0.0
    %3259 = vmatpush2.msra.mxu0 0.0
    %3260 = vmatprep.subr.mxu0 0.0
    %3261 = vmatpush2.msra.mxu0 0.0
    %3262 = vmatprep.subr.mxu0 0.0
    %3263 = vmatpush2.msra.mxu0 0.0
    %3264 = vmatprep.subr.mxu0 0.0
    %3265 = vmatpush2.msra.mxu0 0.0
    %3266 = vmatprep.subr.mxu0 0.0
    %3267 = vmatpush2.msra.mxu0 0.0
    %3268 = vmatprep.subr.mxu0 0.0
    %3269 = vmatpush2.msra.mxu0 0.0
    %3270 = vmatprep.mubr.f32.mxu0 0.0
    %3271 = vmatmul.mubr.f32.gmra.mxu0 %v3204
    %v3272 = vpop.f32.mrf.mxu0
    %v3273 = vadd.f32 %v433, %v3272
    %v3274 = vpop.f32.mrf.mxu0
    %3275 = vdwg.mxu0
    %v3276 = vstv %s3128
    %v3277 = vmul.f32 %v3276, %v3273
    %v3278 = vadd.f32 %v3125, %v3277
    %v3281 = vunpack.c.l.s4 1983009808
    %v3282 = vunpack.c.0.s8 %v3281
    %v3283 = vlaneseq
    %v3284 = vshrl.u32 %v3283, 7
    %v3285 = vsub.s32 %v3282, %v3284
    %v3286 = vrot.slane %v3278, %v3285
    %3287 = vrot.lane.b32.xlu0 %v3286, 8
    %v3288 = vpop.permute.xlu0 %3287
    %3290 = vst.msk [vmem:[#allocation5 + $0x2] sm:$0x3] %vm677, %v3288
    %s3291 = sadd.s32 %s352, 18
    %s3292 = sld [smem:[#allocation4 + %s3291]]
    %v3293 = vsel %vm354, %v3278, 0
    %3295 = vmatprep.subr.mxu0 0.0
    %3296 = vmatpush1.msra.mxu0 0.0
    %3297 = vmatprep.subr.mxu0 0.0
    %3298 = vmatpush1.msra.mxu0 0.0
    %3299 = vmatprep.subr.mxu0 0.0
    %3300 = vmatpush1.msra.mxu0 0.0
    %3301 = vmatprep.subr.mxu0 0.0
    %3302 = vmatpush1.msra.mxu0 0.0
    %3303 = vmatprep.subr.mxu0 0.0
    %3304 = vmatpush1.msra.mxu0 0.0
    %3305 = vmatprep.subr.mxu0 0.0
    %3306 = vmatpush1.msra.mxu0 0.0
    %3307 = vmatprep.subr.mxu0 0.0
    %3308 = vmatpush1.msra.mxu0 0.0
    %3309 = vmatprep.subr.mxu0 0.0
    %3310 = vmatpush1.msra.mxu0 0.0
    %3311 = vmatprep.subr.mxu0 0.0
    %3312 = vmatpush1.msra.mxu0 0.0
    %3313 = vmatprep.subr.mxu0 0.0
    %3314 = vmatpush1.msra.mxu0 0.0
    %3315 = vmatprep.subr.mxu0 0.0
    %3316 = vmatpush1.msra.mxu0 0.0
    %3317 = vmatprep.subr.mxu0 0.0
    %3318 = vmatpush1.msra.mxu0 0.0
    %3319 = vmatprep.subr.mxu0 0.0
    %3320 = vmatpush1.msra.mxu0 0.0
    %3321 = vmatprep.subr.mxu0 0.0
    %3322 = vmatpush1.msra.mxu0 0.0
    %3323 = vmatprep.subr.mxu0 0.0
    %3324 = vmatpush1.msra.mxu0 0.0
    %3325 = vmatprep.subr.mxu0 0.0
    %3326 = vmatpush1.msra.mxu0 %v42
    %3327 = vmatprep.subr.mxu0 0.0
    %3328 = vmatpush2.msra.mxu0 0.0
    %3329 = vmatprep.subr.mxu0 0.0
    %3330 = vmatpush2.msra.mxu0 0.0
    %3331 = vmatprep.subr.mxu0 0.0
    %3332 = vmatpush2.msra.mxu0 0.0
    %3333 = vmatprep.subr.mxu0 0.0
    %3334 = vmatpush2.msra.mxu0 0.0
    %3335 = vmatprep.subr.mxu0 0.0
    %3336 = vmatpush2.msra.mxu0 0.0
    %3337 = vmatprep.subr.mxu0 0.0
    %3338 = vmatpush2.msra.mxu0 0.0
    %3339 = vmatprep.subr.mxu0 0.0
    %3340 = vmatpush2.msra.mxu0 0.0
    %3341 = vmatprep.subr.mxu0 0.0
    %3342 = vmatpush2.msra.mxu0 0.0
    %3343 = vmatprep.subr.mxu0 0.0
    %3344 = vmatpush2.msra.mxu0 0.0
    %3345 = vmatprep.subr.mxu0 0.0
    %3346 = vmatpush2.msra.mxu0 0.0
    %3347 = vmatprep.subr.mxu0 0.0
    %3348 = vmatpush2.msra.mxu0 0.0
    %3349 = vmatprep.subr.mxu0 0.0
    %3350 = vmatpush2.msra.mxu0 0.0
    %3351 = vmatprep.subr.mxu0 0.0
    %3352 = vmatpush2.msra.mxu0 0.0
    %3353 = vmatprep.subr.mxu0 0.0
    %3354 = vmatpush2.msra.mxu0 0.0
    %3355 = vmatprep.subr.mxu0 0.0
    %3356 = vmatpush2.msra.mxu0 0.0
    %3357 = vmatprep.subr.mxu0 0.0
    %3358 = vmatpush2.msra.mxu0 0.0
    %3359 = vmatprep.mubr.f32.mxu0 0.0
    %3360 = vmatmul.mubr.f32.gmra.mxu0 %v3293
    %v3361 = vpop.f32.mrf.mxu0
    %v3362 = vadd.f32 %v177, %v3361
    %v3363 = vpop.f32.mrf.mxu0
    %3364 = vdwg.mxu0
    %v3365 = vtanh.pop %v3362
    %v3367 = vsel %vm435, %v3365, 0
    %3369 = vmatprep.subr.mxu0 0.0
    %3370 = vmatpush1.msra.mxu0 0.0
    %3371 = vmatprep.subr.mxu0 0.0
    %3372 = vmatpush1.msra.mxu0 0.0
    %3373 = vmatprep.subr.mxu0 0.0
    %3374 = vmatpush1.msra.mxu0 0.0
    %3375 = vmatprep.subr.mxu0 0.0
    %3376 = vmatpush1.msra.mxu0 0.0
    %3377 = vmatprep.subr.mxu0 0.0
    %3378 = vmatpush1.msra.mxu0 0.0
    %3379 = vmatprep.subr.mxu0 0.0
    %3380 = vmatpush1.msra.mxu0 0.0
    %3381 = vmatprep.subr.mxu0 0.0
    %3382 = vmatpush1.msra.mxu0 0.0
    %3383 = vmatprep.subr.mxu0 0.0
    %3384 = vmatpush1.msra.mxu0 0.0
    %3385 = vmatprep.subr.mxu0 0.0
    %3386 = vmatpush1.msra.mxu0 0.0
    %3387 = vmatprep.subr.mxu0 0.0
    %3388 = vmatpush1.msra.mxu0 0.0
    %3389 = vmatprep.subr.mxu0 0.0
    %3390 = vmatpush1.msra.mxu0 0.0
    %3391 = vmatprep.subr.mxu0 0.0
    %3392 = vmatpush1.msra.mxu0 0.0
    %3393 = vmatprep.subr.mxu0 0.0
    %3394 = vmatpush1.msra.mxu0 %v48
    %3395 = vmatprep.subr.mxu0 0.0
    %3396 = vmatpush1.msra.mxu0 %v47
    %3397 = vmatprep.subr.mxu0 0.0
    %3398 = vmatpush1.msra.mxu0 %v46
    %3399 = vmatprep.subr.mxu0 0.0
    %3400 = vmatpush1.msra.mxu0 %v45
    %3401 = vmatprep.subr.mxu0 0.0
    %3402 = vmatpush2.msra.mxu0 0.0
    %3403 = vmatprep.subr.mxu0 0.0
    %3404 = vmatpush2.msra.mxu0 0.0
    %3405 = vmatprep.subr.mxu0 0.0
    %3406 = vmatpush2.msra.mxu0 0.0
    %3407 = vmatprep.subr.mxu0 0.0
    %3408 = vmatpush2.msra.mxu0 0.0
    %3409 = vmatprep.subr.mxu0 0.0
    %3410 = vmatpush2.msra.mxu0 0.0
    %3411 = vmatprep.subr.mxu0 0.0
    %3412 = vmatpush2.msra.mxu0 0.0
    %3413 = vmatprep.subr.mxu0 0.0
    %3414 = vmatpush2.msra.mxu0 0.0
    %3415 = vmatprep.subr.mxu0 0.0
    %3416 = vmatpush2.msra.mxu0 0.0
    %3417 = vmatprep.subr.mxu0 0.0
    %3418 = vmatpush2.msra.mxu0 0.0
    %3419 = vmatprep.subr.mxu0 0.0
    %3420 = vmatpush2.msra.mxu0 0.0
    %3421 = vmatprep.subr.mxu0 0.0
    %3422 = vmatpush2.msra.mxu0 0.0
    %3423 = vmatprep.subr.mxu0 0.0
    %3424 = vmatpush2.msra.mxu0 0.0
    %3425 = vmatprep.subr.mxu0 0.0
    %3426 = vmatpush2.msra.mxu0 0.0
    %3427 = vmatprep.subr.mxu0 0.0
    %3428 = vmatpush2.msra.mxu0 0.0
    %3429 = vmatprep.subr.mxu0 0.0
    %3430 = vmatpush2.msra.mxu0 0.0
    %3431 = vmatprep.subr.mxu0 0.0
    %3432 = vmatpush2.msra.mxu0 0.0
    %3433 = vmatprep.mubr.f32.mxu0 0.0
    %3434 = vmatmul.mubr.f32.gmra.mxu0 %v3367
    %v3435 = vpop.f32.mrf.mxu0
    %v3436 = vadd.f32 %v433, %v3435
    %v3437 = vpop.f32.mrf.mxu0
    %3438 = vdwg.mxu0
    %v3439 = vstv %s3292
    %v3440 = vmul.f32 %v3439, %v3436
    %v3441 = vadd.f32 %v3278, %v3440
    %v3444 = vunpack.c.l.s4 1983009808
    %v3445 = vunpack.c.0.s8 %v3444
    %v3446 = vlaneseq
    %v3447 = vshrl.u32 %v3446, 7
    %v3448 = vsub.s32 %v3445, %v3447
    %v3449 = vrot.slane %v3441, %v3448
    %3450 = vrot.lane.b32.xlu0 %v3449, 16
    %v3451 = vpop.permute.xlu0 %3450
    %3453 = vst.msk [vmem:[#allocation5 + $0x2] sm:$0x3] %vm841, %v3451
    %s3454 = sadd.s32 %s352, 19
    %s3455 = sld [smem:[#allocation4 + %s3454]]
    %v3456 = vsel %vm354, %v3441, 0
    %3458 = vmatprep.subr.mxu0 0.0
    %3459 = vmatpush1.msra.mxu0 0.0
    %3460 = vmatprep.subr.mxu0 0.0
    %3461 = vmatpush1.msra.mxu0 0.0
    %3462 = vmatprep.subr.mxu0 0.0
    %3463 = vmatpush1.msra.mxu0 0.0
    %3464 = vmatprep.subr.mxu0 0.0
    %3465 = vmatpush1.msra.mxu0 0.0
    %3466 = vmatprep.subr.mxu0 0.0
    %3467 = vmatpush1.msra.mxu0 0.0
    %3468 = vmatprep.subr.mxu0 0.0
    %3469 = vmatpush1.msra.mxu0 0.0
    %3470 = vmatprep.subr.mxu0 0.0
    %3471 = vmatpush1.msra.mxu0 0.0
    %3472 = vmatprep.subr.mxu0 0.0
    %3473 = vmatpush1.msra.mxu0 0.0
    %3474 = vmatprep.subr.mxu0 0.0
    %3475 = vmatpush1.msra.mxu0 0.0
    %3476 = vmatprep.subr.mxu0 0.0
    %3477 = vmatpush1.msra.mxu0 0.0
    %3478 = vmatprep.subr.mxu0 0.0
    %3479 = vmatpush1.msra.mxu0 0.0
    %3480 = vmatprep.subr.mxu0 0.0
    %3481 = vmatpush1.msra.mxu0 0.0
    %3482 = vmatprep.subr.mxu0 0.0
    %3483 = vmatpush1.msra.mxu0 0.0
    %3484 = vmatprep.subr.mxu0 0.0
    %3485 = vmatpush1.msra.mxu0 0.0
    %3486 = vmatprep.subr.mxu0 0.0
    %3487 = vmatpush1.msra.mxu0 0.0
    %3488 = vmatprep.subr.mxu0 0.0
    %3489 = vmatpush1.msra.mxu0 %v42
    %3490 = vmatprep.subr.mxu0 0.0
    %3491 = vmatpush2.msra.mxu0 0.0
    %3492 = vmatprep.subr.mxu0 0.0
    %3493 = vmatpush2.msra.mxu0 0.0
    %3494 = vmatprep.subr.mxu0 0.0
    %3495 = vmatpush2.msra.mxu0 0.0
    %3496 = vmatprep.subr.mxu0 0.0
    %3497 = vmatpush2.msra.mxu0 0.0
    %3498 = vmatprep.subr.mxu0 0.0
    %3499 = vmatpush2.msra.mxu0 0.0
    %3500 = vmatprep.subr.mxu0 0.0
    %3501 = vmatpush2.msra.mxu0 0.0
    %3502 = vmatprep.subr.mxu0 0.0
    %3503 = vmatpush2.msra.mxu0 0.0
    %3504 = vmatprep.subr.mxu0 0.0
    %3505 = vmatpush2.msra.mxu0 0.0
    %3506 = vmatprep.subr.mxu0 0.0
    %3507 = vmatpush2.msra.mxu0 0.0
    %3508 = vmatprep.subr.mxu0 0.0
    %3509 = vmatpush2.msra.mxu0 0.0
    %3510 = vmatprep.subr.mxu0 0.0
    %3511 = vmatpush2.msra.mxu0 0.0
    %3512 = vmatprep.subr.mxu0 0.0
    %3513 = vmatpush2.msra.mxu0 0.0
    %3514 = vmatprep.subr.mxu0 0.0
    %3515 = vmatpush2.msra.mxu0 0.0
    %3516 = vmatprep.subr.mxu0 0.0
    %3517 = vmatpush2.msra.mxu0 0.0
    %3518 = vmatprep.subr.mxu0 0.0
    %3519 = vmatpush2.msra.mxu0 0.0
    %3520 = vmatprep.subr.mxu0 0.0
    %3521 = vmatpush2.msra.mxu0 0.0
    %3522 = vmatprep.mubr.f32.mxu0 0.0
    %3523 = vmatmul.mubr.f32.gmra.mxu0 %v3456
    %v3524 = vpop.f32.mrf.mxu0
    %v3525 = vadd.f32 %v183, %v3524
    %v3526 = vpop.f32.mrf.mxu0
    %3527 = vdwg.mxu0
    %v3528 = vtanh.pop %v3525
    %v3530 = vsel %vm435, %v3528, 0
    %3532 = vmatprep.subr.mxu0 0.0
    %3533 = vmatpush1.msra.mxu0 0.0
    %3534 = vmatprep.subr.mxu0 0.0
    %3535 = vmatpush1.msra.mxu0 0.0
    %3536 = vmatprep.subr.mxu0 0.0
    %3537 = vmatpush1.msra.mxu0 0.0
    %3538 = vmatprep.subr.mxu0 0.0
    %3539 = vmatpush1.msra.mxu0 0.0
    %3540 = vmatprep.subr.mxu0 0.0
    %3541 = vmatpush1.msra.mxu0 0.0
    %3542 = vmatprep.subr.mxu0 0.0
    %3543 = vmatpush1.msra.mxu0 0.0
    %3544 = vmatprep.subr.mxu0 0.0
    %3545 = vmatpush1.msra.mxu0 0.0
    %3546 = vmatprep.subr.mxu0 0.0
    %3547 = vmatpush1.msra.mxu0 0.0
    %3548 = vmatprep.subr.mxu0 0.0
    %3549 = vmatpush1.msra.mxu0 0.0
    %3550 = vmatprep.subr.mxu0 0.0
    %3551 = vmatpush1.msra.mxu0 0.0
    %3552 = vmatprep.subr.mxu0 0.0
    %3553 = vmatpush1.msra.mxu0 0.0
    %3554 = vmatprep.subr.mxu0 0.0
    %3555 = vmatpush1.msra.mxu0 0.0
    %3556 = vmatprep.subr.mxu0 0.0
    %3557 = vmatpush1.msra.mxu0 %v48
    %3558 = vmatprep.subr.mxu0 0.0
    %3559 = vmatpush1.msra.mxu0 %v47
    %3560 = vmatprep.subr.mxu0 0.0
    %3561 = vmatpush1.msra.mxu0 %v46
    %3562 = vmatprep.subr.mxu0 0.0
    %3563 = vmatpush1.msra.mxu0 %v45
    %3564 = vmatprep.subr.mxu0 0.0
    %3565 = vmatpush2.msra.mxu0 0.0
    %3566 = vmatprep.subr.mxu0 0.0
    %3567 = vmatpush2.msra.mxu0 0.0
    %3568 = vmatprep.subr.mxu0 0.0
    %3569 = vmatpush2.msra.mxu0 0.0
    %3570 = vmatprep.subr.mxu0 0.0
    %3571 = vmatpush2.msra.mxu0 0.0
    %3572 = vmatprep.subr.mxu0 0.0
    %3573 = vmatpush2.msra.mxu0 0.0
    %3574 = vmatprep.subr.mxu0 0.0
    %3575 = vmatpush2.msra.mxu0 0.0
    %3576 = vmatprep.subr.mxu0 0.0
    %3577 = vmatpush2.msra.mxu0 0.0
    %3578 = vmatprep.subr.mxu0 0.0
    %3579 = vmatpush2.msra.mxu0 0.0
    %3580 = vmatprep.subr.mxu0 0.0
    %3581 = vmatpush2.msra.mxu0 0.0
    %3582 = vmatprep.subr.mxu0 0.0
    %3583 = vmatpush2.msra.mxu0 0.0
    %3584 = vmatprep.subr.mxu0 0.0
    %3585 = vmatpush2.msra.mxu0 0.0
    %3586 = vmatprep.subr.mxu0 0.0
    %3587 = vmatpush2.msra.mxu0 0.0
    %3588 = vmatprep.subr.mxu0 0.0
    %3589 = vmatpush2.msra.mxu0 0.0
    %3590 = vmatprep.subr.mxu0 0.0
    %3591 = vmatpush2.msra.mxu0 0.0
    %3592 = vmatprep.subr.mxu0 0.0
    %3593 = vmatpush2.msra.mxu0 0.0
    %3594 = vmatprep.subr.mxu0 0.0
    %3595 = vmatpush2.msra.mxu0 0.0
    %3596 = vmatprep.mubr.f32.mxu0 0.0
    %3597 = vmatmul.mubr.f32.gmra.mxu0 %v3530
    %v3598 = vpop.f32.mrf.mxu0
    %v3599 = vadd.f32 %v433, %v3598
    %v3600 = vpop.f32.mrf.mxu0
    %3601 = vdwg.mxu0
    %v3602 = vstv %s3455
    %v3603 = vmul.f32 %v3602, %v3599
    %v3604 = vadd.f32 %v3441, %v3603
    %v3607 = vunpack.c.l.s4 1983009808
    %v3608 = vunpack.c.0.s8 %v3607
    %v3609 = vlaneseq
    %v3610 = vshrl.u32 %v3609, 7
    %v3611 = vsub.s32 %v3608, %v3610
    %v3612 = vrot.slane %v3604, %v3611
    %3613 = vrot.lane.b32.xlu0 %v3612, 24
    %v3614 = vpop.permute.xlu0 %3613
    %3616 = vst.msk [vmem:[#allocation5 + $0x2] sm:$0x3] %vm1005, %v3614
    %s3617 = sadd.s32 %s352, 20
    %s3618 = sld [smem:[#allocation4 + %s3617]]
    %v3619 = vsel %vm354, %v3604, 0
    %3621 = vmatprep.subr.mxu0 0.0
    %3622 = vmatpush1.msra.mxu0 0.0
    %3623 = vmatprep.subr.mxu0 0.0
    %3624 = vmatpush1.msra.mxu0 0.0
    %3625 = vmatprep.subr.mxu0 0.0
    %3626 = vmatpush1.msra.mxu0 0.0
    %3627 = vmatprep.subr.mxu0 0.0
    %3628 = vmatpush1.msra.mxu0 0.0
    %3629 = vmatprep.subr.mxu0 0.0
    %3630 = vmatpush1.msra.mxu0 0.0
    %3631 = vmatprep.subr.mxu0 0.0
    %3632 = vmatpush1.msra.mxu0 0.0
    %3633 = vmatprep.subr.mxu0 0.0
    %3634 = vmatpush1.msra.mxu0 0.0
    %3635 = vmatprep.subr.mxu0 0.0
    %3636 = vmatpush1.msra.mxu0 0.0
    %3637 = vmatprep.subr.mxu0 0.0
    %3638 = vmatpush1.msra.mxu0 0.0
    %3639 = vmatprep.subr.mxu0 0.0
    %3640 = vmatpush1.msra.mxu0 0.0
    %3641 = vmatprep.subr.mxu0 0.0
    %3642 = vmatpush1.msra.mxu0 0.0
    %3643 = vmatprep.subr.mxu0 0.0
    %3644 = vmatpush1.msra.mxu0 0.0
    %3645 = vmatprep.subr.mxu0 0.0
    %3646 = vmatpush1.msra.mxu0 0.0
    %3647 = vmatprep.subr.mxu0 0.0
    %3648 = vmatpush1.msra.mxu0 0.0
    %3649 = vmatprep.subr.mxu0 0.0
    %3650 = vmatpush1.msra.mxu0 0.0
    %3651 = vmatprep.subr.mxu0 0.0
    %3652 = vmatpush1.msra.mxu0 %v42
    %3653 = vmatprep.subr.mxu0 0.0
    %3654 = vmatpush2.msra.mxu0 0.0
    %3655 = vmatprep.subr.mxu0 0.0
    %3656 = vmatpush2.msra.mxu0 0.0
    %3657 = vmatprep.subr.mxu0 0.0
    %3658 = vmatpush2.msra.mxu0 0.0
    %3659 = vmatprep.subr.mxu0 0.0
    %3660 = vmatpush2.msra.mxu0 0.0
    %3661 = vmatprep.subr.mxu0 0.0
    %3662 = vmatpush2.msra.mxu0 0.0
    %3663 = vmatprep.subr.mxu0 0.0
    %3664 = vmatpush2.msra.mxu0 0.0
    %3665 = vmatprep.subr.mxu0 0.0
    %3666 = vmatpush2.msra.mxu0 0.0
    %3667 = vmatprep.subr.mxu0 0.0
    %3668 = vmatpush2.msra.mxu0 0.0
    %3669 = vmatprep.subr.mxu0 0.0
    %3670 = vmatpush2.msra.mxu0 0.0
    %3671 = vmatprep.subr.mxu0 0.0
    %3672 = vmatpush2.msra.mxu0 0.0
    %3673 = vmatprep.subr.mxu0 0.0
    %3674 = vmatpush2.msra.mxu0 0.0
    %3675 = vmatprep.subr.mxu0 0.0
    %3676 = vmatpush2.msra.mxu0 0.0
    %3677 = vmatprep.subr.mxu0 0.0
    %3678 = vmatpush2.msra.mxu0 0.0
    %3679 = vmatprep.subr.mxu0 0.0
    %3680 = vmatpush2.msra.mxu0 0.0
    %3681 = vmatprep.subr.mxu0 0.0
    %3682 = vmatpush2.msra.mxu0 0.0
    %3683 = vmatprep.subr.mxu0 0.0
    %3684 = vmatpush2.msra.mxu0 0.0
    %3685 = vmatprep.mubr.f32.mxu0 0.0
    %3686 = vmatmul.mubr.f32.gmra.mxu0 %v3619
    %v3687 = vpop.f32.mrf.mxu0
    %v3688 = vadd.f32 %v189, %v3687
    %v3689 = vpop.f32.mrf.mxu0
    %3690 = vdwg.mxu0
    %v3691 = vtanh.pop %v3688
    %v3693 = vsel %vm435, %v3691, 0
    %3695 = vmatprep.subr.mxu0 0.0
    %3696 = vmatpush1.msra.mxu0 0.0
    %3697 = vmatprep.subr.mxu0 0.0
    %3698 = vmatpush1.msra.mxu0 0.0
    %3699 = vmatprep.subr.mxu0 0.0
    %3700 = vmatpush1.msra.mxu0 0.0
    %3701 = vmatprep.subr.mxu0 0.0
    %3702 = vmatpush1.msra.mxu0 0.0
    %3703 = vmatprep.subr.mxu0 0.0
    %3704 = vmatpush1.msra.mxu0 0.0
    %3705 = vmatprep.subr.mxu0 0.0
    %3706 = vmatpush1.msra.mxu0 0.0
    %3707 = vmatprep.subr.mxu0 0.0
    %3708 = vmatpush1.msra.mxu0 0.0
    %3709 = vmatprep.subr.mxu0 0.0
    %3710 = vmatpush1.msra.mxu0 0.0
    %3711 = vmatprep.subr.mxu0 0.0
    %3712 = vmatpush1.msra.mxu0 0.0
    %3713 = vmatprep.subr.mxu0 0.0
    %3714 = vmatpush1.msra.mxu0 0.0
    %3715 = vmatprep.subr.mxu0 0.0
    %3716 = vmatpush1.msra.mxu0 0.0
    %3717 = vmatprep.subr.mxu0 0.0
    %3718 = vmatpush1.msra.mxu0 0.0
    %3719 = vmatprep.subr.mxu0 0.0
    %3720 = vmatpush1.msra.mxu0 %v48
    %3721 = vmatprep.subr.mxu0 0.0
    %3722 = vmatpush1.msra.mxu0 %v47
    %3723 = vmatprep.subr.mxu0 0.0
    %3724 = vmatpush1.msra.mxu0 %v46
    %3725 = vmatprep.subr.mxu0 0.0
    %3726 = vmatpush1.msra.mxu0 %v45
    %3727 = vmatprep.subr.mxu0 0.0
    %3728 = vmatpush2.msra.mxu0 0.0
    %3729 = vmatprep.subr.mxu0 0.0
    %3730 = vmatpush2.msra.mxu0 0.0
    %3731 = vmatprep.subr.mxu0 0.0
    %3732 = vmatpush2.msra.mxu0 0.0
    %3733 = vmatprep.subr.mxu0 0.0
    %3734 = vmatpush2.msra.mxu0 0.0
    %3735 = vmatprep.subr.mxu0 0.0
    %3736 = vmatpush2.msra.mxu0 0.0
    %3737 = vmatprep.subr.mxu0 0.0
    %3738 = vmatpush2.msra.mxu0 0.0
    %3739 = vmatprep.subr.mxu0 0.0
    %3740 = vmatpush2.msra.mxu0 0.0
    %3741 = vmatprep.subr.mxu0 0.0
    %3742 = vmatpush2.msra.mxu0 0.0
    %3743 = vmatprep.subr.mxu0 0.0
    %3744 = vmatpush2.msra.mxu0 0.0
    %3745 = vmatprep.subr.mxu0 0.0
    %3746 = vmatpush2.msra.mxu0 0.0
    %3747 = vmatprep.subr.mxu0 0.0
    %3748 = vmatpush2.msra.mxu0 0.0
    %3749 = vmatprep.subr.mxu0 0.0
    %3750 = vmatpush2.msra.mxu0 0.0
    %3751 = vmatprep.subr.mxu0 0.0
    %3752 = vmatpush2.msra.mxu0 0.0
    %3753 = vmatprep.subr.mxu0 0.0
    %3754 = vmatpush2.msra.mxu0 0.0
    %3755 = vmatprep.subr.mxu0 0.0
    %3756 = vmatpush2.msra.mxu0 0.0
    %3757 = vmatprep.subr.mxu0 0.0
    %3758 = vmatpush2.msra.mxu0 0.0
    %3759 = vmatprep.mubr.f32.mxu0 0.0
    %3760 = vmatmul.mubr.f32.gmra.mxu0 %v3693
    %v3761 = vpop.f32.mrf.mxu0
    %v3762 = vadd.f32 %v433, %v3761
    %v3763 = vpop.f32.mrf.mxu0
    %3764 = vdwg.mxu0
    %v3765 = vstv %s3618
    %v3766 = vmul.f32 %v3765, %v3762
    %v3767 = vadd.f32 %v3604, %v3766
    %v3770 = vunpack.c.l.s4 1983009808
    %v3771 = vunpack.c.0.s8 %v3770
    %v3772 = vlaneseq
    %v3773 = vshrl.u32 %v3772, 7
    %v3774 = vsub.s32 %v3771, %v3773
    %v3775 = vrot.slane %v3767, %v3774
    %3776 = vrot.lane.b32.xlu0 %v3775, 32
    %v3777 = vpop.permute.xlu0 %3776
    %3779 = vst.msk [vmem:[#allocation5 + $0x2] sm:$0x3] %vm1169, %v3777
    %s3780 = sadd.s32 %s352, 21
    %s3781 = sld [smem:[#allocation4 + %s3780]]
    %v3782 = vsel %vm354, %v3767, 0
    %3784 = vmatprep.subr.mxu0 0.0
    %3785 = vmatpush1.msra.mxu0 0.0
    %3786 = vmatprep.subr.mxu0 0.0
    %3787 = vmatpush1.msra.mxu0 0.0
    %3788 = vmatprep.subr.mxu0 0.0
    %3789 = vmatpush1.msra.mxu0 0.0
    %3790 = vmatprep.subr.mxu0 0.0
    %3791 = vmatpush1.msra.mxu0 0.0
    %3792 = vmatprep.subr.mxu0 0.0
    %3793 = vmatpush1.msra.mxu0 0.0
    %3794 = vmatprep.subr.mxu0 0.0
    %3795 = vmatpush1.msra.mxu0 0.0
    %3796 = vmatprep.subr.mxu0 0.0
    %3797 = vmatpush1.msra.mxu0 0.0
    %3798 = vmatprep.subr.mxu0 0.0
    %3799 = vmatpush1.msra.mxu0 0.0
    %3800 = vmatprep.subr.mxu0 0.0
    %3801 = vmatpush1.msra.mxu0 0.0
    %3802 = vmatprep.subr.mxu0 0.0
    %3803 = vmatpush1.msra.mxu0 0.0
    %3804 = vmatprep.subr.mxu0 0.0
    %3805 = vmatpush1.msra.mxu0 0.0
    %3806 = vmatprep.subr.mxu0 0.0
    %3807 = vmatpush1.msra.mxu0 0.0
    %3808 = vmatprep.subr.mxu0 0.0
    %3809 = vmatpush1.msra.mxu0 0.0
    %3810 = vmatprep.subr.mxu0 0.0
    %3811 = vmatpush1.msra.mxu0 0.0
    %3812 = vmatprep.subr.mxu0 0.0
    %3813 = vmatpush1.msra.mxu0 0.0
    %3814 = vmatprep.subr.mxu0 0.0
    %3815 = vmatpush1.msra.mxu0 %v42
    %3816 = vmatprep.subr.mxu0 0.0
    %3817 = vmatpush2.msra.mxu0 0.0
    %3818 = vmatprep.subr.mxu0 0.0
    %3819 = vmatpush2.msra.mxu0 0.0
    %3820 = vmatprep.subr.mxu0 0.0
    %3821 = vmatpush2.msra.mxu0 0.0
    %3822 = vmatprep.subr.mxu0 0.0
    %3823 = vmatpush2.msra.mxu0 0.0
    %3824 = vmatprep.subr.mxu0 0.0
    %3825 = vmatpush2.msra.mxu0 0.0
    %3826 = vmatprep.subr.mxu0 0.0
    %3827 = vmatpush2.msra.mxu0 0.0
    %3828 = vmatprep.subr.mxu0 0.0
    %3829 = vmatpush2.msra.mxu0 0.0
    %3830 = vmatprep.subr.mxu0 0.0
    %3831 = vmatpush2.msra.mxu0 0.0
    %3832 = vmatprep.subr.mxu0 0.0
    %3833 = vmatpush2.msra.mxu0 0.0
    %3834 = vmatprep.subr.mxu0 0.0
    %3835 = vmatpush2.msra.mxu0 0.0
    %3836 = vmatprep.subr.mxu0 0.0
    %3837 = vmatpush2.msra.mxu0 0.0
    %3838 = vmatprep.subr.mxu0 0.0
    %3839 = vmatpush2.msra.mxu0 0.0
    %3840 = vmatprep.subr.mxu0 0.0
    %3841 = vmatpush2.msra.mxu0 0.0
    %3842 = vmatprep.subr.mxu0 0.0
    %3843 = vmatpush2.msra.mxu0 0.0
    %3844 = vmatprep.subr.mxu0 0.0
    %3845 = vmatpush2.msra.mxu0 0.0
    %3846 = vmatprep.subr.mxu0 0.0
    %3847 = vmatpush2.msra.mxu0 0.0
    %3848 = vmatprep.mubr.f32.mxu0 0.0
    %3849 = vmatmul.mubr.f32.gmra.mxu0 %v3782
    %v3850 = vpop.f32.mrf.mxu0
    %v3851 = vadd.f32 %v195, %v3850
    %v3852 = vpop.f32.mrf.mxu0
    %3853 = vdwg.mxu0
    %v3854 = vtanh.pop %v3851
    %v3856 = vsel %vm435, %v3854, 0
    %3858 = vmatprep.subr.mxu0 0.0
    %3859 = vmatpush1.msra.mxu0 0.0
    %3860 = vmatprep.subr.mxu0 0.0
    %3861 = vmatpush1.msra.mxu0 0.0
    %3862 = vmatprep.subr.mxu0 0.0
    %3863 = vmatpush1.msra.mxu0 0.0
    %3864 = vmatprep.subr.mxu0 0.0
    %3865 = vmatpush1.msra.mxu0 0.0
    %3866 = vmatprep.subr.mxu0 0.0
    %3867 = vmatpush1.msra.mxu0 0.0
    %3868 = vmatprep.subr.mxu0 0.0
    %3869 = vmatpush1.msra.mxu0 0.0
    %3870 = vmatprep.subr.mxu0 0.0
    %3871 = vmatpush1.msra.mxu0 0.0
    %3872 = vmatprep.subr.mxu0 0.0
    %3873 = vmatpush1.msra.mxu0 0.0
    %3874 = vmatprep.subr.mxu0 0.0
    %3875 = vmatpush1.msra.mxu0 0.0
    %3876 = vmatprep.subr.mxu0 0.0
    %3877 = vmatpush1.msra.mxu0 0.0
    %3878 = vmatprep.subr.mxu0 0.0
    %3879 = vmatpush1.msra.mxu0 0.0
    %3880 = vmatprep.subr.mxu0 0.0
    %3881 = vmatpush1.msra.mxu0 0.0
    %3882 = vmatprep.subr.mxu0 0.0
    %3883 = vmatpush1.msra.mxu0 %v48
    %3884 = vmatprep.subr.mxu0 0.0
    %3885 = vmatpush1.msra.mxu0 %v47
    %3886 = vmatprep.subr.mxu0 0.0
    %3887 = vmatpush1.msra.mxu0 %v46
    %3888 = vmatprep.subr.mxu0 0.0
    %3889 = vmatpush1.msra.mxu0 %v45
    %3890 = vmatprep.subr.mxu0 0.0
    %3891 = vmatpush2.msra.mxu0 0.0
    %3892 = vmatprep.subr.mxu0 0.0
    %3893 = vmatpush2.msra.mxu0 0.0
    %3894 = vmatprep.subr.mxu0 0.0
    %3895 = vmatpush2.msra.mxu0 0.0
    %3896 = vmatprep.subr.mxu0 0.0
    %3897 = vmatpush2.msra.mxu0 0.0
    %3898 = vmatprep.subr.mxu0 0.0
    %3899 = vmatpush2.msra.mxu0 0.0
    %3900 = vmatprep.subr.mxu0 0.0
    %3901 = vmatpush2.msra.mxu0 0.0
    %3902 = vmatprep.subr.mxu0 0.0
    %3903 = vmatpush2.msra.mxu0 0.0
    %3904 = vmatprep.subr.mxu0 0.0
    %3905 = vmatpush2.msra.mxu0 0.0
    %3906 = vmatprep.subr.mxu0 0.0
    %3907 = vmatpush2.msra.mxu0 0.0
    %3908 = vmatprep.subr.mxu0 0.0
    %3909 = vmatpush2.msra.mxu0 0.0
    %3910 = vmatprep.subr.mxu0 0.0
    %3911 = vmatpush2.msra.mxu0 0.0
    %3912 = vmatprep.subr.mxu0 0.0
    %3913 = vmatpush2.msra.mxu0 0.0
    %3914 = vmatprep.subr.mxu0 0.0
    %3915 = vmatpush2.msra.mxu0 0.0
    %3916 = vmatprep.subr.mxu0 0.0
    %3917 = vmatpush2.msra.mxu0 0.0
    %3918 = vmatprep.subr.mxu0 0.0
    %3919 = vmatpush2.msra.mxu0 0.0
    %3920 = vmatprep.subr.mxu0 0.0
    %3921 = vmatpush2.msra.mxu0 0.0
    %3922 = vmatprep.mubr.f32.mxu0 0.0
    %3923 = vmatmul.mubr.f32.gmra.mxu0 %v3856
    %v3924 = vpop.f32.mrf.mxu0
    %v3925 = vadd.f32 %v433, %v3924
    %v3926 = vpop.f32.mrf.mxu0
    %3927 = vdwg.mxu0
    %v3928 = vstv %s3781
    %v3929 = vmul.f32 %v3928, %v3925
    %v3930 = vadd.f32 %v3767, %v3929
    %v3933 = vunpack.c.l.s4 1983009808
    %v3934 = vunpack.c.0.s8 %v3933
    %v3935 = vlaneseq
    %v3936 = vshrl.u32 %v3935, 7
    %v3937 = vsub.s32 %v3934, %v3936
    %v3938 = vrot.slane %v3930, %v3937
    %3939 = vrot.lane.b32.xlu0 %v3938, 40
    %v3940 = vpop.permute.xlu0 %3939
    %3942 = vst.msk [vmem:[#allocation5 + $0x2] sm:$0x3] %vm1333, %v3940
    %s3943 = sadd.s32 %s352, 22
    %s3944 = sld [smem:[#allocation4 + %s3943]]
    %v3945 = vsel %vm354, %v3930, 0
    %3947 = vmatprep.subr.mxu0 0.0
    %3948 = vmatpush1.msra.mxu0 0.0
    %3949 = vmatprep.subr.mxu0 0.0
    %3950 = vmatpush1.msra.mxu0 0.0
    %3951 = vmatprep.subr.mxu0 0.0
    %3952 = vmatpush1.msra.mxu0 0.0
    %3953 = vmatprep.subr.mxu0 0.0
    %3954 = vmatpush1.msra.mxu0 0.0
    %3955 = vmatprep.subr.mxu0 0.0
    %3956 = vmatpush1.msra.mxu0 0.0
    %3957 = vmatprep.subr.mxu0 0.0
    %3958 = vmatpush1.msra.mxu0 0.0
    %3959 = vmatprep.subr.mxu0 0.0
    %3960 = vmatpush1.msra.mxu0 0.0
    %3961 = vmatprep.subr.mxu0 0.0
    %3962 = vmatpush1.msra.mxu0 0.0
    %3963 = vmatprep.subr.mxu0 0.0
    %3964 = vmatpush1.msra.mxu0 0.0
    %3965 = vmatprep.subr.mxu0 0.0
    %3966 = vmatpush1.msra.mxu0 0.0
    %3967 = vmatprep.subr.mxu0 0.0
    %3968 = vmatpush1.msra.mxu0 0.0
    %3969 = vmatprep.subr.mxu0 0.0
    %3970 = vmatpush1.msra.mxu0 0.0
    %3971 = vmatprep.subr.mxu0 0.0
    %3972 = vmatpush1.msra.mxu0 0.0
    %3973 = vmatprep.subr.mxu0 0.0
    %3974 = vmatpush1.msra.mxu0 0.0
    %3975 = vmatprep.subr.mxu0 0.0
    %3976 = vmatpush1.msra.mxu0 0.0
    %3977 = vmatprep.subr.mxu0 0.0
    %3978 = vmatpush1.msra.mxu0 %v42
    %3979 = vmatprep.subr.mxu0 0.0
    %3980 = vmatpush2.msra.mxu0 0.0
    %3981 = vmatprep.subr.mxu0 0.0
    %3982 = vmatpush2.msra.mxu0 0.0
    %3983 = vmatprep.subr.mxu0 0.0
    %3984 = vmatpush2.msra.mxu0 0.0
    %3985 = vmatprep.subr.mxu0 0.0
    %3986 = vmatpush2.msra.mxu0 0.0
    %3987 = vmatprep.subr.mxu0 0.0
    %3988 = vmatpush2.msra.mxu0 0.0
    %3989 = vmatprep.subr.mxu0 0.0
    %3990 = vmatpush2.msra.mxu0 0.0
    %3991 = vmatprep.subr.mxu0 0.0
    %3992 = vmatpush2.msra.mxu0 0.0
    %3993 = vmatprep.subr.mxu0 0.0
    %3994 = vmatpush2.msra.mxu0 0.0
    %3995 = vmatprep.subr.mxu0 0.0
    %3996 = vmatpush2.msra.mxu0 0.0
    %3997 = vmatprep.subr.mxu0 0.0
    %3998 = vmatpush2.msra.mxu0 0.0
    %3999 = vmatprep.subr.mxu0 0.0
    %4000 = vmatpush2.msra.mxu0 0.0
    %4001 = vmatprep.subr.mxu0 0.0
    %4002 = vmatpush2.msra.mxu0 0.0
    %4003 = vmatprep.subr.mxu0 0.0
    %4004 = vmatpush2.msra.mxu0 0.0
    %4005 = vmatprep.subr.mxu0 0.0
    %4006 = vmatpush2.msra.mxu0 0.0
    %4007 = vmatprep.subr.mxu0 0.0
    %4008 = vmatpush2.msra.mxu0 0.0
    %4009 = vmatprep.subr.mxu0 0.0
    %4010 = vmatpush2.msra.mxu0 0.0
    %4011 = vmatprep.mubr.f32.mxu0 0.0
    %4012 = vmatmul.mubr.f32.gmra.mxu0 %v3945
    %v4013 = vpop.f32.mrf.mxu0
    %v4014 = vadd.f32 %v201, %v4013
    %v4015 = vpop.f32.mrf.mxu0
    %4016 = vdwg.mxu0
    %v4017 = vtanh.pop %v4014
    %v4019 = vsel %vm435, %v4017, 0
    %4021 = vmatprep.subr.mxu0 0.0
    %4022 = vmatpush1.msra.mxu0 0.0
    %4023 = vmatprep.subr.mxu0 0.0
    %4024 = vmatpush1.msra.mxu0 0.0
    %4025 = vmatprep.subr.mxu0 0.0
    %4026 = vmatpush1.msra.mxu0 0.0
    %4027 = vmatprep.subr.mxu0 0.0
    %4028 = vmatpush1.msra.mxu0 0.0
    %4029 = vmatprep.subr.mxu0 0.0
    %4030 = vmatpush1.msra.mxu0 0.0
    %4031 = vmatprep.subr.mxu0 0.0
    %4032 = vmatpush1.msra.mxu0 0.0
    %4033 = vmatprep.subr.mxu0 0.0
    %4034 = vmatpush1.msra.mxu0 0.0
    %4035 = vmatprep.subr.mxu0 0.0
    %4036 = vmatpush1.msra.mxu0 0.0
    %4037 = vmatprep.subr.mxu0 0.0
    %4038 = vmatpush1.msra.mxu0 0.0
    %4039 = vmatprep.subr.mxu0 0.0
    %4040 = vmatpush1.msra.mxu0 0.0
    %4041 = vmatprep.subr.mxu0 0.0
    %4042 = vmatpush1.msra.mxu0 0.0
    %4043 = vmatprep.subr.mxu0 0.0
    %4044 = vmatpush1.msra.mxu0 0.0
    %4045 = vmatprep.subr.mxu0 0.0
    %4046 = vmatpush1.msra.mxu0 %v48
    %4047 = vmatprep.subr.mxu0 0.0
    %4048 = vmatpush1.msra.mxu0 %v47
    %4049 = vmatprep.subr.mxu0 0.0
    %4050 = vmatpush1.msra.mxu0 %v46
    %4051 = vmatprep.subr.mxu0 0.0
    %4052 = vmatpush1.msra.mxu0 %v45
    %4053 = vmatprep.subr.mxu0 0.0
    %4054 = vmatpush2.msra.mxu0 0.0
    %4055 = vmatprep.subr.mxu0 0.0
    %4056 = vmatpush2.msra.mxu0 0.0
    %4057 = vmatprep.subr.mxu0 0.0
    %4058 = vmatpush2.msra.mxu0 0.0
    %4059 = vmatprep.subr.mxu0 0.0
    %4060 = vmatpush2.msra.mxu0 0.0
    %4061 = vmatprep.subr.mxu0 0.0
    %4062 = vmatpush2.msra.mxu0 0.0
    %4063 = vmatprep.subr.mxu0 0.0
    %4064 = vmatpush2.msra.mxu0 0.0
    %4065 = vmatprep.subr.mxu0 0.0
    %4066 = vmatpush2.msra.mxu0 0.0
    %4067 = vmatprep.subr.mxu0 0.0
    %4068 = vmatpush2.msra.mxu0 0.0
    %4069 = vmatprep.subr.mxu0 0.0
    %4070 = vmatpush2.msra.mxu0 0.0
    %4071 = vmatprep.subr.mxu0 0.0
    %4072 = vmatpush2.msra.mxu0 0.0
    %4073 = vmatprep.subr.mxu0 0.0
    %4074 = vmatpush2.msra.mxu0 0.0
    %4075 = vmatprep.subr.mxu0 0.0
    %4076 = vmatpush2.msra.mxu0 0.0
    %4077 = vmatprep.subr.mxu0 0.0
    %4078 = vmatpush2.msra.mxu0 0.0
    %4079 = vmatprep.subr.mxu0 0.0
    %4080 = vmatpush2.msra.mxu0 0.0
    %4081 = vmatprep.subr.mxu0 0.0
    %4082 = vmatpush2.msra.mxu0 0.0
    %4083 = vmatprep.subr.mxu0 0.0
    %4084 = vmatpush2.msra.mxu0 0.0
    %4085 = vmatprep.mubr.f32.mxu0 0.0
    %4086 = vmatmul.mubr.f32.gmra.mxu0 %v4019
    %v4087 = vpop.f32.mrf.mxu0
    %v4088 = vadd.f32 %v433, %v4087
    %v4089 = vpop.f32.mrf.mxu0
    %4090 = vdwg.mxu0
    %v4091 = vstv %s3944
    %v4092 = vmul.f32 %v4091, %v4088
    %v4093 = vadd.f32 %v3930, %v4092
    %v4096 = vunpack.c.l.s4 1983009808
    %v4097 = vunpack.c.0.s8 %v4096
    %v4098 = vlaneseq
    %v4099 = vshrl.u32 %v4098, 7
    %v4100 = vsub.s32 %v4097, %v4099
    %v4101 = vrot.slane %v4093, %v4100
    %4102 = vrot.lane.b32.xlu0 %v4101, 48
    %v4103 = vpop.permute.xlu0 %4102
    %4105 = vst.msk [vmem:[#allocation5 + $0x2] sm:$0x3] %vm1497, %v4103
    %s4106 = sadd.s32 %s352, 23
    %s4107 = sld [smem:[#allocation4 + %s4106]]
    %v4108 = vsel %vm354, %v4093, 0
    %4110 = vmatprep.subr.mxu0 0.0
    %4111 = vmatpush1.msra.mxu0 0.0
    %4112 = vmatprep.subr.mxu0 0.0
    %4113 = vmatpush1.msra.mxu0 0.0
    %4114 = vmatprep.subr.mxu0 0.0
    %4115 = vmatpush1.msra.mxu0 0.0
    %4116 = vmatprep.subr.mxu0 0.0
    %4117 = vmatpush1.msra.mxu0 0.0
    %4118 = vmatprep.subr.mxu0 0.0
    %4119 = vmatpush1.msra.mxu0 0.0
    %4120 = vmatprep.subr.mxu0 0.0
    %4121 = vmatpush1.msra.mxu0 0.0
    %4122 = vmatprep.subr.mxu0 0.0
    %4123 = vmatpush1.msra.mxu0 0.0
    %4124 = vmatprep.subr.mxu0 0.0
    %4125 = vmatpush1.msra.mxu0 0.0
    %4126 = vmatprep.subr.mxu0 0.0
    %4127 = vmatpush1.msra.mxu0 0.0
    %4128 = vmatprep.subr.mxu0 0.0
    %4129 = vmatpush1.msra.mxu0 0.0
    %4130 = vmatprep.subr.mxu0 0.0
    %4131 = vmatpush1.msra.mxu0 0.0
    %4132 = vmatprep.subr.mxu0 0.0
    %4133 = vmatpush1.msra.mxu0 0.0
    %4134 = vmatprep.subr.mxu0 0.0
    %4135 = vmatpush1.msra.mxu0 0.0
    %4136 = vmatprep.subr.mxu0 0.0
    %4137 = vmatpush1.msra.mxu0 0.0
    %4138 = vmatprep.subr.mxu0 0.0
    %4139 = vmatpush1.msra.mxu0 0.0
    %4140 = vmatprep.subr.mxu0 0.0
    %4141 = vmatpush1.msra.mxu0 %v42
    %4142 = vmatprep.subr.mxu0 0.0
    %4143 = vmatpush2.msra.mxu0 0.0
    %4144 = vmatprep.subr.mxu0 0.0
    %4145 = vmatpush2.msra.mxu0 0.0
    %4146 = vmatprep.subr.mxu0 0.0
    %4147 = vmatpush2.msra.mxu0 0.0
    %4148 = vmatprep.subr.mxu0 0.0
    %4149 = vmatpush2.msra.mxu0 0.0
    %4150 = vmatprep.subr.mxu0 0.0
    %4151 = vmatpush2.msra.mxu0 0.0
    %4152 = vmatprep.subr.mxu0 0.0
    %4153 = vmatpush2.msra.mxu0 0.0
    %4154 = vmatprep.subr.mxu0 0.0
    %4155 = vmatpush2.msra.mxu0 0.0
    %4156 = vmatprep.subr.mxu0 0.0
    %4157 = vmatpush2.msra.mxu0 0.0
    %4158 = vmatprep.subr.mxu0 0.0
    %4159 = vmatpush2.msra.mxu0 0.0
    %4160 = vmatprep.subr.mxu0 0.0
    %4161 = vmatpush2.msra.mxu0 0.0
    %4162 = vmatprep.subr.mxu0 0.0
    %4163 = vmatpush2.msra.mxu0 0.0
    %4164 = vmatprep.subr.mxu0 0.0
    %4165 = vmatpush2.msra.mxu0 0.0
    %4166 = vmatprep.subr.mxu0 0.0
    %4167 = vmatpush2.msra.mxu0 0.0
    %4168 = vmatprep.subr.mxu0 0.0
    %4169 = vmatpush2.msra.mxu0 0.0
    %4170 = vmatprep.subr.mxu0 0.0
    %4171 = vmatpush2.msra.mxu0 0.0
    %4172 = vmatprep.subr.mxu0 0.0
    %4173 = vmatpush2.msra.mxu0 0.0
    %4174 = vmatprep.mubr.f32.mxu0 0.0
    %4175 = vmatmul.mubr.f32.gmra.mxu0 %v4108
    %v4176 = vpop.f32.mrf.mxu0
    %v4177 = vadd.f32 %v207, %v4176
    %v4178 = vpop.f32.mrf.mxu0
    %4179 = vdwg.mxu0
    %v4180 = vtanh.pop %v4177
    %v4182 = vsel %vm435, %v4180, 0
    %4184 = vmatprep.subr.mxu0 0.0
    %4185 = vmatpush1.msra.mxu0 0.0
    %4186 = vmatprep.subr.mxu0 0.0
    %4187 = vmatpush1.msra.mxu0 0.0
    %4188 = vmatprep.subr.mxu0 0.0
    %4189 = vmatpush1.msra.mxu0 0.0
    %4190 = vmatprep.subr.mxu0 0.0
    %4191 = vmatpush1.msra.mxu0 0.0
    %4192 = vmatprep.subr.mxu0 0.0
    %4193 = vmatpush1.msra.mxu0 0.0
    %4194 = vmatprep.subr.mxu0 0.0
    %4195 = vmatpush1.msra.mxu0 0.0
    %4196 = vmatprep.subr.mxu0 0.0
    %4197 = vmatpush1.msra.mxu0 0.0
    %4198 = vmatprep.subr.mxu0 0.0
    %4199 = vmatpush1.msra.mxu0 0.0
    %4200 = vmatprep.subr.mxu0 0.0
    %4201 = vmatpush1.msra.mxu0 0.0
    %4202 = vmatprep.subr.mxu0 0.0
    %4203 = vmatpush1.msra.mxu0 0.0
    %4204 = vmatprep.subr.mxu0 0.0
    %4205 = vmatpush1.msra.mxu0 0.0
    %4206 = vmatprep.subr.mxu0 0.0
    %4207 = vmatpush1.msra.mxu0 0.0
    %4208 = vmatprep.subr.mxu0 0.0
    %4209 = vmatpush1.msra.mxu0 %v48
    %4210 = vmatprep.subr.mxu0 0.0
    %4211 = vmatpush1.msra.mxu0 %v47
    %4212 = vmatprep.subr.mxu0 0.0
    %4213 = vmatpush1.msra.mxu0 %v46
    %4214 = vmatprep.subr.mxu0 0.0
    %4215 = vmatpush1.msra.mxu0 %v45
    %4216 = vmatprep.subr.mxu0 0.0
    %4217 = vmatpush2.msra.mxu0 0.0
    %4218 = vmatprep.subr.mxu0 0.0
    %4219 = vmatpush2.msra.mxu0 0.0
    %4220 = vmatprep.subr.mxu0 0.0
    %4221 = vmatpush2.msra.mxu0 0.0
    %4222 = vmatprep.subr.mxu0 0.0
    %4223 = vmatpush2.msra.mxu0 0.0
    %4224 = vmatprep.subr.mxu0 0.0
    %4225 = vmatpush2.msra.mxu0 0.0
    %4226 = vmatprep.subr.mxu0 0.0
    %4227 = vmatpush2.msra.mxu0 0.0
    %4228 = vmatprep.subr.mxu0 0.0
    %4229 = vmatpush2.msra.mxu0 0.0
    %4230 = vmatprep.subr.mxu0 0.0
    %4231 = vmatpush2.msra.mxu0 0.0
    %4232 = vmatprep.subr.mxu0 0.0
    %4233 = vmatpush2.msra.mxu0 0.0
    %4234 = vmatprep.subr.mxu0 0.0
    %4235 = vmatpush2.msra.mxu0 0.0
    %4236 = vmatprep.subr.mxu0 0.0
    %4237 = vmatpush2.msra.mxu0 0.0
    %4238 = vmatprep.subr.mxu0 0.0
    %4239 = vmatpush2.msra.mxu0 0.0
    %4240 = vmatprep.subr.mxu0 0.0
    %4241 = vmatpush2.msra.mxu0 0.0
    %4242 = vmatprep.subr.mxu0 0.0
    %4243 = vmatpush2.msra.mxu0 0.0
    %4244 = vmatprep.subr.mxu0 0.0
    %4245 = vmatpush2.msra.mxu0 0.0
    %4246 = vmatprep.subr.mxu0 0.0
    %4247 = vmatpush2.msra.mxu0 0.0
    %4248 = vmatprep.mubr.f32.mxu0 0.0
    %4249 = vmatmul.mubr.f32.gmra.mxu0 %v4182
    %v4250 = vpop.f32.mrf.mxu0
    %v4251 = vadd.f32 %v433, %v4250
    %v4252 = vpop.f32.mrf.mxu0
    %4253 = vdwg.mxu0
    %v4254 = vstv %s4107
    %v4255 = vmul.f32 %v4254, %v4251
    %v4256 = vadd.f32 %v4093, %v4255
    %v4259 = vunpack.c.l.s4 1983009808
    %v4260 = vunpack.c.0.s8 %v4259
    %v4261 = vlaneseq
    %v4262 = vshrl.u32 %v4261, 7
    %v4263 = vsub.s32 %v4260, %v4262
    %v4264 = vrot.slane %v4256, %v4263
    %4265 = vrot.lane.b32.xlu0 %v4264, 56
    %v4266 = vpop.permute.xlu0 %4265
    %4268 = vst.msk [vmem:[#allocation5 + $0x2] sm:$0x3] %vm1661, %v4266
    %s4269 = sadd.s32 %s352, 24
    %s4270 = sld [smem:[#allocation4 + %s4269]]
    %v4271 = vsel %vm354, %v4256, 0
    %4273 = vmatprep.subr.mxu0 0.0
    %4274 = vmatpush1.msra.mxu0 0.0
    %4275 = vmatprep.subr.mxu0 0.0
    %4276 = vmatpush1.msra.mxu0 0.0
    %4277 = vmatprep.subr.mxu0 0.0
    %4278 = vmatpush1.msra.mxu0 0.0
    %4279 = vmatprep.subr.mxu0 0.0
    %4280 = vmatpush1.msra.mxu0 0.0
    %4281 = vmatprep.subr.mxu0 0.0
    %4282 = vmatpush1.msra.mxu0 0.0
    %4283 = vmatprep.subr.mxu0 0.0
    %4284 = vmatpush1.msra.mxu0 0.0
    %4285 = vmatprep.subr.mxu0 0.0
    %4286 = vmatpush1.msra.mxu0 0.0
    %4287 = vmatprep.subr.mxu0 0.0
    %4288 = vmatpush1.msra.mxu0 0.0
    %4289 = vmatprep.subr.mxu0 0.0
    %4290 = vmatpush1.msra.mxu0 0.0
    %4291 = vmatprep.subr.mxu0 0.0
    %4292 = vmatpush1.msra.mxu0 0.0
    %4293 = vmatprep.subr.mxu0 0.0
    %4294 = vmatpush1.msra.mxu0 0.0
    %4295 = vmatprep.subr.mxu0 0.0
    %4296 = vmatpush1.msra.mxu0 0.0
    %4297 = vmatprep.subr.mxu0 0.0
    %4298 = vmatpush1.msra.mxu0 0.0
    %4299 = vmatprep.subr.mxu0 0.0
    %4300 = vmatpush1.msra.mxu0 0.0
    %4301 = vmatprep.subr.mxu0 0.0
    %4302 = vmatpush1.msra.mxu0 0.0
    %4303 = vmatprep.subr.mxu0 0.0
    %4304 = vmatpush1.msra.mxu0 %v42
    %4305 = vmatprep.subr.mxu0 0.0
    %4306 = vmatpush2.msra.mxu0 0.0
    %4307 = vmatprep.subr.mxu0 0.0
    %4308 = vmatpush2.msra.mxu0 0.0
    %4309 = vmatprep.subr.mxu0 0.0
    %4310 = vmatpush2.msra.mxu0 0.0
    %4311 = vmatprep.subr.mxu0 0.0
    %4312 = vmatpush2.msra.mxu0 0.0
    %4313 = vmatprep.subr.mxu0 0.0
    %4314 = vmatpush2.msra.mxu0 0.0
    %4315 = vmatprep.subr.mxu0 0.0
    %4316 = vmatpush2.msra.mxu0 0.0
    %4317 = vmatprep.subr.mxu0 0.0
    %4318 = vmatpush2.msra.mxu0 0.0
    %4319 = vmatprep.subr.mxu0 0.0
    %4320 = vmatpush2.msra.mxu0 0.0
    %4321 = vmatprep.subr.mxu0 0.0
    %4322 = vmatpush2.msra.mxu0 0.0
    %4323 = vmatprep.subr.mxu0 0.0
    %4324 = vmatpush2.msra.mxu0 0.0
    %4325 = vmatprep.subr.mxu0 0.0
    %4326 = vmatpush2.msra.mxu0 0.0
    %4327 = vmatprep.subr.mxu0 0.0
    %4328 = vmatpush2.msra.mxu0 0.0
    %4329 = vmatprep.subr.mxu0 0.0
    %4330 = vmatpush2.msra.mxu0 0.0
    %4331 = vmatprep.subr.mxu0 0.0
    %4332 = vmatpush2.msra.mxu0 0.0
    %4333 = vmatprep.subr.mxu0 0.0
    %4334 = vmatpush2.msra.mxu0 0.0
    %4335 = vmatprep.subr.mxu0 0.0
    %4336 = vmatpush2.msra.mxu0 0.0
    %4337 = vmatprep.mubr.f32.mxu0 0.0
    %4338 = vmatmul.mubr.f32.gmra.mxu0 %v4271
    %v4339 = vpop.f32.mrf.mxu0
    %v4340 = vadd.f32 %v213, %v4339
    %v4341 = vpop.f32.mrf.mxu0
    %4342 = vdwg.mxu0
    %v4343 = vtanh.pop %v4340
    %v4345 = vsel %vm435, %v4343, 0
    %4347 = vmatprep.subr.mxu0 0.0
    %4348 = vmatpush1.msra.mxu0 0.0
    %4349 = vmatprep.subr.mxu0 0.0
    %4350 = vmatpush1.msra.mxu0 0.0
    %4351 = vmatprep.subr.mxu0 0.0
    %4352 = vmatpush1.msra.mxu0 0.0
    %4353 = vmatprep.subr.mxu0 0.0
    %4354 = vmatpush1.msra.mxu0 0.0
    %4355 = vmatprep.subr.mxu0 0.0
    %4356 = vmatpush1.msra.mxu0 0.0
    %4357 = vmatprep.subr.mxu0 0.0
    %4358 = vmatpush1.msra.mxu0 0.0
    %4359 = vmatprep.subr.mxu0 0.0
    %4360 = vmatpush1.msra.mxu0 0.0
    %4361 = vmatprep.subr.mxu0 0.0
    %4362 = vmatpush1.msra.mxu0 0.0
    %4363 = vmatprep.subr.mxu0 0.0
    %4364 = vmatpush1.msra.mxu0 0.0
    %4365 = vmatprep.subr.mxu0 0.0
    %4366 = vmatpush1.msra.mxu0 0.0
    %4367 = vmatprep.subr.mxu0 0.0
    %4368 = vmatpush1.msra.mxu0 0.0
    %4369 = vmatprep.subr.mxu0 0.0
    %4370 = vmatpush1.msra.mxu0 0.0
    %4371 = vmatprep.subr.mxu0 0.0
    %4372 = vmatpush1.msra.mxu0 %v48
    %4373 = vmatprep.subr.mxu0 0.0
    %4374 = vmatpush1.msra.mxu0 %v47
    %4375 = vmatprep.subr.mxu0 0.0
    %4376 = vmatpush1.msra.mxu0 %v46
    %4377 = vmatprep.subr.mxu0 0.0
    %4378 = vmatpush1.msra.mxu0 %v45
    %4379 = vmatprep.subr.mxu0 0.0
    %4380 = vmatpush2.msra.mxu0 0.0
    %4381 = vmatprep.subr.mxu0 0.0
    %4382 = vmatpush2.msra.mxu0 0.0
    %4383 = vmatprep.subr.mxu0 0.0
    %4384 = vmatpush2.msra.mxu0 0.0
    %4385 = vmatprep.subr.mxu0 0.0
    %4386 = vmatpush2.msra.mxu0 0.0
    %4387 = vmatprep.subr.mxu0 0.0
    %4388 = vmatpush2.msra.mxu0 0.0
    %4389 = vmatprep.subr.mxu0 0.0
    %4390 = vmatpush2.msra.mxu0 0.0
    %4391 = vmatprep.subr.mxu0 0.0
    %4392 = vmatpush2.msra.mxu0 0.0
    %4393 = vmatprep.subr.mxu0 0.0
    %4394 = vmatpush2.msra.mxu0 0.0
    %4395 = vmatprep.subr.mxu0 0.0
    %4396 = vmatpush2.msra.mxu0 0.0
    %4397 = vmatprep.subr.mxu0 0.0
    %4398 = vmatpush2.msra.mxu0 0.0
    %4399 = vmatprep.subr.mxu0 0.0
    %4400 = vmatpush2.msra.mxu0 0.0
    %4401 = vmatprep.subr.mxu0 0.0
    %4402 = vmatpush2.msra.mxu0 0.0
    %4403 = vmatprep.subr.mxu0 0.0
    %4404 = vmatpush2.msra.mxu0 0.0
    %4405 = vmatprep.subr.mxu0 0.0
    %4406 = vmatpush2.msra.mxu0 0.0
    %4407 = vmatprep.subr.mxu0 0.0
    %4408 = vmatpush2.msra.mxu0 0.0
    %4409 = vmatprep.subr.mxu0 0.0
    %4410 = vmatpush2.msra.mxu0 0.0
    %4411 = vmatprep.mubr.f32.mxu0 0.0
    %4412 = vmatmul.mubr.f32.gmra.mxu0 %v4345
    %v4413 = vpop.f32.mrf.mxu0
    %v4414 = vadd.f32 %v433, %v4413
    %v4415 = vpop.f32.mrf.mxu0
    %4416 = vdwg.mxu0
    %v4417 = vstv %s4270
    %v4418 = vmul.f32 %v4417, %v4414
    %v4419 = vadd.f32 %v4256, %v4418
    %v4422 = vunpack.c.l.s4 1983009808
    %v4423 = vunpack.c.0.s8 %v4422
    %v4424 = vlaneseq
    %v4425 = vshrl.u32 %v4424, 7
    %v4426 = vsub.s32 %v4423, %v4425
    %v4427 = vrot.slane %v4419, %v4426
    %4428 = vrot.lane.b32.xlu0 %v4427, 64
    %v4429 = vpop.permute.xlu0 %4428
    %4431 = vst.msk [vmem:[#allocation5 + $0x2] sm:$0x3] %vm1825, %v4429
    %s4432 = sadd.s32 %s352, 25
    %s4433 = sld [smem:[#allocation4 + %s4432]]
    %v4434 = vsel %vm354, %v4419, 0
    %4436 = vmatprep.subr.mxu0 0.0
    %4437 = vmatpush1.msra.mxu0 0.0
    %4438 = vmatprep.subr.mxu0 0.0
    %4439 = vmatpush1.msra.mxu0 0.0
    %4440 = vmatprep.subr.mxu0 0.0
    %4441 = vmatpush1.msra.mxu0 0.0
    %4442 = vmatprep.subr.mxu0 0.0
    %4443 = vmatpush1.msra.mxu0 0.0
    %4444 = vmatprep.subr.mxu0 0.0
    %4445 = vmatpush1.msra.mxu0 0.0
    %4446 = vmatprep.subr.mxu0 0.0
    %4447 = vmatpush1.msra.mxu0 0.0
    %4448 = vmatprep.subr.mxu0 0.0
    %4449 = vmatpush1.msra.mxu0 0.0
    %4450 = vmatprep.subr.mxu0 0.0
    %4451 = vmatpush1.msra.mxu0 0.0
    %4452 = vmatprep.subr.mxu0 0.0
    %4453 = vmatpush1.msra.mxu0 0.0
    %4454 = vmatprep.subr.mxu0 0.0
    %4455 = vmatpush1.msra.mxu0 0.0
    %4456 = vmatprep.subr.mxu0 0.0
    %4457 = vmatpush1.msra.mxu0 0.0
    %4458 = vmatprep.subr.mxu0 0.0
    %4459 = vmatpush1.msra.mxu0 0.0
    %4460 = vmatprep.subr.mxu0 0.0
    %4461 = vmatpush1.msra.mxu0 0.0
    %4462 = vmatprep.subr.mxu0 0.0
    %4463 = vmatpush1.msra.mxu0 0.0
    %4464 = vmatprep.subr.mxu0 0.0
    %4465 = vmatpush1.msra.mxu0 0.0
    %4466 = vmatprep.subr.mxu0 0.0
    %4467 = vmatpush1.msra.mxu0 %v42
    %4468 = vmatprep.subr.mxu0 0.0
    %4469 = vmatpush2.msra.mxu0 0.0
    %4470 = vmatprep.subr.mxu0 0.0
    %4471 = vmatpush2.msra.mxu0 0.0
    %4472 = vmatprep.subr.mxu0 0.0
    %4473 = vmatpush2.msra.mxu0 0.0
    %4474 = vmatprep.subr.mxu0 0.0
    %4475 = vmatpush2.msra.mxu0 0.0
    %4476 = vmatprep.subr.mxu0 0.0
    %4477 = vmatpush2.msra.mxu0 0.0
    %4478 = vmatprep.subr.mxu0 0.0
    %4479 = vmatpush2.msra.mxu0 0.0
    %4480 = vmatprep.subr.mxu0 0.0
    %4481 = vmatpush2.msra.mxu0 0.0
    %4482 = vmatprep.subr.mxu0 0.0
    %4483 = vmatpush2.msra.mxu0 0.0
    %4484 = vmatprep.subr.mxu0 0.0
    %4485 = vmatpush2.msra.mxu0 0.0
    %4486 = vmatprep.subr.mxu0 0.0
    %4487 = vmatpush2.msra.mxu0 0.0
    %4488 = vmatprep.subr.mxu0 0.0
    %4489 = vmatpush2.msra.mxu0 0.0
    %4490 = vmatprep.subr.mxu0 0.0
    %4491 = vmatpush2.msra.mxu0 0.0
    %4492 = vmatprep.subr.mxu0 0.0
    %4493 = vmatpush2.msra.mxu0 0.0
    %4494 = vmatprep.subr.mxu0 0.0
    %4495 = vmatpush2.msra.mxu0 0.0
    %4496 = vmatprep.subr.mxu0 0.0
    %4497 = vmatpush2.msra.mxu0 0.0
    %4498 = vmatprep.subr.mxu0 0.0
    %4499 = vmatpush2.msra.mxu0 0.0
    %4500 = vmatprep.mubr.f32.mxu0 0.0
    %4501 = vmatmul.mubr.f32.gmra.mxu0 %v4434
    %v4502 = vpop.f32.mrf.mxu0
    %v4503 = vadd.f32 %v219, %v4502
    %v4504 = vpop.f32.mrf.mxu0
    %4505 = vdwg.mxu0
    %v4506 = vtanh.pop %v4503
    %v4508 = vsel %vm435, %v4506, 0
    %4510 = vmatprep.subr.mxu0 0.0
    %4511 = vmatpush1.msra.mxu0 0.0
    %4512 = vmatprep.subr.mxu0 0.0
    %4513 = vmatpush1.msra.mxu0 0.0
    %4514 = vmatprep.subr.mxu0 0.0
    %4515 = vmatpush1.msra.mxu0 0.0
    %4516 = vmatprep.subr.mxu0 0.0
    %4517 = vmatpush1.msra.mxu0 0.0
    %4518 = vmatprep.subr.mxu0 0.0
    %4519 = vmatpush1.msra.mxu0 0.0
    %4520 = vmatprep.subr.mxu0 0.0
    %4521 = vmatpush1.msra.mxu0 0.0
    %4522 = vmatprep.subr.mxu0 0.0
    %4523 = vmatpush1.msra.mxu0 0.0
    %4524 = vmatprep.subr.mxu0 0.0
    %4525 = vmatpush1.msra.mxu0 0.0
    %4526 = vmatprep.subr.mxu0 0.0
    %4527 = vmatpush1.msra.mxu0 0.0
    %4528 = vmatprep.subr.mxu0 0.0
    %4529 = vmatpush1.msra.mxu0 0.0
    %4530 = vmatprep.subr.mxu0 0.0
    %4531 = vmatpush1.msra.mxu0 0.0
    %4532 = vmatprep.subr.mxu0 0.0
    %4533 = vmatpush1.msra.mxu0 0.0
    %4534 = vmatprep.subr.mxu0 0.0
    %4535 = vmatpush1.msra.mxu0 %v48
    %4536 = vmatprep.subr.mxu0 0.0
    %4537 = vmatpush1.msra.mxu0 %v47
    %4538 = vmatprep.subr.mxu0 0.0
    %4539 = vmatpush1.msra.mxu0 %v46
    %4540 = vmatprep.subr.mxu0 0.0
    %4541 = vmatpush1.msra.mxu0 %v45
    %4542 = vmatprep.subr.mxu0 0.0
    %4543 = vmatpush2.msra.mxu0 0.0
    %4544 = vmatprep.subr.mxu0 0.0
    %4545 = vmatpush2.msra.mxu0 0.0
    %4546 = vmatprep.subr.mxu0 0.0
    %4547 = vmatpush2.msra.mxu0 0.0
    %4548 = vmatprep.subr.mxu0 0.0
    %4549 = vmatpush2.msra.mxu0 0.0
    %4550 = vmatprep.subr.mxu0 0.0
    %4551 = vmatpush2.msra.mxu0 0.0
    %4552 = vmatprep.subr.mxu0 0.0
    %4553 = vmatpush2.msra.mxu0 0.0
    %4554 = vmatprep.subr.mxu0 0.0
    %4555 = vmatpush2.msra.mxu0 0.0
    %4556 = vmatprep.subr.mxu0 0.0
    %4557 = vmatpush2.msra.mxu0 0.0
    %4558 = vmatprep.subr.mxu0 0.0
    %4559 = vmatpush2.msra.mxu0 0.0
    %4560 = vmatprep.subr.mxu0 0.0
    %4561 = vmatpush2.msra.mxu0 0.0
    %4562 = vmatprep.subr.mxu0 0.0
    %4563 = vmatpush2.msra.mxu0 0.0
    %4564 = vmatprep.subr.mxu0 0.0
    %4565 = vmatpush2.msra.mxu0 0.0
    %4566 = vmatprep.subr.mxu0 0.0
    %4567 = vmatpush2.msra.mxu0 0.0
    %4568 = vmatprep.subr.mxu0 0.0
    %4569 = vmatpush2.msra.mxu0 0.0
    %4570 = vmatprep.subr.mxu0 0.0
    %4571 = vmatpush2.msra.mxu0 0.0
    %4572 = vmatprep.subr.mxu0 0.0
    %4573 = vmatpush2.msra.mxu0 0.0
    %4574 = vmatprep.mubr.f32.mxu0 0.0
    %4575 = vmatmul.mubr.f32.gmra.mxu0 %v4508
    %v4576 = vpop.f32.mrf.mxu0
    %v4577 = vadd.f32 %v433, %v4576
    %v4578 = vpop.f32.mrf.mxu0
    %4579 = vdwg.mxu0
    %v4580 = vstv %s4433
    %v4581 = vmul.f32 %v4580, %v4577
    %v4582 = vadd.f32 %v4419, %v4581
    %v4585 = vunpack.c.l.s4 1983009808
    %v4586 = vunpack.c.0.s8 %v4585
    %v4587 = vlaneseq
    %v4588 = vshrl.u32 %v4587, 7
    %v4589 = vsub.s32 %v4586, %v4588
    %v4590 = vrot.slane %v4582, %v4589
    %4591 = vrot.lane.b32.xlu0 %v4590, 72
    %v4592 = vpop.permute.xlu0 %4591
    %4594 = vst.msk [vmem:[#allocation5 + $0x2] sm:$0x3] %vm1989, %v4592
    %s4595 = sadd.s32 %s352, 26
    %s4596 = sld [smem:[#allocation4 + %s4595]]
    %v4597 = vsel %vm354, %v4582, 0
    %4599 = vmatprep.subr.mxu0 0.0
    %4600 = vmatpush1.msra.mxu0 0.0
    %4601 = vmatprep.subr.mxu0 0.0
    %4602 = vmatpush1.msra.mxu0 0.0
    %4603 = vmatprep.subr.mxu0 0.0
    %4604 = vmatpush1.msra.mxu0 0.0
    %4605 = vmatprep.subr.mxu0 0.0
    %4606 = vmatpush1.msra.mxu0 0.0
    %4607 = vmatprep.subr.mxu0 0.0
    %4608 = vmatpush1.msra.mxu0 0.0
    %4609 = vmatprep.subr.mxu0 0.0
    %4610 = vmatpush1.msra.mxu0 0.0
    %4611 = vmatprep.subr.mxu0 0.0
    %4612 = vmatpush1.msra.mxu0 0.0
    %4613 = vmatprep.subr.mxu0 0.0
    %4614 = vmatpush1.msra.mxu0 0.0
    %4615 = vmatprep.subr.mxu0 0.0
    %4616 = vmatpush1.msra.mxu0 0.0
    %4617 = vmatprep.subr.mxu0 0.0
    %4618 = vmatpush1.msra.mxu0 0.0
    %4619 = vmatprep.subr.mxu0 0.0
    %4620 = vmatpush1.msra.mxu0 0.0
    %4621 = vmatprep.subr.mxu0 0.0
    %4622 = vmatpush1.msra.mxu0 0.0
    %4623 = vmatprep.subr.mxu0 0.0
    %4624 = vmatpush1.msra.mxu0 0.0
    %4625 = vmatprep.subr.mxu0 0.0
    %4626 = vmatpush1.msra.mxu0 0.0
    %4627 = vmatprep.subr.mxu0 0.0
    %4628 = vmatpush1.msra.mxu0 0.0
    %4629 = vmatprep.subr.mxu0 0.0
    %4630 = vmatpush1.msra.mxu0 %v42
    %4631 = vmatprep.subr.mxu0 0.0
    %4632 = vmatpush2.msra.mxu0 0.0
    %4633 = vmatprep.subr.mxu0 0.0
    %4634 = vmatpush2.msra.mxu0 0.0
    %4635 = vmatprep.subr.mxu0 0.0
    %4636 = vmatpush2.msra.mxu0 0.0
    %4637 = vmatprep.subr.mxu0 0.0
    %4638 = vmatpush2.msra.mxu0 0.0
    %4639 = vmatprep.subr.mxu0 0.0
    %4640 = vmatpush2.msra.mxu0 0.0
    %4641 = vmatprep.subr.mxu0 0.0
    %4642 = vmatpush2.msra.mxu0 0.0
    %4643 = vmatprep.subr.mxu0 0.0
    %4644 = vmatpush2.msra.mxu0 0.0
    %4645 = vmatprep.subr.mxu0 0.0
    %4646 = vmatpush2.msra.mxu0 0.0
    %4647 = vmatprep.subr.mxu0 0.0
    %4648 = vmatpush2.msra.mxu0 0.0
    %4649 = vmatprep.subr.mxu0 0.0
    %4650 = vmatpush2.msra.mxu0 0.0
    %4651 = vmatprep.subr.mxu0 0.0
    %4652 = vmatpush2.msra.mxu0 0.0
    %4653 = vmatprep.subr.mxu0 0.0
    %4654 = vmatpush2.msra.mxu0 0.0
    %4655 = vmatprep.subr.mxu0 0.0
    %4656 = vmatpush2.msra.mxu0 0.0
    %4657 = vmatprep.subr.mxu0 0.0
    %4658 = vmatpush2.msra.mxu0 0.0
    %4659 = vmatprep.subr.mxu0 0.0
    %4660 = vmatpush2.msra.mxu0 0.0
    %4661 = vmatprep.subr.mxu0 0.0
    %4662 = vmatpush2.msra.mxu0 0.0
    %4663 = vmatprep.mubr.f32.mxu0 0.0
    %4664 = vmatmul.mubr.f32.gmra.mxu0 %v4597
    %v4665 = vpop.f32.mrf.mxu0
    %v4666 = vadd.f32 %v225, %v4665
    %v4667 = vpop.f32.mrf.mxu0
    %4668 = vdwg.mxu0
    %v4669 = vtanh.pop %v4666
    %v4671 = vsel %vm435, %v4669, 0
    %4673 = vmatprep.subr.mxu0 0.0
    %4674 = vmatpush1.msra.mxu0 0.0
    %4675 = vmatprep.subr.mxu0 0.0
    %4676 = vmatpush1.msra.mxu0 0.0
    %4677 = vmatprep.subr.mxu0 0.0
    %4678 = vmatpush1.msra.mxu0 0.0
    %4679 = vmatprep.subr.mxu0 0.0
    %4680 = vmatpush1.msra.mxu0 0.0
    %4681 = vmatprep.subr.mxu0 0.0
    %4682 = vmatpush1.msra.mxu0 0.0
    %4683 = vmatprep.subr.mxu0 0.0
    %4684 = vmatpush1.msra.mxu0 0.0
    %4685 = vmatprep.subr.mxu0 0.0
    %4686 = vmatpush1.msra.mxu0 0.0
    %4687 = vmatprep.subr.mxu0 0.0
    %4688 = vmatpush1.msra.mxu0 0.0
    %4689 = vmatprep.subr.mxu0 0.0
    %4690 = vmatpush1.msra.mxu0 0.0
    %4691 = vmatprep.subr.mxu0 0.0
    %4692 = vmatpush1.msra.mxu0 0.0
    %4693 = vmatprep.subr.mxu0 0.0
    %4694 = vmatpush1.msra.mxu0 0.0
    %4695 = vmatprep.subr.mxu0 0.0
    %4696 = vmatpush1.msra.mxu0 0.0
    %4697 = vmatprep.subr.mxu0 0.0
    %4698 = vmatpush1.msra.mxu0 %v48
    %4699 = vmatprep.subr.mxu0 0.0
    %4700 = vmatpush1.msra.mxu0 %v47
    %4701 = vmatprep.subr.mxu0 0.0
    %4702 = vmatpush1.msra.mxu0 %v46
    %4703 = vmatprep.subr.mxu0 0.0
    %4704 = vmatpush1.msra.mxu0 %v45
    %4705 = vmatprep.subr.mxu0 0.0
    %4706 = vmatpush2.msra.mxu0 0.0
    %4707 = vmatprep.subr.mxu0 0.0
    %4708 = vmatpush2.msra.mxu0 0.0
    %4709 = vmatprep.subr.mxu0 0.0
    %4710 = vmatpush2.msra.mxu0 0.0
    %4711 = vmatprep.subr.mxu0 0.0
    %4712 = vmatpush2.msra.mxu0 0.0
    %4713 = vmatprep.subr.mxu0 0.0
    %4714 = vmatpush2.msra.mxu0 0.0
    %4715 = vmatprep.subr.mxu0 0.0
    %4716 = vmatpush2.msra.mxu0 0.0
    %4717 = vmatprep.subr.mxu0 0.0
    %4718 = vmatpush2.msra.mxu0 0.0
    %4719 = vmatprep.subr.mxu0 0.0
    %4720 = vmatpush2.msra.mxu0 0.0
    %4721 = vmatprep.subr.mxu0 0.0
    %4722 = vmatpush2.msra.mxu0 0.0
    %4723 = vmatprep.subr.mxu0 0.0
    %4724 = vmatpush2.msra.mxu0 0.0
    %4725 = vmatprep.subr.mxu0 0.0
    %4726 = vmatpush2.msra.mxu0 0.0
    %4727 = vmatprep.subr.mxu0 0.0
    %4728 = vmatpush2.msra.mxu0 0.0
    %4729 = vmatprep.subr.mxu0 0.0
    %4730 = vmatpush2.msra.mxu0 0.0
    %4731 = vmatprep.subr.mxu0 0.0
    %4732 = vmatpush2.msra.mxu0 0.0
    %4733 = vmatprep.subr.mxu0 0.0
    %4734 = vmatpush2.msra.mxu0 0.0
    %4735 = vmatprep.subr.mxu0 0.0
    %4736 = vmatpush2.msra.mxu0 0.0
    %4737 = vmatprep.mubr.f32.mxu0 0.0
    %4738 = vmatmul.mubr.f32.gmra.mxu0 %v4671
    %v4739 = vpop.f32.mrf.mxu0
    %v4740 = vadd.f32 %v433, %v4739
    %v4741 = vpop.f32.mrf.mxu0
    %4742 = vdwg.mxu0
    %v4743 = vstv %s4596
    %v4744 = vmul.f32 %v4743, %v4740
    %v4745 = vadd.f32 %v4582, %v4744
    %v4748 = vunpack.c.l.s4 1983009808
    %v4749 = vunpack.c.0.s8 %v4748
    %v4750 = vlaneseq
    %v4751 = vshrl.u32 %v4750, 7
    %v4752 = vsub.s32 %v4749, %v4751
    %v4753 = vrot.slane %v4745, %v4752
    %4754 = vrot.lane.b32.xlu0 %v4753, 80
    %v4755 = vpop.permute.xlu0 %4754
    %4757 = vst.msk [vmem:[#allocation5 + $0x2] sm:$0x3] %vm2153, %v4755
    %s4758 = sadd.s32 %s352, 27
    %s4759 = sld [smem:[#allocation4 + %s4758]]
    %v4760 = vsel %vm354, %v4745, 0
    %4762 = vmatprep.subr.mxu0 0.0
    %4763 = vmatpush1.msra.mxu0 0.0
    %4764 = vmatprep.subr.mxu0 0.0
    %4765 = vmatpush1.msra.mxu0 0.0
    %4766 = vmatprep.subr.mxu0 0.0
    %4767 = vmatpush1.msra.mxu0 0.0
    %4768 = vmatprep.subr.mxu0 0.0
    %4769 = vmatpush1.msra.mxu0 0.0
    %4770 = vmatprep.subr.mxu0 0.0
    %4771 = vmatpush1.msra.mxu0 0.0
    %4772 = vmatprep.subr.mxu0 0.0
    %4773 = vmatpush1.msra.mxu0 0.0
    %4774 = vmatprep.subr.mxu0 0.0
    %4775 = vmatpush1.msra.mxu0 0.0
    %4776 = vmatprep.subr.mxu0 0.0
    %4777 = vmatpush1.msra.mxu0 0.0
    %4778 = vmatprep.subr.mxu0 0.0
    %4779 = vmatpush1.msra.mxu0 0.0
    %4780 = vmatprep.subr.mxu0 0.0
    %4781 = vmatpush1.msra.mxu0 0.0
    %4782 = vmatprep.subr.mxu0 0.0
    %4783 = vmatpush1.msra.mxu0 0.0
    %4784 = vmatprep.subr.mxu0 0.0
    %4785 = vmatpush1.msra.mxu0 0.0
    %4786 = vmatprep.subr.mxu0 0.0
    %4787 = vmatpush1.msra.mxu0 0.0
    %4788 = vmatprep.subr.mxu0 0.0
    %4789 = vmatpush1.msra.mxu0 0.0
    %4790 = vmatprep.subr.mxu0 0.0
    %4791 = vmatpush1.msra.mxu0 0.0
    %4792 = vmatprep.subr.mxu0 0.0
    %4793 = vmatpush1.msra.mxu0 %v42
    %4794 = vmatprep.subr.mxu0 0.0
    %4795 = vmatpush2.msra.mxu0 0.0
    %4796 = vmatprep.subr.mxu0 0.0
    %4797 = vmatpush2.msra.mxu0 0.0
    %4798 = vmatprep.subr.mxu0 0.0
    %4799 = vmatpush2.msra.mxu0 0.0
    %4800 = vmatprep.subr.mxu0 0.0
    %4801 = vmatpush2.msra.mxu0 0.0
    %4802 = vmatprep.subr.mxu0 0.0
    %4803 = vmatpush2.msra.mxu0 0.0
    %4804 = vmatprep.subr.mxu0 0.0
    %4805 = vmatpush2.msra.mxu0 0.0
    %4806 = vmatprep.subr.mxu0 0.0
    %4807 = vmatpush2.msra.mxu0 0.0
    %4808 = vmatprep.subr.mxu0 0.0
    %4809 = vmatpush2.msra.mxu0 0.0
    %4810 = vmatprep.subr.mxu0 0.0
    %4811 = vmatpush2.msra.mxu0 0.0
    %4812 = vmatprep.subr.mxu0 0.0
    %4813 = vmatpush2.msra.mxu0 0.0
    %4814 = vmatprep.subr.mxu0 0.0
    %4815 = vmatpush2.msra.mxu0 0.0
    %4816 = vmatprep.subr.mxu0 0.0
    %4817 = vmatpush2.msra.mxu0 0.0
    %4818 = vmatprep.subr.mxu0 0.0
    %4819 = vmatpush2.msra.mxu0 0.0
    %4820 = vmatprep.subr.mxu0 0.0
    %4821 = vmatpush2.msra.mxu0 0.0
    %4822 = vmatprep.subr.mxu0 0.0
    %4823 = vmatpush2.msra.mxu0 0.0
    %4824 = vmatprep.subr.mxu0 0.0
    %4825 = vmatpush2.msra.mxu0 0.0
    %4826 = vmatprep.mubr.f32.mxu0 0.0
    %4827 = vmatmul.mubr.f32.gmra.mxu0 %v4760
    %v4828 = vpop.f32.mrf.mxu0
    %v4829 = vadd.f32 %v231, %v4828
    %v4830 = vpop.f32.mrf.mxu0
    %4831 = vdwg.mxu0
    %v4832 = vtanh.pop %v4829
    %v4834 = vsel %vm435, %v4832, 0
    %4836 = vmatprep.subr.mxu0 0.0
    %4837 = vmatpush1.msra.mxu0 0.0
    %4838 = vmatprep.subr.mxu0 0.0
    %4839 = vmatpush1.msra.mxu0 0.0
    %4840 = vmatprep.subr.mxu0 0.0
    %4841 = vmatpush1.msra.mxu0 0.0
    %4842 = vmatprep.subr.mxu0 0.0
    %4843 = vmatpush1.msra.mxu0 0.0
    %4844 = vmatprep.subr.mxu0 0.0
    %4845 = vmatpush1.msra.mxu0 0.0
    %4846 = vmatprep.subr.mxu0 0.0
    %4847 = vmatpush1.msra.mxu0 0.0
    %4848 = vmatprep.subr.mxu0 0.0
    %4849 = vmatpush1.msra.mxu0 0.0
    %4850 = vmatprep.subr.mxu0 0.0
    %4851 = vmatpush1.msra.mxu0 0.0
    %4852 = vmatprep.subr.mxu0 0.0
    %4853 = vmatpush1.msra.mxu0 0.0
    %4854 = vmatprep.subr.mxu0 0.0
    %4855 = vmatpush1.msra.mxu0 0.0
    %4856 = vmatprep.subr.mxu0 0.0
    %4857 = vmatpush1.msra.mxu0 0.0
    %4858 = vmatprep.subr.mxu0 0.0
    %4859 = vmatpush1.msra.mxu0 0.0
    %4860 = vmatprep.subr.mxu0 0.0
    %4861 = vmatpush1.msra.mxu0 %v48
    %4862 = vmatprep.subr.mxu0 0.0
    %4863 = vmatpush1.msra.mxu0 %v47
    %4864 = vmatprep.subr.mxu0 0.0
    %4865 = vmatpush1.msra.mxu0 %v46
    %4866 = vmatprep.subr.mxu0 0.0
    %4867 = vmatpush1.msra.mxu0 %v45
    %4868 = vmatprep.subr.mxu0 0.0
    %4869 = vmatpush2.msra.mxu0 0.0
    %4870 = vmatprep.subr.mxu0 0.0
    %4871 = vmatpush2.msra.mxu0 0.0
    %4872 = vmatprep.subr.mxu0 0.0
    %4873 = vmatpush2.msra.mxu0 0.0
    %4874 = vmatprep.subr.mxu0 0.0
    %4875 = vmatpush2.msra.mxu0 0.0
    %4876 = vmatprep.subr.mxu0 0.0
    %4877 = vmatpush2.msra.mxu0 0.0
    %4878 = vmatprep.subr.mxu0 0.0
    %4879 = vmatpush2.msra.mxu0 0.0
    %4880 = vmatprep.subr.mxu0 0.0
    %4881 = vmatpush2.msra.mxu0 0.0
    %4882 = vmatprep.subr.mxu0 0.0
    %4883 = vmatpush2.msra.mxu0 0.0
    %4884 = vmatprep.subr.mxu0 0.0
    %4885 = vmatpush2.msra.mxu0 0.0
    %4886 = vmatprep.subr.mxu0 0.0
    %4887 = vmatpush2.msra.mxu0 0.0
    %4888 = vmatprep.subr.mxu0 0.0
    %4889 = vmatpush2.msra.mxu0 0.0
    %4890 = vmatprep.subr.mxu0 0.0
    %4891 = vmatpush2.msra.mxu0 0.0
    %4892 = vmatprep.subr.mxu0 0.0
    %4893 = vmatpush2.msra.mxu0 0.0
    %4894 = vmatprep.subr.mxu0 0.0
    %4895 = vmatpush2.msra.mxu0 0.0
    %4896 = vmatprep.subr.mxu0 0.0
    %4897 = vmatpush2.msra.mxu0 0.0
    %4898 = vmatprep.subr.mxu0 0.0
    %4899 = vmatpush2.msra.mxu0 0.0
    %4900 = vmatprep.mubr.f32.mxu0 0.0
    %4901 = vmatmul.mubr.f32.gmra.mxu0 %v4834
    %v4902 = vpop.f32.mrf.mxu0
    %v4903 = vadd.f32 %v433, %v4902
    %v4904 = vpop.f32.mrf.mxu0
    %4905 = vdwg.mxu0
    %v4906 = vstv %s4759
    %v4907 = vmul.f32 %v4906, %v4903
    %v4908 = vadd.f32 %v4745, %v4907
    %v4911 = vunpack.c.l.s4 1983009808
    %v4912 = vunpack.c.0.s8 %v4911
    %v4913 = vlaneseq
    %v4914 = vshrl.u32 %v4913, 7
    %v4915 = vsub.s32 %v4912, %v4914
    %v4916 = vrot.slane %v4908, %v4915
    %4917 = vrot.lane.b32.xlu0 %v4916, 88
    %v4918 = vpop.permute.xlu0 %4917
    %4920 = vst.msk [vmem:[#allocation5 + $0x2] sm:$0x3] %vm2317, %v4918
    %s4921 = sadd.s32 %s352, 28
    %s4922 = sld [smem:[#allocation4 + %s4921]]
    %v4923 = vsel %vm354, %v4908, 0
    %4925 = vmatprep.subr.mxu0 0.0
    %4926 = vmatpush1.msra.mxu0 0.0
    %4927 = vmatprep.subr.mxu0 0.0
    %4928 = vmatpush1.msra.mxu0 0.0
    %4929 = vmatprep.subr.mxu0 0.0
    %4930 = vmatpush1.msra.mxu0 0.0
    %4931 = vmatprep.subr.mxu0 0.0
    %4932 = vmatpush1.msra.mxu0 0.0
    %4933 = vmatprep.subr.mxu0 0.0
    %4934 = vmatpush1.msra.mxu0 0.0
    %4935 = vmatprep.subr.mxu0 0.0
    %4936 = vmatpush1.msra.mxu0 0.0
    %4937 = vmatprep.subr.mxu0 0.0
    %4938 = vmatpush1.msra.mxu0 0.0
    %4939 = vmatprep.subr.mxu0 0.0
    %4940 = vmatpush1.msra.mxu0 0.0
    %4941 = vmatprep.subr.mxu0 0.0
    %4942 = vmatpush1.msra.mxu0 0.0
    %4943 = vmatprep.subr.mxu0 0.0
    %4944 = vmatpush1.msra.mxu0 0.0
    %4945 = vmatprep.subr.mxu0 0.0
    %4946 = vmatpush1.msra.mxu0 0.0
    %4947 = vmatprep.subr.mxu0 0.0
    %4948 = vmatpush1.msra.mxu0 0.0
    %4949 = vmatprep.subr.mxu0 0.0
    %4950 = vmatpush1.msra.mxu0 0.0
    %4951 = vmatprep.subr.mxu0 0.0
    %4952 = vmatpush1.msra.mxu0 0.0
    %4953 = vmatprep.subr.mxu0 0.0
    %4954 = vmatpush1.msra.mxu0 0.0
    %4955 = vmatprep.subr.mxu0 0.0
    %4956 = vmatpush1.msra.mxu0 %v42
    %4957 = vmatprep.subr.mxu0 0.0
    %4958 = vmatpush2.msra.mxu0 0.0
    %4959 = vmatprep.subr.mxu0 0.0
    %4960 = vmatpush2.msra.mxu0 0.0
    %4961 = vmatprep.subr.mxu0 0.0
    %4962 = vmatpush2.msra.mxu0 0.0
    %4963 = vmatprep.subr.mxu0 0.0
    %4964 = vmatpush2.msra.mxu0 0.0
    %4965 = vmatprep.subr.mxu0 0.0
    %4966 = vmatpush2.msra.mxu0 0.0
    %4967 = vmatprep.subr.mxu0 0.0
    %4968 = vmatpush2.msra.mxu0 0.0
    %4969 = vmatprep.subr.mxu0 0.0
    %4970 = vmatpush2.msra.mxu0 0.0
    %4971 = vmatprep.subr.mxu0 0.0
    %4972 = vmatpush2.msra.mxu0 0.0
    %4973 = vmatprep.subr.mxu0 0.0
    %4974 = vmatpush2.msra.mxu0 0.0
    %4975 = vmatprep.subr.mxu0 0.0
    %4976 = vmatpush2.msra.mxu0 0.0
    %4977 = vmatprep.subr.mxu0 0.0
    %4978 = vmatpush2.msra.mxu0 0.0
    %4979 = vmatprep.subr.mxu0 0.0
    %4980 = vmatpush2.msra.mxu0 0.0
    %4981 = vmatprep.subr.mxu0 0.0
    %4982 = vmatpush2.msra.mxu0 0.0
    %4983 = vmatprep.subr.mxu0 0.0
    %4984 = vmatpush2.msra.mxu0 0.0
    %4985 = vmatprep.subr.mxu0 0.0
    %4986 = vmatpush2.msra.mxu0 0.0
    %4987 = vmatprep.subr.mxu0 0.0
    %4988 = vmatpush2.msra.mxu0 0.0
    %4989 = vmatprep.mubr.f32.mxu0 0.0
    %4990 = vmatmul.mubr.f32.gmra.mxu0 %v4923
    %v4991 = vpop.f32.mrf.mxu0
    %v4992 = vadd.f32 %v237, %v4991
    %v4993 = vpop.f32.mrf.mxu0
    %4994 = vdwg.mxu0
    %v4995 = vtanh.pop %v4992
    %v4997 = vsel %vm435, %v4995, 0
    %4999 = vmatprep.subr.mxu0 0.0
    %5000 = vmatpush1.msra.mxu0 0.0
    %5001 = vmatprep.subr.mxu0 0.0
    %5002 = vmatpush1.msra.mxu0 0.0
    %5003 = vmatprep.subr.mxu0 0.0
    %5004 = vmatpush1.msra.mxu0 0.0
    %5005 = vmatprep.subr.mxu0 0.0
    %5006 = vmatpush1.msra.mxu0 0.0
    %5007 = vmatprep.subr.mxu0 0.0
    %5008 = vmatpush1.msra.mxu0 0.0
    %5009 = vmatprep.subr.mxu0 0.0
    %5010 = vmatpush1.msra.mxu0 0.0
    %5011 = vmatprep.subr.mxu0 0.0
    %5012 = vmatpush1.msra.mxu0 0.0
    %5013 = vmatprep.subr.mxu0 0.0
    %5014 = vmatpush1.msra.mxu0 0.0
    %5015 = vmatprep.subr.mxu0 0.0
    %5016 = vmatpush1.msra.mxu0 0.0
    %5017 = vmatprep.subr.mxu0 0.0
    %5018 = vmatpush1.msra.mxu0 0.0
    %5019 = vmatprep.subr.mxu0 0.0
    %5020 = vmatpush1.msra.mxu0 0.0
    %5021 = vmatprep.subr.mxu0 0.0
    %5022 = vmatpush1.msra.mxu0 0.0
    %5023 = vmatprep.subr.mxu0 0.0
    %5024 = vmatpush1.msra.mxu0 %v48
    %5025 = vmatprep.subr.mxu0 0.0
    %5026 = vmatpush1.msra.mxu0 %v47
    %5027 = vmatprep.subr.mxu0 0.0
    %5028 = vmatpush1.msra.mxu0 %v46
    %5029 = vmatprep.subr.mxu0 0.0
    %5030 = vmatpush1.msra.mxu0 %v45
    %5031 = vmatprep.subr.mxu0 0.0
    %5032 = vmatpush2.msra.mxu0 0.0
    %5033 = vmatprep.subr.mxu0 0.0
    %5034 = vmatpush2.msra.mxu0 0.0
    %5035 = vmatprep.subr.mxu0 0.0
    %5036 = vmatpush2.msra.mxu0 0.0
    %5037 = vmatprep.subr.mxu0 0.0
    %5038 = vmatpush2.msra.mxu0 0.0
    %5039 = vmatprep.subr.mxu0 0.0
    %5040 = vmatpush2.msra.mxu0 0.0
    %5041 = vmatprep.subr.mxu0 0.0
    %5042 = vmatpush2.msra.mxu0 0.0
    %5043 = vmatprep.subr.mxu0 0.0
    %5044 = vmatpush2.msra.mxu0 0.0
    %5045 = vmatprep.subr.mxu0 0.0
    %5046 = vmatpush2.msra.mxu0 0.0
    %5047 = vmatprep.subr.mxu0 0.0
    %5048 = vmatpush2.msra.mxu0 0.0
    %5049 = vmatprep.subr.mxu0 0.0
    %5050 = vmatpush2.msra.mxu0 0.0
    %5051 = vmatprep.subr.mxu0 0.0
    %5052 = vmatpush2.msra.mxu0 0.0
    %5053 = vmatprep.subr.mxu0 0.0
    %5054 = vmatpush2.msra.mxu0 0.0
    %5055 = vmatprep.subr.mxu0 0.0
    %5056 = vmatpush2.msra.mxu0 0.0
    %5057 = vmatprep.subr.mxu0 0.0
    %5058 = vmatpush2.msra.mxu0 0.0
    %5059 = vmatprep.subr.mxu0 0.0
    %5060 = vmatpush2.msra.mxu0 0.0
    %5061 = vmatprep.subr.mxu0 0.0
    %5062 = vmatpush2.msra.mxu0 0.0
    %5063 = vmatprep.mubr.f32.mxu0 0.0
    %5064 = vmatmul.mubr.f32.gmra.mxu0 %v4997
    %v5065 = vpop.f32.mrf.mxu0
    %v5066 = vadd.f32 %v433, %v5065
    %v5067 = vpop.f32.mrf.mxu0
    %5068 = vdwg.mxu0
    %v5069 = vstv %s4922
    %v5070 = vmul.f32 %v5069, %v5066
    %v5071 = vadd.f32 %v4908, %v5070
    %v5074 = vunpack.c.l.s4 1983009808
    %v5075 = vunpack.c.0.s8 %v5074
    %v5076 = vlaneseq
    %v5077 = vshrl.u32 %v5076, 7
    %v5078 = vsub.s32 %v5075, %v5077
    %v5079 = vrot.slane %v5071, %v5078
    %5080 = vrot.lane.b32.xlu0 %v5079, 96
    %v5081 = vpop.permute.xlu0 %5080
    %5083 = vst.msk [vmem:[#allocation5 + $0x2] sm:$0x3] %vm2481, %v5081
    %s5084 = sadd.s32 %s352, 29
    %s5085 = sld [smem:[#allocation4 + %s5084]]
    %v5086 = vsel %vm354, %v5071, 0
    %5088 = vmatprep.subr.mxu0 0.0
    %5089 = vmatpush1.msra.mxu0 0.0
    %5090 = vmatprep.subr.mxu0 0.0
    %5091 = vmatpush1.msra.mxu0 0.0
    %5092 = vmatprep.subr.mxu0 0.0
    %5093 = vmatpush1.msra.mxu0 0.0
    %5094 = vmatprep.subr.mxu0 0.0
    %5095 = vmatpush1.msra.mxu0 0.0
    %5096 = vmatprep.subr.mxu0 0.0
    %5097 = vmatpush1.msra.mxu0 0.0
    %5098 = vmatprep.subr.mxu0 0.0
    %5099 = vmatpush1.msra.mxu0 0.0
    %5100 = vmatprep.subr.mxu0 0.0
    %5101 = vmatpush1.msra.mxu0 0.0
    %5102 = vmatprep.subr.mxu0 0.0
    %5103 = vmatpush1.msra.mxu0 0.0
    %5104 = vmatprep.subr.mxu0 0.0
    %5105 = vmatpush1.msra.mxu0 0.0
    %5106 = vmatprep.subr.mxu0 0.0
    %5107 = vmatpush1.msra.mxu0 0.0
    %5108 = vmatprep.subr.mxu0 0.0
    %5109 = vmatpush1.msra.mxu0 0.0
    %5110 = vmatprep.subr.mxu0 0.0
    %5111 = vmatpush1.msra.mxu0 0.0
    %5112 = vmatprep.subr.mxu0 0.0
    %5113 = vmatpush1.msra.mxu0 0.0
    %5114 = vmatprep.subr.mxu0 0.0
    %5115 = vmatpush1.msra.mxu0 0.0
    %5116 = vmatprep.subr.mxu0 0.0
    %5117 = vmatpush1.msra.mxu0 0.0
    %5118 = vmatprep.subr.mxu0 0.0
    %5119 = vmatpush1.msra.mxu0 %v42
    %5120 = vmatprep.subr.mxu0 0.0
    %5121 = vmatpush2.msra.mxu0 0.0
    %5122 = vmatprep.subr.mxu0 0.0
    %5123 = vmatpush2.msra.mxu0 0.0
    %5124 = vmatprep.subr.mxu0 0.0
    %5125 = vmatpush2.msra.mxu0 0.0
    %5126 = vmatprep.subr.mxu0 0.0
    %5127 = vmatpush2.msra.mxu0 0.0
    %5128 = vmatprep.subr.mxu0 0.0
    %5129 = vmatpush2.msra.mxu0 0.0
    %5130 = vmatprep.subr.mxu0 0.0
    %5131 = vmatpush2.msra.mxu0 0.0
    %5132 = vmatprep.subr.mxu0 0.0
    %5133 = vmatpush2.msra.mxu0 0.0
    %5134 = vmatprep.subr.mxu0 0.0
    %5135 = vmatpush2.msra.mxu0 0.0
    %5136 = vmatprep.subr.mxu0 0.0
    %5137 = vmatpush2.msra.mxu0 0.0
    %5138 = vmatprep.subr.mxu0 0.0
    %5139 = vmatpush2.msra.mxu0 0.0
    %5140 = vmatprep.subr.mxu0 0.0
    %5141 = vmatpush2.msra.mxu0 0.0
    %5142 = vmatprep.subr.mxu0 0.0
    %5143 = vmatpush2.msra.mxu0 0.0
    %5144 = vmatprep.subr.mxu0 0.0
    %5145 = vmatpush2.msra.mxu0 0.0
    %5146 = vmatprep.subr.mxu0 0.0
    %5147 = vmatpush2.msra.mxu0 0.0
    %5148 = vmatprep.subr.mxu0 0.0
    %5149 = vmatpush2.msra.mxu0 0.0
    %5150 = vmatprep.subr.mxu0 0.0
    %5151 = vmatpush2.msra.mxu0 0.0
    %5152 = vmatprep.mubr.f32.mxu0 0.0
    %5153 = vmatmul.mubr.f32.gmra.mxu0 %v5086
    %v5154 = vpop.f32.mrf.mxu0
    %v5155 = vadd.f32 %v243, %v5154
    %v5156 = vpop.f32.mrf.mxu0
    %5157 = vdwg.mxu0
    %v5158 = vtanh.pop %v5155
    %v5160 = vsel %vm435, %v5158, 0
    %5162 = vmatprep.subr.mxu0 0.0
    %5163 = vmatpush1.msra.mxu0 0.0
    %5164 = vmatprep.subr.mxu0 0.0
    %5165 = vmatpush1.msra.mxu0 0.0
    %5166 = vmatprep.subr.mxu0 0.0
    %5167 = vmatpush1.msra.mxu0 0.0
    %5168 = vmatprep.subr.mxu0 0.0
    %5169 = vmatpush1.msra.mxu0 0.0
    %5170 = vmatprep.subr.mxu0 0.0
    %5171 = vmatpush1.msra.mxu0 0.0
    %5172 = vmatprep.subr.mxu0 0.0
    %5173 = vmatpush1.msra.mxu0 0.0
    %5174 = vmatprep.subr.mxu0 0.0
    %5175 = vmatpush1.msra.mxu0 0.0
    %5176 = vmatprep.subr.mxu0 0.0
    %5177 = vmatpush1.msra.mxu0 0.0
    %5178 = vmatprep.subr.mxu0 0.0
    %5179 = vmatpush1.msra.mxu0 0.0
    %5180 = vmatprep.subr.mxu0 0.0
    %5181 = vmatpush1.msra.mxu0 0.0
    %5182 = vmatprep.subr.mxu0 0.0
    %5183 = vmatpush1.msra.mxu0 0.0
    %5184 = vmatprep.subr.mxu0 0.0
    %5185 = vmatpush1.msra.mxu0 0.0
    %5186 = vmatprep.subr.mxu0 0.0
    %5187 = vmatpush1.msra.mxu0 %v48
    %5188 = vmatprep.subr.mxu0 0.0
    %5189 = vmatpush1.msra.mxu0 %v47
    %5190 = vmatprep.subr.mxu0 0.0
    %5191 = vmatpush1.msra.mxu0 %v46
    %5192 = vmatprep.subr.mxu0 0.0
    %5193 = vmatpush1.msra.mxu0 %v45
    %5194 = vmatprep.subr.mxu0 0.0
    %5195 = vmatpush2.msra.mxu0 0.0
    %5196 = vmatprep.subr.mxu0 0.0
    %5197 = vmatpush2.msra.mxu0 0.0
    %5198 = vmatprep.subr.mxu0 0.0
    %5199 = vmatpush2.msra.mxu0 0.0
    %5200 = vmatprep.subr.mxu0 0.0
    %5201 = vmatpush2.msra.mxu0 0.0
    %5202 = vmatprep.subr.mxu0 0.0
    %5203 = vmatpush2.msra.mxu0 0.0
    %5204 = vmatprep.subr.mxu0 0.0
    %5205 = vmatpush2.msra.mxu0 0.0
    %5206 = vmatprep.subr.mxu0 0.0
    %5207 = vmatpush2.msra.mxu0 0.0
    %5208 = vmatprep.subr.mxu0 0.0
    %5209 = vmatpush2.msra.mxu0 0.0
    %5210 = vmatprep.subr.mxu0 0.0
    %5211 = vmatpush2.msra.mxu0 0.0
    %5212 = vmatprep.subr.mxu0 0.0
    %5213 = vmatpush2.msra.mxu0 0.0
    %5214 = vmatprep.subr.mxu0 0.0
    %5215 = vmatpush2.msra.mxu0 0.0
    %5216 = vmatprep.subr.mxu0 0.0
    %5217 = vmatpush2.msra.mxu0 0.0
    %5218 = vmatprep.subr.mxu0 0.0
    %5219 = vmatpush2.msra.mxu0 0.0
    %5220 = vmatprep.subr.mxu0 0.0
    %5221 = vmatpush2.msra.mxu0 0.0
    %5222 = vmatprep.subr.mxu0 0.0
    %5223 = vmatpush2.msra.mxu0 0.0
    %5224 = vmatprep.subr.mxu0 0.0
    %5225 = vmatpush2.msra.mxu0 0.0
    %5226 = vmatprep.mubr.f32.mxu0 0.0
    %5227 = vmatmul.mubr.f32.gmra.mxu0 %v5160
    %v5228 = vpop.f32.mrf.mxu0
    %v5229 = vadd.f32 %v433, %v5228
    %v5230 = vpop.f32.mrf.mxu0
    %5231 = vdwg.mxu0
    %v5232 = vstv %s5085
    %v5233 = vmul.f32 %v5232, %v5229
    %v5234 = vadd.f32 %v5071, %v5233
    %v5237 = vunpack.c.l.s4 1983009808
    %v5238 = vunpack.c.0.s8 %v5237
    %v5239 = vlaneseq
    %v5240 = vshrl.u32 %v5239, 7
    %v5241 = vsub.s32 %v5238, %v5240
    %v5242 = vrot.slane %v5234, %v5241
    %5243 = vrot.lane.b32.xlu0 %v5242, 104
    %v5244 = vpop.permute.xlu0 %5243
    %5246 = vst.msk [vmem:[#allocation5 + $0x2] sm:$0x3] %vm2645, %v5244
    %s5247 = sadd.s32 %s352, 30
    %s5248 = sld [smem:[#allocation4 + %s5247]]
    %v5249 = vsel %vm354, %v5234, 0
    %5251 = vmatprep.subr.mxu0 0.0
    %5252 = vmatpush1.msra.mxu0 0.0
    %5253 = vmatprep.subr.mxu0 0.0
    %5254 = vmatpush1.msra.mxu0 0.0
    %5255 = vmatprep.subr.mxu0 0.0
    %5256 = vmatpush1.msra.mxu0 0.0
    %5257 = vmatprep.subr.mxu0 0.0
    %5258 = vmatpush1.msra.mxu0 0.0
    %5259 = vmatprep.subr.mxu0 0.0
    %5260 = vmatpush1.msra.mxu0 0.0
    %5261 = vmatprep.subr.mxu0 0.0
    %5262 = vmatpush1.msra.mxu0 0.0
    %5263 = vmatprep.subr.mxu0 0.0
    %5264 = vmatpush1.msra.mxu0 0.0
    %5265 = vmatprep.subr.mxu0 0.0
    %5266 = vmatpush1.msra.mxu0 0.0
    %5267 = vmatprep.subr.mxu0 0.0
    %5268 = vmatpush1.msra.mxu0 0.0
    %5269 = vmatprep.subr.mxu0 0.0
    %5270 = vmatpush1.msra.mxu0 0.0
    %5271 = vmatprep.subr.mxu0 0.0
    %5272 = vmatpush1.msra.mxu0 0.0
    %5273 = vmatprep.subr.mxu0 0.0
    %5274 = vmatpush1.msra.mxu0 0.0
    %5275 = vmatprep.subr.mxu0 0.0
    %5276 = vmatpush1.msra.mxu0 0.0
    %5277 = vmatprep.subr.mxu0 0.0
    %5278 = vmatpush1.msra.mxu0 0.0
    %5279 = vmatprep.subr.mxu0 0.0
    %5280 = vmatpush1.msra.mxu0 0.0
    %5281 = vmatprep.subr.mxu0 0.0
    %5282 = vmatpush1.msra.mxu0 %v42
    %5283 = vmatprep.subr.mxu0 0.0
    %5284 = vmatpush2.msra.mxu0 0.0
    %5285 = vmatprep.subr.mxu0 0.0
    %5286 = vmatpush2.msra.mxu0 0.0
    %5287 = vmatprep.subr.mxu0 0.0
    %5288 = vmatpush2.msra.mxu0 0.0
    %5289 = vmatprep.subr.mxu0 0.0
    %5290 = vmatpush2.msra.mxu0 0.0
    %5291 = vmatprep.subr.mxu0 0.0
    %5292 = vmatpush2.msra.mxu0 0.0
    %5293 = vmatprep.subr.mxu0 0.0
    %5294 = vmatpush2.msra.mxu0 0.0
    %5295 = vmatprep.subr.mxu0 0.0
    %5296 = vmatpush2.msra.mxu0 0.0
    %5297 = vmatprep.subr.mxu0 0.0
    %5298 = vmatpush2.msra.mxu0 0.0
    %5299 = vmatprep.subr.mxu0 0.0
    %5300 = vmatpush2.msra.mxu0 0.0
    %5301 = vmatprep.subr.mxu0 0.0
    %5302 = vmatpush2.msra.mxu0 0.0
    %5303 = vmatprep.subr.mxu0 0.0
    %5304 = vmatpush2.msra.mxu0 0.0
    %5305 = vmatprep.subr.mxu0 0.0
    %5306 = vmatpush2.msra.mxu0 0.0
    %5307 = vmatprep.subr.mxu0 0.0
    %5308 = vmatpush2.msra.mxu0 0.0
    %5309 = vmatprep.subr.mxu0 0.0
    %5310 = vmatpush2.msra.mxu0 0.0
    %5311 = vmatprep.subr.mxu0 0.0
    %5312 = vmatpush2.msra.mxu0 0.0
    %5313 = vmatprep.subr.mxu0 0.0
    %5314 = vmatpush2.msra.mxu0 0.0
    %5315 = vmatprep.mubr.f32.mxu0 0.0
    %5316 = vmatmul.mubr.f32.gmra.mxu0 %v5249
    %v5317 = vpop.f32.mrf.mxu0
    %v5318 = vadd.f32 %v249, %v5317
    %v5319 = vpop.f32.mrf.mxu0
    %5320 = vdwg.mxu0
    %v5321 = vtanh.pop %v5318
    %v5323 = vsel %vm435, %v5321, 0
    %5325 = vmatprep.subr.mxu0 0.0
    %5326 = vmatpush1.msra.mxu0 0.0
    %5327 = vmatprep.subr.mxu0 0.0
    %5328 = vmatpush1.msra.mxu0 0.0
    %5329 = vmatprep.subr.mxu0 0.0
    %5330 = vmatpush1.msra.mxu0 0.0
    %5331 = vmatprep.subr.mxu0 0.0
    %5332 = vmatpush1.msra.mxu0 0.0
    %5333 = vmatprep.subr.mxu0 0.0
    %5334 = vmatpush1.msra.mxu0 0.0
    %5335 = vmatprep.subr.mxu0 0.0
    %5336 = vmatpush1.msra.mxu0 0.0
    %5337 = vmatprep.subr.mxu0 0.0
    %5338 = vmatpush1.msra.mxu0 0.0
    %5339 = vmatprep.subr.mxu0 0.0
    %5340 = vmatpush1.msra.mxu0 0.0
    %5341 = vmatprep.subr.mxu0 0.0
    %5342 = vmatpush1.msra.mxu0 0.0
    %5343 = vmatprep.subr.mxu0 0.0
    %5344 = vmatpush1.msra.mxu0 0.0
    %5345 = vmatprep.subr.mxu0 0.0
    %5346 = vmatpush1.msra.mxu0 0.0
    %5347 = vmatprep.subr.mxu0 0.0
    %5348 = vmatpush1.msra.mxu0 0.0
    %5349 = vmatprep.subr.mxu0 0.0
    %5350 = vmatpush1.msra.mxu0 %v48
    %5351 = vmatprep.subr.mxu0 0.0
    %5352 = vmatpush1.msra.mxu0 %v47
    %5353 = vmatprep.subr.mxu0 0.0
    %5354 = vmatpush1.msra.mxu0 %v46
    %5355 = vmatprep.subr.mxu0 0.0
    %5356 = vmatpush1.msra.mxu0 %v45
    %5357 = vmatprep.subr.mxu0 0.0
    %5358 = vmatpush2.msra.mxu0 0.0
    %5359 = vmatprep.subr.mxu0 0.0
    %5360 = vmatpush2.msra.mxu0 0.0
    %5361 = vmatprep.subr.mxu0 0.0
    %5362 = vmatpush2.msra.mxu0 0.0
    %5363 = vmatprep.subr.mxu0 0.0
    %5364 = vmatpush2.msra.mxu0 0.0
    %5365 = vmatprep.subr.mxu0 0.0
    %5366 = vmatpush2.msra.mxu0 0.0
    %5367 = vmatprep.subr.mxu0 0.0
    %5368 = vmatpush2.msra.mxu0 0.0
    %5369 = vmatprep.subr.mxu0 0.0
    %5370 = vmatpush2.msra.mxu0 0.0
    %5371 = vmatprep.subr.mxu0 0.0
    %5372 = vmatpush2.msra.mxu0 0.0
    %5373 = vmatprep.subr.mxu0 0.0
    %5374 = vmatpush2.msra.mxu0 0.0
    %5375 = vmatprep.subr.mxu0 0.0
    %5376 = vmatpush2.msra.mxu0 0.0
    %5377 = vmatprep.subr.mxu0 0.0
    %5378 = vmatpush2.msra.mxu0 0.0
    %5379 = vmatprep.subr.mxu0 0.0
    %5380 = vmatpush2.msra.mxu0 0.0
    %5381 = vmatprep.subr.mxu0 0.0
    %5382 = vmatpush2.msra.mxu0 0.0
    %5383 = vmatprep.subr.mxu0 0.0
    %5384 = vmatpush2.msra.mxu0 0.0
    %5385 = vmatprep.subr.mxu0 0.0
    %5386 = vmatpush2.msra.mxu0 0.0
    %5387 = vmatprep.subr.mxu0 0.0
    %5388 = vmatpush2.msra.mxu0 0.0
    %5389 = vmatprep.mubr.f32.mxu0 0.0
    %5390 = vmatmul.mubr.f32.gmra.mxu0 %v5323
    %v5391 = vpop.f32.mrf.mxu0
    %v5392 = vadd.f32 %v433, %v5391
    %v5393 = vpop.f32.mrf.mxu0
    %5394 = vdwg.mxu0
    %v5395 = vstv %s5248
    %v5396 = vmul.f32 %v5395, %v5392
    %v5397 = vadd.f32 %v5234, %v5396
    %v5400 = vunpack.c.l.s4 1983009808
    %v5401 = vunpack.c.0.s8 %v5400
    %v5402 = vlaneseq
    %v5403 = vshrl.u32 %v5402, 7
    %v5404 = vsub.s32 %v5401, %v5403
    %v5405 = vrot.slane %v5397, %v5404
    %5406 = vrot.lane.b32.xlu0 %v5405, 112
    %v5407 = vpop.permute.xlu0 %5406
    %5409 = vst.msk [vmem:[#allocation5 + $0x2] sm:$0x3] %vm2809, %v5407
    %s5410 = sadd.s32 %s352, 31
    %s5411 = sld [smem:[#allocation4 + %s5410]]
    %v5412 = vsel %vm354, %v5397, 0
    %5414 = vmatprep.subr.mxu0 0.0
    %5415 = vmatpush1.msra.mxu0 0.0
    %5416 = vmatprep.subr.mxu0 0.0
    %5417 = vmatpush1.msra.mxu0 0.0
    %5418 = vmatprep.subr.mxu0 0.0
    %5419 = vmatpush1.msra.mxu0 0.0
    %5420 = vmatprep.subr.mxu0 0.0
    %5421 = vmatpush1.msra.mxu0 0.0
    %5422 = vmatprep.subr.mxu0 0.0
    %5423 = vmatpush1.msra.mxu0 0.0
    %5424 = vmatprep.subr.mxu0 0.0
    %5425 = vmatpush1.msra.mxu0 0.0
    %5426 = vmatprep.subr.mxu0 0.0
    %5427 = vmatpush1.msra.mxu0 0.0
    %5428 = vmatprep.subr.mxu0 0.0
    %5429 = vmatpush1.msra.mxu0 0.0
    %5430 = vmatprep.subr.mxu0 0.0
    %5431 = vmatpush1.msra.mxu0 0.0
    %5432 = vmatprep.subr.mxu0 0.0
    %5433 = vmatpush1.msra.mxu0 0.0
    %5434 = vmatprep.subr.mxu0 0.0
    %5435 = vmatpush1.msra.mxu0 0.0
    %5436 = vmatprep.subr.mxu0 0.0
    %5437 = vmatpush1.msra.mxu0 0.0
    %5438 = vmatprep.subr.mxu0 0.0
    %5439 = vmatpush1.msra.mxu0 0.0
    %5440 = vmatprep.subr.mxu0 0.0
    %5441 = vmatpush1.msra.mxu0 0.0
    %5442 = vmatprep.subr.mxu0 0.0
    %5443 = vmatpush1.msra.mxu0 0.0
    %5444 = vmatprep.subr.mxu0 0.0
    %5445 = vmatpush1.msra.mxu0 %v42
    %5446 = vmatprep.subr.mxu0 0.0
    %5447 = vmatpush2.msra.mxu0 0.0
    %5448 = vmatprep.subr.mxu0 0.0
    %5449 = vmatpush2.msra.mxu0 0.0
    %5450 = vmatprep.subr.mxu0 0.0
    %5451 = vmatpush2.msra.mxu0 0.0
    %5452 = vmatprep.subr.mxu0 0.0
    %5453 = vmatpush2.msra.mxu0 0.0
    %5454 = vmatprep.subr.mxu0 0.0
    %5455 = vmatpush2.msra.mxu0 0.0
    %5456 = vmatprep.subr.mxu0 0.0
    %5457 = vmatpush2.msra.mxu0 0.0
    %5458 = vmatprep.subr.mxu0 0.0
    %5459 = vmatpush2.msra.mxu0 0.0
    %5460 = vmatprep.subr.mxu0 0.0
    %5461 = vmatpush2.msra.mxu0 0.0
    %5462 = vmatprep.subr.mxu0 0.0
    %5463 = vmatpush2.msra.mxu0 0.0
    %5464 = vmatprep.subr.mxu0 0.0
    %5465 = vmatpush2.msra.mxu0 0.0
    %5466 = vmatprep.subr.mxu0 0.0
    %5467 = vmatpush2.msra.mxu0 0.0
    %5468 = vmatprep.subr.mxu0 0.0
    %5469 = vmatpush2.msra.mxu0 0.0
    %5470 = vmatprep.subr.mxu0 0.0
    %5471 = vmatpush2.msra.mxu0 0.0
    %5472 = vmatprep.subr.mxu0 0.0
    %5473 = vmatpush2.msra.mxu0 0.0
    %5474 = vmatprep.subr.mxu0 0.0
    %5475 = vmatpush2.msra.mxu0 0.0
    %5476 = vmatprep.subr.mxu0 0.0
    %5477 = vmatpush2.msra.mxu0 0.0
    %5478 = vmatprep.mubr.f32.mxu0 0.0
    %5479 = vmatmul.mubr.f32.gmra.mxu0 %v5412
    %v5480 = vpop.f32.mrf.mxu0
    %v5481 = vadd.f32 %v255, %v5480
    %v5482 = vpop.f32.mrf.mxu0
    %5483 = vdwg.mxu0
    %v5484 = vtanh.pop %v5481
    %v5486 = vsel %vm435, %v5484, 0
    %5488 = vmatprep.subr.mxu0 0.0
    %5489 = vmatpush1.msra.mxu0 0.0
    %5490 = vmatprep.subr.mxu0 0.0
    %5491 = vmatpush1.msra.mxu0 0.0
    %5492 = vmatprep.subr.mxu0 0.0
    %5493 = vmatpush1.msra.mxu0 0.0
    %5494 = vmatprep.subr.mxu0 0.0
    %5495 = vmatpush1.msra.mxu0 0.0
    %5496 = vmatprep.subr.mxu0 0.0
    %5497 = vmatpush1.msra.mxu0 0.0
    %5498 = vmatprep.subr.mxu0 0.0
    %5499 = vmatpush1.msra.mxu0 0.0
    %5500 = vmatprep.subr.mxu0 0.0
    %5501 = vmatpush1.msra.mxu0 0.0
    %5502 = vmatprep.subr.mxu0 0.0
    %5503 = vmatpush1.msra.mxu0 0.0
    %5504 = vmatprep.subr.mxu0 0.0
    %5505 = vmatpush1.msra.mxu0 0.0
    %5506 = vmatprep.subr.mxu0 0.0
    %5507 = vmatpush1.msra.mxu0 0.0
    %5508 = vmatprep.subr.mxu0 0.0
    %5509 = vmatpush1.msra.mxu0 0.0
    %5510 = vmatprep.subr.mxu0 0.0
    %5511 = vmatpush1.msra.mxu0 0.0
    %5512 = vmatprep.subr.mxu0 0.0
    %5513 = vmatpush1.msra.mxu0 %v48
    %5514 = vmatprep.subr.mxu0 0.0
    %5515 = vmatpush1.msra.mxu0 %v47
    %5516 = vmatprep.subr.mxu0 0.0
    %5517 = vmatpush1.msra.mxu0 %v46
    %5518 = vmatprep.subr.mxu0 0.0
    %5519 = vmatpush1.msra.mxu0 %v45
    %5520 = vmatprep.subr.mxu0 0.0
    %5521 = vmatpush2.msra.mxu0 0.0
    %5522 = vmatprep.subr.mxu0 0.0
    %5523 = vmatpush2.msra.mxu0 0.0
    %5524 = vmatprep.subr.mxu0 0.0
    %5525 = vmatpush2.msra.mxu0 0.0
    %5526 = vmatprep.subr.mxu0 0.0
    %5527 = vmatpush2.msra.mxu0 0.0
    %5528 = vmatprep.subr.mxu0 0.0
    %5529 = vmatpush2.msra.mxu0 0.0
    %5530 = vmatprep.subr.mxu0 0.0
    %5531 = vmatpush2.msra.mxu0 0.0
    %5532 = vmatprep.subr.mxu0 0.0
    %5533 = vmatpush2.msra.mxu0 0.0
    %5534 = vmatprep.subr.mxu0 0.0
    %5535 = vmatpush2.msra.mxu0 0.0
    %5536 = vmatprep.subr.mxu0 0.0
    %5537 = vmatpush2.msra.mxu0 0.0
    %5538 = vmatprep.subr.mxu0 0.0
    %5539 = vmatpush2.msra.mxu0 0.0
    %5540 = vmatprep.subr.mxu0 0.0
    %5541 = vmatpush2.msra.mxu0 0.0
    %5542 = vmatprep.subr.mxu0 0.0
    %5543 = vmatpush2.msra.mxu0 0.0
    %5544 = vmatprep.subr.mxu0 0.0
    %5545 = vmatpush2.msra.mxu0 0.0
    %5546 = vmatprep.subr.mxu0 0.0
    %5547 = vmatpush2.msra.mxu0 0.0
    %5548 = vmatprep.subr.mxu0 0.0
    %5549 = vmatpush2.msra.mxu0 0.0
    %5550 = vmatprep.subr.mxu0 0.0
    %5551 = vmatpush2.msra.mxu0 0.0
    %5552 = vmatprep.mubr.f32.mxu0 0.0
    %5553 = vmatmul.mubr.f32.gmra.mxu0 %v5486
    %v5554 = vpop.f32.mrf.mxu0
    %v5555 = vadd.f32 %v433, %v5554
    %v5556 = vpop.f32.mrf.mxu0
    %5557 = vdwg.mxu0
    %v5558 = vstv %s5411
    %v5559 = vmul.f32 %v5558, %v5555
    %v5560 = vadd.f32 %v5397, %v5559
    %v5563 = vunpack.c.l.s4 1983009808
    %v5564 = vunpack.c.0.s8 %v5563
    %v5565 = vlaneseq
    %v5566 = vshrl.u32 %v5565, 7
    %v5567 = vsub.s32 %v5564, %v5566
    %v5568 = vrot.slane %v5560, %v5567
    %5569 = vrot.lane.b32.xlu0 %v5568, 120
    %v5570 = vpop.permute.xlu0 %5569
    %5572 = vst.msk [vmem:[#allocation5 + $0x2] sm:$0x3] %vm2973, %v5570
    %s5573 = sadd.s32 %s352, 32
    %s5574 = sld [smem:[#allocation4 + %s5573]]
    %v5575 = vsel %vm354, %v5560, 0
    %5577 = vmatprep.subr.mxu0 0.0
    %5578 = vmatpush1.msra.mxu0 0.0
    %5579 = vmatprep.subr.mxu0 0.0
    %5580 = vmatpush1.msra.mxu0 0.0
    %5581 = vmatprep.subr.mxu0 0.0
    %5582 = vmatpush1.msra.mxu0 0.0
    %5583 = vmatprep.subr.mxu0 0.0
    %5584 = vmatpush1.msra.mxu0 0.0
    %5585 = vmatprep.subr.mxu0 0.0
    %5586 = vmatpush1.msra.mxu0 0.0
    %5587 = vmatprep.subr.mxu0 0.0
    %5588 = vmatpush1.msra.mxu0 0.0
    %5589 = vmatprep.subr.mxu0 0.0
    %5590 = vmatpush1.msra.mxu0 0.0
    %5591 = vmatprep.subr.mxu0 0.0
    %5592 = vmatpush1.msra.mxu0 0.0
    %5593 = vmatprep.subr.mxu0 0.0
    %5594 = vmatpush1.msra.mxu0 0.0
    %5595 = vmatprep.subr.mxu0 0.0
    %5596 = vmatpush1.msra.mxu0 0.0
    %5597 = vmatprep.subr.mxu0 0.0
    %5598 = vmatpush1.msra.mxu0 0.0
    %5599 = vmatprep.subr.mxu0 0.0
    %5600 = vmatpush1.msra.mxu0 0.0
    %5601 = vmatprep.subr.mxu0 0.0
    %5602 = vmatpush1.msra.mxu0 0.0
    %5603 = vmatprep.subr.mxu0 0.0
    %5604 = vmatpush1.msra.mxu0 0.0
    %5605 = vmatprep.subr.mxu0 0.0
    %5606 = vmatpush1.msra.mxu0 0.0
    %5607 = vmatprep.subr.mxu0 0.0
    %5608 = vmatpush1.msra.mxu0 %v42
    %5609 = vmatprep.subr.mxu0 0.0
    %5610 = vmatpush2.msra.mxu0 0.0
    %5611 = vmatprep.subr.mxu0 0.0
    %5612 = vmatpush2.msra.mxu0 0.0
    %5613 = vmatprep.subr.mxu0 0.0
    %5614 = vmatpush2.msra.mxu0 0.0
    %5615 = vmatprep.subr.mxu0 0.0
    %5616 = vmatpush2.msra.mxu0 0.0
    %5617 = vmatprep.subr.mxu0 0.0
    %5618 = vmatpush2.msra.mxu0 0.0
    %5619 = vmatprep.subr.mxu0 0.0
    %5620 = vmatpush2.msra.mxu0 0.0
    %5621 = vmatprep.subr.mxu0 0.0
    %5622 = vmatpush2.msra.mxu0 0.0
    %5623 = vmatprep.subr.mxu0 0.0
    %5624 = vmatpush2.msra.mxu0 0.0
    %5625 = vmatprep.subr.mxu0 0.0
    %5626 = vmatpush2.msra.mxu0 0.0
    %5627 = vmatprep.subr.mxu0 0.0
    %5628 = vmatpush2.msra.mxu0 0.0
    %5629 = vmatprep.subr.mxu0 0.0
    %5630 = vmatpush2.msra.mxu0 0.0
    %5631 = vmatprep.subr.mxu0 0.0
    %5632 = vmatpush2.msra.mxu0 0.0
    %5633 = vmatprep.subr.mxu0 0.0
    %5634 = vmatpush2.msra.mxu0 0.0
    %5635 = vmatprep.subr.mxu0 0.0
    %5636 = vmatpush2.msra.mxu0 0.0
    %5637 = vmatprep.subr.mxu0 0.0
    %5638 = vmatpush2.msra.mxu0 0.0
    %5639 = vmatprep.subr.mxu0 0.0
    %5640 = vmatpush2.msra.mxu0 0.0
    %5641 = vmatprep.mubr.f32.mxu0 0.0
    %5642 = vmatmul.mubr.f32.gmra.mxu0 %v5575
    %v5643 = vpop.f32.mrf.mxu0
    %v5644 = vadd.f32 %v261, %v5643
    %v5645 = vpop.f32.mrf.mxu0
    %5646 = vdwg.mxu0
    %v5647 = vtanh.pop %v5644
    %v5649 = vsel %vm435, %v5647, 0
    %5651 = vmatprep.subr.mxu0 0.0
    %5652 = vmatpush1.msra.mxu0 0.0
    %5653 = vmatprep.subr.mxu0 0.0
    %5654 = vmatpush1.msra.mxu0 0.0
    %5655 = vmatprep.subr.mxu0 0.0
    %5656 = vmatpush1.msra.mxu0 0.0
    %5657 = vmatprep.subr.mxu0 0.0
    %5658 = vmatpush1.msra.mxu0 0.0
    %5659 = vmatprep.subr.mxu0 0.0
    %5660 = vmatpush1.msra.mxu0 0.0
    %5661 = vmatprep.subr.mxu0 0.0
    %5662 = vmatpush1.msra.mxu0 0.0
    %5663 = vmatprep.subr.mxu0 0.0
    %5664 = vmatpush1.msra.mxu0 0.0
    %5665 = vmatprep.subr.mxu0 0.0
    %5666 = vmatpush1.msra.mxu0 0.0
    %5667 = vmatprep.subr.mxu0 0.0
    %5668 = vmatpush1.msra.mxu0 0.0
    %5669 = vmatprep.subr.mxu0 0.0
    %5670 = vmatpush1.msra.mxu0 0.0
    %5671 = vmatprep.subr.mxu0 0.0
    %5672 = vmatpush1.msra.mxu0 0.0
    %5673 = vmatprep.subr.mxu0 0.0
    %5674 = vmatpush1.msra.mxu0 0.0
    %5675 = vmatprep.subr.mxu0 0.0
    %5676 = vmatpush1.msra.mxu0 %v48
    %5677 = vmatprep.subr.mxu0 0.0
    %5678 = vmatpush1.msra.mxu0 %v47
    %5679 = vmatprep.subr.mxu0 0.0
    %5680 = vmatpush1.msra.mxu0 %v46
    %5681 = vmatprep.subr.mxu0 0.0
    %5682 = vmatpush1.msra.mxu0 %v45
    %5683 = vmatprep.subr.mxu0 0.0
    %5684 = vmatpush2.msra.mxu0 0.0
    %5685 = vmatprep.subr.mxu0 0.0
    %5686 = vmatpush2.msra.mxu0 0.0
    %5687 = vmatprep.subr.mxu0 0.0
    %5688 = vmatpush2.msra.mxu0 0.0
    %5689 = vmatprep.subr.mxu0 0.0
    %5690 = vmatpush2.msra.mxu0 0.0
    %5691 = vmatprep.subr.mxu0 0.0
    %5692 = vmatpush2.msra.mxu0 0.0
    %5693 = vmatprep.subr.mxu0 0.0
    %5694 = vmatpush2.msra.mxu0 0.0
    %5695 = vmatprep.subr.mxu0 0.0
    %5696 = vmatpush2.msra.mxu0 0.0
    %5697 = vmatprep.subr.mxu0 0.0
    %5698 = vmatpush2.msra.mxu0 0.0
    %5699 = vmatprep.subr.mxu0 0.0
    %5700 = vmatpush2.msra.mxu0 0.0
    %5701 = vmatprep.subr.mxu0 0.0
    %5702 = vmatpush2.msra.mxu0 0.0
    %5703 = vmatprep.subr.mxu0 0.0
    %5704 = vmatpush2.msra.mxu0 0.0
    %5705 = vmatprep.subr.mxu0 0.0
    %5706 = vmatpush2.msra.mxu0 0.0
    %5707 = vmatprep.subr.mxu0 0.0
    %5708 = vmatpush2.msra.mxu0 0.0
    %5709 = vmatprep.subr.mxu0 0.0
    %5710 = vmatpush2.msra.mxu0 0.0
    %5711 = vmatprep.subr.mxu0 0.0
    %5712 = vmatpush2.msra.mxu0 0.0
    %5713 = vmatprep.subr.mxu0 0.0
    %5714 = vmatpush2.msra.mxu0 0.0
    %5715 = vmatprep.mubr.f32.mxu0 0.0
    %5716 = vmatmul.mubr.f32.gmra.mxu0 %v5649
    %v5717 = vpop.f32.mrf.mxu0
    %v5718 = vadd.f32 %v433, %v5717
    %v5719 = vpop.f32.mrf.mxu0
    %5720 = vdwg.mxu0
    %v5721 = vstv %s5574
    %v5722 = vmul.f32 %v5721, %v5718
    %v5723 = vadd.f32 %v5560, %v5722
    %5724 = vst.msk [vmem:[#allocation5 + $0x4] sm:$0x3] %vm512, %v5723
    %s5725 = sadd.s32 %s352, 33
    %s5726 = sld [smem:[#allocation4 + %s5725]]
    %v5728 = vsel %vm354, %v5723, 0
    %5730 = vmatprep.subr.mxu0 0.0
    %5731 = vmatpush1.msra.mxu0 0.0
    %5732 = vmatprep.subr.mxu0 0.0
    %5733 = vmatpush1.msra.mxu0 0.0
    %5734 = vmatprep.subr.mxu0 0.0
    %5735 = vmatpush1.msra.mxu0 0.0
    %5736 = vmatprep.subr.mxu0 0.0
    %5737 = vmatpush1.msra.mxu0 0.0
    %5738 = vmatprep.subr.mxu0 0.0
    %5739 = vmatpush1.msra.mxu0 0.0
    %5740 = vmatprep.subr.mxu0 0.0
    %5741 = vmatpush1.msra.mxu0 0.0
    %5742 = vmatprep.subr.mxu0 0.0
    %5743 = vmatpush1.msra.mxu0 0.0
    %5744 = vmatprep.subr.mxu0 0.0
    %5745 = vmatpush1.msra.mxu0 0.0
    %5746 = vmatprep.subr.mxu0 0.0
    %5747 = vmatpush1.msra.mxu0 0.0
    %5748 = vmatprep.subr.mxu0 0.0
    %5749 = vmatpush1.msra.mxu0 0.0
    %5750 = vmatprep.subr.mxu0 0.0
    %5751 = vmatpush1.msra.mxu0 0.0
    %5752 = vmatprep.subr.mxu0 0.0
    %5753 = vmatpush1.msra.mxu0 0.0
    %5754 = vmatprep.subr.mxu0 0.0
    %5755 = vmatpush1.msra.mxu0 0.0
    %5756 = vmatprep.subr.mxu0 0.0
    %5757 = vmatpush1.msra.mxu0 0.0
    %5758 = vmatprep.subr.mxu0 0.0
    %5759 = vmatpush1.msra.mxu0 0.0
    %5760 = vmatprep.subr.mxu0 0.0
    %5761 = vmatpush1.msra.mxu0 %v42
    %5762 = vmatprep.subr.mxu0 0.0
    %5763 = vmatpush2.msra.mxu0 0.0
    %5764 = vmatprep.subr.mxu0 0.0
    %5765 = vmatpush2.msra.mxu0 0.0
    %5766 = vmatprep.subr.mxu0 0.0
    %5767 = vmatpush2.msra.mxu0 0.0
    %5768 = vmatprep.subr.mxu0 0.0
    %5769 = vmatpush2.msra.mxu0 0.0
    %5770 = vmatprep.subr.mxu0 0.0
    %5771 = vmatpush2.msra.mxu0 0.0
    %5772 = vmatprep.subr.mxu0 0.0
    %5773 = vmatpush2.msra.mxu0 0.0
    %5774 = vmatprep.subr.mxu0 0.0
    %5775 = vmatpush2.msra.mxu0 0.0
    %5776 = vmatprep.subr.mxu0 0.0
    %5777 = vmatpush2.msra.mxu0 0.0
    %5778 = vmatprep.subr.mxu0 0.0
    %5779 = vmatpush2.msra.mxu0 0.0
    %5780 = vmatprep.subr.mxu0 0.0
    %5781 = vmatpush2.msra.mxu0 0.0
    %5782 = vmatprep.subr.mxu0 0.0
    %5783 = vmatpush2.msra.mxu0 0.0
    %5784 = vmatprep.subr.mxu0 0.0
    %5785 = vmatpush2.msra.mxu0 0.0
    %5786 = vmatprep.subr.mxu0 0.0
    %5787 = vmatpush2.msra.mxu0 0.0
    %5788 = vmatprep.subr.mxu0 0.0
    %5789 = vmatpush2.msra.mxu0 0.0
    %5790 = vmatprep.subr.mxu0 0.0
    %5791 = vmatpush2.msra.mxu0 0.0
    %5792 = vmatprep.subr.mxu0 0.0
    %5793 = vmatpush2.msra.mxu0 0.0
    %5794 = vmatprep.mubr.f32.mxu0 0.0
    %5795 = vmatmul.mubr.f32.gmra.mxu0 %v5728
    %v5796 = vpop.f32.mrf.mxu0
    %v5797 = vadd.f32 %v267, %v5796
    %v5798 = vpop.f32.mrf.mxu0
    %5799 = vdwg.mxu0
    %v5800 = vtanh.pop %v5797
    %v5802 = vsel %vm435, %v5800, 0
    %5804 = vmatprep.subr.mxu0 0.0
    %5805 = vmatpush1.msra.mxu0 0.0
    %5806 = vmatprep.subr.mxu0 0.0
    %5807 = vmatpush1.msra.mxu0 0.0
    %5808 = vmatprep.subr.mxu0 0.0
    %5809 = vmatpush1.msra.mxu0 0.0
    %5810 = vmatprep.subr.mxu0 0.0
    %5811 = vmatpush1.msra.mxu0 0.0
    %5812 = vmatprep.subr.mxu0 0.0
    %5813 = vmatpush1.msra.mxu0 0.0
    %5814 = vmatprep.subr.mxu0 0.0
    %5815 = vmatpush1.msra.mxu0 0.0
    %5816 = vmatprep.subr.mxu0 0.0
    %5817 = vmatpush1.msra.mxu0 0.0
    %5818 = vmatprep.subr.mxu0 0.0
    %5819 = vmatpush1.msra.mxu0 0.0
    %5820 = vmatprep.subr.mxu0 0.0
    %5821 = vmatpush1.msra.mxu0 0.0
    %5822 = vmatprep.subr.mxu0 0.0
    %5823 = vmatpush1.msra.mxu0 0.0
    %5824 = vmatprep.subr.mxu0 0.0
    %5825 = vmatpush1.msra.mxu0 0.0
    %5826 = vmatprep.subr.mxu0 0.0
    %5827 = vmatpush1.msra.mxu0 0.0
    %5828 = vmatprep.subr.mxu0 0.0
    %5829 = vmatpush1.msra.mxu0 %v48
    %5830 = vmatprep.subr.mxu0 0.0
    %5831 = vmatpush1.msra.mxu0 %v47
    %5832 = vmatprep.subr.mxu0 0.0
    %5833 = vmatpush1.msra.mxu0 %v46
    %5834 = vmatprep.subr.mxu0 0.0
    %5835 = vmatpush1.msra.mxu0 %v45
    %5836 = vmatprep.subr.mxu0 0.0
    %5837 = vmatpush2.msra.mxu0 0.0
    %5838 = vmatprep.subr.mxu0 0.0
    %5839 = vmatpush2.msra.mxu0 0.0
    %5840 = vmatprep.subr.mxu0 0.0
    %5841 = vmatpush2.msra.mxu0 0.0
    %5842 = vmatprep.subr.mxu0 0.0
    %5843 = vmatpush2.msra.mxu0 0.0
    %5844 = vmatprep.subr.mxu0 0.0
    %5845 = vmatpush2.msra.mxu0 0.0
    %5846 = vmatprep.subr.mxu0 0.0
    %5847 = vmatpush2.msra.mxu0 0.0
    %5848 = vmatprep.subr.mxu0 0.0
    %5849 = vmatpush2.msra.mxu0 0.0
    %5850 = vmatprep.subr.mxu0 0.0
    %5851 = vmatpush2.msra.mxu0 0.0
    %5852 = vmatprep.subr.mxu0 0.0
    %5853 = vmatpush2.msra.mxu0 0.0
    %5854 = vmatprep.subr.mxu0 0.0
    %5855 = vmatpush2.msra.mxu0 0.0
    %5856 = vmatprep.subr.mxu0 0.0
    %5857 = vmatpush2.msra.mxu0 0.0
    %5858 = vmatprep.subr.mxu0 0.0
    %5859 = vmatpush2.msra.mxu0 0.0
    %5860 = vmatprep.subr.mxu0 0.0
    %5861 = vmatpush2.msra.mxu0 0.0
    %5862 = vmatprep.subr.mxu0 0.0
    %5863 = vmatpush2.msra.mxu0 0.0
    %5864 = vmatprep.subr.mxu0 0.0
    %5865 = vmatpush2.msra.mxu0 0.0
    %5866 = vmatprep.subr.mxu0 0.0
    %5867 = vmatpush2.msra.mxu0 0.0
    %5868 = vmatprep.mubr.f32.mxu0 0.0
    %5869 = vmatmul.mubr.f32.gmra.mxu0 %v5802
    %v5870 = vpop.f32.mrf.mxu0
    %v5871 = vadd.f32 %v433, %v5870
    %v5872 = vpop.f32.mrf.mxu0
    %5873 = vdwg.mxu0
    %v5874 = vstv %s5726
    %v5875 = vmul.f32 %v5874, %v5871
    %v5876 = vadd.f32 %v5723, %v5875
    %v5879 = vunpack.c.l.s4 1983009808
    %v5880 = vunpack.c.0.s8 %v5879
    %v5881 = vlaneseq
    %v5882 = vshrl.u32 %v5881, 7
    %v5883 = vsub.s32 %v5880, %v5882
    %v5884 = vrot.slane %v5876, %v5883
    %5885 = vrot.lane.b32.xlu0 %v5884, 8
    %v5886 = vpop.permute.xlu0 %5885
    %5888 = vst.msk [vmem:[#allocation5 + $0x4] sm:$0x3] %vm677, %v5886
    %s5889 = sadd.s32 %s352, 34
    %s5890 = sld [smem:[#allocation4 + %s5889]]
    %v5891 = vsel %vm354, %v5876, 0
    %5893 = vmatprep.subr.mxu0 0.0
    %5894 = vmatpush1.msra.mxu0 0.0
    %5895 = vmatprep.subr.mxu0 0.0
    %5896 = vmatpush1.msra.mxu0 0.0
    %5897 = vmatprep.subr.mxu0 0.0
    %5898 = vmatpush1.msra.mxu0 0.0
    %5899 = vmatprep.subr.mxu0 0.0
    %5900 = vmatpush1.msra.mxu0 0.0
    %5901 = vmatprep.subr.mxu0 0.0
    %5902 = vmatpush1.msra.mxu0 0.0
    %5903 = vmatprep.subr.mxu0 0.0
    %5904 = vmatpush1.msra.mxu0 0.0
    %5905 = vmatprep.subr.mxu0 0.0
    %5906 = vmatpush1.msra.mxu0 0.0
    %5907 = vmatprep.subr.mxu0 0.0
    %5908 = vmatpush1.msra.mxu0 0.0
    %5909 = vmatprep.subr.mxu0 0.0
    %5910 = vmatpush1.msra.mxu0 0.0
    %5911 = vmatprep.subr.mxu0 0.0
    %5912 = vmatpush1.msra.mxu0 0.0
    %5913 = vmatprep.subr.mxu0 0.0
    %5914 = vmatpush1.msra.mxu0 0.0
    %5915 = vmatprep.subr.mxu0 0.0
    %5916 = vmatpush1.msra.mxu0 0.0
    %5917 = vmatprep.subr.mxu0 0.0
    %5918 = vmatpush1.msra.mxu0 0.0
    %5919 = vmatprep.subr.mxu0 0.0
    %5920 = vmatpush1.msra.mxu0 0.0
    %5921 = vmatprep.subr.mxu0 0.0
    %5922 = vmatpush1.msra.mxu0 0.0
    %5923 = vmatprep.subr.mxu0 0.0
    %5924 = vmatpush1.msra.mxu0 %v42
    %5925 = vmatprep.subr.mxu0 0.0
    %5926 = vmatpush2.msra.mxu0 0.0
    %5927 = vmatprep.subr.mxu0 0.0
    %5928 = vmatpush2.msra.mxu0 0.0
    %5929 = vmatprep.subr.mxu0 0.0
    %5930 = vmatpush2.msra.mxu0 0.0
    %5931 = vmatprep.subr.mxu0 0.0
    %5932 = vmatpush2.msra.mxu0 0.0
    %5933 = vmatprep.subr.mxu0 0.0
    %5934 = vmatpush2.msra.mxu0 0.0
    %5935 = vmatprep.subr.mxu0 0.0
    %5936 = vmatpush2.msra.mxu0 0.0
    %5937 = vmatprep.subr.mxu0 0.0
    %5938 = vmatpush2.msra.mxu0 0.0
    %5939 = vmatprep.subr.mxu0 0.0
    %5940 = vmatpush2.msra.mxu0 0.0
    %5941 = vmatprep.subr.mxu0 0.0
    %5942 = vmatpush2.msra.mxu0 0.0
    %5943 = vmatprep.subr.mxu0 0.0
    %5944 = vmatpush2.msra.mxu0 0.0
    %5945 = vmatprep.subr.mxu0 0.0
    %5946 = vmatpush2.msra.mxu0 0.0
    %5947 = vmatprep.subr.mxu0 0.0
    %5948 = vmatpush2.msra.mxu0 0.0
    %5949 = vmatprep.subr.mxu0 0.0
    %5950 = vmatpush2.msra.mxu0 0.0
    %5951 = vmatprep.subr.mxu0 0.0
    %5952 = vmatpush2.msra.mxu0 0.0
    %5953 = vmatprep.subr.mxu0 0.0
    %5954 = vmatpush2.msra.mxu0 0.0
    %5955 = vmatprep.subr.mxu0 0.0
    %5956 = vmatpush2.msra.mxu0 0.0
    %5957 = vmatprep.mubr.f32.mxu0 0.0
    %5958 = vmatmul.mubr.f32.gmra.mxu0 %v5891
    %v5959 = vpop.f32.mrf.mxu0
    %v5960 = vadd.f32 %v273, %v5959
    %v5961 = vpop.f32.mrf.mxu0
    %5962 = vdwg.mxu0
    %v5963 = vtanh.pop %v5960
    %v5965 = vsel %vm435, %v5963, 0
    %5967 = vmatprep.subr.mxu0 0.0
    %5968 = vmatpush1.msra.mxu0 0.0
    %5969 = vmatprep.subr.mxu0 0.0
    %5970 = vmatpush1.msra.mxu0 0.0
    %5971 = vmatprep.subr.mxu0 0.0
    %5972 = vmatpush1.msra.mxu0 0.0
    %5973 = vmatprep.subr.mxu0 0.0
    %5974 = vmatpush1.msra.mxu0 0.0
    %5975 = vmatprep.subr.mxu0 0.0
    %5976 = vmatpush1.msra.mxu0 0.0
    %5977 = vmatprep.subr.mxu0 0.0
    %5978 = vmatpush1.msra.mxu0 0.0
    %5979 = vmatprep.subr.mxu0 0.0
    %5980 = vmatpush1.msra.mxu0 0.0
    %5981 = vmatprep.subr.mxu0 0.0
    %5982 = vmatpush1.msra.mxu0 0.0
    %5983 = vmatprep.subr.mxu0 0.0
    %5984 = vmatpush1.msra.mxu0 0.0
    %5985 = vmatprep.subr.mxu0 0.0
    %5986 = vmatpush1.msra.mxu0 0.0
    %5987 = vmatprep.subr.mxu0 0.0
    %5988 = vmatpush1.msra.mxu0 0.0
    %5989 = vmatprep.subr.mxu0 0.0
    %5990 = vmatpush1.msra.mxu0 0.0
    %5991 = vmatprep.subr.mxu0 0.0
    %5992 = vmatpush1.msra.mxu0 %v48
    %5993 = vmatprep.subr.mxu0 0.0
    %5994 = vmatpush1.msra.mxu0 %v47
    %5995 = vmatprep.subr.mxu0 0.0
    %5996 = vmatpush1.msra.mxu0 %v46
    %5997 = vmatprep.subr.mxu0 0.0
    %5998 = vmatpush1.msra.mxu0 %v45
    %5999 = vmatprep.subr.mxu0 0.0
    %6000 = vmatpush2.msra.mxu0 0.0
    %6001 = vmatprep.subr.mxu0 0.0
    %6002 = vmatpush2.msra.mxu0 0.0
    %6003 = vmatprep.subr.mxu0 0.0
    %6004 = vmatpush2.msra.mxu0 0.0
    %6005 = vmatprep.subr.mxu0 0.0
    %6006 = vmatpush2.msra.mxu0 0.0
    %6007 = vmatprep.subr.mxu0 0.0
    %6008 = vmatpush2.msra.mxu0 0.0
    %6009 = vmatprep.subr.mxu0 0.0
    %6010 = vmatpush2.msra.mxu0 0.0
    %6011 = vmatprep.subr.mxu0 0.0
    %6012 = vmatpush2.msra.mxu0 0.0
    %6013 = vmatprep.subr.mxu0 0.0
    %6014 = vmatpush2.msra.mxu0 0.0
    %6015 = vmatprep.subr.mxu0 0.0
    %6016 = vmatpush2.msra.mxu0 0.0
    %6017 = vmatprep.subr.mxu0 0.0
    %6018 = vmatpush2.msra.mxu0 0.0
    %6019 = vmatprep.subr.mxu0 0.0
    %6020 = vmatpush2.msra.mxu0 0.0
    %6021 = vmatprep.subr.mxu0 0.0
    %6022 = vmatpush2.msra.mxu0 0.0
    %6023 = vmatprep.subr.mxu0 0.0
    %6024 = vmatpush2.msra.mxu0 0.0
    %6025 = vmatprep.subr.mxu0 0.0
    %6026 = vmatpush2.msra.mxu0 0.0
    %6027 = vmatprep.subr.mxu0 0.0
    %6028 = vmatpush2.msra.mxu0 0.0
    %6029 = vmatprep.subr.mxu0 0.0
    %6030 = vmatpush2.msra.mxu0 0.0
    %6031 = vmatprep.mubr.f32.mxu0 0.0
    %6032 = vmatmul.mubr.f32.gmra.mxu0 %v5965
    %v6033 = vpop.f32.mrf.mxu0
    %v6034 = vadd.f32 %v433, %v6033
    %v6035 = vpop.f32.mrf.mxu0
    %6036 = vdwg.mxu0
    %v6037 = vstv %s5890
    %v6038 = vmul.f32 %v6037, %v6034
    %v6039 = vadd.f32 %v5876, %v6038
    %v6042 = vunpack.c.l.s4 1983009808
    %v6043 = vunpack.c.0.s8 %v6042
    %v6044 = vlaneseq
    %v6045 = vshrl.u32 %v6044, 7
    %v6046 = vsub.s32 %v6043, %v6045
    %v6047 = vrot.slane %v6039, %v6046
    %6048 = vrot.lane.b32.xlu0 %v6047, 16
    %v6049 = vpop.permute.xlu0 %6048
    %6051 = vst.msk [vmem:[#allocation5 + $0x4] sm:$0x3] %vm841, %v6049
    %s6052 = sadd.s32 %s352, 35
    %s6053 = sld [smem:[#allocation4 + %s6052]]
    %v6054 = vsel %vm354, %v6039, 0
    %6056 = vmatprep.subr.mxu0 0.0
    %6057 = vmatpush1.msra.mxu0 0.0
    %6058 = vmatprep.subr.mxu0 0.0
    %6059 = vmatpush1.msra.mxu0 0.0
    %6060 = vmatprep.subr.mxu0 0.0
    %6061 = vmatpush1.msra.mxu0 0.0
    %6062 = vmatprep.subr.mxu0 0.0
    %6063 = vmatpush1.msra.mxu0 0.0
    %6064 = vmatprep.subr.mxu0 0.0
    %6065 = vmatpush1.msra.mxu0 0.0
    %6066 = vmatprep.subr.mxu0 0.0
    %6067 = vmatpush1.msra.mxu0 0.0
    %6068 = vmatprep.subr.mxu0 0.0
    %6069 = vmatpush1.msra.mxu0 0.0
    %6070 = vmatprep.subr.mxu0 0.0
    %6071 = vmatpush1.msra.mxu0 0.0
    %6072 = vmatprep.subr.mxu0 0.0
    %6073 = vmatpush1.msra.mxu0 0.0
    %6074 = vmatprep.subr.mxu0 0.0
    %6075 = vmatpush1.msra.mxu0 0.0
    %6076 = vmatprep.subr.mxu0 0.0
    %6077 = vmatpush1.msra.mxu0 0.0
    %6078 = vmatprep.subr.mxu0 0.0
    %6079 = vmatpush1.msra.mxu0 0.0
    %6080 = vmatprep.subr.mxu0 0.0
    %6081 = vmatpush1.msra.mxu0 0.0
    %6082 = vmatprep.subr.mxu0 0.0
    %6083 = vmatpush1.msra.mxu0 0.0
    %6084 = vmatprep.subr.mxu0 0.0
    %6085 = vmatpush1.msra.mxu0 0.0
    %6086 = vmatprep.subr.mxu0 0.0
    %6087 = vmatpush1.msra.mxu0 %v42
    %6088 = vmatprep.subr.mxu0 0.0
    %6089 = vmatpush2.msra.mxu0 0.0
    %6090 = vmatprep.subr.mxu0 0.0
    %6091 = vmatpush2.msra.mxu0 0.0
    %6092 = vmatprep.subr.mxu0 0.0
    %6093 = vmatpush2.msra.mxu0 0.0
    %6094 = vmatprep.subr.mxu0 0.0
    %6095 = vmatpush2.msra.mxu0 0.0
    %6096 = vmatprep.subr.mxu0 0.0
    %6097 = vmatpush2.msra.mxu0 0.0
    %6098 = vmatprep.subr.mxu0 0.0
    %6099 = vmatpush2.msra.mxu0 0.0
    %6100 = vmatprep.subr.mxu0 0.0
    %6101 = vmatpush2.msra.mxu0 0.0
    %6102 = vmatprep.subr.mxu0 0.0
    %6103 = vmatpush2.msra.mxu0 0.0
    %6104 = vmatprep.subr.mxu0 0.0
    %6105 = vmatpush2.msra.mxu0 0.0
    %6106 = vmatprep.subr.mxu0 0.0
    %6107 = vmatpush2.msra.mxu0 0.0
    %6108 = vmatprep.subr.mxu0 0.0
    %6109 = vmatpush2.msra.mxu0 0.0
    %6110 = vmatprep.subr.mxu0 0.0
    %6111 = vmatpush2.msra.mxu0 0.0
    %6112 = vmatprep.subr.mxu0 0.0
    %6113 = vmatpush2.msra.mxu0 0.0
    %6114 = vmatprep.subr.mxu0 0.0
    %6115 = vmatpush2.msra.mxu0 0.0
    %6116 = vmatprep.subr.mxu0 0.0
    %6117 = vmatpush2.msra.mxu0 0.0
    %6118 = vmatprep.subr.mxu0 0.0
    %6119 = vmatpush2.msra.mxu0 0.0
    %6120 = vmatprep.mubr.f32.mxu0 0.0
    %6121 = vmatmul.mubr.f32.gmra.mxu0 %v6054
    %v6122 = vpop.f32.mrf.mxu0
    %v6123 = vadd.f32 %v279, %v6122
    %v6124 = vpop.f32.mrf.mxu0
    %6125 = vdwg.mxu0
    %v6126 = vtanh.pop %v6123
    %v6128 = vsel %vm435, %v6126, 0
    %6130 = vmatprep.subr.mxu0 0.0
    %6131 = vmatpush1.msra.mxu0 0.0
    %6132 = vmatprep.subr.mxu0 0.0
    %6133 = vmatpush1.msra.mxu0 0.0
    %6134 = vmatprep.subr.mxu0 0.0
    %6135 = vmatpush1.msra.mxu0 0.0
    %6136 = vmatprep.subr.mxu0 0.0
    %6137 = vmatpush1.msra.mxu0 0.0
    %6138 = vmatprep.subr.mxu0 0.0
    %6139 = vmatpush1.msra.mxu0 0.0
    %6140 = vmatprep.subr.mxu0 0.0
    %6141 = vmatpush1.msra.mxu0 0.0
    %6142 = vmatprep.subr.mxu0 0.0
    %6143 = vmatpush1.msra.mxu0 0.0
    %6144 = vmatprep.subr.mxu0 0.0
    %6145 = vmatpush1.msra.mxu0 0.0
    %6146 = vmatprep.subr.mxu0 0.0
    %6147 = vmatpush1.msra.mxu0 0.0
    %6148 = vmatprep.subr.mxu0 0.0
    %6149 = vmatpush1.msra.mxu0 0.0
    %6150 = vmatprep.subr.mxu0 0.0
    %6151 = vmatpush1.msra.mxu0 0.0
    %6152 = vmatprep.subr.mxu0 0.0
    %6153 = vmatpush1.msra.mxu0 0.0
    %6154 = vmatprep.subr.mxu0 0.0
    %6155 = vmatpush1.msra.mxu0 %v48
    %6156 = vmatprep.subr.mxu0 0.0
    %6157 = vmatpush1.msra.mxu0 %v47
    %6158 = vmatprep.subr.mxu0 0.0
    %6159 = vmatpush1.msra.mxu0 %v46
    %6160 = vmatprep.subr.mxu0 0.0
    %6161 = vmatpush1.msra.mxu0 %v45
    %6162 = vmatprep.subr.mxu0 0.0
    %6163 = vmatpush2.msra.mxu0 0.0
    %6164 = vmatprep.subr.mxu0 0.0
    %6165 = vmatpush2.msra.mxu0 0.0
    %6166 = vmatprep.subr.mxu0 0.0
    %6167 = vmatpush2.msra.mxu0 0.0
    %6168 = vmatprep.subr.mxu0 0.0
    %6169 = vmatpush2.msra.mxu0 0.0
    %6170 = vmatprep.subr.mxu0 0.0
    %6171 = vmatpush2.msra.mxu0 0.0
    %6172 = vmatprep.subr.mxu0 0.0
    %6173 = vmatpush2.msra.mxu0 0.0
    %6174 = vmatprep.subr.mxu0 0.0
    %6175 = vmatpush2.msra.mxu0 0.0
    %6176 = vmatprep.subr.mxu0 0.0
    %6177 = vmatpush2.msra.mxu0 0.0
    %6178 = vmatprep.subr.mxu0 0.0
    %6179 = vmatpush2.msra.mxu0 0.0
    %6180 = vmatprep.subr.mxu0 0.0
    %6181 = vmatpush2.msra.mxu0 0.0
    %6182 = vmatprep.subr.mxu0 0.0
    %6183 = vmatpush2.msra.mxu0 0.0
    %6184 = vmatprep.subr.mxu0 0.0
    %6185 = vmatpush2.msra.mxu0 0.0
    %6186 = vmatprep.subr.mxu0 0.0
    %6187 = vmatpush2.msra.mxu0 0.0
    %6188 = vmatprep.subr.mxu0 0.0
    %6189 = vmatpush2.msra.mxu0 0.0
    %6190 = vmatprep.subr.mxu0 0.0
    %6191 = vmatpush2.msra.mxu0 0.0
    %6192 = vmatprep.subr.mxu0 0.0
    %6193 = vmatpush2.msra.mxu0 0.0
    %6194 = vmatprep.mubr.f32.mxu0 0.0
    %6195 = vmatmul.mubr.f32.gmra.mxu0 %v6128
    %v6196 = vpop.f32.mrf.mxu0
    %v6197 = vadd.f32 %v433, %v6196
    %v6198 = vpop.f32.mrf.mxu0
    %6199 = vdwg.mxu0
    %v6200 = vstv %s6053
    %v6201 = vmul.f32 %v6200, %v6197
    %v6202 = vadd.f32 %v6039, %v6201
    %v6205 = vunpack.c.l.s4 1983009808
    %v6206 = vunpack.c.0.s8 %v6205
    %v6207 = vlaneseq
    %v6208 = vshrl.u32 %v6207, 7
    %v6209 = vsub.s32 %v6206, %v6208
    %v6210 = vrot.slane %v6202, %v6209
    %6211 = vrot.lane.b32.xlu0 %v6210, 24
    %v6212 = vpop.permute.xlu0 %6211
    %6214 = vst.msk [vmem:[#allocation5 + $0x4] sm:$0x3] %vm1005, %v6212
    %s6215 = sadd.s32 %s352, 36
    %s6216 = sld [smem:[#allocation4 + %s6215]]
    %v6217 = vsel %vm354, %v6202, 0
    %6219 = vmatprep.subr.mxu0 0.0
    %6220 = vmatpush1.msra.mxu0 0.0
    %6221 = vmatprep.subr.mxu0 0.0
    %6222 = vmatpush1.msra.mxu0 0.0
    %6223 = vmatprep.subr.mxu0 0.0
    %6224 = vmatpush1.msra.mxu0 0.0
    %6225 = vmatprep.subr.mxu0 0.0
    %6226 = vmatpush1.msra.mxu0 0.0
    %6227 = vmatprep.subr.mxu0 0.0
    %6228 = vmatpush1.msra.mxu0 0.0
    %6229 = vmatprep.subr.mxu0 0.0
    %6230 = vmatpush1.msra.mxu0 0.0
    %6231 = vmatprep.subr.mxu0 0.0
    %6232 = vmatpush1.msra.mxu0 0.0
    %6233 = vmatprep.subr.mxu0 0.0
    %6234 = vmatpush1.msra.mxu0 0.0
    %6235 = vmatprep.subr.mxu0 0.0
    %6236 = vmatpush1.msra.mxu0 0.0
    %6237 = vmatprep.subr.mxu0 0.0
    %6238 = vmatpush1.msra.mxu0 0.0
    %6239 = vmatprep.subr.mxu0 0.0
    %6240 = vmatpush1.msra.mxu0 0.0
    %6241 = vmatprep.subr.mxu0 0.0
    %6242 = vmatpush1.msra.mxu0 0.0
    %6243 = vmatprep.subr.mxu0 0.0
    %6244 = vmatpush1.msra.mxu0 0.0
    %6245 = vmatprep.subr.mxu0 0.0
    %6246 = vmatpush1.msra.mxu0 0.0
    %6247 = vmatprep.subr.mxu0 0.0
    %6248 = vmatpush1.msra.mxu0 0.0
    %6249 = vmatprep.subr.mxu0 0.0
    %6250 = vmatpush1.msra.mxu0 %v42
    %6251 = vmatprep.subr.mxu0 0.0
    %6252 = vmatpush2.msra.mxu0 0.0
    %6253 = vmatprep.subr.mxu0 0.0
    %6254 = vmatpush2.msra.mxu0 0.0
    %6255 = vmatprep.subr.mxu0 0.0
    %6256 = vmatpush2.msra.mxu0 0.0
    %6257 = vmatprep.subr.mxu0 0.0
    %6258 = vmatpush2.msra.mxu0 0.0
    %6259 = vmatprep.subr.mxu0 0.0
    %6260 = vmatpush2.msra.mxu0 0.0
    %6261 = vmatprep.subr.mxu0 0.0
    %6262 = vmatpush2.msra.mxu0 0.0
    %6263 = vmatprep.subr.mxu0 0.0
    %6264 = vmatpush2.msra.mxu0 0.0
    %6265 = vmatprep.subr.mxu0 0.0
    %6266 = vmatpush2.msra.mxu0 0.0
    %6267 = vmatprep.subr.mxu0 0.0
    %6268 = vmatpush2.msra.mxu0 0.0
    %6269 = vmatprep.subr.mxu0 0.0
    %6270 = vmatpush2.msra.mxu0 0.0
    %6271 = vmatprep.subr.mxu0 0.0
    %6272 = vmatpush2.msra.mxu0 0.0
    %6273 = vmatprep.subr.mxu0 0.0
    %6274 = vmatpush2.msra.mxu0 0.0
    %6275 = vmatprep.subr.mxu0 0.0
    %6276 = vmatpush2.msra.mxu0 0.0
    %6277 = vmatprep.subr.mxu0 0.0
    %6278 = vmatpush2.msra.mxu0 0.0
    %6279 = vmatprep.subr.mxu0 0.0
    %6280 = vmatpush2.msra.mxu0 0.0
    %6281 = vmatprep.subr.mxu0 0.0
    %6282 = vmatpush2.msra.mxu0 0.0
    %6283 = vmatprep.mubr.f32.mxu0 0.0
    %6284 = vmatmul.mubr.f32.gmra.mxu0 %v6217
    %v6285 = vpop.f32.mrf.mxu0
    %v6286 = vadd.f32 %v285, %v6285
    %v6287 = vpop.f32.mrf.mxu0
    %6288 = vdwg.mxu0
    %v6289 = vtanh.pop %v6286
    %v6291 = vsel %vm435, %v6289, 0
    %6293 = vmatprep.subr.mxu0 0.0
    %6294 = vmatpush1.msra.mxu0 0.0
    %6295 = vmatprep.subr.mxu0 0.0
    %6296 = vmatpush1.msra.mxu0 0.0
    %6297 = vmatprep.subr.mxu0 0.0
    %6298 = vmatpush1.msra.mxu0 0.0
    %6299 = vmatprep.subr.mxu0 0.0
    %6300 = vmatpush1.msra.mxu0 0.0
    %6301 = vmatprep.subr.mxu0 0.0
    %6302 = vmatpush1.msra.mxu0 0.0
    %6303 = vmatprep.subr.mxu0 0.0
    %6304 = vmatpush1.msra.mxu0 0.0
    %6305 = vmatprep.subr.mxu0 0.0
    %6306 = vmatpush1.msra.mxu0 0.0
    %6307 = vmatprep.subr.mxu0 0.0
    %6308 = vmatpush1.msra.mxu0 0.0
    %6309 = vmatprep.subr.mxu0 0.0
    %6310 = vmatpush1.msra.mxu0 0.0
    %6311 = vmatprep.subr.mxu0 0.0
    %6312 = vmatpush1.msra.mxu0 0.0
    %6313 = vmatprep.subr.mxu0 0.0
    %6314 = vmatpush1.msra.mxu0 0.0
    %6315 = vmatprep.subr.mxu0 0.0
    %6316 = vmatpush1.msra.mxu0 0.0
    %6317 = vmatprep.subr.mxu0 0.0
    %6318 = vmatpush1.msra.mxu0 %v48
    %6319 = vmatprep.subr.mxu0 0.0
    %6320 = vmatpush1.msra.mxu0 %v47
    %6321 = vmatprep.subr.mxu0 0.0
    %6322 = vmatpush1.msra.mxu0 %v46
    %6323 = vmatprep.subr.mxu0 0.0
    %6324 = vmatpush1.msra.mxu0 %v45
    %6325 = vmatprep.subr.mxu0 0.0
    %6326 = vmatpush2.msra.mxu0 0.0
    %6327 = vmatprep.subr.mxu0 0.0
    %6328 = vmatpush2.msra.mxu0 0.0
    %6329 = vmatprep.subr.mxu0 0.0
    %6330 = vmatpush2.msra.mxu0 0.0
    %6331 = vmatprep.subr.mxu0 0.0
    %6332 = vmatpush2.msra.mxu0 0.0
    %6333 = vmatprep.subr.mxu0 0.0
    %6334 = vmatpush2.msra.mxu0 0.0
    %6335 = vmatprep.subr.mxu0 0.0
    %6336 = vmatpush2.msra.mxu0 0.0
    %6337 = vmatprep.subr.mxu0 0.0
    %6338 = vmatpush2.msra.mxu0 0.0
    %6339 = vmatprep.subr.mxu0 0.0
    %6340 = vmatpush2.msra.mxu0 0.0
    %6341 = vmatprep.subr.mxu0 0.0
    %6342 = vmatpush2.msra.mxu0 0.0
    %6343 = vmatprep.subr.mxu0 0.0
    %6344 = vmatpush2.msra.mxu0 0.0
    %6345 = vmatprep.subr.mxu0 0.0
    %6346 = vmatpush2.msra.mxu0 0.0
    %6347 = vmatprep.subr.mxu0 0.0
    %6348 = vmatpush2.msra.mxu0 0.0
    %6349 = vmatprep.subr.mxu0 0.0
    %6350 = vmatpush2.msra.mxu0 0.0
    %6351 = vmatprep.subr.mxu0 0.0
    %6352 = vmatpush2.msra.mxu0 0.0
    %6353 = vmatprep.subr.mxu0 0.0
    %6354 = vmatpush2.msra.mxu0 0.0
    %6355 = vmatprep.subr.mxu0 0.0
    %6356 = vmatpush2.msra.mxu0 0.0
    %6357 = vmatprep.mubr.f32.mxu0 0.0
    %6358 = vmatmul.mubr.f32.gmra.mxu0 %v6291
    %v6359 = vpop.f32.mrf.mxu0
    %v6360 = vadd.f32 %v433, %v6359
    %v6361 = vpop.f32.mrf.mxu0
    %6362 = vdwg.mxu0
    %v6363 = vstv %s6216
    %v6364 = vmul.f32 %v6363, %v6360
    %v6365 = vadd.f32 %v6202, %v6364
    %v6368 = vunpack.c.l.s4 1983009808
    %v6369 = vunpack.c.0.s8 %v6368
    %v6370 = vlaneseq
    %v6371 = vshrl.u32 %v6370, 7
    %v6372 = vsub.s32 %v6369, %v6371
    %v6373 = vrot.slane %v6365, %v6372
    %6374 = vrot.lane.b32.xlu0 %v6373, 32
    %v6375 = vpop.permute.xlu0 %6374
    %6377 = vst.msk [vmem:[#allocation5 + $0x4] sm:$0x3] %vm1169, %v6375
    %s6378 = sadd.s32 %s352, 37
    %s6379 = sld [smem:[#allocation4 + %s6378]]
    %v6380 = vsel %vm354, %v6365, 0
    %6382 = vmatprep.subr.mxu0 0.0
    %6383 = vmatpush1.msra.mxu0 0.0
    %6384 = vmatprep.subr.mxu0 0.0
    %6385 = vmatpush1.msra.mxu0 0.0
    %6386 = vmatprep.subr.mxu0 0.0
    %6387 = vmatpush1.msra.mxu0 0.0
    %6388 = vmatprep.subr.mxu0 0.0
    %6389 = vmatpush1.msra.mxu0 0.0
    %6390 = vmatprep.subr.mxu0 0.0
    %6391 = vmatpush1.msra.mxu0 0.0
    %6392 = vmatprep.subr.mxu0 0.0
    %6393 = vmatpush1.msra.mxu0 0.0
    %6394 = vmatprep.subr.mxu0 0.0
    %6395 = vmatpush1.msra.mxu0 0.0
    %6396 = vmatprep.subr.mxu0 0.0
    %6397 = vmatpush1.msra.mxu0 0.0
    %6398 = vmatprep.subr.mxu0 0.0
    %6399 = vmatpush1.msra.mxu0 0.0
    %6400 = vmatprep.subr.mxu0 0.0
    %6401 = vmatpush1.msra.mxu0 0.0
    %6402 = vmatprep.subr.mxu0 0.0
    %6403 = vmatpush1.msra.mxu0 0.0
    %6404 = vmatprep.subr.mxu0 0.0
    %6405 = vmatpush1.msra.mxu0 0.0
    %6406 = vmatprep.subr.mxu0 0.0
    %6407 = vmatpush1.msra.mxu0 0.0
    %6408 = vmatprep.subr.mxu0 0.0
    %6409 = vmatpush1.msra.mxu0 0.0
    %6410 = vmatprep.subr.mxu0 0.0
    %6411 = vmatpush1.msra.mxu0 0.0
    %6412 = vmatprep.subr.mxu0 0.0
    %6413 = vmatpush1.msra.mxu0 %v42
    %6414 = vmatprep.subr.mxu0 0.0
    %6415 = vmatpush2.msra.mxu0 0.0
    %6416 = vmatprep.subr.mxu0 0.0
    %6417 = vmatpush2.msra.mxu0 0.0
    %6418 = vmatprep.subr.mxu0 0.0
    %6419 = vmatpush2.msra.mxu0 0.0
    %6420 = vmatprep.subr.mxu0 0.0
    %6421 = vmatpush2.msra.mxu0 0.0
    %6422 = vmatprep.subr.mxu0 0.0
    %6423 = vmatpush2.msra.mxu0 0.0
    %6424 = vmatprep.subr.mxu0 0.0
    %6425 = vmatpush2.msra.mxu0 0.0
    %6426 = vmatprep.subr.mxu0 0.0
    %6427 = vmatpush2.msra.mxu0 0.0
    %6428 = vmatprep.subr.mxu0 0.0
    %6429 = vmatpush2.msra.mxu0 0.0
    %6430 = vmatprep.subr.mxu0 0.0
    %6431 = vmatpush2.msra.mxu0 0.0
    %6432 = vmatprep.subr.mxu0 0.0
    %6433 = vmatpush2.msra.mxu0 0.0
    %6434 = vmatprep.subr.mxu0 0.0
    %6435 = vmatpush2.msra.mxu0 0.0
    %6436 = vmatprep.subr.mxu0 0.0
    %6437 = vmatpush2.msra.mxu0 0.0
    %6438 = vmatprep.subr.mxu0 0.0
    %6439 = vmatpush2.msra.mxu0 0.0
    %6440 = vmatprep.subr.mxu0 0.0
    %6441 = vmatpush2.msra.mxu0 0.0
    %6442 = vmatprep.subr.mxu0 0.0
    %6443 = vmatpush2.msra.mxu0 0.0
    %6444 = vmatprep.subr.mxu0 0.0
    %6445 = vmatpush2.msra.mxu0 0.0
    %6446 = vmatprep.mubr.f32.mxu0 0.0
    %6447 = vmatmul.mubr.f32.gmra.mxu0 %v6380
    %v6448 = vpop.f32.mrf.mxu0
    %v6449 = vadd.f32 %v291, %v6448
    %v6450 = vpop.f32.mrf.mxu0
    %6451 = vdwg.mxu0
    %v6452 = vtanh.pop %v6449
    %v6454 = vsel %vm435, %v6452, 0
    %6456 = vmatprep.subr.mxu0 0.0
    %6457 = vmatpush1.msra.mxu0 0.0
    %6458 = vmatprep.subr.mxu0 0.0
    %6459 = vmatpush1.msra.mxu0 0.0
    %6460 = vmatprep.subr.mxu0 0.0
    %6461 = vmatpush1.msra.mxu0 0.0
    %6462 = vmatprep.subr.mxu0 0.0
    %6463 = vmatpush1.msra.mxu0 0.0
    %6464 = vmatprep.subr.mxu0 0.0
    %6465 = vmatpush1.msra.mxu0 0.0
    %6466 = vmatprep.subr.mxu0 0.0
    %6467 = vmatpush1.msra.mxu0 0.0
    %6468 = vmatprep.subr.mxu0 0.0
    %6469 = vmatpush1.msra.mxu0 0.0
    %6470 = vmatprep.subr.mxu0 0.0
    %6471 = vmatpush1.msra.mxu0 0.0
    %6472 = vmatprep.subr.mxu0 0.0
    %6473 = vmatpush1.msra.mxu0 0.0
    %6474 = vmatprep.subr.mxu0 0.0
    %6475 = vmatpush1.msra.mxu0 0.0
    %6476 = vmatprep.subr.mxu0 0.0
    %6477 = vmatpush1.msra.mxu0 0.0
    %6478 = vmatprep.subr.mxu0 0.0
    %6479 = vmatpush1.msra.mxu0 0.0
    %6480 = vmatprep.subr.mxu0 0.0
    %6481 = vmatpush1.msra.mxu0 %v48
    %6482 = vmatprep.subr.mxu0 0.0
    %6483 = vmatpush1.msra.mxu0 %v47
    %6484 = vmatprep.subr.mxu0 0.0
    %6485 = vmatpush1.msra.mxu0 %v46
    %6486 = vmatprep.subr.mxu0 0.0
    %6487 = vmatpush1.msra.mxu0 %v45
    %6488 = vmatprep.subr.mxu0 0.0
    %6489 = vmatpush2.msra.mxu0 0.0
    %6490 = vmatprep.subr.mxu0 0.0
    %6491 = vmatpush2.msra.mxu0 0.0
    %6492 = vmatprep.subr.mxu0 0.0
    %6493 = vmatpush2.msra.mxu0 0.0
    %6494 = vmatprep.subr.mxu0 0.0
    %6495 = vmatpush2.msra.mxu0 0.0
    %6496 = vmatprep.subr.mxu0 0.0
    %6497 = vmatpush2.msra.mxu0 0.0
    %6498 = vmatprep.subr.mxu0 0.0
    %6499 = vmatpush2.msra.mxu0 0.0
    %6500 = vmatprep.subr.mxu0 0.0
    %6501 = vmatpush2.msra.mxu0 0.0
    %6502 = vmatprep.subr.mxu0 0.0
    %6503 = vmatpush2.msra.mxu0 0.0
    %6504 = vmatprep.subr.mxu0 0.0
    %6505 = vmatpush2.msra.mxu0 0.0
    %6506 = vmatprep.subr.mxu0 0.0
    %6507 = vmatpush2.msra.mxu0 0.0
    %6508 = vmatprep.subr.mxu0 0.0
    %6509 = vmatpush2.msra.mxu0 0.0
    %6510 = vmatprep.subr.mxu0 0.0
    %6511 = vmatpush2.msra.mxu0 0.0
    %6512 = vmatprep.subr.mxu0 0.0
    %6513 = vmatpush2.msra.mxu0 0.0
    %6514 = vmatprep.subr.mxu0 0.0
    %6515 = vmatpush2.msra.mxu0 0.0
    %6516 = vmatprep.subr.mxu0 0.0
    %6517 = vmatpush2.msra.mxu0 0.0
    %6518 = vmatprep.subr.mxu0 0.0
    %6519 = vmatpush2.msra.mxu0 0.0
    %6520 = vmatprep.mubr.f32.mxu0 0.0
    %6521 = vmatmul.mubr.f32.gmra.mxu0 %v6454
    %v6522 = vpop.f32.mrf.mxu0
    %v6523 = vadd.f32 %v433, %v6522
    %v6524 = vpop.f32.mrf.mxu0
    %6525 = vdwg.mxu0
    %v6526 = vstv %s6379
    %v6527 = vmul.f32 %v6526, %v6523
    %v6528 = vadd.f32 %v6365, %v6527
    %v6531 = vunpack.c.l.s4 1983009808
    %v6532 = vunpack.c.0.s8 %v6531
    %v6533 = vlaneseq
    %v6534 = vshrl.u32 %v6533, 7
    %v6535 = vsub.s32 %v6532, %v6534
    %v6536 = vrot.slane %v6528, %v6535
    %6537 = vrot.lane.b32.xlu0 %v6536, 40
    %v6538 = vpop.permute.xlu0 %6537
    %6540 = vst.msk [vmem:[#allocation5 + $0x4] sm:$0x3] %vm1333, %v6538
    %s6541 = sadd.s32 %s352, 38
    %s6542 = sld [smem:[#allocation4 + %s6541]]
    %v6543 = vsel %vm354, %v6528, 0
    %6545 = vmatprep.subr.mxu0 0.0
    %6546 = vmatpush1.msra.mxu0 0.0
    %6547 = vmatprep.subr.mxu0 0.0
    %6548 = vmatpush1.msra.mxu0 0.0
    %6549 = vmatprep.subr.mxu0 0.0
    %6550 = vmatpush1.msra.mxu0 0.0
    %6551 = vmatprep.subr.mxu0 0.0
    %6552 = vmatpush1.msra.mxu0 0.0
    %6553 = vmatprep.subr.mxu0 0.0
    %6554 = vmatpush1.msra.mxu0 0.0
    %6555 = vmatprep.subr.mxu0 0.0
    %6556 = vmatpush1.msra.mxu0 0.0
    %6557 = vmatprep.subr.mxu0 0.0
    %6558 = vmatpush1.msra.mxu0 0.0
    %6559 = vmatprep.subr.mxu0 0.0
    %6560 = vmatpush1.msra.mxu0 0.0
    %6561 = vmatprep.subr.mxu0 0.0
    %6562 = vmatpush1.msra.mxu0 0.0
    %6563 = vmatprep.subr.mxu0 0.0
    %6564 = vmatpush1.msra.mxu0 0.0
    %6565 = vmatprep.subr.mxu0 0.0
    %6566 = vmatpush1.msra.mxu0 0.0
    %6567 = vmatprep.subr.mxu0 0.0
    %6568 = vmatpush1.msra.mxu0 0.0
    %6569 = vmatprep.subr.mxu0 0.0
    %6570 = vmatpush1.msra.mxu0 0.0
    %6571 = vmatprep.subr.mxu0 0.0
    %6572 = vmatpush1.msra.mxu0 0.0
    %6573 = vmatprep.subr.mxu0 0.0
    %6574 = vmatpush1.msra.mxu0 0.0
    %6575 = vmatprep.subr.mxu0 0.0
    %6576 = vmatpush1.msra.mxu0 %v42
    %6577 = vmatprep.subr.mxu0 0.0
    %6578 = vmatpush2.msra.mxu0 0.0
    %6579 = vmatprep.subr.mxu0 0.0
    %6580 = vmatpush2.msra.mxu0 0.0
    %6581 = vmatprep.subr.mxu0 0.0
    %6582 = vmatpush2.msra.mxu0 0.0
    %6583 = vmatprep.subr.mxu0 0.0
    %6584 = vmatpush2.msra.mxu0 0.0
    %6585 = vmatprep.subr.mxu0 0.0
    %6586 = vmatpush2.msra.mxu0 0.0
    %6587 = vmatprep.subr.mxu0 0.0
    %6588 = vmatpush2.msra.mxu0 0.0
    %6589 = vmatprep.subr.mxu0 0.0
    %6590 = vmatpush2.msra.mxu0 0.0
    %6591 = vmatprep.subr.mxu0 0.0
    %6592 = vmatpush2.msra.mxu0 0.0
    %6593 = vmatprep.subr.mxu0 0.0
    %6594 = vmatpush2.msra.mxu0 0.0
    %6595 = vmatprep.subr.mxu0 0.0
    %6596 = vmatpush2.msra.mxu0 0.0
    %6597 = vmatprep.subr.mxu0 0.0
    %6598 = vmatpush2.msra.mxu0 0.0
    %6599 = vmatprep.subr.mxu0 0.0
    %6600 = vmatpush2.msra.mxu0 0.0
    %6601 = vmatprep.subr.mxu0 0.0
    %6602 = vmatpush2.msra.mxu0 0.0
    %6603 = vmatprep.subr.mxu0 0.0
    %6604 = vmatpush2.msra.mxu0 0.0
    %6605 = vmatprep.subr.mxu0 0.0
    %6606 = vmatpush2.msra.mxu0 0.0
    %6607 = vmatprep.subr.mxu0 0.0
    %6608 = vmatpush2.msra.mxu0 0.0
    %6609 = vmatprep.mubr.f32.mxu0 0.0
    %6610 = vmatmul.mubr.f32.gmra.mxu0 %v6543
    %v6611 = vpop.f32.mrf.mxu0
    %v6612 = vadd.f32 %v297, %v6611
    %v6613 = vpop.f32.mrf.mxu0
    %6614 = vdwg.mxu0
    %v6615 = vtanh.pop %v6612
    %v6617 = vsel %vm435, %v6615, 0
    %6619 = vmatprep.subr.mxu0 0.0
    %6620 = vmatpush1.msra.mxu0 0.0
    %6621 = vmatprep.subr.mxu0 0.0
    %6622 = vmatpush1.msra.mxu0 0.0
    %6623 = vmatprep.subr.mxu0 0.0
    %6624 = vmatpush1.msra.mxu0 0.0
    %6625 = vmatprep.subr.mxu0 0.0
    %6626 = vmatpush1.msra.mxu0 0.0
    %6627 = vmatprep.subr.mxu0 0.0
    %6628 = vmatpush1.msra.mxu0 0.0
    %6629 = vmatprep.subr.mxu0 0.0
    %6630 = vmatpush1.msra.mxu0 0.0
    %6631 = vmatprep.subr.mxu0 0.0
    %6632 = vmatpush1.msra.mxu0 0.0
    %6633 = vmatprep.subr.mxu0 0.0
    %6634 = vmatpush1.msra.mxu0 0.0
    %6635 = vmatprep.subr.mxu0 0.0
    %6636 = vmatpush1.msra.mxu0 0.0
    %6637 = vmatprep.subr.mxu0 0.0
    %6638 = vmatpush1.msra.mxu0 0.0
    %6639 = vmatprep.subr.mxu0 0.0
    %6640 = vmatpush1.msra.mxu0 0.0
    %6641 = vmatprep.subr.mxu0 0.0
    %6642 = vmatpush1.msra.mxu0 0.0
    %6643 = vmatprep.subr.mxu0 0.0
    %6644 = vmatpush1.msra.mxu0 %v48
    %6645 = vmatprep.subr.mxu0 0.0
    %6646 = vmatpush1.msra.mxu0 %v47
    %6647 = vmatprep.subr.mxu0 0.0
    %6648 = vmatpush1.msra.mxu0 %v46
    %6649 = vmatprep.subr.mxu0 0.0
    %6650 = vmatpush1.msra.mxu0 %v45
    %6651 = vmatprep.subr.mxu0 0.0
    %6652 = vmatpush2.msra.mxu0 0.0
    %6653 = vmatprep.subr.mxu0 0.0
    %6654 = vmatpush2.msra.mxu0 0.0
    %6655 = vmatprep.subr.mxu0 0.0
    %6656 = vmatpush2.msra.mxu0 0.0
    %6657 = vmatprep.subr.mxu0 0.0
    %6658 = vmatpush2.msra.mxu0 0.0
    %6659 = vmatprep.subr.mxu0 0.0
    %6660 = vmatpush2.msra.mxu0 0.0
    %6661 = vmatprep.subr.mxu0 0.0
    %6662 = vmatpush2.msra.mxu0 0.0
    %6663 = vmatprep.subr.mxu0 0.0
    %6664 = vmatpush2.msra.mxu0 0.0
    %6665 = vmatprep.subr.mxu0 0.0
    %6666 = vmatpush2.msra.mxu0 0.0
    %6667 = vmatprep.subr.mxu0 0.0
    %6668 = vmatpush2.msra.mxu0 0.0
    %6669 = vmatprep.subr.mxu0 0.0
    %6670 = vmatpush2.msra.mxu0 0.0
    %6671 = vmatprep.subr.mxu0 0.0
    %6672 = vmatpush2.msra.mxu0 0.0
    %6673 = vmatprep.subr.mxu0 0.0
    %6674 = vmatpush2.msra.mxu0 0.0
    %6675 = vmatprep.subr.mxu0 0.0
    %6676 = vmatpush2.msra.mxu0 0.0
    %6677 = vmatprep.subr.mxu0 0.0
    %6678 = vmatpush2.msra.mxu0 0.0
    %6679 = vmatprep.subr.mxu0 0.0
    %6680 = vmatpush2.msra.mxu0 0.0
    %6681 = vmatprep.subr.mxu0 0.0
    %6682 = vmatpush2.msra.mxu0 0.0
    %6683 = vmatprep.mubr.f32.mxu0 0.0
    %6684 = vmatmul.mubr.f32.gmra.mxu0 %v6617
    %v6685 = vpop.f32.mrf.mxu0
    %v6686 = vadd.f32 %v433, %v6685
    %v6687 = vpop.f32.mrf.mxu0
    %6688 = vdwg.mxu0
    %v6689 = vstv %s6542
    %v6690 = vmul.f32 %v6689, %v6686
    %v6691 = vadd.f32 %v6528, %v6690
    %v6694 = vunpack.c.l.s4 1983009808
    %v6695 = vunpack.c.0.s8 %v6694
    %v6696 = vlaneseq
    %v6697 = vshrl.u32 %v6696, 7
    %v6698 = vsub.s32 %v6695, %v6697
    %v6699 = vrot.slane %v6691, %v6698
    %6700 = vrot.lane.b32.xlu0 %v6699, 48
    %v6701 = vpop.permute.xlu0 %6700
    %6703 = vst.msk [vmem:[#allocation5 + $0x4] sm:$0x3] %vm1497, %v6701
    %s6704 = sadd.s32 %s352, 39
    %s6705 = sld [smem:[#allocation4 + %s6704]]
    %v6706 = vsel %vm354, %v6691, 0
    %6708 = vmatprep.subr.mxu0 0.0
    %6709 = vmatpush1.msra.mxu0 0.0
    %6710 = vmatprep.subr.mxu0 0.0
    %6711 = vmatpush1.msra.mxu0 0.0
    %6712 = vmatprep.subr.mxu0 0.0
    %6713 = vmatpush1.msra.mxu0 0.0
    %6714 = vmatprep.subr.mxu0 0.0
    %6715 = vmatpush1.msra.mxu0 0.0
    %6716 = vmatprep.subr.mxu0 0.0
    %6717 = vmatpush1.msra.mxu0 0.0
    %6718 = vmatprep.subr.mxu0 0.0
    %6719 = vmatpush1.msra.mxu0 0.0
    %6720 = vmatprep.subr.mxu0 0.0
    %6721 = vmatpush1.msra.mxu0 0.0
    %6722 = vmatprep.subr.mxu0 0.0
    %6723 = vmatpush1.msra.mxu0 0.0
    %6724 = vmatprep.subr.mxu0 0.0
    %6725 = vmatpush1.msra.mxu0 0.0
    %6726 = vmatprep.subr.mxu0 0.0
    %6727 = vmatpush1.msra.mxu0 0.0
    %6728 = vmatprep.subr.mxu0 0.0
    %6729 = vmatpush1.msra.mxu0 0.0
    %6730 = vmatprep.subr.mxu0 0.0
    %6731 = vmatpush1.msra.mxu0 0.0
    %6732 = vmatprep.subr.mxu0 0.0
    %6733 = vmatpush1.msra.mxu0 0.0
    %6734 = vmatprep.subr.mxu0 0.0
    %6735 = vmatpush1.msra.mxu0 0.0
    %6736 = vmatprep.subr.mxu0 0.0
    %6737 = vmatpush1.msra.mxu0 0.0
    %6738 = vmatprep.subr.mxu0 0.0
    %6739 = vmatpush1.msra.mxu0 %v42
    %6740 = vmatprep.subr.mxu0 0.0
    %6741 = vmatpush2.msra.mxu0 0.0
    %6742 = vmatprep.subr.mxu0 0.0
    %6743 = vmatpush2.msra.mxu0 0.0
    %6744 = vmatprep.subr.mxu0 0.0
    %6745 = vmatpush2.msra.mxu0 0.0
    %6746 = vmatprep.subr.mxu0 0.0
    %6747 = vmatpush2.msra.mxu0 0.0
    %6748 = vmatprep.subr.mxu0 0.0
    %6749 = vmatpush2.msra.mxu0 0.0
    %6750 = vmatprep.subr.mxu0 0.0
    %6751 = vmatpush2.msra.mxu0 0.0
    %6752 = vmatprep.subr.mxu0 0.0
    %6753 = vmatpush2.msra.mxu0 0.0
    %6754 = vmatprep.subr.mxu0 0.0
    %6755 = vmatpush2.msra.mxu0 0.0
    %6756 = vmatprep.subr.mxu0 0.0
    %6757 = vmatpush2.msra.mxu0 0.0
    %6758 = vmatprep.subr.mxu0 0.0
    %6759 = vmatpush2.msra.mxu0 0.0
    %6760 = vmatprep.subr.mxu0 0.0
    %6761 = vmatpush2.msra.mxu0 0.0
    %6762 = vmatprep.subr.mxu0 0.0
    %6763 = vmatpush2.msra.mxu0 0.0
    %6764 = vmatprep.subr.mxu0 0.0
    %6765 = vmatpush2.msra.mxu0 0.0
    %6766 = vmatprep.subr.mxu0 0.0
    %6767 = vmatpush2.msra.mxu0 0.0
    %6768 = vmatprep.subr.mxu0 0.0
    %6769 = vmatpush2.msra.mxu0 0.0
    %6770 = vmatprep.subr.mxu0 0.0
    %6771 = vmatpush2.msra.mxu0 0.0
    %6772 = vmatprep.mubr.f32.mxu0 0.0
    %6773 = vmatmul.mubr.f32.gmra.mxu0 %v6706
    %v6774 = vpop.f32.mrf.mxu0
    %v6775 = vadd.f32 %v303, %v6774
    %v6776 = vpop.f32.mrf.mxu0
    %6777 = vdwg.mxu0
    %v6778 = vtanh.pop %v6775
    %v6780 = vsel %vm435, %v6778, 0
    %6782 = vmatprep.subr.mxu0 0.0
    %6783 = vmatpush1.msra.mxu0 0.0
    %6784 = vmatprep.subr.mxu0 0.0
    %6785 = vmatpush1.msra.mxu0 0.0
    %6786 = vmatprep.subr.mxu0 0.0
    %6787 = vmatpush1.msra.mxu0 0.0
    %6788 = vmatprep.subr.mxu0 0.0
    %6789 = vmatpush1.msra.mxu0 0.0
    %6790 = vmatprep.subr.mxu0 0.0
    %6791 = vmatpush1.msra.mxu0 0.0
    %6792 = vmatprep.subr.mxu0 0.0
    %6793 = vmatpush1.msra.mxu0 0.0
    %6794 = vmatprep.subr.mxu0 0.0
    %6795 = vmatpush1.msra.mxu0 0.0
    %6796 = vmatprep.subr.mxu0 0.0
    %6797 = vmatpush1.msra.mxu0 0.0
    %6798 = vmatprep.subr.mxu0 0.0
    %6799 = vmatpush1.msra.mxu0 0.0
    %6800 = vmatprep.subr.mxu0 0.0
    %6801 = vmatpush1.msra.mxu0 0.0
    %6802 = vmatprep.subr.mxu0 0.0
    %6803 = vmatpush1.msra.mxu0 0.0
    %6804 = vmatprep.subr.mxu0 0.0
    %6805 = vmatpush1.msra.mxu0 0.0
    %6806 = vmatprep.subr.mxu0 0.0
    %6807 = vmatpush1.msra.mxu0 %v48
    %6808 = vmatprep.subr.mxu0 0.0
    %6809 = vmatpush1.msra.mxu0 %v47
    %6810 = vmatprep.subr.mxu0 0.0
    %6811 = vmatpush1.msra.mxu0 %v46
    %6812 = vmatprep.subr.mxu0 0.0
    %6813 = vmatpush1.msra.mxu0 %v45
    %6814 = vmatprep.subr.mxu0 0.0
    %6815 = vmatpush2.msra.mxu0 0.0
    %6816 = vmatprep.subr.mxu0 0.0
    %6817 = vmatpush2.msra.mxu0 0.0
    %6818 = vmatprep.subr.mxu0 0.0
    %6819 = vmatpush2.msra.mxu0 0.0
    %6820 = vmatprep.subr.mxu0 0.0
    %6821 = vmatpush2.msra.mxu0 0.0
    %6822 = vmatprep.subr.mxu0 0.0
    %6823 = vmatpush2.msra.mxu0 0.0
    %6824 = vmatprep.subr.mxu0 0.0
    %6825 = vmatpush2.msra.mxu0 0.0
    %6826 = vmatprep.subr.mxu0 0.0
    %6827 = vmatpush2.msra.mxu0 0.0
    %6828 = vmatprep.subr.mxu0 0.0
    %6829 = vmatpush2.msra.mxu0 0.0
    %6830 = vmatprep.subr.mxu0 0.0
    %6831 = vmatpush2.msra.mxu0 0.0
    %6832 = vmatprep.subr.mxu0 0.0
    %6833 = vmatpush2.msra.mxu0 0.0
    %6834 = vmatprep.subr.mxu0 0.0
    %6835 = vmatpush2.msra.mxu0 0.0
    %6836 = vmatprep.subr.mxu0 0.0
    %6837 = vmatpush2.msra.mxu0 0.0
    %6838 = vmatprep.subr.mxu0 0.0
    %6839 = vmatpush2.msra.mxu0 0.0
    %6840 = vmatprep.subr.mxu0 0.0
    %6841 = vmatpush2.msra.mxu0 0.0
    %6842 = vmatprep.subr.mxu0 0.0
    %6843 = vmatpush2.msra.mxu0 0.0
    %6844 = vmatprep.subr.mxu0 0.0
    %6845 = vmatpush2.msra.mxu0 0.0
    %6846 = vmatprep.mubr.f32.mxu0 0.0
    %6847 = vmatmul.mubr.f32.gmra.mxu0 %v6780
    %v6848 = vpop.f32.mrf.mxu0
    %v6849 = vadd.f32 %v433, %v6848
    %v6850 = vpop.f32.mrf.mxu0
    %6851 = vdwg.mxu0
    %v6852 = vstv %s6705
    %v6853 = vmul.f32 %v6852, %v6849
    %v6854 = vadd.f32 %v6691, %v6853
    %v6857 = vunpack.c.l.s4 1983009808
    %v6858 = vunpack.c.0.s8 %v6857
    %v6859 = vlaneseq
    %v6860 = vshrl.u32 %v6859, 7
    %v6861 = vsub.s32 %v6858, %v6860
    %v6862 = vrot.slane %v6854, %v6861
    %6863 = vrot.lane.b32.xlu0 %v6862, 56
    %v6864 = vpop.permute.xlu0 %6863
    %6866 = vst.msk [vmem:[#allocation5 + $0x4] sm:$0x3] %vm1661, %v6864
    %s6867 = sadd.s32 %s352, 40
    %s6868 = sld [smem:[#allocation4 + %s6867]]
    %v6869 = vsel %vm354, %v6854, 0
    %6871 = vmatprep.subr.mxu0 0.0
    %6872 = vmatpush1.msra.mxu0 0.0
    %6873 = vmatprep.subr.mxu0 0.0
    %6874 = vmatpush1.msra.mxu0 0.0
    %6875 = vmatprep.subr.mxu0 0.0
    %6876 = vmatpush1.msra.mxu0 0.0
    %6877 = vmatprep.subr.mxu0 0.0
    %6878 = vmatpush1.msra.mxu0 0.0
    %6879 = vmatprep.subr.mxu0 0.0
    %6880 = vmatpush1.msra.mxu0 0.0
    %6881 = vmatprep.subr.mxu0 0.0
    %6882 = vmatpush1.msra.mxu0 0.0
    %6883 = vmatprep.subr.mxu0 0.0
    %6884 = vmatpush1.msra.mxu0 0.0
    %6885 = vmatprep.subr.mxu0 0.0
    %6886 = vmatpush1.msra.mxu0 0.0
    %6887 = vmatprep.subr.mxu0 0.0
    %6888 = vmatpush1.msra.mxu0 0.0
    %6889 = vmatprep.subr.mxu0 0.0
    %6890 = vmatpush1.msra.mxu0 0.0
    %6891 = vmatprep.subr.mxu0 0.0
    %6892 = vmatpush1.msra.mxu0 0.0
    %6893 = vmatprep.subr.mxu0 0.0
    %6894 = vmatpush1.msra.mxu0 0.0
    %6895 = vmatprep.subr.mxu0 0.0
    %6896 = vmatpush1.msra.mxu0 0.0
    %6897 = vmatprep.subr.mxu0 0.0
    %6898 = vmatpush1.msra.mxu0 0.0
    %6899 = vmatprep.subr.mxu0 0.0
    %6900 = vmatpush1.msra.mxu0 0.0
    %6901 = vmatprep.subr.mxu0 0.0
    %6902 = vmatpush1.msra.mxu0 %v42
    %6903 = vmatprep.subr.mxu0 0.0
    %6904 = vmatpush2.msra.mxu0 0.0
    %6905 = vmatprep.subr.mxu0 0.0
    %6906 = vmatpush2.msra.mxu0 0.0
    %6907 = vmatprep.subr.mxu0 0.0
    %6908 = vmatpush2.msra.mxu0 0.0
    %6909 = vmatprep.subr.mxu0 0.0
    %6910 = vmatpush2.msra.mxu0 0.0
    %6911 = vmatprep.subr.mxu0 0.0
    %6912 = vmatpush2.msra.mxu0 0.0
    %6913 = vmatprep.subr.mxu0 0.0
    %6914 = vmatpush2.msra.mxu0 0.0
    %6915 = vmatprep.subr.mxu0 0.0
    %6916 = vmatpush2.msra.mxu0 0.0
    %6917 = vmatprep.subr.mxu0 0.0
    %6918 = vmatpush2.msra.mxu0 0.0
    %6919 = vmatprep.subr.mxu0 0.0
    %6920 = vmatpush2.msra.mxu0 0.0
    %6921 = vmatprep.subr.mxu0 0.0
    %6922 = vmatpush2.msra.mxu0 0.0
    %6923 = vmatprep.subr.mxu0 0.0
    %6924 = vmatpush2.msra.mxu0 0.0
    %6925 = vmatprep.subr.mxu0 0.0
    %6926 = vmatpush2.msra.mxu0 0.0
    %6927 = vmatprep.subr.mxu0 0.0
    %6928 = vmatpush2.msra.mxu0 0.0
    %6929 = vmatprep.subr.mxu0 0.0
    %6930 = vmatpush2.msra.mxu0 0.0
    %6931 = vmatprep.subr.mxu0 0.0
    %6932 = vmatpush2.msra.mxu0 0.0
    %6933 = vmatprep.subr.mxu0 0.0
    %6934 = vmatpush2.msra.mxu0 0.0
    %6935 = vmatprep.mubr.f32.mxu0 0.0
    %6936 = vmatmul.mubr.f32.gmra.mxu0 %v6869
    %v6937 = vpop.f32.mrf.mxu0
    %v6938 = vadd.f32 %v309, %v6937
    %v6939 = vpop.f32.mrf.mxu0
    %6940 = vdwg.mxu0
    %v6941 = vtanh.pop %v6938
    %v6943 = vsel %vm435, %v6941, 0
    %6945 = vmatprep.subr.mxu0 0.0
    %6946 = vmatpush1.msra.mxu0 0.0
    %6947 = vmatprep.subr.mxu0 0.0
    %6948 = vmatpush1.msra.mxu0 0.0
    %6949 = vmatprep.subr.mxu0 0.0
    %6950 = vmatpush1.msra.mxu0 0.0
    %6951 = vmatprep.subr.mxu0 0.0
    %6952 = vmatpush1.msra.mxu0 0.0
    %6953 = vmatprep.subr.mxu0 0.0
    %6954 = vmatpush1.msra.mxu0 0.0
    %6955 = vmatprep.subr.mxu0 0.0
    %6956 = vmatpush1.msra.mxu0 0.0
    %6957 = vmatprep.subr.mxu0 0.0
    %6958 = vmatpush1.msra.mxu0 0.0
    %6959 = vmatprep.subr.mxu0 0.0
    %6960 = vmatpush1.msra.mxu0 0.0
    %6961 = vmatprep.subr.mxu0 0.0
    %6962 = vmatpush1.msra.mxu0 0.0
    %6963 = vmatprep.subr.mxu0 0.0
    %6964 = vmatpush1.msra.mxu0 0.0
    %6965 = vmatprep.subr.mxu0 0.0
    %6966 = vmatpush1.msra.mxu0 0.0
    %6967 = vmatprep.subr.mxu0 0.0
    %6968 = vmatpush1.msra.mxu0 0.0
    %6969 = vmatprep.subr.mxu0 0.0
    %6970 = vmatpush1.msra.mxu0 %v48
    %6971 = vmatprep.subr.mxu0 0.0
    %6972 = vmatpush1.msra.mxu0 %v47
    %6973 = vmatprep.subr.mxu0 0.0
    %6974 = vmatpush1.msra.mxu0 %v46
    %6975 = vmatprep.subr.mxu0 0.0
    %6976 = vmatpush1.msra.mxu0 %v45
    %6977 = vmatprep.subr.mxu0 0.0
    %6978 = vmatpush2.msra.mxu0 0.0
    %6979 = vmatprep.subr.mxu0 0.0
    %6980 = vmatpush2.msra.mxu0 0.0
    %6981 = vmatprep.subr.mxu0 0.0
    %6982 = vmatpush2.msra.mxu0 0.0
    %6983 = vmatprep.subr.mxu0 0.0
    %6984 = vmatpush2.msra.mxu0 0.0
    %6985 = vmatprep.subr.mxu0 0.0
    %6986 = vmatpush2.msra.mxu0 0.0
    %6987 = vmatprep.subr.mxu0 0.0
    %6988 = vmatpush2.msra.mxu0 0.0
    %6989 = vmatprep.subr.mxu0 0.0
    %6990 = vmatpush2.msra.mxu0 0.0
    %6991 = vmatprep.subr.mxu0 0.0
    %6992 = vmatpush2.msra.mxu0 0.0
    %6993 = vmatprep.subr.mxu0 0.0
    %6994 = vmatpush2.msra.mxu0 0.0
    %6995 = vmatprep.subr.mxu0 0.0
    %6996 = vmatpush2.msra.mxu0 0.0
    %6997 = vmatprep.subr.mxu0 0.0
    %6998 = vmatpush2.msra.mxu0 0.0
    %6999 = vmatprep.subr.mxu0 0.0
    %7000 = vmatpush2.msra.mxu0 0.0
    %7001 = vmatprep.subr.mxu0 0.0
    %7002 = vmatpush2.msra.mxu0 0.0
    %7003 = vmatprep.subr.mxu0 0.0
    %7004 = vmatpush2.msra.mxu0 0.0
    %7005 = vmatprep.subr.mxu0 0.0
    %7006 = vmatpush2.msra.mxu0 0.0
    %7007 = vmatprep.subr.mxu0 0.0
    %7008 = vmatpush2.msra.mxu0 0.0
    %7009 = vmatprep.mubr.f32.mxu0 0.0
    %7010 = vmatmul.mubr.f32.gmra.mxu0 %v6943
    %v7011 = vpop.f32.mrf.mxu0
    %v7012 = vadd.f32 %v433, %v7011
    %v7013 = vpop.f32.mrf.mxu0
    %7014 = vdwg.mxu0
    %v7015 = vstv %s6868
    %v7016 = vmul.f32 %v7015, %v7012
    %v7017 = vadd.f32 %v6854, %v7016
    %v7020 = vunpack.c.l.s4 1983009808
    %v7021 = vunpack.c.0.s8 %v7020
    %v7022 = vlaneseq
    %v7023 = vshrl.u32 %v7022, 7
    %v7024 = vsub.s32 %v7021, %v7023
    %v7025 = vrot.slane %v7017, %v7024
    %7026 = vrot.lane.b32.xlu0 %v7025, 64
    %v7027 = vpop.permute.xlu0 %7026
    %7029 = vst.msk [vmem:[#allocation5 + $0x4] sm:$0x3] %vm1825, %v7027
    %s7030 = sadd.s32 %s352, 41
    %s7031 = sld [smem:[#allocation4 + %s7030]]
    %v7032 = vsel %vm354, %v7017, 0
    %7034 = vmatprep.subr.mxu0 0.0
    %7035 = vmatpush1.msra.mxu0 0.0
    %7036 = vmatprep.subr.mxu0 0.0
    %7037 = vmatpush1.msra.mxu0 0.0
    %7038 = vmatprep.subr.mxu0 0.0
    %7039 = vmatpush1.msra.mxu0 0.0
    %7040 = vmatprep.subr.mxu0 0.0
    %7041 = vmatpush1.msra.mxu0 0.0
    %7042 = vmatprep.subr.mxu0 0.0
    %7043 = vmatpush1.msra.mxu0 0.0
    %7044 = vmatprep.subr.mxu0 0.0
    %7045 = vmatpush1.msra.mxu0 0.0
    %7046 = vmatprep.subr.mxu0 0.0
    %7047 = vmatpush1.msra.mxu0 0.0
    %7048 = vmatprep.subr.mxu0 0.0
    %7049 = vmatpush1.msra.mxu0 0.0
    %7050 = vmatprep.subr.mxu0 0.0
    %7051 = vmatpush1.msra.mxu0 0.0
    %7052 = vmatprep.subr.mxu0 0.0
    %7053 = vmatpush1.msra.mxu0 0.0
    %7054 = vmatprep.subr.mxu0 0.0
    %7055 = vmatpush1.msra.mxu0 0.0
    %7056 = vmatprep.subr.mxu0 0.0
    %7057 = vmatpush1.msra.mxu0 0.0
    %7058 = vmatprep.subr.mxu0 0.0
    %7059 = vmatpush1.msra.mxu0 0.0
    %7060 = vmatprep.subr.mxu0 0.0
    %7061 = vmatpush1.msra.mxu0 0.0
    %7062 = vmatprep.subr.mxu0 0.0
    %7063 = vmatpush1.msra.mxu0 0.0
    %7064 = vmatprep.subr.mxu0 0.0
    %7065 = vmatpush1.msra.mxu0 %v42
    %7066 = vmatprep.subr.mxu0 0.0
    %7067 = vmatpush2.msra.mxu0 0.0
    %7068 = vmatprep.subr.mxu0 0.0
    %7069 = vmatpush2.msra.mxu0 0.0
    %7070 = vmatprep.subr.mxu0 0.0
    %7071 = vmatpush2.msra.mxu0 0.0
    %7072 = vmatprep.subr.mxu0 0.0
    %7073 = vmatpush2.msra.mxu0 0.0
    %7074 = vmatprep.subr.mxu0 0.0
    %7075 = vmatpush2.msra.mxu0 0.0
    %7076 = vmatprep.subr.mxu0 0.0
    %7077 = vmatpush2.msra.mxu0 0.0
    %7078 = vmatprep.subr.mxu0 0.0
    %7079 = vmatpush2.msra.mxu0 0.0
    %7080 = vmatprep.subr.mxu0 0.0
    %7081 = vmatpush2.msra.mxu0 0.0
    %7082 = vmatprep.subr.mxu0 0.0
    %7083 = vmatpush2.msra.mxu0 0.0
    %7084 = vmatprep.subr.mxu0 0.0
    %7085 = vmatpush2.msra.mxu0 0.0
    %7086 = vmatprep.subr.mxu0 0.0
    %7087 = vmatpush2.msra.mxu0 0.0
    %7088 = vmatprep.subr.mxu0 0.0
    %7089 = vmatpush2.msra.mxu0 0.0
    %7090 = vmatprep.subr.mxu0 0.0
    %7091 = vmatpush2.msra.mxu0 0.0
    %7092 = vmatprep.subr.mxu0 0.0
    %7093 = vmatpush2.msra.mxu0 0.0
    %7094 = vmatprep.subr.mxu0 0.0
    %7095 = vmatpush2.msra.mxu0 0.0
    %7096 = vmatprep.subr.mxu0 0.0
    %7097 = vmatpush2.msra.mxu0 0.0
    %7098 = vmatprep.mubr.f32.mxu0 0.0
    %7099 = vmatmul.mubr.f32.gmra.mxu0 %v7032
    %v7100 = vpop.f32.mrf.mxu0
    %v7101 = vadd.f32 %v315, %v7100
    %v7102 = vpop.f32.mrf.mxu0
    %7103 = vdwg.mxu0
    %v7104 = vtanh.pop %v7101
    %v7106 = vsel %vm435, %v7104, 0
    %7108 = vmatprep.subr.mxu0 0.0
    %7109 = vmatpush1.msra.mxu0 0.0
    %7110 = vmatprep.subr.mxu0 0.0
    %7111 = vmatpush1.msra.mxu0 0.0
    %7112 = vmatprep.subr.mxu0 0.0
    %7113 = vmatpush1.msra.mxu0 0.0
    %7114 = vmatprep.subr.mxu0 0.0
    %7115 = vmatpush1.msra.mxu0 0.0
    %7116 = vmatprep.subr.mxu0 0.0
    %7117 = vmatpush1.msra.mxu0 0.0
    %7118 = vmatprep.subr.mxu0 0.0
    %7119 = vmatpush1.msra.mxu0 0.0
    %7120 = vmatprep.subr.mxu0 0.0
    %7121 = vmatpush1.msra.mxu0 0.0
    %7122 = vmatprep.subr.mxu0 0.0
    %7123 = vmatpush1.msra.mxu0 0.0
    %7124 = vmatprep.subr.mxu0 0.0
    %7125 = vmatpush1.msra.mxu0 0.0
    %7126 = vmatprep.subr.mxu0 0.0
    %7127 = vmatpush1.msra.mxu0 0.0
    %7128 = vmatprep.subr.mxu0 0.0
    %7129 = vmatpush1.msra.mxu0 0.0
    %7130 = vmatprep.subr.mxu0 0.0
    %7131 = vmatpush1.msra.mxu0 0.0
    %7132 = vmatprep.subr.mxu0 0.0
    %7133 = vmatpush1.msra.mxu0 %v48
    %7134 = vmatprep.subr.mxu0 0.0
    %7135 = vmatpush1.msra.mxu0 %v47
    %7136 = vmatprep.subr.mxu0 0.0
    %7137 = vmatpush1.msra.mxu0 %v46
    %7138 = vmatprep.subr.mxu0 0.0
    %7139 = vmatpush1.msra.mxu0 %v45
    %7140 = vmatprep.subr.mxu0 0.0
    %7141 = vmatpush2.msra.mxu0 0.0
    %7142 = vmatprep.subr.mxu0 0.0
    %7143 = vmatpush2.msra.mxu0 0.0
    %7144 = vmatprep.subr.mxu0 0.0
    %7145 = vmatpush2.msra.mxu0 0.0
    %7146 = vmatprep.subr.mxu0 0.0
    %7147 = vmatpush2.msra.mxu0 0.0
    %7148 = vmatprep.subr.mxu0 0.0
    %7149 = vmatpush2.msra.mxu0 0.0
    %7150 = vmatprep.subr.mxu0 0.0
    %7151 = vmatpush2.msra.mxu0 0.0
    %7152 = vmatprep.subr.mxu0 0.0
    %7153 = vmatpush2.msra.mxu0 0.0
    %7154 = vmatprep.subr.mxu0 0.0
    %7155 = vmatpush2.msra.mxu0 0.0
    %7156 = vmatprep.subr.mxu0 0.0
    %7157 = vmatpush2.msra.mxu0 0.0
    %7158 = vmatprep.subr.mxu0 0.0
    %7159 = vmatpush2.msra.mxu0 0.0
    %7160 = vmatprep.subr.mxu0 0.0
    %7161 = vmatpush2.msra.mxu0 0.0
    %7162 = vmatprep.subr.mxu0 0.0
    %7163 = vmatpush2.msra.mxu0 0.0
    %7164 = vmatprep.subr.mxu0 0.0
    %7165 = vmatpush2.msra.mxu0 0.0
    %7166 = vmatprep.subr.mxu0 0.0
    %7167 = vmatpush2.msra.mxu0 0.0
    %7168 = vmatprep.subr.mxu0 0.0
    %7169 = vmatpush2.msra.mxu0 0.0
    %7170 = vmatprep.subr.mxu0 0.0
    %7171 = vmatpush2.msra.mxu0 0.0
    %7172 = vmatprep.mubr.f32.mxu0 0.0
    %7173 = vmatmul.mubr.f32.gmra.mxu0 %v7106
    %v7174 = vpop.f32.mrf.mxu0
    %v7175 = vadd.f32 %v433, %v7174
    %v7176 = vpop.f32.mrf.mxu0
    %7177 = vdwg.mxu0
    %v7178 = vstv %s7031
    %v7179 = vmul.f32 %v7178, %v7175
    %v7180 = vadd.f32 %v7017, %v7179
    %v7183 = vunpack.c.l.s4 1983009808
    %v7184 = vunpack.c.0.s8 %v7183
    %v7185 = vlaneseq
    %v7186 = vshrl.u32 %v7185, 7
    %v7187 = vsub.s32 %v7184, %v7186
    %v7188 = vrot.slane %v7180, %v7187
    %7189 = vrot.lane.b32.xlu0 %v7188, 72
    %v7190 = vpop.permute.xlu0 %7189
    %7192 = vst.msk [vmem:[#allocation5 + $0x4] sm:$0x3] %vm1989, %v7190
    %s7193 = sadd.s32 %s352, 42
    %s7194 = sld [smem:[#allocation4 + %s7193]]
    %v7195 = vsel %vm354, %v7180, 0
    %7197 = vmatprep.subr.mxu0 0.0
    %7198 = vmatpush1.msra.mxu0 0.0
    %7199 = vmatprep.subr.mxu0 0.0
    %7200 = vmatpush1.msra.mxu0 0.0
    %7201 = vmatprep.subr.mxu0 0.0
    %7202 = vmatpush1.msra.mxu0 0.0
    %7203 = vmatprep.subr.mxu0 0.0
    %7204 = vmatpush1.msra.mxu0 0.0
    %7205 = vmatprep.subr.mxu0 0.0
    %7206 = vmatpush1.msra.mxu0 0.0
    %7207 = vmatprep.subr.mxu0 0.0
    %7208 = vmatpush1.msra.mxu0 0.0
    %7209 = vmatprep.subr.mxu0 0.0
    %7210 = vmatpush1.msra.mxu0 0.0
    %7211 = vmatprep.subr.mxu0 0.0
    %7212 = vmatpush1.msra.mxu0 0.0
    %7213 = vmatprep.subr.mxu0 0.0
    %7214 = vmatpush1.msra.mxu0 0.0
    %7215 = vmatprep.subr.mxu0 0.0
    %7216 = vmatpush1.msra.mxu0 0.0
    %7217 = vmatprep.subr.mxu0 0.0
    %7218 = vmatpush1.msra.mxu0 0.0
    %7219 = vmatprep.subr.mxu0 0.0
    %7220 = vmatpush1.msra.mxu0 0.0
    %7221 = vmatprep.subr.mxu0 0.0
    %7222 = vmatpush1.msra.mxu0 0.0
    %7223 = vmatprep.subr.mxu0 0.0
    %7224 = vmatpush1.msra.mxu0 0.0
    %7225 = vmatprep.subr.mxu0 0.0
    %7226 = vmatpush1.msra.mxu0 0.0
    %7227 = vmatprep.subr.mxu0 0.0
    %7228 = vmatpush1.msra.mxu0 %v42
    %7229 = vmatprep.subr.mxu0 0.0
    %7230 = vmatpush2.msra.mxu0 0.0
    %7231 = vmatprep.subr.mxu0 0.0
    %7232 = vmatpush2.msra.mxu0 0.0
    %7233 = vmatprep.subr.mxu0 0.0
    %7234 = vmatpush2.msra.mxu0 0.0
    %7235 = vmatprep.subr.mxu0 0.0
    %7236 = vmatpush2.msra.mxu0 0.0
    %7237 = vmatprep.subr.mxu0 0.0
    %7238 = vmatpush2.msra.mxu0 0.0
    %7239 = vmatprep.subr.mxu0 0.0
    %7240 = vmatpush2.msra.mxu0 0.0
    %7241 = vmatprep.subr.mxu0 0.0
    %7242 = vmatpush2.msra.mxu0 0.0
    %7243 = vmatprep.subr.mxu0 0.0
    %7244 = vmatpush2.msra.mxu0 0.0
    %7245 = vmatprep.subr.mxu0 0.0
    %7246 = vmatpush2.msra.mxu0 0.0
    %7247 = vmatprep.subr.mxu0 0.0
    %7248 = vmatpush2.msra.mxu0 0.0
    %7249 = vmatprep.subr.mxu0 0.0
    %7250 = vmatpush2.msra.mxu0 0.0
    %7251 = vmatprep.subr.mxu0 0.0
    %7252 = vmatpush2.msra.mxu0 0.0
    %7253 = vmatprep.subr.mxu0 0.0
    %7254 = vmatpush2.msra.mxu0 0.0
    %7255 = vmatprep.subr.mxu0 0.0
    %7256 = vmatpush2.msra.mxu0 0.0
    %7257 = vmatprep.subr.mxu0 0.0
    %7258 = vmatpush2.msra.mxu0 0.0
    %7259 = vmatprep.subr.mxu0 0.0
    %7260 = vmatpush2.msra.mxu0 0.0
    %7261 = vmatprep.mubr.f32.mxu0 0.0
    %7262 = vmatmul.mubr.f32.gmra.mxu0 %v7195
    %v7263 = vpop.f32.mrf.mxu0
    %v7264 = vadd.f32 %v321, %v7263
    %v7265 = vpop.f32.mrf.mxu0
    %7266 = vdwg.mxu0
    %v7267 = vtanh.pop %v7264
    %v7269 = vsel %vm435, %v7267, 0
    %7271 = vmatprep.subr.mxu0 0.0
    %7272 = vmatpush1.msra.mxu0 0.0
    %7273 = vmatprep.subr.mxu0 0.0
    %7274 = vmatpush1.msra.mxu0 0.0
    %7275 = vmatprep.subr.mxu0 0.0
    %7276 = vmatpush1.msra.mxu0 0.0
    %7277 = vmatprep.subr.mxu0 0.0
    %7278 = vmatpush1.msra.mxu0 0.0
    %7279 = vmatprep.subr.mxu0 0.0
    %7280 = vmatpush1.msra.mxu0 0.0
    %7281 = vmatprep.subr.mxu0 0.0
    %7282 = vmatpush1.msra.mxu0 0.0
    %7283 = vmatprep.subr.mxu0 0.0
    %7284 = vmatpush1.msra.mxu0 0.0
    %7285 = vmatprep.subr.mxu0 0.0
    %7286 = vmatpush1.msra.mxu0 0.0
    %7287 = vmatprep.subr.mxu0 0.0
    %7288 = vmatpush1.msra.mxu0 0.0
    %7289 = vmatprep.subr.mxu0 0.0
    %7290 = vmatpush1.msra.mxu0 0.0
    %7291 = vmatprep.subr.mxu0 0.0
    %7292 = vmatpush1.msra.mxu0 0.0
    %7293 = vmatprep.subr.mxu0 0.0
    %7294 = vmatpush1.msra.mxu0 0.0
    %7295 = vmatprep.subr.mxu0 0.0
    %7296 = vmatpush1.msra.mxu0 %v48
    %7297 = vmatprep.subr.mxu0 0.0
    %7298 = vmatpush1.msra.mxu0 %v47
    %7299 = vmatprep.subr.mxu0 0.0
    %7300 = vmatpush1.msra.mxu0 %v46
    %7301 = vmatprep.subr.mxu0 0.0
    %7302 = vmatpush1.msra.mxu0 %v45
    %7303 = vmatprep.subr.mxu0 0.0
    %7304 = vmatpush2.msra.mxu0 0.0
    %7305 = vmatprep.subr.mxu0 0.0
    %7306 = vmatpush2.msra.mxu0 0.0
    %7307 = vmatprep.subr.mxu0 0.0
    %7308 = vmatpush2.msra.mxu0 0.0
    %7309 = vmatprep.subr.mxu0 0.0
    %7310 = vmatpush2.msra.mxu0 0.0
    %7311 = vmatprep.subr.mxu0 0.0
    %7312 = vmatpush2.msra.mxu0 0.0
    %7313 = vmatprep.subr.mxu0 0.0
    %7314 = vmatpush2.msra.mxu0 0.0
    %7315 = vmatprep.subr.mxu0 0.0
    %7316 = vmatpush2.msra.mxu0 0.0
    %7317 = vmatprep.subr.mxu0 0.0
    %7318 = vmatpush2.msra.mxu0 0.0
    %7319 = vmatprep.subr.mxu0 0.0
    %7320 = vmatpush2.msra.mxu0 0.0
    %7321 = vmatprep.subr.mxu0 0.0
    %7322 = vmatpush2.msra.mxu0 0.0
    %7323 = vmatprep.subr.mxu0 0.0
    %7324 = vmatpush2.msra.mxu0 0.0
    %7325 = vmatprep.subr.mxu0 0.0
    %7326 = vmatpush2.msra.mxu0 0.0
    %7327 = vmatprep.subr.mxu0 0.0
    %7328 = vmatpush2.msra.mxu0 0.0
    %7329 = vmatprep.subr.mxu0 0.0
    %7330 = vmatpush2.msra.mxu0 0.0
    %7331 = vmatprep.subr.mxu0 0.0
    %7332 = vmatpush2.msra.mxu0 0.0
    %7333 = vmatprep.subr.mxu0 0.0
    %7334 = vmatpush2.msra.mxu0 0.0
    %7335 = vmatprep.mubr.f32.mxu0 0.0
    %7336 = vmatmul.mubr.f32.gmra.mxu0 %v7269
    %v7337 = vpop.f32.mrf.mxu0
    %v7338 = vadd.f32 %v433, %v7337
    %v7339 = vpop.f32.mrf.mxu0
    %7340 = vdwg.mxu0
    %v7341 = vstv %s7194
    %v7342 = vmul.f32 %v7341, %v7338
    %v7343 = vadd.f32 %v7180, %v7342
    %v7346 = vunpack.c.l.s4 1983009808
    %v7347 = vunpack.c.0.s8 %v7346
    %v7348 = vlaneseq
    %v7349 = vshrl.u32 %v7348, 7
    %v7350 = vsub.s32 %v7347, %v7349
    %v7351 = vrot.slane %v7343, %v7350
    %7352 = vrot.lane.b32.xlu0 %v7351, 80
    %v7353 = vpop.permute.xlu0 %7352
    %7355 = vst.msk [vmem:[#allocation5 + $0x4] sm:$0x3] %vm2153, %v7353
    %s7356 = sadd.s32 %s352, 43
    %s7357 = sld [smem:[#allocation4 + %s7356]]
    %v7358 = vsel %vm354, %v7343, 0
    %7360 = vmatprep.subr.mxu0 0.0
    %7361 = vmatpush1.msra.mxu0 0.0
    %7362 = vmatprep.subr.mxu0 0.0
    %7363 = vmatpush1.msra.mxu0 0.0
    %7364 = vmatprep.subr.mxu0 0.0
    %7365 = vmatpush1.msra.mxu0 0.0
    %7366 = vmatprep.subr.mxu0 0.0
    %7367 = vmatpush1.msra.mxu0 0.0
    %7368 = vmatprep.subr.mxu0 0.0
    %7369 = vmatpush1.msra.mxu0 0.0
    %7370 = vmatprep.subr.mxu0 0.0
    %7371 = vmatpush1.msra.mxu0 0.0
    %7372 = vmatprep.subr.mxu0 0.0
    %7373 = vmatpush1.msra.mxu0 0.0
    %7374 = vmatprep.subr.mxu0 0.0
    %7375 = vmatpush1.msra.mxu0 0.0
    %7376 = vmatprep.subr.mxu0 0.0
    %7377 = vmatpush1.msra.mxu0 0.0
    %7378 = vmatprep.subr.mxu0 0.0
    %7379 = vmatpush1.msra.mxu0 0.0
    %7380 = vmatprep.subr.mxu0 0.0
    %7381 = vmatpush1.msra.mxu0 0.0
    %7382 = vmatprep.subr.mxu0 0.0
    %7383 = vmatpush1.msra.mxu0 0.0
    %7384 = vmatprep.subr.mxu0 0.0
    %7385 = vmatpush1.msra.mxu0 0.0
    %7386 = vmatprep.subr.mxu0 0.0
    %7387 = vmatpush1.msra.mxu0 0.0
    %7388 = vmatprep.subr.mxu0 0.0
    %7389 = vmatpush1.msra.mxu0 0.0
    %7390 = vmatprep.subr.mxu0 0.0
    %7391 = vmatpush1.msra.mxu0 %v42
    %7392 = vmatprep.subr.mxu0 0.0
    %7393 = vmatpush2.msra.mxu0 0.0
    %7394 = vmatprep.subr.mxu0 0.0
    %7395 = vmatpush2.msra.mxu0 0.0
    %7396 = vmatprep.subr.mxu0 0.0
    %7397 = vmatpush2.msra.mxu0 0.0
    %7398 = vmatprep.subr.mxu0 0.0
    %7399 = vmatpush2.msra.mxu0 0.0
    %7400 = vmatprep.subr.mxu0 0.0
    %7401 = vmatpush2.msra.mxu0 0.0
    %7402 = vmatprep.subr.mxu0 0.0
    %7403 = vmatpush2.msra.mxu0 0.0
    %7404 = vmatprep.subr.mxu0 0.0
    %7405 = vmatpush2.msra.mxu0 0.0
    %7406 = vmatprep.subr.mxu0 0.0
    %7407 = vmatpush2.msra.mxu0 0.0
    %7408 = vmatprep.subr.mxu0 0.0
    %7409 = vmatpush2.msra.mxu0 0.0
    %7410 = vmatprep.subr.mxu0 0.0
    %7411 = vmatpush2.msra.mxu0 0.0
    %7412 = vmatprep.subr.mxu0 0.0
    %7413 = vmatpush2.msra.mxu0 0.0
    %7414 = vmatprep.subr.mxu0 0.0
    %7415 = vmatpush2.msra.mxu0 0.0
    %7416 = vmatprep.subr.mxu0 0.0
    %7417 = vmatpush2.msra.mxu0 0.0
    %7418 = vmatprep.subr.mxu0 0.0
    %7419 = vmatpush2.msra.mxu0 0.0
    %7420 = vmatprep.subr.mxu0 0.0
    %7421 = vmatpush2.msra.mxu0 0.0
    %7422 = vmatprep.subr.mxu0 0.0
    %7423 = vmatpush2.msra.mxu0 0.0
    %7424 = vmatprep.mubr.f32.mxu0 0.0
    %7425 = vmatmul.mubr.f32.gmra.mxu0 %v7358
    %v7426 = vpop.f32.mrf.mxu0
    %v7427 = vadd.f32 %v327, %v7426
    %v7428 = vpop.f32.mrf.mxu0
    %7429 = vdwg.mxu0
    %v7430 = vtanh.pop %v7427
    %v7432 = vsel %vm435, %v7430, 0
    %7434 = vmatprep.subr.mxu0 0.0
    %7435 = vmatpush1.msra.mxu0 0.0
    %7436 = vmatprep.subr.mxu0 0.0
    %7437 = vmatpush1.msra.mxu0 0.0
    %7438 = vmatprep.subr.mxu0 0.0
    %7439 = vmatpush1.msra.mxu0 0.0
    %7440 = vmatprep.subr.mxu0 0.0
    %7441 = vmatpush1.msra.mxu0 0.0
    %7442 = vmatprep.subr.mxu0 0.0
    %7443 = vmatpush1.msra.mxu0 0.0
    %7444 = vmatprep.subr.mxu0 0.0
    %7445 = vmatpush1.msra.mxu0 0.0
    %7446 = vmatprep.subr.mxu0 0.0
    %7447 = vmatpush1.msra.mxu0 0.0
    %7448 = vmatprep.subr.mxu0 0.0
    %7449 = vmatpush1.msra.mxu0 0.0
    %7450 = vmatprep.subr.mxu0 0.0
    %7451 = vmatpush1.msra.mxu0 0.0
    %7452 = vmatprep.subr.mxu0 0.0
    %7453 = vmatpush1.msra.mxu0 0.0
    %7454 = vmatprep.subr.mxu0 0.0
    %7455 = vmatpush1.msra.mxu0 0.0
    %7456 = vmatprep.subr.mxu0 0.0
    %7457 = vmatpush1.msra.mxu0 0.0
    %7458 = vmatprep.subr.mxu0 0.0
    %7459 = vmatpush1.msra.mxu0 %v48
    %7460 = vmatprep.subr.mxu0 0.0
    %7461 = vmatpush1.msra.mxu0 %v47
    %7462 = vmatprep.subr.mxu0 0.0
    %7463 = vmatpush1.msra.mxu0 %v46
    %7464 = vmatprep.subr.mxu0 0.0
    %7465 = vmatpush1.msra.mxu0 %v45
    %7466 = vmatprep.subr.mxu0 0.0
    %7467 = vmatpush2.msra.mxu0 0.0
    %7468 = vmatprep.subr.mxu0 0.0
    %7469 = vmatpush2.msra.mxu0 0.0
    %7470 = vmatprep.subr.mxu0 0.0
    %7471 = vmatpush2.msra.mxu0 0.0
    %7472 = vmatprep.subr.mxu0 0.0
    %7473 = vmatpush2.msra.mxu0 0.0
    %7474 = vmatprep.subr.mxu0 0.0
    %7475 = vmatpush2.msra.mxu0 0.0
    %7476 = vmatprep.subr.mxu0 0.0
    %7477 = vmatpush2.msra.mxu0 0.0
    %7478 = vmatprep.subr.mxu0 0.0
    %7479 = vmatpush2.msra.mxu0 0.0
    %7480 = vmatprep.subr.mxu0 0.0
    %7481 = vmatpush2.msra.mxu0 0.0
    %7482 = vmatprep.subr.mxu0 0.0
    %7483 = vmatpush2.msra.mxu0 0.0
    %7484 = vmatprep.subr.mxu0 0.0
    %7485 = vmatpush2.msra.mxu0 0.0
    %7486 = vmatprep.subr.mxu0 0.0
    %7487 = vmatpush2.msra.mxu0 0.0
    %7488 = vmatprep.subr.mxu0 0.0
    %7489 = vmatpush2.msra.mxu0 0.0
    %7490 = vmatprep.subr.mxu0 0.0
    %7491 = vmatpush2.msra.mxu0 0.0
    %7492 = vmatprep.subr.mxu0 0.0
    %7493 = vmatpush2.msra.mxu0 0.0
    %7494 = vmatprep.subr.mxu0 0.0
    %7495 = vmatpush2.msra.mxu0 0.0
    %7496 = vmatprep.subr.mxu0 0.0
    %7497 = vmatpush2.msra.mxu0 0.0
    %7498 = vmatprep.mubr.f32.mxu0 0.0
    %7499 = vmatmul.mubr.f32.gmra.mxu0 %v7432
    %v7500 = vpop.f32.mrf.mxu0
    %v7501 = vadd.f32 %v433, %v7500
    %v7502 = vpop.f32.mrf.mxu0
    %7503 = vdwg.mxu0
    %v7504 = vstv %s7357
    %v7505 = vmul.f32 %v7504, %v7501
    %v7506 = vadd.f32 %v7343, %v7505
    %v7509 = vunpack.c.l.s4 1983009808
    %v7510 = vunpack.c.0.s8 %v7509
    %v7511 = vlaneseq
    %v7512 = vshrl.u32 %v7511, 7
    %v7513 = vsub.s32 %v7510, %v7512
    %v7514 = vrot.slane %v7506, %v7513
    %7515 = vrot.lane.b32.xlu0 %v7514, 88
    %v7516 = vpop.permute.xlu0 %7515
    %7518 = vst.msk [vmem:[#allocation5 + $0x4] sm:$0x3] %vm2317, %v7516
    %s7519 = sadd.s32 %s352, 44
    %s7520 = sld [smem:[#allocation4 + %s7519]]
    %v7521 = vsel %vm354, %v7506, 0
    %7523 = vmatprep.subr.mxu0 0.0
    %7524 = vmatpush1.msra.mxu0 0.0
    %7525 = vmatprep.subr.mxu0 0.0
    %7526 = vmatpush1.msra.mxu0 0.0
    %7527 = vmatprep.subr.mxu0 0.0
    %7528 = vmatpush1.msra.mxu0 0.0
    %7529 = vmatprep.subr.mxu0 0.0
    %7530 = vmatpush1.msra.mxu0 0.0
    %7531 = vmatprep.subr.mxu0 0.0
    %7532 = vmatpush1.msra.mxu0 0.0
    %7533 = vmatprep.subr.mxu0 0.0
    %7534 = vmatpush1.msra.mxu0 0.0
    %7535 = vmatprep.subr.mxu0 0.0
    %7536 = vmatpush1.msra.mxu0 0.0
    %7537 = vmatprep.subr.mxu0 0.0
    %7538 = vmatpush1.msra.mxu0 0.0
    %7539 = vmatprep.subr.mxu0 0.0
    %7540 = vmatpush1.msra.mxu0 0.0
    %7541 = vmatprep.subr.mxu0 0.0
    %7542 = vmatpush1.msra.mxu0 0.0
    %7543 = vmatprep.subr.mxu0 0.0
    %7544 = vmatpush1.msra.mxu0 0.0
    %7545 = vmatprep.subr.mxu0 0.0
    %7546 = vmatpush1.msra.mxu0 0.0
    %7547 = vmatprep.subr.mxu0 0.0
    %7548 = vmatpush1.msra.mxu0 0.0
    %7549 = vmatprep.subr.mxu0 0.0
    %7550 = vmatpush1.msra.mxu0 0.0
    %7551 = vmatprep.subr.mxu0 0.0
    %7552 = vmatpush1.msra.mxu0 0.0
    %7553 = vmatprep.subr.mxu0 0.0
    %7554 = vmatpush1.msra.mxu0 %v42
    %7555 = vmatprep.subr.mxu0 0.0
    %7556 = vmatpush2.msra.mxu0 0.0
    %7557 = vmatprep.subr.mxu0 0.0
    %7558 = vmatpush2.msra.mxu0 0.0
    %7559 = vmatprep.subr.mxu0 0.0
    %7560 = vmatpush2.msra.mxu0 0.0
    %7561 = vmatprep.subr.mxu0 0.0
    %7562 = vmatpush2.msra.mxu0 0.0
    %7563 = vmatprep.subr.mxu0 0.0
    %7564 = vmatpush2.msra.mxu0 0.0
    %7565 = vmatprep.subr.mxu0 0.0
    %7566 = vmatpush2.msra.mxu0 0.0
    %7567 = vmatprep.subr.mxu0 0.0
    %7568 = vmatpush2.msra.mxu0 0.0
    %7569 = vmatprep.subr.mxu0 0.0
    %7570 = vmatpush2.msra.mxu0 0.0
    %7571 = vmatprep.subr.mxu0 0.0
    %7572 = vmatpush2.msra.mxu0 0.0
    %7573 = vmatprep.subr.mxu0 0.0
    %7574 = vmatpush2.msra.mxu0 0.0
    %7575 = vmatprep.subr.mxu0 0.0
    %7576 = vmatpush2.msra.mxu0 0.0
    %7577 = vmatprep.subr.mxu0 0.0
    %7578 = vmatpush2.msra.mxu0 0.0
    %7579 = vmatprep.subr.mxu0 0.0
    %7580 = vmatpush2.msra.mxu0 0.0
    %7581 = vmatprep.subr.mxu0 0.0
    %7582 = vmatpush2.msra.mxu0 0.0
    %7583 = vmatprep.subr.mxu0 0.0
    %7584 = vmatpush2.msra.mxu0 0.0
    %7585 = vmatprep.subr.mxu0 0.0
    %7586 = vmatpush2.msra.mxu0 0.0
    %7587 = vmatprep.mubr.f32.mxu0 0.0
    %7588 = vmatmul.mubr.f32.gmra.mxu0 %v7521
    %v7589 = vpop.f32.mrf.mxu0
    %v7590 = vadd.f32 %v333, %v7589
    %v7591 = vpop.f32.mrf.mxu0
    %7592 = vdwg.mxu0
    %v7593 = vtanh.pop %v7590
    %v7595 = vsel %vm435, %v7593, 0
    %7597 = vmatprep.subr.mxu0 0.0
    %7598 = vmatpush1.msra.mxu0 0.0
    %7599 = vmatprep.subr.mxu0 0.0
    %7600 = vmatpush1.msra.mxu0 0.0
    %7601 = vmatprep.subr.mxu0 0.0
    %7602 = vmatpush1.msra.mxu0 0.0
    %7603 = vmatprep.subr.mxu0 0.0
    %7604 = vmatpush1.msra.mxu0 0.0
    %7605 = vmatprep.subr.mxu0 0.0
    %7606 = vmatpush1.msra.mxu0 0.0
    %7607 = vmatprep.subr.mxu0 0.0
    %7608 = vmatpush1.msra.mxu0 0.0
    %7609 = vmatprep.subr.mxu0 0.0
    %7610 = vmatpush1.msra.mxu0 0.0
    %7611 = vmatprep.subr.mxu0 0.0
    %7612 = vmatpush1.msra.mxu0 0.0
    %7613 = vmatprep.subr.mxu0 0.0
    %7614 = vmatpush1.msra.mxu0 0.0
    %7615 = vmatprep.subr.mxu0 0.0
    %7616 = vmatpush1.msra.mxu0 0.0
    %7617 = vmatprep.subr.mxu0 0.0
    %7618 = vmatpush1.msra.mxu0 0.0
    %7619 = vmatprep.subr.mxu0 0.0
    %7620 = vmatpush1.msra.mxu0 0.0
    %7621 = vmatprep.subr.mxu0 0.0
    %7622 = vmatpush1.msra.mxu0 %v48
    %7623 = vmatprep.subr.mxu0 0.0
    %7624 = vmatpush1.msra.mxu0 %v47
    %7625 = vmatprep.subr.mxu0 0.0
    %7626 = vmatpush1.msra.mxu0 %v46
    %7627 = vmatprep.subr.mxu0 0.0
    %7628 = vmatpush1.msra.mxu0 %v45
    %7629 = vmatprep.subr.mxu0 0.0
    %7630 = vmatpush2.msra.mxu0 0.0
    %7631 = vmatprep.subr.mxu0 0.0
    %7632 = vmatpush2.msra.mxu0 0.0
    %7633 = vmatprep.subr.mxu0 0.0
    %7634 = vmatpush2.msra.mxu0 0.0
    %7635 = vmatprep.subr.mxu0 0.0
    %7636 = vmatpush2.msra.mxu0 0.0
    %7637 = vmatprep.subr.mxu0 0.0
    %7638 = vmatpush2.msra.mxu0 0.0
    %7639 = vmatprep.subr.mxu0 0.0
    %7640 = vmatpush2.msra.mxu0 0.0
    %7641 = vmatprep.subr.mxu0 0.0
    %7642 = vmatpush2.msra.mxu0 0.0
    %7643 = vmatprep.subr.mxu0 0.0
    %7644 = vmatpush2.msra.mxu0 0.0
    %7645 = vmatprep.subr.mxu0 0.0
    %7646 = vmatpush2.msra.mxu0 0.0
    %7647 = vmatprep.subr.mxu0 0.0
    %7648 = vmatpush2.msra.mxu0 0.0
    %7649 = vmatprep.subr.mxu0 0.0
    %7650 = vmatpush2.msra.mxu0 0.0
    %7651 = vmatprep.subr.mxu0 0.0
    %7652 = vmatpush2.msra.mxu0 0.0
    %7653 = vmatprep.subr.mxu0 0.0
    %7654 = vmatpush2.msra.mxu0 0.0
    %7655 = vmatprep.subr.mxu0 0.0
    %7656 = vmatpush2.msra.mxu0 0.0
    %7657 = vmatprep.subr.mxu0 0.0
    %7658 = vmatpush2.msra.mxu0 0.0
    %7659 = vmatprep.subr.mxu0 0.0
    %7660 = vmatpush2.msra.mxu0 0.0
    %7661 = vmatprep.mubr.f32.mxu0 0.0
    %7662 = vmatmul.mubr.f32.gmra.mxu0 %v7595
    %v7663 = vpop.f32.mrf.mxu0
    %v7664 = vadd.f32 %v433, %v7663
    %v7665 = vpop.f32.mrf.mxu0
    %7666 = vdwg.mxu0
    %v7667 = vstv %s7520
    %v7668 = vmul.f32 %v7667, %v7664
    %v7669 = vadd.f32 %v7506, %v7668
    %v7672 = vunpack.c.l.s4 1983009808
    %v7673 = vunpack.c.0.s8 %v7672
    %v7674 = vlaneseq
    %v7675 = vshrl.u32 %v7674, 7
    %v7676 = vsub.s32 %v7673, %v7675
    %v7677 = vrot.slane %v7669, %v7676
    %7678 = vrot.lane.b32.xlu0 %v7677, 96
    %v7679 = vpop.permute.xlu0 %7678
    %7681 = vst.msk [vmem:[#allocation5 + $0x4] sm:$0x3] %vm2481, %v7679
    %s7682 = sadd.s32 %s352, 45
    %s7683 = sld [smem:[#allocation4 + %s7682]]
    %v7684 = vsel %vm354, %v7669, 0
    %7686 = vmatprep.subr.mxu0 0.0
    %7687 = vmatpush1.msra.mxu0 0.0
    %7688 = vmatprep.subr.mxu0 0.0
    %7689 = vmatpush1.msra.mxu0 0.0
    %7690 = vmatprep.subr.mxu0 0.0
    %7691 = vmatpush1.msra.mxu0 0.0
    %7692 = vmatprep.subr.mxu0 0.0
    %7693 = vmatpush1.msra.mxu0 0.0
    %7694 = vmatprep.subr.mxu0 0.0
    %7695 = vmatpush1.msra.mxu0 0.0
    %7696 = vmatprep.subr.mxu0 0.0
    %7697 = vmatpush1.msra.mxu0 0.0
    %7698 = vmatprep.subr.mxu0 0.0
    %7699 = vmatpush1.msra.mxu0 0.0
    %7700 = vmatprep.subr.mxu0 0.0
    %7701 = vmatpush1.msra.mxu0 0.0
    %7702 = vmatprep.subr.mxu0 0.0
    %7703 = vmatpush1.msra.mxu0 0.0
    %7704 = vmatprep.subr.mxu0 0.0
    %7705 = vmatpush1.msra.mxu0 0.0
    %7706 = vmatprep.subr.mxu0 0.0
    %7707 = vmatpush1.msra.mxu0 0.0
    %7708 = vmatprep.subr.mxu0 0.0
    %7709 = vmatpush1.msra.mxu0 0.0
    %7710 = vmatprep.subr.mxu0 0.0
    %7711 = vmatpush1.msra.mxu0 0.0
    %7712 = vmatprep.subr.mxu0 0.0
    %7713 = vmatpush1.msra.mxu0 0.0
    %7714 = vmatprep.subr.mxu0 0.0
    %7715 = vmatpush1.msra.mxu0 0.0
    %7716 = vmatprep.subr.mxu0 0.0
    %7717 = vmatpush1.msra.mxu0 %v42
    %7718 = vmatprep.subr.mxu0 0.0
    %7719 = vmatpush2.msra.mxu0 0.0
    %7720 = vmatprep.subr.mxu0 0.0
    %7721 = vmatpush2.msra.mxu0 0.0
    %7722 = vmatprep.subr.mxu0 0.0
    %7723 = vmatpush2.msra.mxu0 0.0
    %7724 = vmatprep.subr.mxu0 0.0
    %7725 = vmatpush2.msra.mxu0 0.0
    %7726 = vmatprep.subr.mxu0 0.0
    %7727 = vmatpush2.msra.mxu0 0.0
    %7728 = vmatprep.subr.mxu0 0.0
    %7729 = vmatpush2.msra.mxu0 0.0
    %7730 = vmatprep.subr.mxu0 0.0
    %7731 = vmatpush2.msra.mxu0 0.0
    %7732 = vmatprep.subr.mxu0 0.0
    %7733 = vmatpush2.msra.mxu0 0.0
    %7734 = vmatprep.subr.mxu0 0.0
    %7735 = vmatpush2.msra.mxu0 0.0
    %7736 = vmatprep.subr.mxu0 0.0
    %7737 = vmatpush2.msra.mxu0 0.0
    %7738 = vmatprep.subr.mxu0 0.0
    %7739 = vmatpush2.msra.mxu0 0.0
    %7740 = vmatprep.subr.mxu0 0.0
    %7741 = vmatpush2.msra.mxu0 0.0
    %7742 = vmatprep.subr.mxu0 0.0
    %7743 = vmatpush2.msra.mxu0 0.0
    %7744 = vmatprep.subr.mxu0 0.0
    %7745 = vmatpush2.msra.mxu0 0.0
    %7746 = vmatprep.subr.mxu0 0.0
    %7747 = vmatpush2.msra.mxu0 0.0
    %7748 = vmatprep.subr.mxu0 0.0
    %7749 = vmatpush2.msra.mxu0 0.0
    %7750 = vmatprep.mubr.f32.mxu0 0.0
    %7751 = vmatmul.mubr.f32.gmra.mxu0 %v7684
    %v7752 = vpop.f32.mrf.mxu0
    %v7753 = vadd.f32 %v339, %v7752
    %v7754 = vpop.f32.mrf.mxu0
    %7755 = vdwg.mxu0
    %v7756 = vtanh.pop %v7753
    %v7758 = vsel %vm435, %v7756, 0
    %7760 = vmatprep.subr.mxu0 0.0
    %7761 = vmatpush1.msra.mxu0 0.0
    %7762 = vmatprep.subr.mxu0 0.0
    %7763 = vmatpush1.msra.mxu0 0.0
    %7764 = vmatprep.subr.mxu0 0.0
    %7765 = vmatpush1.msra.mxu0 0.0
    %7766 = vmatprep.subr.mxu0 0.0
    %7767 = vmatpush1.msra.mxu0 0.0
    %7768 = vmatprep.subr.mxu0 0.0
    %7769 = vmatpush1.msra.mxu0 0.0
    %7770 = vmatprep.subr.mxu0 0.0
    %7771 = vmatpush1.msra.mxu0 0.0
    %7772 = vmatprep.subr.mxu0 0.0
    %7773 = vmatpush1.msra.mxu0 0.0
    %7774 = vmatprep.subr.mxu0 0.0
    %7775 = vmatpush1.msra.mxu0 0.0
    %7776 = vmatprep.subr.mxu0 0.0
    %7777 = vmatpush1.msra.mxu0 0.0
    %7778 = vmatprep.subr.mxu0 0.0
    %7779 = vmatpush1.msra.mxu0 0.0
    %7780 = vmatprep.subr.mxu0 0.0
    %7781 = vmatpush1.msra.mxu0 0.0
    %7782 = vmatprep.subr.mxu0 0.0
    %7783 = vmatpush1.msra.mxu0 0.0
    %7784 = vmatprep.subr.mxu0 0.0
    %7785 = vmatpush1.msra.mxu0 %v48
    %7786 = vmatprep.subr.mxu0 0.0
    %7787 = vmatpush1.msra.mxu0 %v47
    %7788 = vmatprep.subr.mxu0 0.0
    %7789 = vmatpush1.msra.mxu0 %v46
    %7790 = vmatprep.subr.mxu0 0.0
    %7791 = vmatpush1.msra.mxu0 %v45
    %7792 = vmatprep.subr.mxu0 0.0
    %7793 = vmatpush2.msra.mxu0 0.0
    %7794 = vmatprep.subr.mxu0 0.0
    %7795 = vmatpush2.msra.mxu0 0.0
    %7796 = vmatprep.subr.mxu0 0.0
    %7797 = vmatpush2.msra.mxu0 0.0
    %7798 = vmatprep.subr.mxu0 0.0
    %7799 = vmatpush2.msra.mxu0 0.0
    %7800 = vmatprep.subr.mxu0 0.0
    %7801 = vmatpush2.msra.mxu0 0.0
    %7802 = vmatprep.subr.mxu0 0.0
    %7803 = vmatpush2.msra.mxu0 0.0
    %7804 = vmatprep.subr.mxu0 0.0
    %7805 = vmatpush2.msra.mxu0 0.0
    %7806 = vmatprep.subr.mxu0 0.0
    %7807 = vmatpush2.msra.mxu0 0.0
    %7808 = vmatprep.subr.mxu0 0.0
    %7809 = vmatpush2.msra.mxu0 0.0
    %7810 = vmatprep.subr.mxu0 0.0
    %7811 = vmatpush2.msra.mxu0 0.0
    %7812 = vmatprep.subr.mxu0 0.0
    %7813 = vmatpush2.msra.mxu0 0.0
    %7814 = vmatprep.subr.mxu0 0.0
    %7815 = vmatpush2.msra.mxu0 0.0
    %7816 = vmatprep.subr.mxu0 0.0
    %7817 = vmatpush2.msra.mxu0 0.0
    %7818 = vmatprep.subr.mxu0 0.0
    %7819 = vmatpush2.msra.mxu0 0.0
    %7820 = vmatprep.subr.mxu0 0.0
    %7821 = vmatpush2.msra.mxu0 0.0
    %7822 = vmatprep.subr.mxu0 0.0
    %7823 = vmatpush2.msra.mxu0 0.0
    %7824 = vmatprep.mubr.f32.mxu0 0.0
    %7825 = vmatmul.mubr.f32.gmra.mxu0 %v7758
    %v7826 = vpop.f32.mrf.mxu0
    %v7827 = vadd.f32 %v433, %v7826
    %v7828 = vpop.f32.mrf.mxu0
    %7829 = vdwg.mxu0
    %v7830 = vstv %s7683
    %v7831 = vmul.f32 %v7830, %v7827
    %v7832 = vadd.f32 %v7669, %v7831
    %v7835 = vunpack.c.l.s4 1983009808
    %v7836 = vunpack.c.0.s8 %v7835
    %v7837 = vlaneseq
    %v7838 = vshrl.u32 %v7837, 7
    %v7839 = vsub.s32 %v7836, %v7838
    %v7840 = vrot.slane %v7832, %v7839
    %7841 = vrot.lane.b32.xlu0 %v7840, 104
    %v7842 = vpop.permute.xlu0 %7841
    %7844 = vst.msk [vmem:[#allocation5 + $0x4] sm:$0x3] %vm2645, %v7842
    %s7845 = sadd.s32 %s352, 46
    %s7846 = sld [smem:[#allocation4 + %s7845]]
    %v7847 = vsel %vm354, %v7832, 0
    %7849 = vmatprep.subr.mxu0 0.0
    %7850 = vmatpush1.msra.mxu0 0.0
    %7851 = vmatprep.subr.mxu0 0.0
    %7852 = vmatpush1.msra.mxu0 0.0
    %7853 = vmatprep.subr.mxu0 0.0
    %7854 = vmatpush1.msra.mxu0 0.0
    %7855 = vmatprep.subr.mxu0 0.0
    %7856 = vmatpush1.msra.mxu0 0.0
    %7857 = vmatprep.subr.mxu0 0.0
    %7858 = vmatpush1.msra.mxu0 0.0
    %7859 = vmatprep.subr.mxu0 0.0
    %7860 = vmatpush1.msra.mxu0 0.0
    %7861 = vmatprep.subr.mxu0 0.0
    %7862 = vmatpush1.msra.mxu0 0.0
    %7863 = vmatprep.subr.mxu0 0.0
    %7864 = vmatpush1.msra.mxu0 0.0
    %7865 = vmatprep.subr.mxu0 0.0
    %7866 = vmatpush1.msra.mxu0 0.0
    %7867 = vmatprep.subr.mxu0 0.0
    %7868 = vmatpush1.msra.mxu0 0.0
    %7869 = vmatprep.subr.mxu0 0.0
    %7870 = vmatpush1.msra.mxu0 0.0
    %7871 = vmatprep.subr.mxu0 0.0
    %7872 = vmatpush1.msra.mxu0 0.0
    %7873 = vmatprep.subr.mxu0 0.0
    %7874 = vmatpush1.msra.mxu0 0.0
    %7875 = vmatprep.subr.mxu0 0.0
    %7876 = vmatpush1.msra.mxu0 0.0
    %7877 = vmatprep.subr.mxu0 0.0
    %7878 = vmatpush1.msra.mxu0 0.0
    %7879 = vmatprep.subr.mxu0 0.0
    %7880 = vmatpush1.msra.mxu0 %v42
    %7881 = vmatprep.subr.mxu0 0.0
    %7882 = vmatpush2.msra.mxu0 0.0
    %7883 = vmatprep.subr.mxu0 0.0
    %7884 = vmatpush2.msra.mxu0 0.0
    %7885 = vmatprep.subr.mxu0 0.0
    %7886 = vmatpush2.msra.mxu0 0.0
    %7887 = vmatprep.subr.mxu0 0.0
    %7888 = vmatpush2.msra.mxu0 0.0
    %7889 = vmatprep.subr.mxu0 0.0
    %7890 = vmatpush2.msra.mxu0 0.0
    %7891 = vmatprep.subr.mxu0 0.0
    %7892 = vmatpush2.msra.mxu0 0.0
    %7893 = vmatprep.subr.mxu0 0.0
    %7894 = vmatpush2.msra.mxu0 0.0
    %7895 = vmatprep.subr.mxu0 0.0
    %7896 = vmatpush2.msra.mxu0 0.0
    %7897 = vmatprep.subr.mxu0 0.0
    %7898 = vmatpush2.msra.mxu0 0.0
    %7899 = vmatprep.subr.mxu0 0.0
    %7900 = vmatpush2.msra.mxu0 0.0
    %7901 = vmatprep.subr.mxu0 0.0
    %7902 = vmatpush2.msra.mxu0 0.0
    %7903 = vmatprep.subr.mxu0 0.0
    %7904 = vmatpush2.msra.mxu0 0.0
    %7905 = vmatprep.subr.mxu0 0.0
    %7906 = vmatpush2.msra.mxu0 0.0
    %7907 = vmatprep.subr.mxu0 0.0
    %7908 = vmatpush2.msra.mxu0 0.0
    %7909 = vmatprep.subr.mxu0 0.0
    %7910 = vmatpush2.msra.mxu0 0.0
    %7911 = vmatprep.subr.mxu0 0.0
    %7912 = vmatpush2.msra.mxu0 0.0
    %7913 = vmatprep.mubr.f32.mxu0 0.0
    %7914 = vmatmul.mubr.f32.gmra.mxu0 %v7847
    %v7915 = vpop.f32.mrf.mxu0
    %v7916 = vadd.f32 %v345, %v7915
    %v7917 = vpop.f32.mrf.mxu0
    %7918 = vdwg.mxu0
    %v7919 = vtanh.pop %v7916
    %v7921 = vsel %vm435, %v7919, 0
    %7923 = vmatprep.subr.mxu0 0.0
    %7924 = vmatpush1.msra.mxu0 0.0
    %7925 = vmatprep.subr.mxu0 0.0
    %7926 = vmatpush1.msra.mxu0 0.0
    %7927 = vmatprep.subr.mxu0 0.0
    %7928 = vmatpush1.msra.mxu0 0.0
    %7929 = vmatprep.subr.mxu0 0.0
    %7930 = vmatpush1.msra.mxu0 0.0
    %7931 = vmatprep.subr.mxu0 0.0
    %7932 = vmatpush1.msra.mxu0 0.0
    %7933 = vmatprep.subr.mxu0 0.0
    %7934 = vmatpush1.msra.mxu0 0.0
    %7935 = vmatprep.subr.mxu0 0.0
    %7936 = vmatpush1.msra.mxu0 0.0
    %7937 = vmatprep.subr.mxu0 0.0
    %7938 = vmatpush1.msra.mxu0 0.0
    %7939 = vmatprep.subr.mxu0 0.0
    %7940 = vmatpush1.msra.mxu0 0.0
    %7941 = vmatprep.subr.mxu0 0.0
    %7942 = vmatpush1.msra.mxu0 0.0
    %7943 = vmatprep.subr.mxu0 0.0
    %7944 = vmatpush1.msra.mxu0 0.0
    %7945 = vmatprep.subr.mxu0 0.0
    %7946 = vmatpush1.msra.mxu0 0.0
    %7947 = vmatprep.subr.mxu0 0.0
    %7948 = vmatpush1.msra.mxu0 %v48
    %7949 = vmatprep.subr.mxu0 0.0
    %7950 = vmatpush1.msra.mxu0 %v47
    %7951 = vmatprep.subr.mxu0 0.0
    %7952 = vmatpush1.msra.mxu0 %v46
    %7953 = vmatprep.subr.mxu0 0.0
    %7954 = vmatpush1.msra.mxu0 %v45
    %7955 = vmatprep.subr.mxu0 0.0
    %7956 = vmatpush2.msra.mxu0 0.0
    %7957 = vmatprep.subr.mxu0 0.0
    %7958 = vmatpush2.msra.mxu0 0.0
    %7959 = vmatprep.subr.mxu0 0.0
    %7960 = vmatpush2.msra.mxu0 0.0
    %7961 = vmatprep.subr.mxu0 0.0
    %7962 = vmatpush2.msra.mxu0 0.0
    %7963 = vmatprep.subr.mxu0 0.0
    %7964 = vmatpush2.msra.mxu0 0.0
    %7965 = vmatprep.subr.mxu0 0.0
    %7966 = vmatpush2.msra.mxu0 0.0
    %7967 = vmatprep.subr.mxu0 0.0
    %7968 = vmatpush2.msra.mxu0 0.0
    %7969 = vmatprep.subr.mxu0 0.0
    %7970 = vmatpush2.msra.mxu0 0.0
    %7971 = vmatprep.subr.mxu0 0.0
    %7972 = vmatpush2.msra.mxu0 0.0
    %7973 = vmatprep.subr.mxu0 0.0
    %7974 = vmatpush2.msra.mxu0 0.0
    %7975 = vmatprep.subr.mxu0 0.0
    %7976 = vmatpush2.msra.mxu0 0.0
    %7977 = vmatprep.subr.mxu0 0.0
    %7978 = vmatpush2.msra.mxu0 0.0
    %7979 = vmatprep.subr.mxu0 0.0
    %7980 = vmatpush2.msra.mxu0 0.0
    %7981 = vmatprep.subr.mxu0 0.0
    %7982 = vmatpush2.msra.mxu0 0.0
    %7983 = vmatprep.subr.mxu0 0.0
    %7984 = vmatpush2.msra.mxu0 0.0
    %7985 = vmatprep.subr.mxu0 0.0
    %7986 = vmatpush2.msra.mxu0 0.0
    %7987 = vmatprep.mubr.f32.mxu0 0.0
    %7988 = vmatmul.mubr.f32.gmra.mxu0 %v7921
    %v7989 = vpop.f32.mrf.mxu0
    %v7990 = vadd.f32 %v433, %v7989
    %v7991 = vpop.f32.mrf.mxu0
    %7992 = vdwg.mxu0
    %v7993 = vstv %s7846
    %v7994 = vmul.f32 %v7993, %v7990
    %v7995 = vadd.f32 %v7832, %v7994
    %v7998 = vunpack.c.l.s4 1983009808
    %v7999 = vunpack.c.0.s8 %v7998
    %v8000 = vlaneseq
    %v8001 = vshrl.u32 %v8000, 7
    %v8002 = vsub.s32 %v7999, %v8001
    %v8003 = vrot.slane %v7995, %v8002
    %8004 = vrot.lane.b32.xlu0 %v8003, 112
    %v8005 = vpop.permute.xlu0 %8004
    %8007 = vst.msk [vmem:[#allocation5 + $0x4] sm:$0x3] %vm2809, %v8005
    %s8008 = sadd.s32 %s352, 47
    %s8009 = sld [smem:[#allocation4 + %s8008]]
    %v8010 = vsel %vm354, %v7995, 0
    %8012 = vmatprep.subr.mxu0 0.0
    %8013 = vmatpush1.msra.mxu0 0.0
    %8014 = vmatprep.subr.mxu0 0.0
    %8015 = vmatpush1.msra.mxu0 0.0
    %8016 = vmatprep.subr.mxu0 0.0
    %8017 = vmatpush1.msra.mxu0 0.0
    %8018 = vmatprep.subr.mxu0 0.0
    %8019 = vmatpush1.msra.mxu0 0.0
    %8020 = vmatprep.subr.mxu0 0.0
    %8021 = vmatpush1.msra.mxu0 0.0
    %8022 = vmatprep.subr.mxu0 0.0
    %8023 = vmatpush1.msra.mxu0 0.0
    %8024 = vmatprep.subr.mxu0 0.0
    %8025 = vmatpush1.msra.mxu0 0.0
    %8026 = vmatprep.subr.mxu0 0.0
    %8027 = vmatpush1.msra.mxu0 0.0
    %8028 = vmatprep.subr.mxu0 0.0
    %8029 = vmatpush1.msra.mxu0 0.0
    %8030 = vmatprep.subr.mxu0 0.0
    %8031 = vmatpush1.msra.mxu0 0.0
    %8032 = vmatprep.subr.mxu0 0.0
    %8033 = vmatpush1.msra.mxu0 0.0
    %8034 = vmatprep.subr.mxu0 0.0
    %8035 = vmatpush1.msra.mxu0 0.0
    %8036 = vmatprep.subr.mxu0 0.0
    %8037 = vmatpush1.msra.mxu0 0.0
    %8038 = vmatprep.subr.mxu0 0.0
    %8039 = vmatpush1.msra.mxu0 0.0
    %8040 = vmatprep.subr.mxu0 0.0
    %8041 = vmatpush1.msra.mxu0 0.0
    %8042 = vmatprep.subr.mxu0 0.0
    %8043 = vmatpush1.msra.mxu0 %v42
    %8044 = vmatprep.subr.mxu0 0.0
    %8045 = vmatpush2.msra.mxu0 0.0
    %8046 = vmatprep.subr.mxu0 0.0
    %8047 = vmatpush2.msra.mxu0 0.0
    %8048 = vmatprep.subr.mxu0 0.0
    %8049 = vmatpush2.msra.mxu0 0.0
    %8050 = vmatprep.subr.mxu0 0.0
    %8051 = vmatpush2.msra.mxu0 0.0
    %8052 = vmatprep.subr.mxu0 0.0
    %8053 = vmatpush2.msra.mxu0 0.0
    %8054 = vmatprep.subr.mxu0 0.0
    %8055 = vmatpush2.msra.mxu0 0.0
    %8056 = vmatprep.subr.mxu0 0.0
    %8057 = vmatpush2.msra.mxu0 0.0
    %8058 = vmatprep.subr.mxu0 0.0
    %8059 = vmatpush2.msra.mxu0 0.0
    %8060 = vmatprep.subr.mxu0 0.0
    %8061 = vmatpush2.msra.mxu0 0.0
    %8062 = vmatprep.subr.mxu0 0.0
    %8063 = vmatpush2.msra.mxu0 0.0
    %8064 = vmatprep.subr.mxu0 0.0
    %8065 = vmatpush2.msra.mxu0 0.0
    %8066 = vmatprep.subr.mxu0 0.0
    %8067 = vmatpush2.msra.mxu0 0.0
    %8068 = vmatprep.subr.mxu0 0.0
    %8069 = vmatpush2.msra.mxu0 0.0
    %8070 = vmatprep.subr.mxu0 0.0
    %8071 = vmatpush2.msra.mxu0 0.0
    %8072 = vmatprep.subr.mxu0 0.0
    %8073 = vmatpush2.msra.mxu0 0.0
    %8074 = vmatprep.subr.mxu0 0.0
    %8075 = vmatpush2.msra.mxu0 0.0
    %8076 = vmatprep.mubr.f32.mxu0 0.0
    %8077 = vmatmul.mubr.f32.gmra.mxu0 %v8010
    %v8078 = vpop.f32.mrf.mxu0
    %v8079 = vadd.f32 %v351, %v8078
    %v8080 = vpop.f32.mrf.mxu0
    %8081 = vdwg.mxu0
    %v8082 = vtanh.pop %v8079
    %v8084 = vsel %vm435, %v8082, 0
    %8086 = vmatprep.subr.mxu0 0.0
    %8087 = vmatpush1.msra.mxu0 0.0
    %8088 = vmatprep.subr.mxu0 0.0
    %8089 = vmatpush1.msra.mxu0 0.0
    %8090 = vmatprep.subr.mxu0 0.0
    %8091 = vmatpush1.msra.mxu0 0.0
    %8092 = vmatprep.subr.mxu0 0.0
    %8093 = vmatpush1.msra.mxu0 0.0
    %8094 = vmatprep.subr.mxu0 0.0
    %8095 = vmatpush1.msra.mxu0 0.0
    %8096 = vmatprep.subr.mxu0 0.0
    %8097 = vmatpush1.msra.mxu0 0.0
    %8098 = vmatprep.subr.mxu0 0.0
    %8099 = vmatpush1.msra.mxu0 0.0
    %8100 = vmatprep.subr.mxu0 0.0
    %8101 = vmatpush1.msra.mxu0 0.0
    %8102 = vmatprep.subr.mxu0 0.0
    %8103 = vmatpush1.msra.mxu0 0.0
    %8104 = vmatprep.subr.mxu0 0.0
    %8105 = vmatpush1.msra.mxu0 0.0
    %8106 = vmatprep.subr.mxu0 0.0
    %8107 = vmatpush1.msra.mxu0 0.0
    %8108 = vmatprep.subr.mxu0 0.0
    %8109 = vmatpush1.msra.mxu0 0.0
    %8110 = vmatprep.subr.mxu0 0.0
    %8111 = vmatpush1.msra.mxu0 %v48
    %8112 = vmatprep.subr.mxu0 0.0
    %8113 = vmatpush1.msra.mxu0 %v47
    %8114 = vmatprep.subr.mxu0 0.0
    %8115 = vmatpush1.msra.mxu0 %v46
    %8116 = vmatprep.subr.mxu0 0.0
    %8117 = vmatpush1.msra.mxu0 %v45
    %8118 = vmatprep.subr.mxu0 0.0
    %8119 = vmatpush2.msra.mxu0 0.0
    %8120 = vmatprep.subr.mxu0 0.0
    %8121 = vmatpush2.msra.mxu0 0.0
    %8122 = vmatprep.subr.mxu0 0.0
    %8123 = vmatpush2.msra.mxu0 0.0
    %8124 = vmatprep.subr.mxu0 0.0
    %8125 = vmatpush2.msra.mxu0 0.0
    %8126 = vmatprep.subr.mxu0 0.0
    %8127 = vmatpush2.msra.mxu0 0.0
    %8128 = vmatprep.subr.mxu0 0.0
    %8129 = vmatpush2.msra.mxu0 0.0
    %8130 = vmatprep.subr.mxu0 0.0
    %8131 = vmatpush2.msra.mxu0 0.0
    %8132 = vmatprep.subr.mxu0 0.0
    %8133 = vmatpush2.msra.mxu0 0.0
    %8134 = vmatprep.subr.mxu0 0.0
    %8135 = vmatpush2.msra.mxu0 0.0
    %8136 = vmatprep.subr.mxu0 0.0
    %8137 = vmatpush2.msra.mxu0 0.0
    %8138 = vmatprep.subr.mxu0 0.0
    %8139 = vmatpush2.msra.mxu0 0.0
    %8140 = vmatprep.subr.mxu0 0.0
    %8141 = vmatpush2.msra.mxu0 0.0
    %8142 = vmatprep.subr.mxu0 0.0
    %8143 = vmatpush2.msra.mxu0 0.0
    %8144 = vmatprep.subr.mxu0 0.0
    %8145 = vmatpush2.msra.mxu0 0.0
    %8146 = vmatprep.subr.mxu0 0.0
    %8147 = vmatpush2.msra.mxu0 0.0
    %8148 = vmatprep.subr.mxu0 0.0
    %8149 = vmatpush2.msra.mxu0 0.0
    %8150 = vmatprep.mubr.f32.mxu0 0.0
    %8151 = vmatmul.mubr.f32.gmra.mxu0 %v8084
    %v8152 = vpop.f32.mrf.mxu0
    %v8153 = vadd.f32 %v433, %v8152
    %v8154 = vpop.f32.mrf.mxu0
    %8155 = vdwg.mxu0
    %v8156 = vstv %s8009
    %v8157 = vmul.f32 %v8156, %v8153
    %v8158 = vadd.f32 %v7995, %v8157
    %v8161 = vunpack.c.l.s4 1983009808
    %v8162 = vunpack.c.0.s8 %v8161
    %v8163 = vlaneseq
    %v8164 = vshrl.u32 %v8163, 7
    %v8165 = vsub.s32 %v8162, %v8164
    %v8166 = vrot.slane %v8158, %v8165
    %8167 = vrot.lane.b32.xlu0 %v8166, 120
    %v8168 = vpop.permute.xlu0 %8167
    %8170 = vst.msk [vmem:[#allocation5 + $0x4] sm:$0x3] %vm2973, %v8168
    %8171 = vst.msk [vmem:[#allocation2] sm:$0x3] %vm512, %v8158
    // Predicated region
    $region34: #{tpu_custom_call.1} parent=1 // pred_check
      _
    $region35: #{tpu_custom_call.1} parent=1 // pred_check_branch
      %8173 = sbr.rel (0) target = $region37
    $region36: #{tpu_custom_call.1} parent=1 // pred_region
      %s8175 = ssub.s32 96, 96
      %8176 = vsyncadd [#allocation6], %s8175
      %s8178 = sshll.u32 [#allocation5], 4
      %s8179 = int_to_ptr.vmem [resolvable:$true] %s8178
      %8181 = dma.vmem_to_hbm [thread:$0]  %s8179, 96, %s8, [#allocation6]
    $region37: #{tpu_custom_call.1} parent=1 // pred_fallthru
      _
    // Predicated region
    $region38: #{tpu_custom_call.1} parent=1 // pred_check
      _
    $region39: #{tpu_custom_call.1} parent=1 // pred_check_branch
      %8183 = sbr.rel (0) target = $region41
    $region40: #{tpu_custom_call.1} parent=1 // pred_region
      %8184 = dma.done [#allocation6], 96
    $region41: #{tpu_custom_call.1} parent=1 // pred_fallthru
      _
    %8185 = vsyncpa [#allocation6], 1

</llo_original>
